<compile_context>
chip_gen: v6e
topology: v6e:2x2x1
jax: 0.10.0
libtpu: 0.0.40
codegen_flags: <defaults>
</compile_context>

<pallas_src>
import functools
import math

import jax
import jax.numpy as jnp
from jax import lax
from jax.experimental import pallas as pl
from jax.experimental.pallas import tpu as pltpu

TM_CAP = 512                          # row-tile cap for conv matmuls (v7x 64 MiB safe)
TR_CAP = 1024                         # row-tile cap for the residual epilogue
VMEM_LIMIT_BYTES = 32 * 1024 * 1024   # > v5e 16 MiB default, < v7x 64 MiB physical
BN_EPS = 1e-5                         # nn.BatchNorm3d default


def _round_up(x, m):
    return ((x + m - 1) // m) * m


def _pick_row_tile(m, cap):
    """Row tile (multiple of 8, <= cap) and padded row count; prefers divisors of m."""
    cap = max(8, (cap // 8) * 8)
    mp = _round_up(m, 8)
    if mp <= cap:
        return mp, mp
    best = None
    for cand in range(cap, 7, -8):
        if mp % cand == 0:
            best = cand
            break
    if best is not None and best >= min(cap, 128):
        return best, mp
    return cap, _round_up(m, cap)


def _pick_tn(n):
    """Output-channel tile: split only when it divides cleanly (megacore on v7x)."""
    for cand in (512, 384, 256, 128):
        if n > cand and n % cand == 0:
            return cand
    return n


# ---------------------------------------------------------------------------
# Pallas kernels
# ---------------------------------------------------------------------------

def _mm_stats_kernel(x_ref, w_ref, o_ref, sum_ref, sq_ref):
    """o = x @ w (bf16 MXU, f32 acc); per-tile partial column sum / sum-of-squares."""
    y = jnp.dot(x_ref[...], w_ref[...], preferred_element_type=jnp.float32)
    o_ref[...] = y.astype(o_ref.dtype)
    sum_ref[...] = jnp.sum(y, axis=0, keepdims=True)
    sq_ref[...] = jnp.sum(y * y, axis=0, keepdims=True)


def _mm_bn_stats_kernel(x_ref, w_ref, s_ref, b_ref, o_ref, sum_ref, sq_ref):
    """o = relu(x*scale + shift) @ w  (previous BN+ReLU fused as prologue); plus stats."""
    xv = x_ref[...].astype(jnp.float32) * s_ref[...] + b_ref[...]
    xv = jnp.maximum(xv, 0.0)
    y = jnp.dot(xv.astype(jnp.bfloat16), w_ref[...], preferred_element_type=jnp.float32)
    o_ref[...] = y.astype(o_ref.dtype)
    sum_ref[...] = jnp.sum(y, axis=0, keepdims=True)
    sq_ref[...] = jnp.sum(y * y, axis=0, keepdims=True)


def matmul_stats(x, w, in_scale=None, in_shift=None, fill_cols=None):
    """y = [relu(x*scale+shift)] @ w on the MXU (bf16 in/out, f32 accumulation).

    Also returns training-mode BatchNorm statistics (per-column mean, biased variance)
    of y, emitted as per-row-tile partials inside the same kernel (no second HBM pass).
    Tile-padding rows use `fill_cols` (neutral under the fused BN+ReLU) so no masking
    is needed inside the kernel.
    """
    m, kdim = x.shape
    n = w.shape[1]
    tn = _pick_tn(n)
    nt = n // tn
    tm, mp = _pick_row_tile(m, TM_CAP)
    mt = mp // tm

    if mp != m:
        extra = mp - m
        if fill_cols is None:
            pad_rows = jnp.zeros((extra, kdim), x.dtype)
        else:
            pad_rows = jnp.broadcast_to(fill_cols.astype(x.dtype), (extra, kdim))
        x = jnp.concatenate([x, pad_rows], axis=0)

    if in_scale is None:
        kern = _mm_stats_kernel
        in_specs = [
            pl.BlockSpec((tm, kdim), lambda j, i: (j, 0)),
            pl.BlockSpec((kdim, tn), lambda j, i: (0, i)),
        ]
        args = (x, w)
    else:
        kern = _mm_bn_stats_kernel
        in_specs = [
            pl.BlockSpec((tm, kdim), lambda j, i: (j, 0)),
            pl.BlockSpec((kdim, tn), lambda j, i: (0, i)),
            pl.BlockSpec((1, kdim), lambda j, i: (0, 0)),
            pl.BlockSpec((1, kdim), lambda j, i: (0, 0)),
        ]
        args = (x, w, in_scale, in_shift)

    y, s, sq = pl.pallas_call(
        kern,
        out_shape=(
            jax.ShapeDtypeStruct((mp, n), jnp.bfloat16),
            jax.ShapeDtypeStruct((mt, 1, n), jnp.float32),
            jax.ShapeDtypeStruct((mt, 1, n), jnp.float32),
        ),
        grid=(mt, nt),
        in_specs=in_specs,
        out_specs=(
            pl.BlockSpec((tm, tn), lambda j, i: (j, i)),
            pl.BlockSpec((None, 1, tn), lambda j, i: (j, 0, i)),
            pl.BlockSpec((None, 1, tn), lambda j, i: (j, 0, i)),
        ),
        compiler_params=pltpu.CompilerParams(
            dimension_semantics=("parallel", "parallel"),
            vmem_limit_bytes=VMEM_LIMIT_BYTES),
        cost_estimate=pl.CostEstimate(
            flops=2 * mp * kdim * n,
            transcendentals=0,
            bytes_accessed=2 * (mp * kdim + kdim * n + mp * n)),
    )(*args)

    ssum = jnp.sum(s, axis=(0, 1))                       # (n,) f32 partial combine
    ssq = jnp.sum(sq, axis=(0, 1))
    mean = (ssum / m)[None, :]
    var = jnp.maximum(ssq / m - jnp.square(mean[0]), 0.0)[None, :]
    return y[:m], mean, var


def _tconv_kernel(x_ref, w_ref, s_ref, b_ref, o_ref, sum_ref, sq_ref, acc_ref, *, k):
    """Implicit-GEMM temporal conv step: acc += relu(x*scale+shift) @ w[kt]."""
    kt = pl.program_id(2)

    @pl.when(kt == 0)
    def _():
        acc_ref[...] = jnp.zeros_like(acc_ref)

    xv = x_ref[...].astype(jnp.float32) * s_ref[...] + b_ref[...]
    xv = jnp.maximum(xv, 0.0)
    acc_ref[...] += jnp.dot(xv.astype(jnp.bfloat16), w_ref[...],
                            preferred_element_type=jnp.float32)

    @pl.when(kt == k - 1)
    def _():
        y = acc_ref[...]
        o_ref[...] = y.astype(o_ref.dtype)
        sum_ref[...] = jnp.sum(y, axis=0, keepdims=True)
        sq_ref[...] = jnp.sum(y * y, axis=0, keepdims=True)


def temporal_conv_stats(y4, wt, scale, shift, k, stride, pad, fill):
    """Temporal (k,1,1) conv as implicit GEMM; spatial-conv BN+ReLU fused as prologue.

    y4: (N, T, H*W, C) raw (pre-BN) spatial-conv output, bf16.  wt: (k, C, Cout) bf16.
    Returns z (N, To, H*W, Cout) bf16 plus training-mode batch stats of z.
    """
    nb, tt, hw, c = y4.shape
    cout = wt.shape[-1]
    if pad:
        border = jnp.broadcast_to(fill.astype(y4.dtype).reshape(1, 1, 1, c),
                                  (nb, pad, hw, c))
        y4 = jnp.concatenate([border, y4, border], axis=1)
    to = (tt + 2 * pad - k) // stride + 1

    z, s, sq = pl.pallas_call(
        functools.partial(_tconv_kernel, k=k),
        out_shape=(
            jax.ShapeDtypeStruct((nb, to, hw, cout), jnp.bfloat16),
            jax.ShapeDtypeStruct((nb * to, 1, cout), jnp.float32),
            jax.ShapeDtypeStruct((nb * to, 1, cout), jnp.float32),
        ),
        grid=(nb, to, k),
        in_specs=[
            pl.BlockSpec((None, None, hw, c),
                         lambda b, t, kt: (b, stride * t + kt, 0, 0)),
            pl.BlockSpec((None, c, cout), lambda b, t, kt: (kt, 0, 0)),
            pl.BlockSpec((1, c), lambda b, t, kt: (0, 0)),
            pl.BlockSpec((1, c), lambda b, t, kt: (0, 0)),
        ],
        out_specs=(
            pl.BlockSpec((None, None, hw, cout), lambda b, t, kt: (b, t, 0, 0)),
            pl.BlockSpec((None, 1, cout), lambda b, t, kt: (b * to + t, 0, 0)),
            pl.BlockSpec((None, 1, cout), lambda b, t, kt: (b * to + t, 0, 0)),
        ),
        scratch_shapes=[pltpu.VMEM((hw, cout), jnp.float32)],
        compiler_params=pltpu.CompilerParams(
            dimension_semantics=("parallel", "parallel", "arbitrary"),
            vmem_limit_bytes=VMEM_LIMIT_BYTES),
        cost_estimate=pl.CostEstimate(
            flops=2 * nb * to * k * hw * c * cout,
            transcendentals=0,
            bytes_accessed=2 * (y4.size + wt.size + nb * to * hw * cout)),
    )(y4, wt, scale, shift)

    total = nb * to * hw
    ssum = jnp.sum(s, axis=(0, 1))
    ssq = jnp.sum(sq, axis=(0, 1))
    mean = (ssum / total)[None, :]
    var = jnp.maximum(ssq / total - jnp.square(mean[0]), 0.0)[None, :]
    return z, mean, var


def _res_epilogue_kernel(r_ref, x_ref, s2_ref, b2_ref, o_ref):
    o_ref[...] = jnp.maximum(
        r_ref[...].astype(jnp.float32) * s2_ref[...] + b2_ref[...]
        + x_ref[...].astype(jnp.float32), 0.0).astype(o_ref.dtype)


def _res_epilogue_affine_kernel(r_ref, x_ref, s2_ref, b2_ref, sd_ref, bd_ref, o_ref):
    o_ref[...] = jnp.maximum(
        r_ref[...].astype(jnp.float32) * s2_ref[...] + b2_ref[...]
        + x_ref[...].astype(jnp.float32) * sd_ref[...] + bd_ref[...], 0.0
    ).astype(o_ref.dtype)


def block_epilogue(r2, scale2, shift2, res, res_scale=None, res_shift=None):
    """relu(BN2(r2) + [BN_d(res) | res]) on matching 5D channels-last tensors.

    Trailing dims are folded into the lane axis until it is a multiple of 128 (full-lane
    unmasked stores); per-channel scale/shift are tiled to match; the row tile is chosen
    to divide the row count (no pad copies) and bounded to ~2 MiB per operand.
    """
    shape5 = r2.shape
    c = shape5[-1]
    lane = c
    lead = list(shape5[:-1])
    while lead and (lane < 128 or lane % 128) and lane < 4096:
        lane *= lead.pop()
    rows = math.prod(lead)
    reps = lane // c

    r2f = r2.reshape(rows, lane)
    resf = res.reshape(rows, lane)
    s2 = jnp.tile(scale2, (1, reps))
    b2 = jnp.tile(shift2, (1, reps))

    cap = max(8, min(TR_CAP, (2 * 1024 * 1024) // (lane * 2)))
    tr, rp = _pick_row_tile(rows, cap)
    if rp != rows:
        padcfg = ((0, rp - rows), (0, 0))
        r2f = jnp.pad(r2f, padcfg)
        resf = jnp.pad(resf, padcfg)

    if res_scale is None:
        kern = _res_epilogue_kernel
        vec = (s2, b2)
    else:
        kern = _res_epilogue_affine_kernel
        vec = (s2, b2, jnp.tile(res_scale, (1, reps)), jnp.tile(res_shift, (1, reps)))

    in_specs = ([pl.BlockSpec((tr, lane), lambda i: (i, 0))] * 2
                + [pl.BlockSpec((1, lane), lambda i: (0, 0))] * len(vec))

    out = pl.pallas_call(
        kern,
        out_shape=jax.ShapeDtypeStruct((rp, lane), jnp.bfloat16),
        grid=(rp // tr,),
        in_specs=in_specs,
        out_specs=pl.BlockSpec((tr, lane), lambda i: (i, 0)),
        compiler_params=pltpu.CompilerParams(
            dimension_semantics=("parallel",),
            vmem_limit_bytes=VMEM_LIMIT_BYTES),
    )(r2f, resf, *vec)
    return out[:rows].reshape(shape5)


# ---------------------------------------------------------------------------
# Plain-JAX glue: BN affine folding, neutral pad fill, spatial im2col
# ---------------------------------------------------------------------------

def bn_affine(mean, var, gamma, beta):
    """Per-channel scale/shift such that BN(x) == x*scale + shift (training mode)."""
    scale = gamma * lax.rsqrt(var + BN_EPS)
    shift = beta - mean * scale
    return scale, shift


def _neutral_fill(scale, shift):
    """Per-channel value v with relu(v*scale + shift) == 0 exactly, robust to bf16
    rounding of v (the target BN output is a strictly negative margin)."""
    # TODO(synk): if gamma == 0 the post-BN zero pad is not representable pre-BN;
    #             fall back to v = 0 (only matters for dead channels).
    margin = 0.01 * (1.0 + jnp.abs(shift))
    safe = jnp.where(scale == 0.0, 1.0, scale)
    return jnp.where(scale == 0.0, 0.0, (-margin - shift) / safe)


def _pad_axis(x, axis, pad, fill):
    if pad == 0:
        return x
    if fill is None:
        cfg = [(0, 0)] * x.ndim
        cfg[axis] = (pad, pad)
        return jnp.pad(x, cfg)
    shp = list(x.shape)
    shp[axis] = pad
    border = jnp.broadcast_to(
        fill.reshape((1,) * (x.ndim - 1) + (-1,)).astype(x.dtype), tuple(shp))
    return jnp.concatenate([border, x, border], axis=axis)


def im2col_spatial(x, k, stride, pad, fill=None):
    """(N,T,H,W,C) -> (N*T*Ho*Wo, k*k*C); patch order (kh, kw, c)."""
    n, t, h, w, c = x.shape
    xp = _pad_axis(x, 2, pad, fill)
    xp = _pad_axis(xp, 3, pad, fill)
    ho = (h + 2 * pad - k) // stride + 1
    wo = (w + 2 * pad - k) // stride + 1
    cols = []
    for i in range(k):
        for j in range(k):
            cols.append(xp[:, :, i:i + stride * ho:stride, j:j + stride * wo:stride, :])
    patches = jnp.stack(cols, axis=-2)                   # (N,T,Ho,Wo,k*k,C)
    return patches.reshape(n * t * ho * wo, k * k * c), (n, t, ho, wo)


# ---------------------------------------------------------------------------
# Module forward passes (compose Pallas kernels)
# ---------------------------------------------------------------------------

def _intermed_channels(in_c, out_c, k):
    return int(math.floor(k * k * k * in_c * out_c / (k * k * in_c + k * out_c)))


def st_conv_forward(x5, p, k, stride, pad, in_scale=None, in_shift=None):
    """SpatioTemporalConv: spatial (1,k,k) conv -> BN -> ReLU -> temporal (k,1,1) conv.

    A pending caller-side BN+ReLU (bn1/relu1) is fused into the spatial matmul prologue;
    the internal BN+ReLU is fused into the temporal implicit-GEMM prologue.  Conv biases
    are omitted: every conv output in this layer feeds a training-mode BatchNorm, which
    cancels per-channel constant biases.  Returns the raw (pre-downstream-BN)
    temporal-conv output and its batch statistics.
    """
    c_mid = p["ws"].shape[1]
    c_out = p["wt"].shape[-1]

    if in_scale is not None:
        fill_in = _neutral_fill(in_scale, in_shift)
        s_cols = jnp.tile(in_scale, (1, k * k))
        b_cols = jnp.tile(in_shift, (1, k * k))
        fill_cols = jnp.tile(fill_in, (1, k * k))
    else:
        fill_in = s_cols = b_cols = fill_cols = None

    cols, (nb, tt, ho, wo) = im2col_spatial(x5, k, stride, pad, fill_in)
    y, m_s, v_s = matmul_stats(cols, p["ws"], s_cols, b_cols, fill_cols)
    scale_s, shift_s = bn_affine(m_s, v_s, p["bn_g"], p["bn_b"])

    y4 = y.reshape(nb, tt, ho * wo, c_mid)
    fill_t = _neutral_fill(scale_s, shift_s)
    z, m_t, v_t = temporal_conv_stats(y4, p["wt"], scale_s, shift_s, k, stride, pad, fill_t)
    return z.reshape(nb, z.shape[1], ho, wo, c_out), m_t, v_t


def res_block_forward(x5, p, k):
    downsample = "dconv" in p                   # static pytree-structure check (jit-safe)
    pad = k // 2
    stride = 2 if downsample else 1

    # conv1 (raw, pre-bn1) + its batch stats
    r1, m1, v1 = st_conv_forward(x5, p["conv1"], k, stride, pad)
    scale1, shift1 = bn_affine(m1, v1, p["bn1_g"], p["bn1_b"])

    # conv2 with bn1+relu1 fused into its spatial-matmul prologue
    r2, m2, v2 = st_conv_forward(r1, p["conv2"], k, 1, pad,
                                 in_scale=scale1, in_shift=shift1)
    scale2, shift2 = bn_affine(m2, v2, p["bn2_g"], p["bn2_b"])

    if downsample:
        xd, md, vd = st_conv_forward(x5, p["dconv"], 1, 2, 0)
        scaled, shiftd = bn_affine(md, vd, p["dbn_g"], p["dbn_b"])
        return block_epilogue(r2, scale2, shift2, xd, scaled, shiftd)
    return block_epilogue(r2, scale2, shift2, x5)


def res_layer_forward(x_ncdhw, params, k):
    # NCDHW -> channels-last (N, T, H, W, C), bf16 for the MXU path
    x = jnp.transpose(x_ncdhw, (0, 2, 3, 4, 1)).astype(jnp.bfloat16)
    x = res_block_forward(x, params["block1"], k)
    for bp in params["blocks"]:
        x = res_block_forward(x, bp, k)
    # back to NCDHW, f32 at the boundary
    return jnp.transpose(x, (0, 4, 1, 2, 3)).astype(jnp.float32)


# ---------------------------------------------------------------------------
# Deterministic parameter initialization (synthetic, shapes match the nn.Module)
# ---------------------------------------------------------------------------

def init_st_conv(key, in_c, out_c, k):
    mid = _intermed_channels(in_c, out_c, k)
    k1, k2 = jax.random.split(key)
    bs = 1.0 / math.sqrt(k * k * in_c)
    bt = 1.0 / math.sqrt(k * mid)
    # Conv biases omitted: cancelled by the training-mode BatchNorm that always follows.
    return dict(
        # spatial conv weight (C_mid, C_in, 1, k, k) flattened to (k*k*C_in, C_mid)
        ws=jax.random.uniform(k1, (k * k * in_c, mid), jnp.float32, -bs, bs
                              ).astype(jnp.bfloat16),
        bn_g=jnp.ones((1, mid), jnp.float32),
        bn_b=jnp.zeros((1, mid), jnp.float32),
        # temporal conv weight (C_out, C_mid, k, 1, 1) stored as (k, C_mid, C_out)
        wt=jax.random.uniform(k2, (k, mid, out_c), jnp.float32, -bt, bt
                              ).astype(jnp.bfloat16),
    )


def init_res_block(key, in_c, out_c, k, downsample):
    ks = jax.random.split(key, 3)
    p = dict(
        conv1=init_st_conv(ks[0], in_c, out_c, k),
        bn1_g=jnp.ones((1, out_c), jnp.float32),
        bn1_b=jnp.zeros((1, out_c), jnp.float32),
        conv2=init_st_conv(ks[1], out_c, out_c, k),
        bn2_g=jnp.ones((1, out_c), jnp.float32),
        bn2_b=jnp.zeros((1, out_c), jnp.float32),
    )
    if downsample:   # no bool leaf stored; downsample inferred from key presence
        p["dconv"] = init_st_conv(ks[2], in_c, out_c, 1)
        p["dbn_g"] = jnp.ones((1, out_c), jnp.float32)
        p["dbn_b"] = jnp.zeros((1, out_c), jnp.float32)
    return p


def init_res_layer(key, in_c, out_c, k, layer_size, downsample):
    ks = jax.random.split(key, layer_size)
    return dict(
        block1=init_res_block(ks[0], in_c, out_c, k, downsample),
        blocks=[init_res_block(ks[i], out_c, out_c, k, False)
                for i in range(1, layer_size)],
    )


if __name__ == "__main__":
    key = jax.random.PRNGKey(0)
    k_param, k_x = jax.random.split(key)

    in_channels, out_channels = 4, 8
    kernel_size, layer_size = 3, 2
    N, T, H, W = 2, 8, 16, 16

    params = init_res_layer(k_param, in_channels, out_channels,
                            kernel_size, layer_size, downsample=True)

    # PyTorch NCDHW input: (N, C, T, H, W)
    x = jax.random.normal(k_x, (N, in_channels, T, H, W), jnp.float32)

    fwd = jax.jit(functools.partial(res_layer_forward, k=kernel_size))
    y = jax.block_until_ready(fwd(x, params))

    expected = (N, out_channels, T // 2, H // 2, W // 2)  # downsample halves T, H, W
    assert y.shape == expected, (y.shape, expected)
    assert bool(jnp.all(jnp.isfinite(y)))
    print("KERNEL_OK")
</pallas_src>

<mosaic_0001>
module attributes {stable_mosaic.version = 11 : i64} {
  func.func @_mm_stats_kernel(%arg0: i32, %arg1: i32, %arg2: memref<512x36xbf16, #tpu.memory_space<vmem>>, %arg3: memref<36x14xbf16, #tpu.memory_space<vmem>>, %arg4: memref<512x14xbf16, #tpu.memory_space<vmem>>, %arg5: memref<1x1x14xf32, #tpu.memory_space<vmem>>, %arg6: memref<1x1x14xf32, #tpu.memory_space<vmem>>) attributes {dimension_semantics = [#tpu.dimension_semantics<parallel>, #tpu.dimension_semantics<parallel>], iteration_bounds = array<i64: 2, 1>, scalar_prefetch = 0 : i64, scratch_operands = 0 : i64, tpu.core_type = #tpu.core_type<tc>, window_params = [{transform_indices = @transform_0, window_bounds = array<i64: 512, 36>}, {transform_indices = @transform_1, window_bounds = array<i64: 36, 14>}, {transform_indices = @transform_2, window_bounds = array<i64: 512, 14>}, {transform_indices = @transform_3, window_bounds = array<i64: 1, 1, 14>}, {transform_indices = @transform_4, window_bounds = array<i64: 1, 1, 14>}]} {
    %c0 = arith.constant 0 : index
    %c0_0 = arith.constant 0 : index
    %0 = vector.load %arg2[%c0, %c0_0] : memref<512x36xbf16, #tpu.memory_space<vmem>>, vector<512x36xbf16>
    %c0_1 = arith.constant 0 : index
    %c0_2 = arith.constant 0 : index
    %1 = vector.load %arg3[%c0_1, %c0_2] : memref<36x14xbf16, #tpu.memory_space<vmem>>, vector<36x14xbf16>
    %cst = arith.constant dense<0.000000e+00> : vector<512x14xf32>
    %2 = tpu.matmul %0, %1, %cst {dimension_numbers = #tpu.dot_dimension_numbers<[1], [0], [0], [1], [0, 0, 1, 1], [], []>} : vector<512x36xbf16>, vector<36x14xbf16>, vector<512x14xf32> -> vector<512x14xf32>
    %3 = arith.truncf %2 : vector<512x14xf32> to vector<512x14xbf16>
    %c0_3 = arith.constant 0 : index
    %c0_4 = arith.constant 0 : index
    %4 = vector.load %arg4[%c0_3, %c0_4] : memref<512x14xbf16, #tpu.memory_space<vmem>>, vector<512x14xbf16>
    tpu.vector_store %arg4[%c0_3, %c0_4], %3 {strides = array<i32>} : memref<512x14xbf16, #tpu.memory_space<vmem>>, vector<512x14xbf16>,
    %cst_5 = arith.constant dense<0.000000e+00> : vector<14xf32>
    %5 = vector.multi_reduction <add>, %2, %cst_5 [0] : vector<512x14xf32> to vector<14xf32>
    %6 = vector.shape_cast %5 : vector<14xf32> to vector<1x14xf32>
    %c0_6 = arith.constant 0 : index
    %c0_7 = arith.constant 0 : index
    %c0_8 = arith.constant 0 : index
    %7 = vector.load %arg5[%c0_6, %c0_7, %c0_8] : memref<1x1x14xf32, #tpu.memory_space<vmem>>, vector<1x1x14xf32>
    %8 = vector.shape_cast %7 : vector<1x1x14xf32> to vector<1x14xf32>
    %9 = vector.shape_cast %6 : vector<1x14xf32> to vector<1x1x14xf32>
    tpu.vector_store %arg5[%c0_6, %c0_7, %c0_8], %9 {strides = array<i32>} : memref<1x1x14xf32, #tpu.memory_space<vmem>>, vector<1x1x14xf32>,
    %10 = arith.mulf %2, %2 : vector<512x14xf32>
    %cst_9 = arith.constant dense<0.000000e+00> : vector<14xf32>
    %11 = vector.multi_reduction <add>, %10, %cst_9 [0] : vector<512x14xf32> to vector<14xf32>
    %12 = vector.shape_cast %11 : vector<14xf32> to vector<1x14xf32>
    %c0_10 = arith.constant 0 : index
    %c0_11 = arith.constant 0 : index
    %c0_12 = arith.constant 0 : index
    %13 = vector.load %arg6[%c0_10, %c0_11, %c0_12] : memref<1x1x14xf32, #tpu.memory_space<vmem>>, vector<1x1x14xf32>
    %14 = vector.shape_cast %13 : vector<1x1x14xf32> to vector<1x14xf32>
    %15 = vector.shape_cast %12 : vector<1x14xf32> to vector<1x1x14xf32>
    tpu.vector_store %arg6[%c0_10, %c0_11, %c0_12], %15 {strides = array<i32>} : memref<1x1x14xf32, #tpu.memory_space<vmem>>, vector<1x1x14xf32>,
    return
  }
  func.func @transform_0(%arg0: i32, %arg1: i32) -> (i32, i32) {
    %c0_i32 = arith.constant 0 : i32
    %c0_i32_0 = arith.constant 0 : i32
    return %arg0, %c0_i32 : i32, i32
  }
  func.func @transform_1(%arg0: i32, %arg1: i32) -> (i32, i32) {
    %c0_i32 = arith.constant 0 : i32
    %c0_i32_0 = arith.constant 0 : i32
    return %c0_i32, %arg1 : i32, i32
  }
  func.func @transform_2(%arg0: i32, %arg1: i32) -> (i32, i32) {
    %c0_i32 = arith.constant 0 : i32
    return %arg0, %arg1 : i32, i32
  }
  func.func @transform_3(%arg0: i32, %arg1: i32) -> (i32, i32, i32) {
    %c0_i32 = arith.constant 0 : i32
    %c0_i32_0 = arith.constant 0 : i32
    return %arg0, %c0_i32, %arg1 : i32, i32, i32
  }
  func.func @transform_4(%arg0: i32, %arg1: i32) -> (i32, i32, i32) {
    %c0_i32 = arith.constant 0 : i32
    %c0_i32_0 = arith.constant 0 : i32
    return %arg0, %c0_i32, %arg1 : i32, i32, i32
  }
}

module attributes {stable_mosaic.version = 11 : i64} {
  func.func @_tconv_kernel(%arg0: i32, %arg1: i32, %arg2: i32, %arg3: memref<1x1x64x14xbf16, #tpu.memory_space<vmem>>, %arg4: memref<1x14x8xbf16, #tpu.memory_space<vmem>>, %arg5: memref<1x14xf32, #tpu.memory_space<vmem>>, %arg6: memref<1x14xf32, #tpu.memory_space<vmem>>, %arg7: memref<1x1x64x8xbf16, #tpu.memory_space<vmem>>, %arg8: memref<1x1x8xf32, #tpu.memory_space<vmem>>, %arg9: memref<1x1x8xf32, #tpu.memory_space<vmem>>, %arg10: memref<64x8xf32, #tpu.memory_space<vmem>>) attributes {dimension_semantics = [#tpu.dimension_semantics<parallel>, #tpu.dimension_semantics<parallel>, #tpu.dimension_semantics<arbitrary>], iteration_bounds = array<i64: 2, 4, 3>, scalar_prefetch = 0 : i64, scratch_operands = 1 : i64, tpu.core_type = #tpu.core_type<tc>, window_params = [{transform_indices = @transform_0, window_bounds = array<i64: 1, 1, 64, 14>}, {transform_indices = @transform_1, window_bounds = array<i64: 1, 14, 8>}, {pipeline_mode = #tpu.pipeline_mode<synchronous>, transform_indices = @transform_2, window_bounds = array<i64: 1, 14>}, {pipeline_mode = #tpu.pipeline_mode<synchronous>, transform_indices = @transform_3, window_bounds = array<i64: 1, 14>}, {transform_indices = @transform_4, window_bounds = array<i64: 1, 1, 64, 8>}, {transform_indices = @transform_5, window_bounds = array<i64: 1, 1, 8>}, {transform_indices = @transform_6, window_bounds = array<i64: 1, 1, 8>}]} {
    %c0_i32 = arith.constant 0 : i32
    %0 = arith.cmpi eq, %arg2, %c0_i32 : i32
    %1 = arith.extui %0 : i1 to i32
    %c0_i32_0 = arith.constant 0 : i32
    %2 = arith.cmpi ne, %1, %c0_i32_0 : i32
    scf.if %2 {
      %cst_17 = arith.constant 0.000000e+00 : f32
      %24 = vector.broadcast %cst_17 : f32 to vector<64x8xf32>
      %c0_18 = arith.constant 0 : index
      %c0_19 = arith.constant 0 : index
      %25 = vector.load %arg10[%c0_18, %c0_19] : memref<64x8xf32, #tpu.memory_space<vmem>>, vector<64x8xf32>
      tpu.vector_store %arg10[%c0_18, %c0_19], %24 {strides = array<i32>} : memref<64x8xf32, #tpu.memory_space<vmem>>, vector<64x8xf32>,
    } else {
    }
    %c0 = arith.constant 0 : index
    %c0_1 = arith.constant 0 : index
    %c0_2 = arith.constant 0 : index
    %c0_3 = arith.constant 0 : index
    %3 = vector.load %arg3[%c0, %c0_1, %c0_2, %c0_3] : memref<1x1x64x14xbf16, #tpu.memory_space<vmem>>, vector<1x1x64x14xbf16>
    %4 = vector.shape_cast %3 : vector<1x1x64x14xbf16> to vector<64x14xbf16>
    %5 = arith.extf %4 : vector<64x14xbf16> to vector<64x14xf32>
    %c0_4 = arith.constant 0 : index
    %c0_5 = arith.constant 0 : index
    %6 = vector.load %arg5[%c0_4, %c0_5] : memref<1x14xf32, #tpu.memory_space<vmem>>, vector<1x14xf32>
    %7 = vector.broadcast %6 : vector<1x14xf32> to vector<64x14xf32>
    %8 = arith.mulf %5, %7 : vector<64x14xf32>
    %c0_6 = arith.constant 0 : index
    %c0_7 = arith.constant 0 : index
    %9 = vector.load %arg6[%c0_6, %c0_7] : memref<1x14xf32, #tpu.memory_space<vmem>>, vector<1x14xf32>
    %10 = vector.broadcast %9 : vector<1x14xf32> to vector<64x14xf32>
    %11 = arith.addf %8, %10 : vector<64x14xf32>
    %cst = arith.constant 0.000000e+00 : f32
    %12 = vector.broadcast %cst : f32 to vector<64x14xf32>
    %13 = arith.maximumf %11, %12 : vector<64x14xf32>
    %c0_8 = arith.constant 0 : index
    %c0_9 = arith.constant 0 : index
    %14 = vector.load %arg10[%c0_8, %c0_9] : memref<64x8xf32, #tpu.memory_space<vmem>>, vector<64x8xf32>
    %15 = arith.truncf %13 : vector<64x14xf32> to vector<64x14xbf16>
    %c0_10 = arith.constant 0 : index
    %c0_11 = arith.constant 0 : index
    %c0_12 = arith.constant 0 : index
    %16 = vector.load %arg4[%c0_10, %c0_11, %c0_12] : memref<1x14x8xbf16, #tpu.memory_space<vmem>>, vector<1x14x8xbf16>
    %17 = vector.shape_cast %16 : vector<1x14x8xbf16> to vector<14x8xbf16>
    %cst_13 = arith.constant dense<0.000000e+00> : vector<64x8xf32>
    %18 = tpu.matmul %15, %17, %cst_13 {dimension_numbers = #tpu.dot_dimension_numbers<[1], [0], [0], [1], [0, 0, 1, 1], [], []>} : vector<64x14xbf16>, vector<14x8xbf16>, vector<64x8xf32> -> vector<64x8xf32>
    %19 = arith.addf %14, %18 : vector<64x8xf32>
    %c0_14 = arith.constant 0 : index
    %c0_15 = arith.constant 0 : index
    %20 = vector.load %arg10[%c0_14, %c0_15] : memref<64x8xf32, #tpu.memory_space<vmem>>, vector<64x8xf32>
    tpu.vector_store %arg10[%c0_14, %c0_15], %19 {strides = array<i32>} : memref<64x8xf32, #tpu.memory_space<vmem>>, vector<64x8xf32>,
    %c2_i32 = arith.constant 2 : i32
    %21 = arith.cmpi eq, %arg2, %c2_i32 : i32
    %22 = arith.extui %21 : i1 to i32
    %c0_i32_16 = arith.constant 0 : i32
    %23 = arith.cmpi ne, %22, %c0_i32_16 : i32
    scf.if %23 {
      %c0_17 = arith.constant 0 : index
      %c0_18 = arith.constant 0 : index
      %24 = vector.load %arg10[%c0_17, %c0_18] : memref<64x8xf32, #tpu.memory_space<vmem>>, vector<64x8xf32>
      %25 = arith.truncf %24 : vector<64x8xf32> to vector<64x8xbf16>
      %c0_19 = arith.constant 0 : index
      %c0_20 = arith.constant 0 : index
      %c0_21 = arith.constant 0 : index
      %c0_22 = arith.constant 0 : index
      %26 = vector.load %arg7[%c0_19, %c0_20, %c0_21, %c0_22] : memref<1x1x64x8xbf16, #tpu.memory_space<vmem>>, vector<1x1x64x8xbf16>
      %27 = vector.shape_cast %26 : vector<1x1x64x8xbf16> to vector<64x8xbf16>
      %28 = vector.shape_cast %25 : vector<64x8xbf16> to vector<1x1x64x8xbf16>
      tpu.vector_store %arg7[%c0_19, %c0_20, %c0_21, %c0_22], %28 {strides = array<i32>} : memref<1x1x64x8xbf16, #tpu.memory_space<vmem>>, vector<1x1x64x8xbf16>,
      %cst_23 = arith.constant dense<0.000000e+00> : vector<8xf32>
      %29 = vector.multi_reduction <add>, %24, %cst_23 [0] : vector<64x8xf32> to vector<8xf32>
      %30 = vector.shape_cast %29 : vector<8xf32> to vector<1x8xf32>
      %c0_24 = arith.constant 0 : index
      %c0_25 = arith.constant 0 : index
      %c0_26 = arith.constant 0 : index
      %31 = vector.load %arg8[%c0_24, %c0_25, %c0_26] : memref<1x1x8xf32, #tpu.memory_space<vmem>>, vector<1x1x8xf32>
      %32 = vector.shape_cast %31 : vector<1x1x8xf32> to vector<1x8xf32>
      %33 = vector.shape_cast %30 : vector<1x8xf32> to vector<1x1x8xf32>
      tpu.vector_store %arg8[%c0_24, %c0_25, %c0_26], %33 {strides = array<i32>} : memref<1x1x8xf32, #tpu.memory_space<vmem>>, vector<1x1x8xf32>,
      %34 = arith.mulf %24, %24 : vector<64x8xf32>
      %cst_27 = arith.constant dense<0.000000e+00> : vector<8xf32>
      %35 = vector.multi_reduction <add>, %34, %cst_27 [0] : vector<64x8xf32> to vector<8xf32>
      %36 = vector.shape_cast %35 : vector<8xf32> to vector<1x8xf32>
      %c0_28 = arith.constant 0 : index
      %c0_29 = arith.constant 0 : index
      %c0_30 = arith.constant 0 : index
      %37 = vector.load %arg9[%c0_28, %c0_29, %c0_30] : memref<1x1x8xf32, #tpu.memory_space<vmem>>, vector<1x1x8xf32>
      %38 = vector.shape_cast %37 : vector<1x1x8xf32> to vector<1x8xf32>
      %39 = vector.shape_cast %36 : vector<1x8xf32> to vector<1x1x8xf32>
      tpu.vector_store %arg9[%c0_28, %c0_29, %c0_30], %39 {strides = array<i32>} : memref<1x1x8xf32, #tpu.memory_space<vmem>>, vector<1x1x8xf32>,
    } else {
    }
    return
  }
  func.func @transform_0(%arg0: i32, %arg1: i32, %arg2: i32) -> (i32, i32, i32, i32) {
    %c2_i32 = arith.constant 2 : i32
    %0 = arith.muli %c2_i32, %arg1 : i32
    %1 = arith.addi %0, %arg2 : i32
    %c0_i32 = arith.constant 0 : i32
    %c0_i32_0 = arith.constant 0 : i32
    %c0_i32_1 = arith.constant 0 : i32
    return %arg0, %1, %c0_i32, %c0_i32_0 : i32, i32, i32, i32
  }
  func.func @transform_1(%arg0: i32, %arg1: i32, %arg2: i32) -> (i32, i32, i32) {
    %c0_i32 = arith.constant 0 : i32
    %c0_i32_0 = arith.constant 0 : i32
    %c0_i32_1 = arith.constant 0 : i32
    return %arg2, %c0_i32, %c0_i32_0 : i32, i32, i32
  }
  func.func @transform_2(%arg0: i32, %arg1: i32, %arg2: i32) -> (i32, i32) {
    %c0_i32 = arith.constant 0 : i32
    %c0_i32_0 = arith.constant 0 : i32
    %c0_i32_1 = arith.constant 0 : i32
    return %c0_i32, %c0_i32_0 : i32, i32
  }
  func.func @transform_3(%arg0: i32, %arg1: i32, %arg2: i32) -> (i32, i32) {
    %c0_i32 = arith.constant 0 : i32
    %c0_i32_0 = arith.constant 0 : i32
    %c0_i32_1 = arith.constant 0 : i32
    return %c0_i32, %c0_i32_0 : i32, i32
  }
  func.func @transform_4(%arg0: i32, %arg1: i32, %arg2: i32) -> (i32, i32, i32, i32) {
    %c0_i32 = arith.constant 0 : i32
    %c0_i32_0 = arith.constant 0 : i32
    %c0_i32_1 = arith.constant 0 : i32
    return %arg0, %arg1, %c0_i32, %c0_i32_0 : i32, i32, i32, i32
  }
  func.func @transform_5(%arg0: i32, %arg1: i32, %arg2: i32) -> (i32, i32, i32) {
    %c4_i32 = arith.constant 4 : i32
    %0 = arith.muli %arg0, %c4_i32 : i32
    %1 = arith.addi %0, %arg1 : i32
    %c0_i32 = arith.constant 0 : i32
    %c0_i32_0 = arith.constant 0 : i32
    %c0_i32_1 = arith.constant 0 : i32
    return %1, %c0_i32, %c0_i32_0 : i32, i32, i32
  }
  func.func @transform_6(%arg0: i32, %arg1: i32, %arg2: i32) -> (i32, i32, i32) {
    %c4_i32 = arith.constant 4 : i32
    %0 = arith.muli %arg0, %c4_i32 : i32
    %1 = arith.addi %0, %arg1 : i32
    %c0_i32 = arith.constant 0 : i32
    %c0_i32_0 = arith.constant 0 : i32
    %c0_i32_1 = arith.constant 0 : i32
    return %1, %c0_i32, %c0_i32_0 : i32, i32, i32
  }
}

module attributes {stable_mosaic.version = 11 : i64} {
  func.func @_mm_bn_stats_kernel(%arg0: i32, %arg1: i32, %arg2: memref<512x72xbf16, #tpu.memory_space<vmem>>, %arg3: memref<72x18xbf16, #tpu.memory_space<vmem>>, %arg4: memref<1x72xf32, #tpu.memory_space<vmem>>, %arg5: memref<1x72xf32, #tpu.memory_space<vmem>>, %arg6: memref<512x18xbf16, #tpu.memory_space<vmem>>, %arg7: memref<1x1x18xf32, #tpu.memory_space<vmem>>, %arg8: memref<1x1x18xf32, #tpu.memory_space<vmem>>) attributes {dimension_semantics = [#tpu.dimension_semantics<parallel>, #tpu.dimension_semantics<parallel>], iteration_bounds = array<i64: 1, 1>, scalar_prefetch = 0 : i64, scratch_operands = 0 : i64, tpu.core_type = #tpu.core_type<tc>, window_params = [{transform_indices = @transform_0, window_bounds = array<i64: 512, 72>}, {transform_indices = @transform_1, window_bounds = array<i64: 72, 18>}, {pipeline_mode = #tpu.pipeline_mode<synchronous>, transform_indices = @transform_2, window_bounds = array<i64: 1, 72>}, {pipeline_mode = #tpu.pipeline_mode<synchronous>, transform_indices = @transform_3, window_bounds = array<i64: 1, 72>}, {transform_indices = @transform_4, window_bounds = array<i64: 512, 18>}, {transform_indices = @transform_5, window_bounds = array<i64: 1, 1, 18>}, {transform_indices = @transform_6, window_bounds = array<i64: 1, 1, 18>}]} {
    %c0 = arith.constant 0 : index
    %c0_0 = arith.constant 0 : index
    %0 = vector.load %arg2[%c0, %c0_0] : memref<512x72xbf16, #tpu.memory_space<vmem>>, vector<512x72xbf16>
    %1 = arith.extf %0 : vector<512x72xbf16> to vector<512x72xf32>
    %c0_1 = arith.constant 0 : index
    %c0_2 = arith.constant 0 : index
    %2 = vector.load %arg4[%c0_1, %c0_2] : memref<1x72xf32, #tpu.memory_space<vmem>>, vector<1x72xf32>
    %3 = vector.broadcast %2 : vector<1x72xf32> to vector<512x72xf32>
    %4 = arith.mulf %1, %3 : vector<512x72xf32>
    %c0_3 = arith.constant 0 : index
    %c0_4 = arith.constant 0 : index
    %5 = vector.load %arg5[%c0_3, %c0_4] : memref<1x72xf32, #tpu.memory_space<vmem>>, vector<1x72xf32>
    %6 = vector.broadcast %5 : vector<1x72xf32> to vector<512x72xf32>
    %7 = arith.addf %4, %6 : vector<512x72xf32>
    %cst = arith.constant 0.000000e+00 : f32
    %8 = vector.broadcast %cst : f32 to vector<512x72xf32>
    %9 = arith.maximumf %7, %8 : vector<512x72xf32>
    %10 = arith.truncf %9 : vector<512x72xf32> to vector<512x72xbf16>
    %c0_5 = arith.constant 0 : index
    %c0_6 = arith.constant 0 : index
    %11 = vector.load %arg3[%c0_5, %c0_6] : memref<72x18xbf16, #tpu.memory_space<vmem>>, vector<72x18xbf16>
    %cst_7 = arith.constant dense<0.000000e+00> : vector<512x18xf32>
    %12 = tpu.matmul %10, %11, %cst_7 {dimension_numbers = #tpu.dot_dimension_numbers<[1], [0], [0], [1], [0, 0, 1, 1], [], []>} : vector<512x72xbf16>, vector<72x18xbf16>, vector<512x18xf32> -> vector<512x18xf32>
    %13 = arith.truncf %12 : vector<512x18xf32> to vector<512x18xbf16>
    %c0_8 = arith.constant 0 : index
    %c0_9 = arith.constant 0 : index
    %14 = vector.load %arg6[%c0_8, %c0_9] : memref<512x18xbf16, #tpu.memory_space<vmem>>, vector<512x18xbf16>
    tpu.vector_store %arg6[%c0_8, %c0_9], %13 {strides = array<i32>} : memref<512x18xbf16, #tpu.memory_space<vmem>>, vector<512x18xbf16>,
    %cst_10 = arith.constant dense<0.000000e+00> : vector<18xf32>
    %15 = vector.multi_reduction <add>, %12, %cst_10 [0] : vector<512x18xf32> to vector<18xf32>
    %16 = vector.shape_cast %15 : vector<18xf32> to vector<1x18xf32>
    %c0_11 = arith.constant 0 : index
    %c0_12 = arith.constant 0 : index
    %c0_13 = arith.constant 0 : index
    %17 = vector.load %arg7[%c0_11, %c0_12, %c0_13] : memref<1x1x18xf32, #tpu.memory_space<vmem>>, vector<1x1x18xf32>
    %18 = vector.shape_cast %17 : vector<1x1x18xf32> to vector<1x18xf32>
    %19 = vector.shape_cast %16 : vector<1x18xf32> to vector<1x1x18xf32>
    tpu.vector_store %arg7[%c0_11, %c0_12, %c0_13], %19 {strides = array<i32>} : memref<1x1x18xf32, #tpu.memory_space<vmem>>, vector<1x1x18xf32>,
    %20 = arith.mulf %12, %12 : vector<512x18xf32>
    %cst_14 = arith.constant dense<0.000000e+00> : vector<18xf32>
    %21 = vector.multi_reduction <add>, %20, %cst_14 [0] : vector<512x18xf32> to vector<18xf32>
    %22 = vector.shape_cast %21 : vector<18xf32> to vector<1x18xf32>
    %c0_15 = arith.constant 0 : index
    %c0_16 = arith.constant 0 : index
    %c0_17 = arith.constant 0 : index
    %23 = vector.load %arg8[%c0_15, %c0_16, %c0_17] : memref<1x1x18xf32, #tpu.memory_space<vmem>>, vector<1x1x18xf32>
    %24 = vector.shape_cast %23 : vector<1x1x18xf32> to vector<1x18xf32>
    %25 = vector.shape_cast %22 : vector<1x18xf32> to vector<1x1x18xf32>
    tpu.vector_store %arg8[%c0_15, %c0_16, %c0_17], %25 {strides = array<i32>} : memref<1x1x18xf32, #tpu.memory_space<vmem>>, vector<1x1x18xf32>,
    return
  }
  func.func @transform_0(%arg0: i32, %arg1: i32) -> (i32, i32) {
    %c0_i32 = arith.constant 0 : i32
    %c0_i32_0 = arith.constant 0 : i32
    return %arg0, %c0_i32 : i32, i32
  }
  func.func @transform_1(%arg0: i32, %arg1: i32) -> (i32, i32) {
    %c0_i32 = arith.constant 0 : i32
    %c0_i32_0 = arith.constant 0 : i32
    return %c0_i32, %arg1 : i32, i32
  }
  func.func @transform_2(%arg0: i32, %arg1: i32) -> (i32, i32) {
    %c0_i32 = arith.constant 0 : i32
    %c0_i32_0 = arith.constant 0 : i32
    %c0_i32_1 = arith.constant 0 : i32
    return %c0_i32, %c0_i32_0 : i32, i32
  }
  func.func @transform_3(%arg0: i32, %arg1: i32) -> (i32, i32) {
    %c0_i32 = arith.constant 0 : i32
    %c0_i32_0 = arith.constant 0 : i32
    %c0_i32_1 = arith.constant 0 : i32
    return %c0_i32, %c0_i32_0 : i32, i32
  }
  func.func @transform_4(%arg0: i32, %arg1: i32) -> (i32, i32) {
    %c0_i32 = arith.constant 0 : i32
    return %arg0, %arg1 : i32, i32
  }
  func.func @transform_5(%arg0: i32, %arg1: i32) -> (i32, i32, i32) {
    %c0_i32 = arith.constant 0 : i32
    %c0_i32_0 = arith.constant 0 : i32
    return %arg0, %c0_i32, %arg1 : i32, i32, i32
  }
  func.func @transform_6(%arg0: i32, %arg1: i32) -> (i32, i32, i32) {
    %c0_i32 = arith.constant 0 : i32
    %c0_i32_0 = arith.constant 0 : i32
    return %arg0, %c0_i32, %arg1 : i32, i32, i32
  }
}

module attributes {stable_mosaic.version = 11 : i64} {
  func.func @_tconv_kernel(%arg0: i32, %arg1: i32, %arg2: i32, %arg3: memref<1x1x64x18xbf16, #tpu.memory_space<vmem>>, %arg4: memref<1x18x8xbf16, #tpu.memory_space<vmem>>, %arg5: memref<1x18xf32, #tpu.memory_space<vmem>>, %arg6: memref<1x18xf32, #tpu.memory_space<vmem>>, %arg7: memref<1x1x64x8xbf16, #tpu.memory_space<vmem>>, %arg8: memref<1x1x8xf32, #tpu.memory_space<vmem>>, %arg9: memref<1x1x8xf32, #tpu.memory_space<vmem>>, %arg10: memref<64x8xf32, #tpu.memory_space<vmem>>) attributes {dimension_semantics = [#tpu.dimension_semantics<parallel>, #tpu.dimension_semantics<parallel>, #tpu.dimension_semantics<arbitrary>], iteration_bounds = array<i64: 2, 4, 3>, scalar_prefetch = 0 : i64, scratch_operands = 1 : i64, tpu.core_type = #tpu.core_type<tc>, window_params = [{transform_indices = @transform_0, window_bounds = array<i64: 1, 1, 64, 18>}, {transform_indices = @transform_1, window_bounds = array<i64: 1, 18, 8>}, {pipeline_mode = #tpu.pipeline_mode<synchronous>, transform_indices = @transform_2, window_bounds = array<i64: 1, 18>}, {pipeline_mode = #tpu.pipeline_mode<synchronous>, transform_indices = @transform_3, window_bounds = array<i64: 1, 18>}, {transform_indices = @transform_4, window_bounds = array<i64: 1, 1, 64, 8>}, {transform_indices = @transform_5, window_bounds = array<i64: 1, 1, 8>}, {transform_indices = @transform_6, window_bounds = array<i64: 1, 1, 8>}]} {
    %c0_i32 = arith.constant 0 : i32
    %0 = arith.cmpi eq, %arg2, %c0_i32 : i32
    %1 = arith.extui %0 : i1 to i32
    %c0_i32_0 = arith.constant 0 : i32
    %2 = arith.cmpi ne, %1, %c0_i32_0 : i32
    scf.if %2 {
      %cst_17 = arith.constant 0.000000e+00 : f32
      %24 = vector.broadcast %cst_17 : f32 to vector<64x8xf32>
      %c0_18 = arith.constant 0 : index
      %c0_19 = arith.constant 0 : index
      %25 = vector.load %arg10[%c0_18, %c0_19] : memref<64x8xf32, #tpu.memory_space<vmem>>, vector<64x8xf32>
      tpu.vector_store %arg10[%c0_18, %c0_19], %24 {strides = array<i32>} : memref<64x8xf32, #tpu.memory_space<vmem>>, vector<64x8xf32>,
    } else {
    }
    %c0 = arith.constant 0 : index
    %c0_1 = arith.constant 0 : index
    %c0_2 = arith.constant 0 : index
    %c0_3 = arith.constant 0 : index
    %3 = vector.load %arg3[%c0, %c0_1, %c0_2, %c0_3] : memref<1x1x64x18xbf16, #tpu.memory_space<vmem>>, vector<1x1x64x18xbf16>
    %4 = vector.shape_cast %3 : vector<1x1x64x18xbf16> to vector<64x18xbf16>
    %5 = arith.extf %4 : vector<64x18xbf16> to vector<64x18xf32>
    %c0_4 = arith.constant 0 : index
    %c0_5 = arith.constant 0 : index
    %6 = vector.load %arg5[%c0_4, %c0_5] : memref<1x18xf32, #tpu.memory_space<vmem>>, vector<1x18xf32>
    %7 = vector.broadcast %6 : vector<1x18xf32> to vector<64x18xf32>
    %8 = arith.mulf %5, %7 : vector<64x18xf32>
    %c0_6 = arith.constant 0 : index
    %c0_7 = arith.constant 0 : index
    %9 = vector.load %arg6[%c0_6, %c0_7] : memref<1x18xf32, #tpu.memory_space<vmem>>, vector<1x18xf32>
    %10 = vector.broadcast %9 : vector<1x18xf32> to vector<64x18xf32>
    %11 = arith.addf %8, %10 : vector<64x18xf32>
    %cst = arith.constant 0.000000e+00 : f32
    %12 = vector.broadcast %cst : f32 to vector<64x18xf32>
    %13 = arith.maximumf %11, %12 : vector<64x18xf32>
    %c0_8 = arith.constant 0 : index
    %c0_9 = arith.constant 0 : index
    %14 = vector.load %arg10[%c0_8, %c0_9] : memref<64x8xf32, #tpu.memory_space<vmem>>, vector<64x8xf32>
    %15 = arith.truncf %13 : vector<64x18xf32> to vector<64x18xbf16>
    %c0_10 = arith.constant 0 : index
    %c0_11 = arith.constant 0 : index
    %c0_12 = arith.constant 0 : index
    %16 = vector.load %arg4[%c0_10, %c0_11, %c0_12] : memref<1x18x8xbf16, #tpu.memory_space<vmem>>, vector<1x18x8xbf16>
    %17 = vector.shape_cast %16 : vector<1x18x8xbf16> to vector<18x8xbf16>
    %cst_13 = arith.constant dense<0.000000e+00> : vector<64x8xf32>
    %18 = tpu.matmul %15, %17, %cst_13 {dimension_numbers = #tpu.dot_dimension_numbers<[1], [0], [0], [1], [0, 0, 1, 1], [], []>} : vector<64x18xbf16>, vector<18x8xbf16>, vector<64x8xf32> -> vector<64x8xf32>
    %19 = arith.addf %14, %18 : vector<64x8xf32>
    %c0_14 = arith.constant 0 : index
    %c0_15 = arith.constant 0 : index
    %20 = vector.load %arg10[%c0_14, %c0_15] : memref<64x8xf32, #tpu.memory_space<vmem>>, vector<64x8xf32>
    tpu.vector_store %arg10[%c0_14, %c0_15], %19 {strides = array<i32>} : memref<64x8xf32, #tpu.memory_space<vmem>>, vector<64x8xf32>,
    %c2_i32 = arith.constant 2 : i32
    %21 = arith.cmpi eq, %arg2, %c2_i32 : i32
    %22 = arith.extui %21 : i1 to i32
    %c0_i32_16 = arith.constant 0 : i32
    %23 = arith.cmpi ne, %22, %c0_i32_16 : i32
    scf.if %23 {
      %c0_17 = arith.constant 0 : index
      %c0_18 = arith.constant 0 : index
      %24 = vector.load %arg10[%c0_17, %c0_18] : memref<64x8xf32, #tpu.memory_space<vmem>>, vector<64x8xf32>
      %25 = arith.truncf %24 : vector<64x8xf32> to vector<64x8xbf16>
      %c0_19 = arith.constant 0 : index
      %c0_20 = arith.constant 0 : index
      %c0_21 = arith.constant 0 : index
      %c0_22 = arith.constant 0 : index
      %26 = vector.load %arg7[%c0_19, %c0_20, %c0_21, %c0_22] : memref<1x1x64x8xbf16, #tpu.memory_space<vmem>>, vector<1x1x64x8xbf16>
      %27 = vector.shape_cast %26 : vector<1x1x64x8xbf16> to vector<64x8xbf16>
      %28 = vector.shape_cast %25 : vector<64x8xbf16> to vector<1x1x64x8xbf16>
      tpu.vector_store %arg7[%c0_19, %c0_20, %c0_21, %c0_22], %28 {strides = array<i32>} : memref<1x1x64x8xbf16, #tpu.memory_space<vmem>>, vector<1x1x64x8xbf16>,
      %cst_23 = arith.constant dense<0.000000e+00> : vector<8xf32>
      %29 = vector.multi_reduction <add>, %24, %cst_23 [0] : vector<64x8xf32> to vector<8xf32>
      %30 = vector.shape_cast %29 : vector<8xf32> to vector<1x8xf32>
      %c0_24 = arith.constant 0 : index
      %c0_25 = arith.constant 0 : index
      %c0_26 = arith.constant 0 : index
      %31 = vector.load %arg8[%c0_24, %c0_25, %c0_26] : memref<1x1x8xf32, #tpu.memory_space<vmem>>, vector<1x1x8xf32>
      %32 = vector.shape_cast %31 : vector<1x1x8xf32> to vector<1x8xf32>
      %33 = vector.shape_cast %30 : vector<1x8xf32> to vector<1x1x8xf32>
      tpu.vector_store %arg8[%c0_24, %c0_25, %c0_26], %33 {strides = array<i32>} : memref<1x1x8xf32, #tpu.memory_space<vmem>>, vector<1x1x8xf32>,
      %34 = arith.mulf %24, %24 : vector<64x8xf32>
      %cst_27 = arith.constant dense<0.000000e+00> : vector<8xf32>
      %35 = vector.multi_reduction <add>, %34, %cst_27 [0] : vector<64x8xf32> to vector<8xf32>
      %36 = vector.shape_cast %35 : vector<8xf32> to vector<1x8xf32>
      %c0_28 = arith.constant 0 : index
      %c0_29 = arith.constant 0 : index
      %c0_30 = arith.constant 0 : index
      %37 = vector.load %arg9[%c0_28, %c0_29, %c0_30] : memref<1x1x8xf32, #tpu.memory_space<vmem>>, vector<1x1x8xf32>
      %38 = vector.shape_cast %37 : vector<1x1x8xf32> to vector<1x8xf32>
      %39 = vector.shape_cast %36 : vector<1x8xf32> to vector<1x1x8xf32>
      tpu.vector_store %arg9[%c0_28, %c0_29, %c0_30], %39 {strides = array<i32>} : memref<1x1x8xf32, #tpu.memory_space<vmem>>, vector<1x1x8xf32>,
    } else {
    }
    return
  }
  func.func @transform_0(%arg0: i32, %arg1: i32, %arg2: i32) -> (i32, i32, i32, i32) {
    %c1_i32 = arith.constant 1 : i32
    %0 = arith.muli %c1_i32, %arg1 : i32
    %1 = arith.addi %0, %arg2 : i32
    %c0_i32 = arith.constant 0 : i32
    %c0_i32_0 = arith.constant 0 : i32
    %c0_i32_1 = arith.constant 0 : i32
    return %arg0, %1, %c0_i32, %c0_i32_0 : i32, i32, i32, i32
  }
  func.func @transform_1(%arg0: i32, %arg1: i32, %arg2: i32) -> (i32, i32, i32) {
    %c0_i32 = arith.constant 0 : i32
    %c0_i32_0 = arith.constant 0 : i32
    %c0_i32_1 = arith.constant 0 : i32
    return %arg2, %c0_i32, %c0_i32_0 : i32, i32, i32
  }
  func.func @transform_2(%arg0: i32, %arg1: i32, %arg2: i32) -> (i32, i32) {
    %c0_i32 = arith.constant 0 : i32
    %c0_i32_0 = arith.constant 0 : i32
    %c0_i32_1 = arith.constant 0 : i32
    return %c0_i32, %c0_i32_0 : i32, i32
  }
  func.func @transform_3(%arg0: i32, %arg1: i32, %arg2: i32) -> (i32, i32) {
    %c0_i32 = arith.constant 0 : i32
    %c0_i32_0 = arith.constant 0 : i32
    %c0_i32_1 = arith.constant 0 : i32
    return %c0_i32, %c0_i32_0 : i32, i32
  }
  func.func @transform_4(%arg0: i32, %arg1: i32, %arg2: i32) -> (i32, i32, i32, i32) {
    %c0_i32 = arith.constant 0 : i32
    %c0_i32_0 = arith.constant 0 : i32
    %c0_i32_1 = arith.constant 0 : i32
    return %arg0, %arg1, %c0_i32, %c0_i32_0 : i32, i32, i32, i32
  }
  func.func @transform_5(%arg0: i32, %arg1: i32, %arg2: i32) -> (i32, i32, i32) {
    %c4_i32 = arith.constant 4 : i32
    %0 = arith.muli %arg0, %c4_i32 : i32
    %1 = arith.addi %0, %arg1 : i32
    %c0_i32 = arith.constant 0 : i32
    %c0_i32_0 = arith.constant 0 : i32
    %c0_i32_1 = arith.constant 0 : i32
    return %1, %c0_i32, %c0_i32_0 : i32, i32, i32
  }
  func.func @transform_6(%arg0: i32, %arg1: i32, %arg2: i32) -> (i32, i32, i32) {
    %c4_i32 = arith.constant 4 : i32
    %0 = arith.muli %arg0, %c4_i32 : i32
    %1 = arith.addi %0, %arg1 : i32
    %c0_i32 = arith.constant 0 : i32
    %c0_i32_0 = arith.constant 0 : i32
    %c0_i32_1 = arith.constant 0 : i32
    return %1, %c0_i32, %c0_i32_0 : i32, i32, i32
  }
}

module attributes {stable_mosaic.version = 11 : i64} {
  func.func @_mm_stats_kernel(%arg0: i32, %arg1: i32, %arg2: memref<512x4xbf16, #tpu.memory_space<vmem>>, %arg3: memref<4x2xbf16, #tpu.memory_space<vmem>>, %arg4: memref<512x2xbf16, #tpu.memory_space<vmem>>, %arg5: memref<1x1x2xf32, #tpu.memory_space<vmem>>, %arg6: memref<1x1x2xf32, #tpu.memory_space<vmem>>) attributes {dimension_semantics = [#tpu.dimension_semantics<parallel>, #tpu.dimension_semantics<parallel>], iteration_bounds = array<i64: 2, 1>, scalar_prefetch = 0 : i64, scratch_operands = 0 : i64, tpu.core_type = #tpu.core_type<tc>, window_params = [{transform_indices = @transform_0, window_bounds = array<i64: 512, 4>}, {transform_indices = @transform_1, window_bounds = array<i64: 4, 2>}, {transform_indices = @transform_2, window_bounds = array<i64: 512, 2>}, {transform_indices = @transform_3, window_bounds = array<i64: 1, 1, 2>}, {transform_indices = @transform_4, window_bounds = array<i64: 1, 1, 2>}]} {
    %c0 = arith.constant 0 : index
    %c0_0 = arith.constant 0 : index
    %0 = vector.load %arg2[%c0, %c0_0] : memref<512x4xbf16, #tpu.memory_space<vmem>>, vector<512x4xbf16>
    %c0_1 = arith.constant 0 : index
    %c0_2 = arith.constant 0 : index
    %1 = vector.load %arg3[%c0_1, %c0_2] : memref<4x2xbf16, #tpu.memory_space<vmem>>, vector<4x2xbf16>
    %cst = arith.constant dense<0.000000e+00> : vector<512x2xf32>
    %2 = tpu.matmul %0, %1, %cst {dimension_numbers = #tpu.dot_dimension_numbers<[1], [0], [0], [1], [0, 0, 1, 1], [], []>} : vector<512x4xbf16>, vector<4x2xbf16>, vector<512x2xf32> -> vector<512x2xf32>
    %3 = arith.truncf %2 : vector<512x2xf32> to vector<512x2xbf16>
    %c0_3 = arith.constant 0 : index
    %c0_4 = arith.constant 0 : index
    %4 = vector.load %arg4[%c0_3, %c0_4] : memref<512x2xbf16, #tpu.memory_space<vmem>>, vector<512x2xbf16>
    tpu.vector_store %arg4[%c0_3, %c0_4], %3 {strides = array<i32>} : memref<512x2xbf16, #tpu.memory_space<vmem>>, vector<512x2xbf16>,
    %cst_5 = arith.constant dense<0.000000e+00> : vector<2xf32>
    %5 = vector.multi_reduction <add>, %2, %cst_5 [0] : vector<512x2xf32> to vector<2xf32>
    %6 = vector.shape_cast %5 : vector<2xf32> to vector<1x2xf32>
    %c0_6 = arith.constant 0 : index
    %c0_7 = arith.constant 0 : index
    %c0_8 = arith.constant 0 : index
    %7 = vector.load %arg5[%c0_6, %c0_7, %c0_8] : memref<1x1x2xf32, #tpu.memory_space<vmem>>, vector<1x1x2xf32>
    %8 = vector.shape_cast %7 : vector<1x1x2xf32> to vector<1x2xf32>
    %9 = vector.shape_cast %6 : vector<1x2xf32> to vector<1x1x2xf32>
    tpu.vector_store %arg5[%c0_6, %c0_7, %c0_8], %9 {strides = array<i32>} : memref<1x1x2xf32, #tpu.memory_space<vmem>>, vector<1x1x2xf32>,
    %10 = arith.mulf %2, %2 : vector<512x2xf32>
    %cst_9 = arith.constant dense<0.000000e+00> : vector<2xf32>
    %11 = vector.multi_reduction <add>, %10, %cst_9 [0] : vector<512x2xf32> to vector<2xf32>
    %12 = vector.shape_cast %11 : vector<2xf32> to vector<1x2xf32>
    %c0_10 = arith.constant 0 : index
    %c0_11 = arith.constant 0 : index
    %c0_12 = arith.constant 0 : index
    %13 = vector.load %arg6[%c0_10, %c0_11, %c0_12] : memref<1x1x2xf32, #tpu.memory_space<vmem>>, vector<1x1x2xf32>
    %14 = vector.shape_cast %13 : vector<1x1x2xf32> to vector<1x2xf32>
    %15 = vector.shape_cast %12 : vector<1x2xf32> to vector<1x1x2xf32>
    tpu.vector_store %arg6[%c0_10, %c0_11, %c0_12], %15 {strides = array<i32>} : memref<1x1x2xf32, #tpu.memory_space<vmem>>, vector<1x1x2xf32>,
    return
  }
  func.func @transform_0(%arg0: i32, %arg1: i32) -> (i32, i32) {
    %c0_i32 = arith.constant 0 : i32
    %c0_i32_0 = arith.constant 0 : i32
    return %arg0, %c0_i32 : i32, i32
  }
  func.func @transform_1(%arg0: i32, %arg1: i32) -> (i32, i32) {
    %c0_i32 = arith.constant 0 : i32
    %c0_i32_0 = arith.constant 0 : i32
    return %c0_i32, %arg1 : i32, i32
  }
  func.func @transform_2(%arg0: i32, %arg1: i32) -> (i32, i32) {
    %c0_i32 = arith.constant 0 : i32
    return %arg0, %arg1 : i32, i32
  }
  func.func @transform_3(%arg0: i32, %arg1: i32) -> (i32, i32, i32) {
    %c0_i32 = arith.constant 0 : i32
    %c0_i32_0 = arith.constant 0 : i32
    return %arg0, %c0_i32, %arg1 : i32, i32, i32
  }
  func.func @transform_4(%arg0: i32, %arg1: i32) -> (i32, i32, i32) {
    %c0_i32 = arith.constant 0 : i32
    %c0_i32_0 = arith.constant 0 : i32
    return %arg0, %c0_i32, %arg1 : i32, i32, i32
  }
}

module attributes {stable_mosaic.version = 11 : i64} {
  func.func @_tconv_kernel(%arg0: i32, %arg1: i32, %arg2: i32, %arg3: memref<1x1x64x2xbf16, #tpu.memory_space<vmem>>, %arg4: memref<1x2x8xbf16, #tpu.memory_space<vmem>>, %arg5: memref<1x2xf32, #tpu.memory_space<vmem>>, %arg6: memref<1x2xf32, #tpu.memory_space<vmem>>, %arg7: memref<1x1x64x8xbf16, #tpu.memory_space<vmem>>, %arg8: memref<1x1x8xf32, #tpu.memory_space<vmem>>, %arg9: memref<1x1x8xf32, #tpu.memory_space<vmem>>, %arg10: memref<64x8xf32, #tpu.memory_space<vmem>>) attributes {dimension_semantics = [#tpu.dimension_semantics<parallel>, #tpu.dimension_semantics<parallel>, #tpu.dimension_semantics<arbitrary>], iteration_bounds = array<i64: 2, 4, 1>, scalar_prefetch = 0 : i64, scratch_operands = 1 : i64, tpu.core_type = #tpu.core_type<tc>, window_params = [{transform_indices = @transform_0, window_bounds = array<i64: 1, 1, 64, 2>}, {transform_indices = @transform_1, window_bounds = array<i64: 1, 2, 8>}, {pipeline_mode = #tpu.pipeline_mode<synchronous>, transform_indices = @transform_2, window_bounds = array<i64: 1, 2>}, {pipeline_mode = #tpu.pipeline_mode<synchronous>, transform_indices = @transform_3, window_bounds = array<i64: 1, 2>}, {transform_indices = @transform_4, window_bounds = array<i64: 1, 1, 64, 8>}, {transform_indices = @transform_5, window_bounds = array<i64: 1, 1, 8>}, {transform_indices = @transform_6, window_bounds = array<i64: 1, 1, 8>}]} {
    %c0_i32 = arith.constant 0 : i32
    %0 = arith.cmpi eq, %arg2, %c0_i32 : i32
    %1 = arith.extui %0 : i1 to i32
    %c0_i32_0 = arith.constant 0 : i32
    %2 = arith.cmpi ne, %1, %c0_i32_0 : i32
    scf.if %2 {
      %cst_18 = arith.constant 0.000000e+00 : f32
      %24 = vector.broadcast %cst_18 : f32 to vector<64x8xf32>
      %c0_19 = arith.constant 0 : index
      %c0_20 = arith.constant 0 : index
      %25 = vector.load %arg10[%c0_19, %c0_20] : memref<64x8xf32, #tpu.memory_space<vmem>>, vector<64x8xf32>
      tpu.vector_store %arg10[%c0_19, %c0_20], %24 {strides = array<i32>} : memref<64x8xf32, #tpu.memory_space<vmem>>, vector<64x8xf32>,
    } else {
    }
    %c0 = arith.constant 0 : index
    %c0_1 = arith.constant 0 : index
    %c0_2 = arith.constant 0 : index
    %c0_3 = arith.constant 0 : index
    %3 = vector.load %arg3[%c0, %c0_1, %c0_2, %c0_3] : memref<1x1x64x2xbf16, #tpu.memory_space<vmem>>, vector<1x1x64x2xbf16>
    %4 = vector.shape_cast %3 : vector<1x1x64x2xbf16> to vector<64x2xbf16>
    %5 = arith.extf %4 : vector<64x2xbf16> to vector<64x2xf32>
    %c0_4 = arith.constant 0 : index
    %c0_5 = arith.constant 0 : index
    %6 = vector.load %arg5[%c0_4, %c0_5] : memref<1x2xf32, #tpu.memory_space<vmem>>, vector<1x2xf32>
    %7 = vector.broadcast %6 : vector<1x2xf32> to vector<64x2xf32>
    %8 = arith.mulf %5, %7 : vector<64x2xf32>
    %c0_6 = arith.constant 0 : index
    %c0_7 = arith.constant 0 : index
    %9 = vector.load %arg6[%c0_6, %c0_7] : memref<1x2xf32, #tpu.memory_space<vmem>>, vector<1x2xf32>
    %10 = vector.broadcast %9 : vector<1x2xf32> to vector<64x2xf32>
    %11 = arith.addf %8, %10 : vector<64x2xf32>
    %cst = arith.constant 0.000000e+00 : f32
    %12 = vector.broadcast %cst : f32 to vector<64x2xf32>
    %13 = arith.maximumf %11, %12 : vector<64x2xf32>
    %c0_8 = arith.constant 0 : index
    %c0_9 = arith.constant 0 : index
    %14 = vector.load %arg10[%c0_8, %c0_9] : memref<64x8xf32, #tpu.memory_space<vmem>>, vector<64x8xf32>
    %15 = arith.truncf %13 : vector<64x2xf32> to vector<64x2xbf16>
    %c0_10 = arith.constant 0 : index
    %c0_11 = arith.constant 0 : index
    %c0_12 = arith.constant 0 : index
    %16 = vector.load %arg4[%c0_10, %c0_11, %c0_12] : memref<1x2x8xbf16, #tpu.memory_space<vmem>>, vector<1x2x8xbf16>
    %17 = vector.shape_cast %16 : vector<1x2x8xbf16> to vector<2x8xbf16>
    %cst_13 = arith.constant dense<0.000000e+00> : vector<64x8xf32>
    %18 = tpu.matmul %15, %17, %cst_13 {dimension_numbers = #tpu.dot_dimension_numbers<[1], [0], [0], [1], [0, 0, 1, 1], [], []>} : vector<64x2xbf16>, vector<2x8xbf16>, vector<64x8xf32> -> vector<64x8xf32>
    %19 = arith.addf %14, %18 : vector<64x8xf32>
    %c0_14 = arith.constant 0 : index
    %c0_15 = arith.constant 0 : index
    %20 = vector.load %arg10[%c0_14, %c0_15] : memref<64x8xf32, #tpu.memory_space<vmem>>, vector<64x8xf32>
    tpu.vector_store %arg10[%c0_14, %c0_15], %19 {strides = array<i32>} : memref<64x8xf32, #tpu.memory_space<vmem>>, vector<64x8xf32>,
    %c0_i32_16 = arith.constant 0 : i32
    %21 = arith.cmpi eq, %arg2, %c0_i32_16 : i32
    %22 = arith.extui %21 : i1 to i32
    %c0_i32_17 = arith.constant 0 : i32
    %23 = arith.cmpi ne, %22, %c0_i32_17 : i32
    scf.if %23 {
      %c0_18 = arith.constant 0 : index
      %c0_19 = arith.constant 0 : index
      %24 = vector.load %arg10[%c0_18, %c0_19] : memref<64x8xf32, #tpu.memory_space<vmem>>, vector<64x8xf32>
      %25 = arith.truncf %24 : vector<64x8xf32> to vector<64x8xbf16>
      %c0_20 = arith.constant 0 : index
      %c0_21 = arith.constant 0 : index
      %c0_22 = arith.constant 0 : index
      %c0_23 = arith.constant 0 : index
      %26 = vector.load %arg7[%c0_20, %c0_21, %c0_22, %c0_23] : memref<1x1x64x8xbf16, #tpu.memory_space<vmem>>, vector<1x1x64x8xbf16>
      %27 = vector.shape_cast %26 : vector<1x1x64x8xbf16> to vector<64x8xbf16>
      %28 = vector.shape_cast %25 : vector<64x8xbf16> to vector<1x1x64x8xbf16>
      tpu.vector_store %arg7[%c0_20, %c0_21, %c0_22, %c0_23], %28 {strides = array<i32>} : memref<1x1x64x8xbf16, #tpu.memory_space<vmem>>, vector<1x1x64x8xbf16>,
      %cst_24 = arith.constant dense<0.000000e+00> : vector<8xf32>
      %29 = vector.multi_reduction <add>, %24, %cst_24 [0] : vector<64x8xf32> to vector<8xf32>
      %30 = vector.shape_cast %29 : vector<8xf32> to vector<1x8xf32>
      %c0_25 = arith.constant 0 : index
      %c0_26 = arith.constant 0 : index
      %c0_27 = arith.constant 0 : index
      %31 = vector.load %arg8[%c0_25, %c0_26, %c0_27] : memref<1x1x8xf32, #tpu.memory_space<vmem>>, vector<1x1x8xf32>
      %32 = vector.shape_cast %31 : vector<1x1x8xf32> to vector<1x8xf32>
      %33 = vector.shape_cast %30 : vector<1x8xf32> to vector<1x1x8xf32>
      tpu.vector_store %arg8[%c0_25, %c0_26, %c0_27], %33 {strides = array<i32>} : memref<1x1x8xf32, #tpu.memory_space<vmem>>, vector<1x1x8xf32>,
      %34 = arith.mulf %24, %24 : vector<64x8xf32>
      %cst_28 = arith.constant dense<0.000000e+00> : vector<8xf32>
      %35 = vector.multi_reduction <add>, %34, %cst_28 [0] : vector<64x8xf32> to vector<8xf32>
      %36 = vector.shape_cast %35 : vector<8xf32> to vector<1x8xf32>
      %c0_29 = arith.constant 0 : index
      %c0_30 = arith.constant 0 : index
      %c0_31 = arith.constant 0 : index
      %37 = vector.load %arg9[%c0_29, %c0_30, %c0_31] : memref<1x1x8xf32, #tpu.memory_space<vmem>>, vector<1x1x8xf32>
      %38 = vector.shape_cast %37 : vector<1x1x8xf32> to vector<1x8xf32>
      %39 = vector.shape_cast %36 : vector<1x8xf32> to vector<1x1x8xf32>
      tpu.vector_store %arg9[%c0_29, %c0_30, %c0_31], %39 {strides = array<i32>} : memref<1x1x8xf32, #tpu.memory_space<vmem>>, vector<1x1x8xf32>,
    } else {
    }
    return
  }
  func.func @transform_0(%arg0: i32, %arg1: i32, %arg2: i32) -> (i32, i32, i32, i32) {
    %c2_i32 = arith.constant 2 : i32
    %0 = arith.muli %c2_i32, %arg1 : i32
    %1 = arith.addi %0, %arg2 : i32
    %c0_i32 = arith.constant 0 : i32
    %c0_i32_0 = arith.constant 0 : i32
    %c0_i32_1 = arith.constant 0 : i32
    return %arg0, %1, %c0_i32, %c0_i32_0 : i32, i32, i32, i32
  }
  func.func @transform_1(%arg0: i32, %arg1: i32, %arg2: i32) -> (i32, i32, i32) {
    %c0_i32 = arith.constant 0 : i32
    %c0_i32_0 = arith.constant 0 : i32
    %c0_i32_1 = arith.constant 0 : i32
    return %arg2, %c0_i32, %c0_i32_0 : i32, i32, i32
  }
  func.func @transform_2(%arg0: i32, %arg1: i32, %arg2: i32) -> (i32, i32) {
    %c0_i32 = arith.constant 0 : i32
    %c0_i32_0 = arith.constant 0 : i32
    %c0_i32_1 = arith.constant 0 : i32
    return %c0_i32, %c0_i32_0 : i32, i32
  }
  func.func @transform_3(%arg0: i32, %arg1: i32, %arg2: i32) -> (i32, i32) {
    %c0_i32 = arith.constant 0 : i32
    %c0_i32_0 = arith.constant 0 : i32
    %c0_i32_1 = arith.constant 0 : i32
    return %c0_i32, %c0_i32_0 : i32, i32
  }
  func.func @transform_4(%arg0: i32, %arg1: i32, %arg2: i32) -> (i32, i32, i32, i32) {
    %c0_i32 = arith.constant 0 : i32
    %c0_i32_0 = arith.constant 0 : i32
    %c0_i32_1 = arith.constant 0 : i32
    return %arg0, %arg1, %c0_i32, %c0_i32_0 : i32, i32, i32, i32
  }
  func.func @transform_5(%arg0: i32, %arg1: i32, %arg2: i32) -> (i32, i32, i32) {
    %c4_i32 = arith.constant 4 : i32
    %0 = arith.muli %arg0, %c4_i32 : i32
    %1 = arith.addi %0, %arg1 : i32
    %c0_i32 = arith.constant 0 : i32
    %c0_i32_0 = arith.constant 0 : i32
    %c0_i32_1 = arith.constant 0 : i32
    return %1, %c0_i32, %c0_i32_0 : i32, i32, i32
  }
  func.func @transform_6(%arg0: i32, %arg1: i32, %arg2: i32) -> (i32, i32, i32) {
    %c4_i32 = arith.constant 4 : i32
    %0 = arith.muli %arg0, %c4_i32 : i32
    %1 = arith.addi %0, %arg1 : i32
    %c0_i32 = arith.constant 0 : i32
    %c0_i32_0 = arith.constant 0 : i32
    %c0_i32_1 = arith.constant 0 : i32
    return %1, %c0_i32, %c0_i32_0 : i32, i32, i32
  }
}

module attributes {stable_mosaic.version = 11 : i64} {
  func.func @_res_epilogue_affine_kernel(%arg0: i32, %arg1: memref<8x512xbf16, #tpu.memory_space<vmem>>, %arg2: memref<8x512xbf16, #tpu.memory_space<vmem>>, %arg3: memref<1x512xf32, #tpu.memory_space<vmem>>, %arg4: memref<1x512xf32, #tpu.memory_space<vmem>>, %arg5: memref<1x512xf32, #tpu.memory_space<vmem>>, %arg6: memref<1x512xf32, #tpu.memory_space<vmem>>, %arg7: memref<8x512xbf16, #tpu.memory_space<vmem>>) attributes {dimension_semantics = [#tpu.dimension_semantics<parallel>], iteration_bounds = array<i64: 1>, scalar_prefetch = 0 : i64, scratch_operands = 0 : i64, tpu.core_type = #tpu.core_type<tc>, window_params = [{transform_indices = @transform_0, window_bounds = array<i64: 8, 512>}, {transform_indices = @transform_1, window_bounds = array<i64: 8, 512>}, {pipeline_mode = #tpu.pipeline_mode<synchronous>, transform_indices = @transform_2, window_bounds = array<i64: 1, 512>}, {pipeline_mode = #tpu.pipeline_mode<synchronous>, transform_indices = @transform_3, window_bounds = array<i64: 1, 512>}, {pipeline_mode = #tpu.pipeline_mode<synchronous>, transform_indices = @transform_4, window_bounds = array<i64: 1, 512>}, {pipeline_mode = #tpu.pipeline_mode<synchronous>, transform_indices = @transform_5, window_bounds = array<i64: 1, 512>}, {transform_indices = @transform_6, window_bounds = array<i64: 8, 512>}]} {
    %c0 = arith.constant 0 : index
    %c0_0 = arith.constant 0 : index
    %0 = vector.load %arg1[%c0, %c0_0] : memref<8x512xbf16, #tpu.memory_space<vmem>>, vector<8x512xbf16>
    %1 = arith.extf %0 : vector<8x512xbf16> to vector<8x512xf32>
    %c0_1 = arith.constant 0 : index
    %c0_2 = arith.constant 0 : index
    %2 = vector.load %arg3[%c0_1, %c0_2] : memref<1x512xf32, #tpu.memory_space<vmem>>, vector<1x512xf32>
    %3 = vector.broadcast %2 : vector<1x512xf32> to vector<8x512xf32>
    %4 = arith.mulf %1, %3 : vector<8x512xf32>
    %c0_3 = arith.constant 0 : index
    %c0_4 = arith.constant 0 : index
    %5 = vector.load %arg4[%c0_3, %c0_4] : memref<1x512xf32, #tpu.memory_space<vmem>>, vector<1x512xf32>
    %6 = vector.broadcast %5 : vector<1x512xf32> to vector<8x512xf32>
    %7 = arith.addf %4, %6 : vector<8x512xf32>
    %c0_5 = arith.constant 0 : index
    %c0_6 = arith.constant 0 : index
    %8 = vector.load %arg2[%c0_5, %c0_6] : memref<8x512xbf16, #tpu.memory_space<vmem>>, vector<8x512xbf16>
    %9 = arith.extf %8 : vector<8x512xbf16> to vector<8x512xf32>
    %c0_7 = arith.constant 0 : index
    %c0_8 = arith.constant 0 : index
    %10 = vector.load %arg5[%c0_7, %c0_8] : memref<1x512xf32, #tpu.memory_space<vmem>>, vector<1x512xf32>
    %11 = vector.broadcast %10 : vector<1x512xf32> to vector<8x512xf32>
    %12 = arith.mulf %9, %11 : vector<8x512xf32>
    %13 = arith.addf %7, %12 : vector<8x512xf32>
    %c0_9 = arith.constant 0 : index
    %c0_10 = arith.constant 0 : index
    %14 = vector.load %arg6[%c0_9, %c0_10] : memref<1x512xf32, #tpu.memory_space<vmem>>, vector<1x512xf32>
    %15 = vector.broadcast %14 : vector<1x512xf32> to vector<8x512xf32>
    %16 = arith.addf %13, %15 : vector<8x512xf32>
    %cst = arith.constant 0.000000e+00 : f32
    %17 = vector.broadcast %cst : f32 to vector<8x512xf32>
    %18 = arith.maximumf %16, %17 : vector<8x512xf32>
    %19 = arith.truncf %18 : vector<8x512xf32> to vector<8x512xbf16>
    %c0_11 = arith.constant 0 : index
    %c0_12 = arith.constant 0 : index
    %20 = vector.load %arg7[%c0_11, %c0_12] : memref<8x512xbf16, #tpu.memory_space<vmem>>, vector<8x512xbf16>
    tpu.vector_store %arg7[%c0_11, %c0_12], %19 {strides = array<i32>} : memref<8x512xbf16, #tpu.memory_space<vmem>>, vector<8x512xbf16>,
    return
  }
  func.func @transform_0(%arg0: i32) -> (i32, i32) {
    %c0_i32 = arith.constant 0 : i32
    %c0_i32_0 = arith.constant 0 : i32
    return %arg0, %c0_i32 : i32, i32
  }
  func.func @transform_1(%arg0: i32) -> (i32, i32) {
    %c0_i32 = arith.constant 0 : i32
    %c0_i32_0 = arith.constant 0 : i32
    return %arg0, %c0_i32 : i32, i32
  }
  func.func @transform_2(%arg0: i32) -> (i32, i32) {
    %c0_i32 = arith.constant 0 : i32
    %c0_i32_0 = arith.constant 0 : i32
    %c0_i32_1 = arith.constant 0 : i32
    return %c0_i32, %c0_i32_0 : i32, i32
  }
  func.func @transform_3(%arg0: i32) -> (i32, i32) {
    %c0_i32 = arith.constant 0 : i32
    %c0_i32_0 = arith.constant 0 : i32
    %c0_i32_1 = arith.constant 0 : i32
    return %c0_i32, %c0_i32_0 : i32, i32
  }
  func.func @transform_4(%arg0: i32) -> (i32, i32) {
    %c0_i32 = arith.constant 0 : i32
    %c0_i32_0 = arith.constant 0 : i32
    %c0_i32_1 = arith.constant 0 : i32
    return %c0_i32, %c0_i32_0 : i32, i32
  }
  func.func @transform_5(%arg0: i32) -> (i32, i32) {
    %c0_i32 = arith.constant 0 : i32
    %c0_i32_0 = arith.constant 0 : i32
    %c0_i32_1 = arith.constant 0 : i32
    return %c0_i32, %c0_i32_0 : i32, i32
  }
  func.func @transform_6(%arg0: i32) -> (i32, i32) {
    %c0_i32 = arith.constant 0 : i32
    %c0_i32_0 = arith.constant 0 : i32
    return %arg0, %c0_i32 : i32, i32
  }
}

module attributes {stable_mosaic.version = 11 : i64} {
  func.func @_res_epilogue_kernel(%arg0: i32, %arg1: memref<8x512xbf16, #tpu.memory_space<vmem>>, %arg2: memref<8x512xbf16, #tpu.memory_space<vmem>>, %arg3: memref<1x512xf32, #tpu.memory_space<vmem>>, %arg4: memref<1x512xf32, #tpu.memory_space<vmem>>, %arg5: memref<8x512xbf16, #tpu.memory_space<vmem>>) attributes {dimension_semantics = [#tpu.dimension_semantics<parallel>], iteration_bounds = array<i64: 1>, scalar_prefetch = 0 : i64, scratch_operands = 0 : i64, tpu.core_type = #tpu.core_type<tc>, window_params = [{transform_indices = @transform_0, window_bounds = array<i64: 8, 512>}, {transform_indices = @transform_1, window_bounds = array<i64: 8, 512>}, {pipeline_mode = #tpu.pipeline_mode<synchronous>, transform_indices = @transform_2, window_bounds = array<i64: 1, 512>}, {pipeline_mode = #tpu.pipeline_mode<synchronous>, transform_indices = @transform_3, window_bounds = array<i64: 1, 512>}, {transform_indices = @transform_4, window_bounds = array<i64: 8, 512>}]} {
    %c0 = arith.constant 0 : index
    %c0_0 = arith.constant 0 : index
    %0 = vector.load %arg1[%c0, %c0_0] : memref<8x512xbf16, #tpu.memory_space<vmem>>, vector<8x512xbf16>
    %1 = arith.extf %0 : vector<8x512xbf16> to vector<8x512xf32>
    %c0_1 = arith.constant 0 : index
    %c0_2 = arith.constant 0 : index
    %2 = vector.load %arg3[%c0_1, %c0_2] : memref<1x512xf32, #tpu.memory_space<vmem>>, vector<1x512xf32>
    %3 = vector.broadcast %2 : vector<1x512xf32> to vector<8x512xf32>
    %4 = arith.mulf %1, %3 : vector<8x512xf32>
    %c0_3 = arith.constant 0 : index
    %c0_4 = arith.constant 0 : index
    %5 = vector.load %arg4[%c0_3, %c0_4] : memref<1x512xf32, #tpu.memory_space<vmem>>, vector<1x512xf32>
    %6 = vector.broadcast %5 : vector<1x512xf32> to vector<8x512xf32>
    %7 = arith.addf %4, %6 : vector<8x512xf32>
    %c0_5 = arith.constant 0 : index
    %c0_6 = arith.constant 0 : index
    %8 = vector.load %arg2[%c0_5, %c0_6] : memref<8x512xbf16, #tpu.memory_space<vmem>>, vector<8x512xbf16>
    %9 = arith.extf %8 : vector<8x512xbf16> to vector<8x512xf32>
    %10 = arith.addf %7, %9 : vector<8x512xf32>
    %cst = arith.constant 0.000000e+00 : f32
    %11 = vector.broadcast %cst : f32 to vector<8x512xf32>
    %12 = arith.maximumf %10, %11 : vector<8x512xf32>
    %13 = arith.truncf %12 : vector<8x512xf32> to vector<8x512xbf16>
    %c0_7 = arith.constant 0 : index
    %c0_8 = arith.constant 0 : index
    %14 = vector.load %arg5[%c0_7, %c0_8] : memref<8x512xbf16, #tpu.memory_space<vmem>>, vector<8x512xbf16>
    tpu.vector_store %arg5[%c0_7, %c0_8], %13 {strides = array<i32>} : memref<8x512xbf16, #tpu.memory_space<vmem>>, vector<8x512xbf16>,
    return
  }
  func.func @transform_0(%arg0: i32) -> (i32, i32) {
    %c0_i32 = arith.constant 0 : i32
    %c0_i32_0 = arith.constant 0 : i32
    return %arg0, %c0_i32 : i32, i32
  }
  func.func @transform_1(%arg0: i32) -> (i32, i32) {
    %c0_i32 = arith.constant 0 : i32
    %c0_i32_0 = arith.constant 0 : i32
    return %arg0, %c0_i32 : i32, i32
  }
  func.func @transform_2(%arg0: i32) -> (i32, i32) {
    %c0_i32 = arith.constant 0 : i32
    %c0_i32_0 = arith.constant 0 : i32
    %c0_i32_1 = arith.constant 0 : i32
    return %c0_i32, %c0_i32_0 : i32, i32
  }
  func.func @transform_3(%arg0: i32) -> (i32, i32) {
    %c0_i32 = arith.constant 0 : i32
    %c0_i32_0 = arith.constant 0 : i32
    %c0_i32_1 = arith.constant 0 : i32
    return %c0_i32, %c0_i32_0 : i32, i32
  }
  func.func @transform_4(%arg0: i32) -> (i32, i32) {
    %c0_i32 = arith.constant 0 : i32
    %c0_i32_0 = arith.constant 0 : i32
    return %arg0, %c0_i32 : i32, i32
  }
}

module attributes {stable_mosaic.version = 11 : i64} {
  func.func @_mm_stats_kernel(%arg0: i32, %arg1: i32, %arg2: memref<512x72xbf16, #tpu.memory_space<vmem>>, %arg3: memref<72x18xbf16, #tpu.memory_space<vmem>>, %arg4: memref<512x18xbf16, #tpu.memory_space<vmem>>, %arg5: memref<1x1x18xf32, #tpu.memory_space<vmem>>, %arg6: memref<1x1x18xf32, #tpu.memory_space<vmem>>) attributes {dimension_semantics = [#tpu.dimension_semantics<parallel>, #tpu.dimension_semantics<parallel>], iteration_bounds = array<i64: 1, 1>, scalar_prefetch = 0 : i64, scratch_operands = 0 : i64, tpu.core_type = #tpu.core_type<tc>, window_params = [{transform_indices = @transform_0, window_bounds = array<i64: 512, 72>}, {transform_indices = @transform_1, window_bounds = array<i64: 72, 18>}, {transform_indices = @transform_2, window_bounds = array<i64: 512, 18>}, {transform_indices = @transform_3, window_bounds = array<i64: 1, 1, 18>}, {transform_indices = @transform_4, window_bounds = array<i64: 1, 1, 18>}]} {
    %c0 = arith.constant 0 : index
    %c0_0 = arith.constant 0 : index
    %0 = vector.load %arg2[%c0, %c0_0] : memref<512x72xbf16, #tpu.memory_space<vmem>>, vector<512x72xbf16>
    %c0_1 = arith.constant 0 : index
    %c0_2 = arith.constant 0 : index
    %1 = vector.load %arg3[%c0_1, %c0_2] : memref<72x18xbf16, #tpu.memory_space<vmem>>, vector<72x18xbf16>
    %cst = arith.constant dense<0.000000e+00> : vector<512x18xf32>
    %2 = tpu.matmul %0, %1, %cst {dimension_numbers = #tpu.dot_dimension_numbers<[1], [0], [0], [1], [0, 0, 1, 1], [], []>} : vector<512x72xbf16>, vector<72x18xbf16>, vector<512x18xf32> -> vector<512x18xf32>
    %3 = arith.truncf %2 : vector<512x18xf32> to vector<512x18xbf16>
    %c0_3 = arith.constant 0 : index
    %c0_4 = arith.constant 0 : index
    %4 = vector.load %arg4[%c0_3, %c0_4] : memref<512x18xbf16, #tpu.memory_space<vmem>>, vector<512x18xbf16>
    tpu.vector_store %arg4[%c0_3, %c0_4], %3 {strides = array<i32>} : memref<512x18xbf16, #tpu.memory_space<vmem>>, vector<512x18xbf16>,
    %cst_5 = arith.constant dense<0.000000e+00> : vector<18xf32>
    %5 = vector.multi_reduction <add>, %2, %cst_5 [0] : vector<512x18xf32> to vector<18xf32>
    %6 = vector.shape_cast %5 : vector<18xf32> to vector<1x18xf32>
    %c0_6 = arith.constant 0 : index
    %c0_7 = arith.constant 0 : index
    %c0_8 = arith.constant 0 : index
    %7 = vector.load %arg5[%c0_6, %c0_7, %c0_8] : memref<1x1x18xf32, #tpu.memory_space<vmem>>, vector<1x1x18xf32>
    %8 = vector.shape_cast %7 : vector<1x1x18xf32> to vector<1x18xf32>
    %9 = vector.shape_cast %6 : vector<1x18xf32> to vector<1x1x18xf32>
    tpu.vector_store %arg5[%c0_6, %c0_7, %c0_8], %9 {strides = array<i32>} : memref<1x1x18xf32, #tpu.memory_space<vmem>>, vector<1x1x18xf32>,
    %10 = arith.mulf %2, %2 : vector<512x18xf32>
    %cst_9 = arith.constant dense<0.000000e+00> : vector<18xf32>
    %11 = vector.multi_reduction <add>, %10, %cst_9 [0] : vector<512x18xf32> to vector<18xf32>
    %12 = vector.shape_cast %11 : vector<18xf32> to vector<1x18xf32>
    %c0_10 = arith.constant 0 : index
    %c0_11 = arith.constant 0 : index
    %c0_12 = arith.constant 0 : index
    %13 = vector.load %arg6[%c0_10, %c0_11, %c0_12] : memref<1x1x18xf32, #tpu.memory_space<vmem>>, vector<1x1x18xf32>
    %14 = vector.shape_cast %13 : vector<1x1x18xf32> to vector<1x18xf32>
    %15 = vector.shape_cast %12 : vector<1x18xf32> to vector<1x1x18xf32>
    tpu.vector_store %arg6[%c0_10, %c0_11, %c0_12], %15 {strides = array<i32>} : memref<1x1x18xf32, #tpu.memory_space<vmem>>, vector<1x1x18xf32>,
    return
  }
  func.func @transform_0(%arg0: i32, %arg1: i32) -> (i32, i32) {
    %c0_i32 = arith.constant 0 : i32
    %c0_i32_0 = arith.constant 0 : i32
    return %arg0, %c0_i32 : i32, i32
  }
  func.func @transform_1(%arg0: i32, %arg1: i32) -> (i32, i32) {
    %c0_i32 = arith.constant 0 : i32
    %c0_i32_0 = arith.constant 0 : i32
    return %c0_i32, %arg1 : i32, i32
  }
  func.func @transform_2(%arg0: i32, %arg1: i32) -> (i32, i32) {
    %c0_i32 = arith.constant 0 : i32
    return %arg0, %arg1 : i32, i32
  }
  func.func @transform_3(%arg0: i32, %arg1: i32) -> (i32, i32, i32) {
    %c0_i32 = arith.constant 0 : i32
    %c0_i32_0 = arith.constant 0 : i32
    return %arg0, %c0_i32, %arg1 : i32, i32, i32
  }
  func.func @transform_4(%arg0: i32, %arg1: i32) -> (i32, i32, i32) {
    %c0_i32 = arith.constant 0 : i32
    %c0_i32_0 = arith.constant 0 : i32
    return %arg0, %c0_i32, %arg1 : i32, i32, i32
  }
}

</mosaic_0001>

<llo_original>
// kernel: res_layer_forward.12
$region0: #{res_layer_forward.12}
  #allocation0 [shape = 'u32[]', space=smem, size = 0x4, offset = 0x4, fixed_abs, tag = 'smem constant byte address 0x4 - core index']
  #allocation1 [shape = 'u32[144,128]{1,0:T(1,128)}', space=vmem, size = 0x12000, scoped, tag = 'internal scratch']
  %s0 = inlined_call_operand.vmem [shape: bf16[1024,36], index: 0, kind: input, shape index: {}]
  %s1 = inlined_call_operand.vmem [shape: bf16[36,14], index: 1, kind: input, shape index: {}]
  %s2 = inlined_call_operand.vmem [shape: bf16[1024,14], index: 2, kind: output, shape index: {0}]
  %s3 = inlined_call_operand.vmem [shape: f32[2,1,14], index: 3, kind: output, shape index: {1}]
  %s4 = inlined_call_operand.vmem [shape: f32[2,1,14], index: 4, kind: output, shape index: {2}]
  %5 = xla_tuple %s2, %s3, %s4
  %s6 = sld [smem:[#allocation0]]
  $region57: #{res_layer_forward.12} parent=0
    _
  %s8 = ssub.s32 1, %s6
  %s9 = scalar_select 0, %s8, %s6
  loop: start=0, step=1, limit=4
  $region2: #{res_layer_forward.12} parent=0 // loop_pre_header
    _
  $region3: #{res_layer_forward.12} parent=0 // loop_header
    %s11 = sphi 0, %s15
    %p12 = scmp.ge.s32.totalorder %s11, 4
    %s18 = sphi 0, %s30
    %s19 = sphi 0, %s26
    %s20 = sphi 0, %s18
    %s21 = sphi 0, %s19
    %s22 = sphi 0, %s20
    %s23 = sphi 0, %s21
    %s33 = sphi 0, %s35
    %s36 = sphi 0, %s33
    %s37 = sphi 0, %s36
    %s53 = sphi 0, %s37
    %s59 = sphi 0, %s61
    %s62 = sphi 0, %s59
    %s63 = sphi 0, %s62
    %s79 = sphi 0, %s63
    %s87 = sphi 0, %s89
    %s90 = sphi 0, %s87
    %s91 = sphi 0, %s90
    %s107 = sphi 0, %s91
    %s115 = sphi 0, %s117
    %s118 = sphi 0, %s115
    %s119 = sphi 0, %s118
    %s135 = sphi 0, %s119
    %s143 = sphi 0, %s145
    %s146 = sphi 0, %s143
    %s147 = sphi 0, %s146
    %s163 = sphi 0, %s147
  $region4: #{res_layer_forward.12} parent=0 // loop_header_branch
    %14 = sbr.rel (%p12) target = $region8
  $region5: #{res_layer_forward.12} parent=0 // loop_body
    %s16 = ssub.s32 %s11, 1
    %s17 = ssub.s32 %s11, 2
    %s24 = sadd.s32 1, %s19
    %p25 = scmp.ge.s32.totalorder %s24, 1
    %s26 = scalar_select %p25, 0, %s24
    %s27 = sadd.s32 1, %s18
    %s28 = scalar_select %p25, %s27, %s18
    %p29 = scmp.ge.s32.totalorder %s28, 2
    %s30 = scalar_select %p29, 0, %s28
    %s31 = ssub.s32 %s18, %s30
    %p32 = scmp.eq.s32.totalorder %s31, 0
    %s34 = sadd.s32 %s33, 1
    %s35 = scalar_select %p32, %s33, %s34
    %p38 = pneg %p32
    %p39 = scmp.eq.s32.totalorder %s11, 1
    %p40 = por %p38, %p39
    %p41 = scmp.ne.s32.totalorder %s33, %s36
    %p42 = scmp.eq.s32.totalorder %s11, 0
    %p43 = por %p41, %p42
    %p44 = scmp.ne.s32.totalorder %s33, %s36
    %p45 = scmp.eq.s32.totalorder %s16, 1
    %p46 = por %p44, %p45
    %p47 = scmp.ne.s32.totalorder %s36, %s37
    %p48 = scmp.eq.s32.totalorder %s16, 0
    %p49 = por %p47, %p48
    %p50 = scmp.ne.s32.totalorder %s36, %s37
    %p51 = scmp.eq.s32.totalorder %s17, 1
    %p52 = por %p50, %p51
    %p54 = scmp.ne.s32.totalorder %s37, %s53
    %p55 = scmp.eq.s32.totalorder %s17, 0
    %p56 = por %p54, %p55
    %s57 = ssub.s32 %s19, %s26
    %p58 = scmp.eq.s32.totalorder %s57, 0
    %s60 = sadd.s32 %s59, 1
    %s61 = scalar_select %p58, %s59, %s60
    %p64 = pneg %p58
    %p65 = scmp.eq.s32.totalorder %s11, 1
    %p66 = por %p64, %p65
    %p67 = scmp.ne.s32.totalorder %s59, %s62
    %p68 = scmp.eq.s32.totalorder %s11, 0
    %p69 = por %p67, %p68
    %p70 = scmp.ne.s32.totalorder %s59, %s62
    %p71 = scmp.eq.s32.totalorder %s16, 1
    %p72 = por %p70, %p71
    %p73 = scmp.ne.s32.totalorder %s62, %s63
    %p74 = scmp.eq.s32.totalorder %s16, 0
    %p75 = por %p73, %p74
    %p76 = scmp.ne.s32.totalorder %s62, %s63
    %p77 = scmp.eq.s32.totalorder %s17, 1
    %p78 = por %p76, %p77
    %p80 = scmp.ne.s32.totalorder %s63, %s79
    %p81 = scmp.eq.s32.totalorder %s17, 0
    %p82 = por %p80, %p81
    %s83 = ssub.s32 %s18, %s30
    %s84 = ssub.s32 %s19, %s26
    %s85 = sor.u32 %s83, %s84
    %p86 = scmp.eq.s32.totalorder %s85, 0
    %s88 = sadd.s32 %s87, 1
    %s89 = scalar_select %p86, %s87, %s88
    %p92 = pneg %p86
    %p93 = scmp.eq.s32.totalorder %s11, 1
    %p94 = por %p92, %p93
    %p95 = scmp.ne.s32.totalorder %s87, %s90
    %p96 = scmp.eq.s32.totalorder %s11, 0
    %p97 = por %p95, %p96
    %p98 = scmp.ne.s32.totalorder %s87, %s90
    %p99 = scmp.eq.s32.totalorder %s16, 1
    %p100 = por %p98, %p99
    %p101 = scmp.ne.s32.totalorder %s90, %s91
    %p102 = scmp.eq.s32.totalorder %s16, 0
    %p103 = por %p101, %p102
    %p104 = scmp.ne.s32.totalorder %s90, %s91
    %p105 = scmp.eq.s32.totalorder %s17, 1
    %p106 = por %p104, %p105
    %p108 = scmp.ne.s32.totalorder %s91, %s107
    %p109 = scmp.eq.s32.totalorder %s17, 0
    %p110 = por %p108, %p109
    %s111 = ssub.s32 %s18, %s30
    %s112 = ssub.s32 %s19, %s26
    %s113 = sor.u32 %s111, %s112
    %p114 = scmp.eq.s32.totalorder %s113, 0
    %s116 = sadd.s32 %s115, 1
    %s117 = scalar_select %p114, %s115, %s116
    %p120 = pneg %p114
    %p121 = scmp.eq.s32.totalorder %s11, 1
    %p122 = por %p120, %p121
    %p123 = scmp.ne.s32.totalorder %s115, %s118
    %p124 = scmp.eq.s32.totalorder %s11, 0
    %p125 = por %p123, %p124
    %p126 = scmp.ne.s32.totalorder %s115, %s118
    %p127 = scmp.eq.s32.totalorder %s16, 1
    %p128 = por %p126, %p127
    %p129 = scmp.ne.s32.totalorder %s118, %s119
    %p130 = scmp.eq.s32.totalorder %s16, 0
    %p131 = por %p129, %p130
    %p132 = scmp.ne.s32.totalorder %s118, %s119
    %p133 = scmp.eq.s32.totalorder %s17, 1
    %p134 = por %p132, %p133
    %p136 = scmp.ne.s32.totalorder %s119, %s135
    %p137 = scmp.eq.s32.totalorder %s17, 0
    %p138 = por %p136, %p137
    %s139 = ssub.s32 %s18, %s30
    %s140 = ssub.s32 %s19, %s26
    %s141 = sor.u32 %s139, %s140
    %p142 = scmp.eq.s32.totalorder %s141, 0
    %s144 = sadd.s32 %s143, 1
    %s145 = scalar_select %p142, %s143, %s144
    %p148 = pneg %p142
    %p149 = scmp.eq.s32.totalorder %s11, 1
    %p150 = por %p148, %p149
    %p151 = scmp.ne.s32.totalorder %s143, %s146
    %p152 = scmp.eq.s32.totalorder %s11, 0
    %p153 = por %p151, %p152
    %p154 = scmp.ne.s32.totalorder %s143, %s146
    %p155 = scmp.eq.s32.totalorder %s16, 1
    %p156 = por %p154, %p155
    %p157 = scmp.ne.s32.totalorder %s146, %s147
    %p158 = scmp.eq.s32.totalorder %s16, 0
    %p159 = por %p157, %p158
    %p160 = scmp.ne.s32.totalorder %s146, %s147
    %p161 = scmp.eq.s32.totalorder %s17, 1
    %p162 = por %p160, %p161
    %p164 = scmp.ne.s32.totalorder %s147, %s163
    %p165 = scmp.eq.s32.totalorder %s17, 0
    %p166 = por %p164, %p165
    %p167 = scmp.le.s32.totalorder 1, %s11
    %p168 = scmp.lt.s32.totalorder %s11, 3
    %p169 = pnand %p167, %p168
    %p170 = pneg %p169
    // Predicated region
    $region9: #{res_layer_forward.12} parent=5 // pred_check
      _
    $region10: #{res_layer_forward.12} parent=5 // pred_check_branch
      %172 = sbr.rel (%p169) target = $region12
    $region11: #{res_layer_forward.12} parent=5 // pred_region
      %s173 = ssub.s32 %s11, 1
      // Predicated region
      $region13: #{res_layer_forward.12} parent=11 // pred_check
        %p174 = pneg %p75
      $region14: #{res_layer_forward.12} parent=11 // pred_check_branch
        %176 = sbr.rel (%p174) target = $region16
      $region15: #{res_layer_forward.12} parent=11 // pred_region
        %p177 = scmp.lt.s32.totalorder %s21, 0
        %s178 = scalar_select %p177, %s21, 0
        %s179 = smul.addr %s178, 4
        %s180 = scalar_lea.vmem %s1, %s179
      $region16: #{res_layer_forward.12} parent=11 // pred_fallthru
        _
    $region12: #{res_layer_forward.12} parent=5 // pred_fallthru
      _
    %p181 = scmp.lt.s32.totalorder %s11, 2
    // Predicated region
    $region17: #{res_layer_forward.12} parent=5 // pred_check
      %p182 = pneg %p181
    $region18: #{res_layer_forward.12} parent=5 // pred_check_branch
      %184 = sbr.rel (%p182) target = $region20
    $region19: #{res_layer_forward.12} parent=5 // pred_region
      // Predicated region
      $region21: #{res_layer_forward.12} parent=19 // pred_check
        %p185 = pneg %p43
      $region22: #{res_layer_forward.12} parent=19 // pred_check_branch
        %187 = sbr.rel (%p185) target = $region24
      $region23: #{res_layer_forward.12} parent=19 // pred_region
        %s188 = smul.u32 64, %s18
        %p189 = scmp.lt.s32.totalorder %s188, 127
        %s190 = scalar_select %p189, %s188, 127
        %s191 = smul.addr %s190, 4
        %s192 = scalar_lea.vmem %s0, %s191
        %s193 = smul.u32 64, %s18
      $region24: #{res_layer_forward.12} parent=19 // pred_fallthru
        _
    $region20: #{res_layer_forward.12} parent=5 // pred_fallthru
      _
    %p194 = scmp.le.s32.totalorder 1, %s11
    %p195 = scmp.lt.s32.totalorder %s11, 3
    %p196 = pnand %p194, %p195
    %p197 = pneg %p196
    // Predicated region
    $region25: #{res_layer_forward.12} parent=5 // pred_check
      _
    $region26: #{res_layer_forward.12} parent=5 // pred_check_branch
      %199 = sbr.rel (%p196) target = $region28
    $region27: #{res_layer_forward.12} parent=5 // pred_region
      %s200 = ssub.s32 %s11, 1
      %s201 = smul.u32 64, %s20
      %p202 = scmp.lt.s32.totalorder %s201, 127
      %s203 = scalar_select %p202, %s201, 127
      %s204 = smul.addr %s203, 4
      %s205 = scalar_lea.vmem %s0, %s204
      %p206 = pneg %p49
      %p207 = pneg %p46
      %p208 = scmp.lt.s32.totalorder %s21, 0
      %s209 = scalar_select %p208, %s21, 0
      %s210 = smul.addr %s209, 4
      %s211 = scalar_lea.vmem %s1, %s210
      %p212 = pneg %p75
      %p213 = pneg %p72
      %p214 = pneg %p103
      %p215 = pneg %p100
      %s216 = smul.u32 64, %s20
      %p217 = scmp.lt.s32.totalorder %s216, 127
      %s218 = scalar_select %p217, %s216, 127
      %p219 = scmp.lt.s32.totalorder %s21, 0
      %s220 = scalar_select %p219, %s21, 0
      %s221 = sadd.s32 %s220, %s218
      %s222 = smul.addr %s221, 4
      %s223 = scalar_lea.vmem %s2, %s222
      %p224 = pneg %p131
      %p225 = pneg %p128
      %p226 = scmp.lt.s32.totalorder %s20, 1
      %s227 = scalar_select %p226, %s20, 1
      %p228 = scmp.lt.s32.totalorder %s21, 0
      %s229 = scalar_select %p228, %s21, 0
      %s230 = sadd.s32 %s229, %s227
      %s231 = scalar_lea.vmem %s3, %s230
      %p232 = pneg %p159
      %p233 = pneg %p156
      %p234 = scmp.lt.s32.totalorder %s20, 1
      %s235 = scalar_select %p234, %s20, 1
      %p236 = scmp.lt.s32.totalorder %s21, 0
      %s237 = scalar_select %p236, %s21, 0
      %s238 = sadd.s32 %s237, %s235
      %s239 = scalar_lea.vmem %s4, %s238
      %s240 = smul.u32 64, %s20
      %p241 = scmp.lt.s32.totalorder %s240, 127
      %s242 = scalar_select %p241, %s240, 127
      %s243 = smul.addr %s242, 4
      %s244 = scalar_lea.vmem %s0, %s243
      %s245 = smul.u32 64, %s20
      %p246 = scmp.lt.s32.totalorder %s21, 0
      %s247 = scalar_select %p246, %s21, 0
      %s248 = smul.addr %s247, 4
      %s249 = scalar_lea.vmem %s1, %s248
      %s250 = smul.u32 64, %s20
      %p251 = scmp.lt.s32.totalorder %s250, 127
      %s252 = scalar_select %p251, %s250, 127
      %p253 = scmp.lt.s32.totalorder %s21, 0
      %s254 = scalar_select %p253, %s21, 0
      %s255 = sadd.s32 %s254, %s252
      %s256 = smul.addr %s255, 4
      %s257 = scalar_lea.vmem %s2, %s256
      %s258 = smul.u32 64, %s20
      %p259 = scmp.lt.s32.totalorder %s20, 1
      %s260 = scalar_select %p259, %s20, 1
      %p261 = scmp.lt.s32.totalorder %s21, 0
      %s262 = scalar_select %p261, %s21, 0
      %s263 = sadd.s32 %s262, %s260
      %s264 = scalar_lea.vmem %s3, %s263
      %p265 = scmp.lt.s32.totalorder %s20, 1
      %s266 = scalar_select %p265, %s20, 1
      %p267 = scmp.lt.s32.totalorder %s21, 0
      %s268 = scalar_select %p267, %s21, 0
      %s269 = sadd.s32 %s268, %s266
      %s270 = scalar_lea.vmem %s4, %s269
      %v272 = vld [vmem:[%s244] sm:$0xf]
      %v273 = vld [vmem:[%s244 + $0x4] sm:$0xf]
      %v274 = vld [vmem:[%s244 + $0x8] sm:$0xf]
      %v275 = vld [vmem:[%s244 + $0xc] sm:$0xf]
      %v276 = vld [vmem:[%s244 + $0x10] sm:$0xf]
      %v277 = vld [vmem:[%s244 + $0x14] sm:$0xf]
      %v278 = vld [vmem:[%s244 + $0x18] sm:$0xf]
      %v279 = vld [vmem:[%s244 + $0x1c] sm:$0xf]
      %v280 = vld [vmem:[%s244 + $0x20] sm:$0xf]
      %v281 = vld [vmem:[%s244 + $0x24] sm:$0xf]
      %v282 = vld [vmem:[%s244 + $0x28] sm:$0xf]
      %v283 = vld [vmem:[%s244 + $0x2c] sm:$0xf]
      %v284 = vld [vmem:[%s244 + $0x30] sm:$0xf]
      %v285 = vld [vmem:[%s244 + $0x34] sm:$0xf]
      %v286 = vld [vmem:[%s244 + $0x38] sm:$0xf]
      %v287 = vld [vmem:[%s244 + $0x3c] sm:$0xf]
      %v288 = vld [vmem:[%s244 + $0x40] sm:$0xf]
      %v289 = vld [vmem:[%s244 + $0x44] sm:$0xf]
      %v290 = vld [vmem:[%s244 + $0x48] sm:$0xf]
      %v291 = vld [vmem:[%s244 + $0x4c] sm:$0xf]
      %v292 = vld [vmem:[%s244 + $0x50] sm:$0xf]
      %v293 = vld [vmem:[%s244 + $0x54] sm:$0xf]
      %v294 = vld [vmem:[%s244 + $0x58] sm:$0xf]
      %v295 = vld [vmem:[%s244 + $0x5c] sm:$0xf]
      %v296 = vld [vmem:[%s244 + $0x60] sm:$0xf]
      %v297 = vld [vmem:[%s244 + $0x64] sm:$0xf]
      %v298 = vld [vmem:[%s244 + $0x68] sm:$0xf]
      %v299 = vld [vmem:[%s244 + $0x6c] sm:$0xf]
      %v300 = vld [vmem:[%s244 + $0x70] sm:$0xf]
      %v301 = vld [vmem:[%s244 + $0x74] sm:$0xf]
      %v302 = vld [vmem:[%s244 + $0x78] sm:$0xf]
      %v303 = vld [vmem:[%s244 + $0x7c] sm:$0xf]
      %v304 = vld [vmem:[%s244 + $0x80] sm:$0xf]
      %v305 = vld [vmem:[%s244 + $0x84] sm:$0xf]
      %v306 = vld [vmem:[%s244 + $0x88] sm:$0xf]
      %v307 = vld [vmem:[%s244 + $0x8c] sm:$0xf]
      %v308 = vld [vmem:[%s244 + $0x90] sm:$0xf]
      %v309 = vld [vmem:[%s244 + $0x94] sm:$0xf]
      %v310 = vld [vmem:[%s244 + $0x98] sm:$0xf]
      %v311 = vld [vmem:[%s244 + $0x9c] sm:$0xf]
      %v312 = vld [vmem:[%s244 + $0xa0] sm:$0xf]
      %v313 = vld [vmem:[%s244 + $0xa4] sm:$0xf]
      %v314 = vld [vmem:[%s244 + $0xa8] sm:$0xf]
      %v315 = vld [vmem:[%s244 + $0xac] sm:$0xf]
      %v316 = vld [vmem:[%s244 + $0xb0] sm:$0xf]
      %v317 = vld [vmem:[%s244 + $0xb4] sm:$0xf]
      %v318 = vld [vmem:[%s244 + $0xb8] sm:$0xf]
      %v319 = vld [vmem:[%s244 + $0xbc] sm:$0xf]
      %v320 = vld [vmem:[%s244 + $0xc0] sm:$0xf]
      %v321 = vld [vmem:[%s244 + $0xc4] sm:$0xf]
      %v322 = vld [vmem:[%s244 + $0xc8] sm:$0xf]
      %v323 = vld [vmem:[%s244 + $0xcc] sm:$0xf]
      %v324 = vld [vmem:[%s244 + $0xd0] sm:$0xf]
      %v325 = vld [vmem:[%s244 + $0xd4] sm:$0xf]
      %v326 = vld [vmem:[%s244 + $0xd8] sm:$0xf]
      %v327 = vld [vmem:[%s244 + $0xdc] sm:$0xf]
      %v328 = vld [vmem:[%s244 + $0xe0] sm:$0xf]
      %v329 = vld [vmem:[%s244 + $0xe4] sm:$0xf]
      %v330 = vld [vmem:[%s244 + $0xe8] sm:$0xf]
      %v331 = vld [vmem:[%s244 + $0xec] sm:$0xf]
      %v332 = vld [vmem:[%s244 + $0xf0] sm:$0xf]
      %v333 = vld [vmem:[%s244 + $0xf4] sm:$0xf]
      %v334 = vld [vmem:[%s244 + $0xf8] sm:$0xf]
      %v335 = vld [vmem:[%s244 + $0xfc] sm:$0xf]
      %v336 = vld [vmem:[%s249] sm:$0xf]
      %v337 = vld [vmem:[%s249 + $0x4] sm:$0xf]
      %v338 = vld [vmem:[%s249 + $0x8] sm:$0xf]
      %v339 = vld [vmem:[%s249 + $0xc] sm:$0xf]
      %v340 = vld [vmem:[%s249 + $0x10] sm:$0x3]
      %v405 = vunpack.c.l.b16 %v272
      %v406 = vunpack.c.l.b16 %v273
      %v407 = vunpack.c.l.b16 %v274
      %v408 = vunpack.c.l.b16 %v275
      %v409 = vunpack.c.l.b16 %v276
      %v410 = vunpack.c.l.b16 %v277
      %v411 = vunpack.c.l.b16 %v278
      %v412 = vunpack.c.l.b16 %v279
      %v413 = vunpack.c.l.b16 %v280
      %v414 = vunpack.c.l.b16 %v281
      %v415 = vunpack.c.l.b16 %v282
      %v416 = vunpack.c.l.b16 %v283
      %v417 = vunpack.c.l.b16 %v284
      %v418 = vunpack.c.l.b16 %v285
      %v419 = vunpack.c.l.b16 %v286
      %v420 = vunpack.c.l.b16 %v287
      %v421 = vunpack.c.l.b16 %v288
      %v422 = vunpack.c.l.b16 %v289
      %v423 = vunpack.c.l.b16 %v290
      %v424 = vunpack.c.l.b16 %v291
      %v425 = vunpack.c.l.b16 %v292
      %v426 = vunpack.c.l.b16 %v293
      %v427 = vunpack.c.l.b16 %v294
      %v428 = vunpack.c.l.b16 %v295
      %v429 = vunpack.c.l.b16 %v296
      %v430 = vunpack.c.l.b16 %v297
      %v431 = vunpack.c.l.b16 %v298
      %v432 = vunpack.c.l.b16 %v299
      %v433 = vunpack.c.l.b16 %v300
      %v434 = vunpack.c.l.b16 %v301
      %v435 = vunpack.c.l.b16 %v302
      %v436 = vunpack.c.l.b16 %v303
      %v437 = vunpack.c.l.b16 %v304
      %v438 = vunpack.c.l.b16 %v305
      %v439 = vunpack.c.l.b16 %v306
      %v440 = vunpack.c.l.b16 %v307
      %v441 = vunpack.c.l.b16 %v308
      %v442 = vunpack.c.l.b16 %v309
      %v443 = vunpack.c.l.b16 %v310
      %v444 = vunpack.c.l.b16 %v311
      %v445 = vunpack.c.l.b16 %v312
      %v446 = vunpack.c.l.b16 %v313
      %v447 = vunpack.c.l.b16 %v314
      %v448 = vunpack.c.l.b16 %v315
      %v449 = vunpack.c.l.b16 %v316
      %v450 = vunpack.c.l.b16 %v317
      %v451 = vunpack.c.l.b16 %v318
      %v452 = vunpack.c.l.b16 %v319
      %v453 = vunpack.c.l.b16 %v320
      %v454 = vunpack.c.l.b16 %v321
      %v455 = vunpack.c.l.b16 %v322
      %v456 = vunpack.c.l.b16 %v323
      %v457 = vunpack.c.l.b16 %v324
      %v458 = vunpack.c.l.b16 %v325
      %v459 = vunpack.c.l.b16 %v326
      %v460 = vunpack.c.l.b16 %v327
      %v461 = vunpack.c.l.b16 %v328
      %v462 = vunpack.c.l.b16 %v329
      %v463 = vunpack.c.l.b16 %v330
      %v464 = vunpack.c.l.b16 %v331
      %v465 = vunpack.c.l.b16 %v332
      %v466 = vunpack.c.l.b16 %v333
      %v467 = vunpack.c.l.b16 %v334
      %v468 = vunpack.c.l.b16 %v335
      %v469 = vpack.c.b16 %v406, %v405
      %v470 = vpack.c.b16 %v408, %v407
      %v471 = vpack.c.b16 %v410, %v409
      %v472 = vpack.c.b16 %v412, %v411
      %v473 = vpack.c.b16 %v414, %v413
      %v474 = vpack.c.b16 %v416, %v415
      %v475 = vpack.c.b16 %v418, %v417
      %v476 = vpack.c.b16 %v420, %v419
      %v477 = vpack.c.b16 %v422, %v421
      %v478 = vpack.c.b16 %v424, %v423
      %v479 = vpack.c.b16 %v426, %v425
      %v480 = vpack.c.b16 %v428, %v427
      %v481 = vpack.c.b16 %v430, %v429
      %v482 = vpack.c.b16 %v432, %v431
      %v483 = vpack.c.b16 %v434, %v433
      %v484 = vpack.c.b16 %v436, %v435
      %v485 = vpack.c.b16 %v438, %v437
      %v486 = vpack.c.b16 %v440, %v439
      %v487 = vpack.c.b16 %v442, %v441
      %v488 = vpack.c.b16 %v444, %v443
      %v489 = vpack.c.b16 %v446, %v445
      %v490 = vpack.c.b16 %v448, %v447
      %v491 = vpack.c.b16 %v450, %v449
      %v492 = vpack.c.b16 %v452, %v451
      %v493 = vpack.c.b16 %v454, %v453
      %v494 = vpack.c.b16 %v456, %v455
      %v495 = vpack.c.b16 %v458, %v457
      %v496 = vpack.c.b16 %v460, %v459
      %v497 = vpack.c.b16 %v462, %v461
      %v498 = vpack.c.b16 %v464, %v463
      %v499 = vpack.c.b16 %v466, %v465
      %v500 = vpack.c.b16 %v468, %v467
      %v506 = vunpack.c.l.b16 %v336
      %v507 = vunpack.c.l.b16 %v337
      %v508 = vunpack.c.l.b16 %v338
      %v509 = vunpack.c.l.b16 %v339
      %v510 = vunpack.c.l.b16 %v340
      %v511 = vpack.c.b16 %v507, %v506
      %v512 = vpack.c.b16 %v509, %v508
      %v513 = vpack.c.b16 %v510, %v510
      %vm516 = vcmask 293888
      %v518 = vsel %vm516, %v469, 0
      %v521 = vsel %vm516, %v470, 0
      %v524 = vsel %vm516, %v471, 0
      %v527 = vsel %vm516, %v472, 0
      %v530 = vsel %vm516, %v473, 0
      %v533 = vsel %vm516, %v474, 0
      %v536 = vsel %vm516, %v475, 0
      %v539 = vsel %vm516, %v476, 0
      %v542 = vsel %vm516, %v477, 0
      %v545 = vsel %vm516, %v478, 0
      %v548 = vsel %vm516, %v479, 0
      %v551 = vsel %vm516, %v480, 0
      %v554 = vsel %vm516, %v481, 0
      %v557 = vsel %vm516, %v482, 0
      %v560 = vsel %vm516, %v483, 0
      %v563 = vsel %vm516, %v484, 0
      %v566 = vsel %vm516, %v485, 0
      %v569 = vsel %vm516, %v486, 0
      %v572 = vsel %vm516, %v487, 0
      %v575 = vsel %vm516, %v488, 0
      %v578 = vsel %vm516, %v489, 0
      %v581 = vsel %vm516, %v490, 0
      %v584 = vsel %vm516, %v491, 0
      %v587 = vsel %vm516, %v492, 0
      %v590 = vsel %vm516, %v493, 0
      %v593 = vsel %vm516, %v494, 0
      %v596 = vsel %vm516, %v495, 0
      %v599 = vsel %vm516, %v496, 0
      %v602 = vsel %vm516, %v497, 0
      %v605 = vsel %vm516, %v498, 0
      %v608 = vsel %vm516, %v499, 0
      %v611 = vsel %vm516, %v500, 0
      %vm613 = vcmask 1041408
      %v615 = vsel %vm613, %v513, 0
      %617 = vmatprep.subr.bf16.mxu0 0
      %618 = vmatpush1.bf16.msra.mxu0 0
      %619 = vmatprep.subr.bf16.mxu0 0
      %620 = vmatpush1.bf16.msra.mxu0 0
      %621 = vmatprep.subr.bf16.mxu0 0
      %622 = vmatpush1.bf16.msra.mxu0 0
      %623 = vmatprep.subr.bf16.mxu0 0
      %624 = vmatpush1.bf16.msra.mxu0 0
      %625 = vmatprep.subr.bf16.mxu0 0
      %626 = vmatpush1.bf16.msra.mxu0 0
      %627 = vmatprep.subr.bf16.mxu0 0
      %628 = vmatpush1.bf16.msra.mxu0 %v615
      %629 = vmatprep.subr.bf16.mxu0 0
      %630 = vmatpush1.bf16.msra.mxu0 %v512
      %631 = vmatprep.subr.bf16.mxu0 0
      %632 = vmatpush1.bf16.msra.mxu0 %v511
      %633 = vmatprep.subr.bf16.mxu0 0
      %634 = vmatpush2.bf16.msra.mxu0 0
      %635 = vmatprep.subr.bf16.mxu0 0
      %636 = vmatpush2.bf16.msra.mxu0 0
      %637 = vmatprep.subr.bf16.mxu0 0
      %638 = vmatpush2.bf16.msra.mxu0 0
      %639 = vmatprep.subr.bf16.mxu0 0
      %640 = vmatpush2.bf16.msra.mxu0 0
      %641 = vmatprep.subr.bf16.mxu0 0
      %642 = vmatpush2.bf16.msra.mxu0 0
      %643 = vmatprep.subr.bf16.mxu0 0
      %644 = vmatpush2.bf16.msra.mxu0 0
      %645 = vmatprep.subr.bf16.mxu0 0
      %646 = vmatpush2.bf16.msra.mxu0 0
      %647 = vmatprep.subr.bf16.mxu0 0
      %648 = vmatpush2.bf16.msra.mxu0 0
      %649 = vmatprep.mubr.bf16.mxu0 0
      %650 = vmatmul.mubr.bf16.gmra.mxu0 %v518
      %v651 = vpop.f32.mrf.mxu0
      %v652 = vadd.f32 0.0, %v651
      %v653 = vpop.f32.mrf.mxu0
      %v654 = vpop.f32.mrf.mxu0
      %v655 = vadd.f32 0.0, %v654
      %v656 = vpop.f32.mrf.mxu0
      %657 = vmatprep.mubr.bf16.mxu0 0
      %658 = vmatmul.mubr.bf16.gmra.mxu0 %v521
      %v659 = vpop.f32.mrf.mxu0
      %v660 = vadd.f32 0.0, %v659
      %v661 = vpop.f32.mrf.mxu0
      %v662 = vpop.f32.mrf.mxu0
      %v663 = vadd.f32 0.0, %v662
      %v664 = vpop.f32.mrf.mxu0
      %665 = vmatprep.mubr.bf16.mxu0 0
      %666 = vmatmul.mubr.bf16.gmra.mxu0 %v524
      %v667 = vpop.f32.mrf.mxu0
      %v668 = vadd.f32 0.0, %v667
      %v669 = vpop.f32.mrf.mxu0
      %v670 = vpop.f32.mrf.mxu0
      %v671 = vadd.f32 0.0, %v670
      %v672 = vpop.f32.mrf.mxu0
      %673 = vmatprep.mubr.bf16.mxu0 0
      %674 = vmatmul.mubr.bf16.gmra.mxu0 %v527
      %v675 = vpop.f32.mrf.mxu0
      %v676 = vadd.f32 0.0, %v675
      %v677 = vpop.f32.mrf.mxu0
      %v678 = vpop.f32.mrf.mxu0
      %v679 = vadd.f32 0.0, %v678
      %v680 = vpop.f32.mrf.mxu0
      %681 = vmatprep.mubr.bf16.mxu0 0
      %682 = vmatmul.mubr.bf16.gmra.mxu0 %v530
      %v683 = vpop.f32.mrf.mxu0
      %v684 = vadd.f32 0.0, %v683
      %v685 = vpop.f32.mrf.mxu0
      %v686 = vpop.f32.mrf.mxu0
      %v687 = vadd.f32 0.0, %v686
      %v688 = vpop.f32.mrf.mxu0
      %689 = vmatprep.mubr.bf16.mxu0 0
      %690 = vmatmul.mubr.bf16.gmra.mxu0 %v533
      %v691 = vpop.f32.mrf.mxu0
      %v692 = vadd.f32 0.0, %v691
      %v693 = vpop.f32.mrf.mxu0
      %v694 = vpop.f32.mrf.mxu0
      %v695 = vadd.f32 0.0, %v694
      %v696 = vpop.f32.mrf.mxu0
      %697 = vmatprep.mubr.bf16.mxu0 0
      %698 = vmatmul.mubr.bf16.gmra.mxu0 %v536
      %v699 = vpop.f32.mrf.mxu0
      %v700 = vadd.f32 0.0, %v699
      %v701 = vpop.f32.mrf.mxu0
      %v702 = vpop.f32.mrf.mxu0
      %v703 = vadd.f32 0.0, %v702
      %v704 = vpop.f32.mrf.mxu0
      %705 = vmatprep.mubr.bf16.mxu0 0
      %706 = vmatmul.mubr.bf16.gmra.mxu0 %v539
      %v707 = vpop.f32.mrf.mxu0
      %v708 = vadd.f32 0.0, %v707
      %v709 = vpop.f32.mrf.mxu0
      %v710 = vpop.f32.mrf.mxu0
      %v711 = vadd.f32 0.0, %v710
      %v712 = vpop.f32.mrf.mxu0
      %713 = vmatprep.mubr.bf16.mxu0 0
      %714 = vmatmul.mubr.bf16.gmra.mxu0 %v542
      %v715 = vpop.f32.mrf.mxu0
      %v716 = vadd.f32 0.0, %v715
      %v717 = vpop.f32.mrf.mxu0
      %v718 = vpop.f32.mrf.mxu0
      %v719 = vadd.f32 0.0, %v718
      %v720 = vpop.f32.mrf.mxu0
      %721 = vmatprep.mubr.bf16.mxu0 0
      %722 = vmatmul.mubr.bf16.gmra.mxu0 %v545
      %v723 = vpop.f32.mrf.mxu0
      %v724 = vadd.f32 0.0, %v723
      %v725 = vpop.f32.mrf.mxu0
      %v726 = vpop.f32.mrf.mxu0
      %v727 = vadd.f32 0.0, %v726
      %v728 = vpop.f32.mrf.mxu0
      %729 = vmatprep.mubr.bf16.mxu0 0
      %730 = vmatmul.mubr.bf16.gmra.mxu0 %v548
      %v731 = vpop.f32.mrf.mxu0
      %v732 = vadd.f32 0.0, %v731
      %v733 = vpop.f32.mrf.mxu0
      %v734 = vpop.f32.mrf.mxu0
      %v735 = vadd.f32 0.0, %v734
      %v736 = vpop.f32.mrf.mxu0
      %737 = vmatprep.mubr.bf16.mxu0 0
      %738 = vmatmul.mubr.bf16.gmra.mxu0 %v551
      %v739 = vpop.f32.mrf.mxu0
      %v740 = vadd.f32 0.0, %v739
      %v741 = vpop.f32.mrf.mxu0
      %v742 = vpop.f32.mrf.mxu0
      %v743 = vadd.f32 0.0, %v742
      %v744 = vpop.f32.mrf.mxu0
      %745 = vmatprep.mubr.bf16.mxu0 0
      %746 = vmatmul.mubr.bf16.gmra.mxu0 %v554
      %v747 = vpop.f32.mrf.mxu0
      %v748 = vadd.f32 0.0, %v747
      %v749 = vpop.f32.mrf.mxu0
      %v750 = vpop.f32.mrf.mxu0
      %v751 = vadd.f32 0.0, %v750
      %v752 = vpop.f32.mrf.mxu0
      %753 = vmatprep.mubr.bf16.mxu0 0
      %754 = vmatmul.mubr.bf16.gmra.mxu0 %v557
      %v755 = vpop.f32.mrf.mxu0
      %v756 = vadd.f32 0.0, %v755
      %v757 = vpop.f32.mrf.mxu0
      %v758 = vpop.f32.mrf.mxu0
      %v759 = vadd.f32 0.0, %v758
      %v760 = vpop.f32.mrf.mxu0
      %761 = vmatprep.mubr.bf16.mxu0 0
      %762 = vmatmul.mubr.bf16.gmra.mxu0 %v560
      %v763 = vpop.f32.mrf.mxu0
      %v764 = vadd.f32 0.0, %v763
      %v765 = vpop.f32.mrf.mxu0
      %v766 = vpop.f32.mrf.mxu0
      %v767 = vadd.f32 0.0, %v766
      %v768 = vpop.f32.mrf.mxu0
      %769 = vmatprep.mubr.bf16.mxu0 0
      %770 = vmatmul.mubr.bf16.gmra.mxu0 %v563
      %v771 = vpop.f32.mrf.mxu0
      %v772 = vadd.f32 0.0, %v771
      %v773 = vpop.f32.mrf.mxu0
      %v774 = vpop.f32.mrf.mxu0
      %v775 = vadd.f32 0.0, %v774
      %v776 = vpop.f32.mrf.mxu0
      %777 = vmatprep.mubr.bf16.mxu0 0
      %778 = vmatmul.mubr.bf16.gmra.mxu0 %v566
      %v779 = vpop.f32.mrf.mxu0
      %v780 = vadd.f32 0.0, %v779
      %v781 = vpop.f32.mrf.mxu0
      %v782 = vpop.f32.mrf.mxu0
      %v783 = vadd.f32 0.0, %v782
      %v784 = vpop.f32.mrf.mxu0
      %785 = vmatprep.mubr.bf16.mxu0 0
      %786 = vmatmul.mubr.bf16.gmra.mxu0 %v569
      %v787 = vpop.f32.mrf.mxu0
      %v788 = vadd.f32 0.0, %v787
      %v789 = vpop.f32.mrf.mxu0
      %v790 = vpop.f32.mrf.mxu0
      %v791 = vadd.f32 0.0, %v790
      %v792 = vpop.f32.mrf.mxu0
      %793 = vmatprep.mubr.bf16.mxu0 0
      %794 = vmatmul.mubr.bf16.gmra.mxu0 %v572
      %v795 = vpop.f32.mrf.mxu0
      %v796 = vadd.f32 0.0, %v795
      %v797 = vpop.f32.mrf.mxu0
      %v798 = vpop.f32.mrf.mxu0
      %v799 = vadd.f32 0.0, %v798
      %v800 = vpop.f32.mrf.mxu0
      %801 = vmatprep.mubr.bf16.mxu0 0
      %802 = vmatmul.mubr.bf16.gmra.mxu0 %v575
      %v803 = vpop.f32.mrf.mxu0
      %v804 = vadd.f32 0.0, %v803
      %v805 = vpop.f32.mrf.mxu0
      %v806 = vpop.f32.mrf.mxu0
      %v807 = vadd.f32 0.0, %v806
      %v808 = vpop.f32.mrf.mxu0
      %809 = vmatprep.mubr.bf16.mxu0 0
      %810 = vmatmul.mubr.bf16.gmra.mxu0 %v578
      %v811 = vpop.f32.mrf.mxu0
      %v812 = vadd.f32 0.0, %v811
      %v813 = vpop.f32.mrf.mxu0
      %v814 = vpop.f32.mrf.mxu0
      %v815 = vadd.f32 0.0, %v814
      %v816 = vpop.f32.mrf.mxu0
      %817 = vmatprep.mubr.bf16.mxu0 0
      %818 = vmatmul.mubr.bf16.gmra.mxu0 %v581
      %v819 = vpop.f32.mrf.mxu0
      %v820 = vadd.f32 0.0, %v819
      %v821 = vpop.f32.mrf.mxu0
      %v822 = vpop.f32.mrf.mxu0
      %v823 = vadd.f32 0.0, %v822
      %v824 = vpop.f32.mrf.mxu0
      %825 = vmatprep.mubr.bf16.mxu0 0
      %826 = vmatmul.mubr.bf16.gmra.mxu0 %v584
      %v827 = vpop.f32.mrf.mxu0
      %v828 = vadd.f32 0.0, %v827
      %v829 = vpop.f32.mrf.mxu0
      %v830 = vpop.f32.mrf.mxu0
      %v831 = vadd.f32 0.0, %v830
      %v832 = vpop.f32.mrf.mxu0
      %833 = vmatprep.mubr.bf16.mxu0 0
      %834 = vmatmul.mubr.bf16.gmra.mxu0 %v587
      %v835 = vpop.f32.mrf.mxu0
      %v836 = vadd.f32 0.0, %v835
      %v837 = vpop.f32.mrf.mxu0
      %v838 = vpop.f32.mrf.mxu0
      %v839 = vadd.f32 0.0, %v838
      %v840 = vpop.f32.mrf.mxu0
      %841 = vmatprep.mubr.bf16.mxu0 0
      %842 = vmatmul.mubr.bf16.gmra.mxu0 %v590
      %v843 = vpop.f32.mrf.mxu0
      %v844 = vadd.f32 0.0, %v843
      %v845 = vpop.f32.mrf.mxu0
      %v846 = vpop.f32.mrf.mxu0
      %v847 = vadd.f32 0.0, %v846
      %v848 = vpop.f32.mrf.mxu0
      %849 = vmatprep.mubr.bf16.mxu0 0
      %850 = vmatmul.mubr.bf16.gmra.mxu0 %v593
      %v851 = vpop.f32.mrf.mxu0
      %v852 = vadd.f32 0.0, %v851
      %v853 = vpop.f32.mrf.mxu0
      %v854 = vpop.f32.mrf.mxu0
      %v855 = vadd.f32 0.0, %v854
      %v856 = vpop.f32.mrf.mxu0
      %857 = vmatprep.mubr.bf16.mxu0 0
      %858 = vmatmul.mubr.bf16.gmra.mxu0 %v596
      %v859 = vpop.f32.mrf.mxu0
      %v860 = vadd.f32 0.0, %v859
      %v861 = vpop.f32.mrf.mxu0
      %v862 = vpop.f32.mrf.mxu0
      %v863 = vadd.f32 0.0, %v862
      %v864 = vpop.f32.mrf.mxu0
      %865 = vmatprep.mubr.bf16.mxu0 0
      %866 = vmatmul.mubr.bf16.gmra.mxu0 %v599
      %v867 = vpop.f32.mrf.mxu0
      %v868 = vadd.f32 0.0, %v867
      %v869 = vpop.f32.mrf.mxu0
      %v870 = vpop.f32.mrf.mxu0
      %v871 = vadd.f32 0.0, %v870
      %v872 = vpop.f32.mrf.mxu0
      %873 = vmatprep.mubr.bf16.mxu0 0
      %874 = vmatmul.mubr.bf16.gmra.mxu0 %v602
      %v875 = vpop.f32.mrf.mxu0
      %v876 = vadd.f32 0.0, %v875
      %v877 = vpop.f32.mrf.mxu0
      %v878 = vpop.f32.mrf.mxu0
      %v879 = vadd.f32 0.0, %v878
      %v880 = vpop.f32.mrf.mxu0
      %881 = vmatprep.mubr.bf16.mxu0 0
      %882 = vmatmul.mubr.bf16.gmra.mxu0 %v605
      %v883 = vpop.f32.mrf.mxu0
      %v884 = vadd.f32 0.0, %v883
      %v885 = vpop.f32.mrf.mxu0
      %v886 = vpop.f32.mrf.mxu0
      %v887 = vadd.f32 0.0, %v886
      %v888 = vpop.f32.mrf.mxu0
      %889 = vmatprep.mubr.bf16.mxu0 0
      %890 = vmatmul.mubr.bf16.gmra.mxu0 %v608
      %v891 = vpop.f32.mrf.mxu0
      %v892 = vadd.f32 0.0, %v891
      %v893 = vpop.f32.mrf.mxu0
      %v894 = vpop.f32.mrf.mxu0
      %v895 = vadd.f32 0.0, %v894
      %v896 = vpop.f32.mrf.mxu0
      %897 = vmatprep.mubr.bf16.mxu0 0
      %898 = vmatmul.mubr.bf16.gmra.mxu0 %v611
      %v899 = vpop.f32.mrf.mxu0
      %v900 = vadd.f32 0.0, %v899
      %v901 = vpop.f32.mrf.mxu0
      %v902 = vpop.f32.mrf.mxu0
      %v903 = vadd.f32 0.0, %v902
      %v904 = vpop.f32.mrf.mxu0
      %905 = vdwg.mxu0
      %v906 = vpack.c.bf16 %v655, %v652
      %v907 = vpack.c.bf16 %v663, %v660
      %v908 = vpack.c.bf16 %v671, %v668
      %v909 = vpack.c.bf16 %v679, %v676
      %v910 = vpack.c.bf16 %v687, %v684
      %v911 = vpack.c.bf16 %v695, %v692
      %v912 = vpack.c.bf16 %v703, %v700
      %v913 = vpack.c.bf16 %v711, %v708
      %v914 = vpack.c.bf16 %v719, %v716
      %v915 = vpack.c.bf16 %v727, %v724
      %v916 = vpack.c.bf16 %v735, %v732
      %v917 = vpack.c.bf16 %v743, %v740
      %v918 = vpack.c.bf16 %v751, %v748
      %v919 = vpack.c.bf16 %v759, %v756
      %v920 = vpack.c.bf16 %v767, %v764
      %v921 = vpack.c.bf16 %v775, %v772
      %v922 = vpack.c.bf16 %v783, %v780
      %v923 = vpack.c.bf16 %v791, %v788
      %v924 = vpack.c.bf16 %v799, %v796
      %v925 = vpack.c.bf16 %v807, %v804
      %v926 = vpack.c.bf16 %v815, %v812
      %v927 = vpack.c.bf16 %v823, %v820
      %v928 = vpack.c.bf16 %v831, %v828
      %v929 = vpack.c.bf16 %v839, %v836
      %v930 = vpack.c.bf16 %v847, %v844
      %v931 = vpack.c.bf16 %v855, %v852
      %v932 = vpack.c.bf16 %v863, %v860
      %v933 = vpack.c.bf16 %v871, %v868
      %v934 = vpack.c.bf16 %v879, %v876
      %v935 = vpack.c.bf16 %v887, %v884
      %v936 = vpack.c.bf16 %v895, %v892
      %v937 = vpack.c.bf16 %v903, %v900
      %v970 = vunpack.c.l.b16 %v906
      %v971 = vunpack.c.h.b16 %v906
      %v972 = vunpack.c.l.b16 %v907
      %v973 = vunpack.c.h.b16 %v907
      %v974 = vunpack.c.l.b16 %v908
      %v975 = vunpack.c.h.b16 %v908
      %v976 = vunpack.c.l.b16 %v909
      %v977 = vunpack.c.h.b16 %v909
      %v978 = vunpack.c.l.b16 %v910
      %v979 = vunpack.c.h.b16 %v910
      %v980 = vunpack.c.l.b16 %v911
      %v981 = vunpack.c.h.b16 %v911
      %v982 = vunpack.c.l.b16 %v912
      %v983 = vunpack.c.h.b16 %v912
      %v984 = vunpack.c.l.b16 %v913
      %v985 = vunpack.c.h.b16 %v913
      %v986 = vunpack.c.l.b16 %v914
      %v987 = vunpack.c.h.b16 %v914
      %v988 = vunpack.c.l.b16 %v915
      %v989 = vunpack.c.h.b16 %v915
      %v990 = vunpack.c.l.b16 %v916
      %v991 = vunpack.c.h.b16 %v916
      %v992 = vunpack.c.l.b16 %v917
      %v993 = vunpack.c.h.b16 %v917
      %v994 = vunpack.c.l.b16 %v918
      %v995 = vunpack.c.h.b16 %v918
      %v996 = vunpack.c.l.b16 %v919
      %v997 = vunpack.c.h.b16 %v919
      %v998 = vunpack.c.l.b16 %v920
      %v999 = vunpack.c.h.b16 %v920
      %v1000 = vunpack.c.l.b16 %v921
      %v1001 = vunpack.c.h.b16 %v921
      %v1002 = vunpack.c.l.b16 %v922
      %v1003 = vunpack.c.h.b16 %v922
      %v1004 = vunpack.c.l.b16 %v923
      %v1005 = vunpack.c.h.b16 %v923
      %v1006 = vunpack.c.l.b16 %v924
      %v1007 = vunpack.c.h.b16 %v924
      %v1008 = vunpack.c.l.b16 %v925
      %v1009 = vunpack.c.h.b16 %v925
      %v1010 = vunpack.c.l.b16 %v926
      %v1011 = vunpack.c.h.b16 %v926
      %v1012 = vunpack.c.l.b16 %v927
      %v1013 = vunpack.c.h.b16 %v927
      %v1014 = vunpack.c.l.b16 %v928
      %v1015 = vunpack.c.h.b16 %v928
      %v1016 = vunpack.c.l.b16 %v929
      %v1017 = vunpack.c.h.b16 %v929
      %v1018 = vunpack.c.l.b16 %v930
      %v1019 = vunpack.c.h.b16 %v930
      %v1020 = vunpack.c.l.b16 %v931
      %v1021 = vunpack.c.h.b16 %v931
      %v1022 = vunpack.c.l.b16 %v932
      %v1023 = vunpack.c.h.b16 %v932
      %v1024 = vunpack.c.l.b16 %v933
      %v1025 = vunpack.c.h.b16 %v933
      %v1026 = vunpack.c.l.b16 %v934
      %v1027 = vunpack.c.h.b16 %v934
      %v1028 = vunpack.c.l.b16 %v935
      %v1029 = vunpack.c.h.b16 %v935
      %v1030 = vunpack.c.l.b16 %v936
      %v1031 = vunpack.c.h.b16 %v936
      %v1032 = vunpack.c.l.b16 %v937
      %v1033 = vunpack.c.h.b16 %v937
      %v1034 = vpack.c.b16 %v970, %v970
      %v1035 = vpack.c.b16 %v971, %v971
      %v1036 = vpack.c.b16 %v972, %v972
      %v1037 = vpack.c.b16 %v973, %v973
      %v1038 = vpack.c.b16 %v974, %v974
      %v1039 = vpack.c.b16 %v975, %v975
      %v1040 = vpack.c.b16 %v976, %v976
      %v1041 = vpack.c.b16 %v977, %v977
      %v1042 = vpack.c.b16 %v978, %v978
      %v1043 = vpack.c.b16 %v979, %v979
      %v1044 = vpack.c.b16 %v980, %v980
      %v1045 = vpack.c.b16 %v981, %v981
      %v1046 = vpack.c.b16 %v982, %v982
      %v1047 = vpack.c.b16 %v983, %v983
      %v1048 = vpack.c.b16 %v984, %v984
      %v1049 = vpack.c.b16 %v985, %v985
      %v1050 = vpack.c.b16 %v986, %v986
      %v1051 = vpack.c.b16 %v987, %v987
      %v1052 = vpack.c.b16 %v988, %v988
      %v1053 = vpack.c.b16 %v989, %v989
      %v1054 = vpack.c.b16 %v990, %v990
      %v1055 = vpack.c.b16 %v991, %v991
      %v1056 = vpack.c.b16 %v992, %v992
      %v1057 = vpack.c.b16 %v993, %v993
      %v1058 = vpack.c.b16 %v994, %v994
      %v1059 = vpack.c.b16 %v995, %v995
      %v1060 = vpack.c.b16 %v996, %v996
      %v1061 = vpack.c.b16 %v997, %v997
      %v1062 = vpack.c.b16 %v998, %v998
      %v1063 = vpack.c.b16 %v999, %v999
      %v1064 = vpack.c.b16 %v1000, %v1000
      %v1065 = vpack.c.b16 %v1001, %v1001
      %v1066 = vpack.c.b16 %v1002, %v1002
      %v1067 = vpack.c.b16 %v1003, %v1003
      %v1068 = vpack.c.b16 %v1004, %v1004
      %v1069 = vpack.c.b16 %v1005, %v1005
      %v1070 = vpack.c.b16 %v1006, %v1006
      %v1071 = vpack.c.b16 %v1007, %v1007
      %v1072 = vpack.c.b16 %v1008, %v1008
      %v1073 = vpack.c.b16 %v1009, %v1009
      %v1074 = vpack.c.b16 %v1010, %v1010
      %v1075 = vpack.c.b16 %v1011, %v1011
      %v1076 = vpack.c.b16 %v1012, %v1012
      %v1077 = vpack.c.b16 %v1013, %v1013
      %v1078 = vpack.c.b16 %v1014, %v1014
      %v1079 = vpack.c.b16 %v1015, %v1015
      %v1080 = vpack.c.b16 %v1016, %v1016
      %v1081 = vpack.c.b16 %v1017, %v1017
      %v1082 = vpack.c.b16 %v1018, %v1018
      %v1083 = vpack.c.b16 %v1019, %v1019
      %v1084 = vpack.c.b16 %v1020, %v1020
      %v1085 = vpack.c.b16 %v1021, %v1021
      %v1086 = vpack.c.b16 %v1022, %v1022
      %v1087 = vpack.c.b16 %v1023, %v1023
      %v1088 = vpack.c.b16 %v1024, %v1024
      %v1089 = vpack.c.b16 %v1025, %v1025
      %v1090 = vpack.c.b16 %v1026, %v1026
      %v1091 = vpack.c.b16 %v1027, %v1027
      %v1092 = vpack.c.b16 %v1028, %v1028
      %v1093 = vpack.c.b16 %v1029, %v1029
      %v1094 = vpack.c.b16 %v1030, %v1030
      %v1095 = vpack.c.b16 %v1031, %v1031
      %v1096 = vpack.c.b16 %v1032, %v1032
      %v1097 = vpack.c.b16 %v1033, %v1033
      %vm1162 = vcmask 109568
      %1163 = vst.msk [vmem:[%s257] sm:$0xf] %vm1162, %v1034
      %1164 = vst.msk [vmem:[%s257 + $0x4] sm:$0xf] %vm1162, %v1035
      %1165 = vst.msk [vmem:[%s257 + $0x8] sm:$0xf] %vm1162, %v1036
      %1166 = vst.msk [vmem:[%s257 + $0xc] sm:$0xf] %vm1162, %v1037
      %1167 = vst.msk [vmem:[%s257 + $0x10] sm:$0xf] %vm1162, %v1038
      %1168 = vst.msk [vmem:[%s257 + $0x14] sm:$0xf] %vm1162, %v1039
      %1169 = vst.msk [vmem:[%s257 + $0x18] sm:$0xf] %vm1162, %v1040
      %1170 = vst.msk [vmem:[%s257 + $0x1c] sm:$0xf] %vm1162, %v1041
      %1171 = vst.msk [vmem:[%s257 + $0x20] sm:$0xf] %vm1162, %v1042
      %1172 = vst.msk [vmem:[%s257 + $0x24] sm:$0xf] %vm1162, %v1043
      %1173 = vst.msk [vmem:[%s257 + $0x28] sm:$0xf] %vm1162, %v1044
      %1174 = vst.msk [vmem:[%s257 + $0x2c] sm:$0xf] %vm1162, %v1045
      %1175 = vst.msk [vmem:[%s257 + $0x30] sm:$0xf] %vm1162, %v1046
      %1176 = vst.msk [vmem:[%s257 + $0x34] sm:$0xf] %vm1162, %v1047
      %1177 = vst.msk [vmem:[%s257 + $0x38] sm:$0xf] %vm1162, %v1048
      %1178 = vst.msk [vmem:[%s257 + $0x3c] sm:$0xf] %vm1162, %v1049
      %1179 = vst.msk [vmem:[%s257 + $0x40] sm:$0xf] %vm1162, %v1050
      %1180 = vst.msk [vmem:[%s257 + $0x44] sm:$0xf] %vm1162, %v1051
      %1181 = vst.msk [vmem:[%s257 + $0x48] sm:$0xf] %vm1162, %v1052
      %1182 = vst.msk [vmem:[%s257 + $0x4c] sm:$0xf] %vm1162, %v1053
      %1183 = vst.msk [vmem:[%s257 + $0x50] sm:$0xf] %vm1162, %v1054
      %1184 = vst.msk [vmem:[%s257 + $0x54] sm:$0xf] %vm1162, %v1055
      %1185 = vst.msk [vmem:[%s257 + $0x58] sm:$0xf] %vm1162, %v1056
      %1186 = vst.msk [vmem:[%s257 + $0x5c] sm:$0xf] %vm1162, %v1057
      %1187 = vst.msk [vmem:[%s257 + $0x60] sm:$0xf] %vm1162, %v1058
      %1188 = vst.msk [vmem:[%s257 + $0x64] sm:$0xf] %vm1162, %v1059
      %1189 = vst.msk [vmem:[%s257 + $0x68] sm:$0xf] %vm1162, %v1060
      %1190 = vst.msk [vmem:[%s257 + $0x6c] sm:$0xf] %vm1162, %v1061
      %1191 = vst.msk [vmem:[%s257 + $0x70] sm:$0xf] %vm1162, %v1062
      %1192 = vst.msk [vmem:[%s257 + $0x74] sm:$0xf] %vm1162, %v1063
      %1193 = vst.msk [vmem:[%s257 + $0x78] sm:$0xf] %vm1162, %v1064
      %1194 = vst.msk [vmem:[%s257 + $0x7c] sm:$0xf] %vm1162, %v1065
      %1195 = vst.msk [vmem:[%s257 + $0x80] sm:$0xf] %vm1162, %v1066
      %1196 = vst.msk [vmem:[%s257 + $0x84] sm:$0xf] %vm1162, %v1067
      %1197 = vst.msk [vmem:[%s257 + $0x88] sm:$0xf] %vm1162, %v1068
      %1198 = vst.msk [vmem:[%s257 + $0x8c] sm:$0xf] %vm1162, %v1069
      %1199 = vst.msk [vmem:[%s257 + $0x90] sm:$0xf] %vm1162, %v1070
      %1200 = vst.msk [vmem:[%s257 + $0x94] sm:$0xf] %vm1162, %v1071
      %1201 = vst.msk [vmem:[%s257 + $0x98] sm:$0xf] %vm1162, %v1072
      %1202 = vst.msk [vmem:[%s257 + $0x9c] sm:$0xf] %vm1162, %v1073
      %1203 = vst.msk [vmem:[%s257 + $0xa0] sm:$0xf] %vm1162, %v1074
      %1204 = vst.msk [vmem:[%s257 + $0xa4] sm:$0xf] %vm1162, %v1075
      %1205 = vst.msk [vmem:[%s257 + $0xa8] sm:$0xf] %vm1162, %v1076
      %1206 = vst.msk [vmem:[%s257 + $0xac] sm:$0xf] %vm1162, %v1077
      %1207 = vst.msk [vmem:[%s257 + $0xb0] sm:$0xf] %vm1162, %v1078
      %1208 = vst.msk [vmem:[%s257 + $0xb4] sm:$0xf] %vm1162, %v1079
      %1209 = vst.msk [vmem:[%s257 + $0xb8] sm:$0xf] %vm1162, %v1080
      %1210 = vst.msk [vmem:[%s257 + $0xbc] sm:$0xf] %vm1162, %v1081
      %1211 = vst.msk [vmem:[%s257 + $0xc0] sm:$0xf] %vm1162, %v1082
      %1212 = vst.msk [vmem:[%s257 + $0xc4] sm:$0xf] %vm1162, %v1083
      %1213 = vst.msk [vmem:[%s257 + $0xc8] sm:$0xf] %vm1162, %v1084
      %1214 = vst.msk [vmem:[%s257 + $0xcc] sm:$0xf] %vm1162, %v1085
      %1215 = vst.msk [vmem:[%s257 + $0xd0] sm:$0xf] %vm1162, %v1086
      %1216 = vst.msk [vmem:[%s257 + $0xd4] sm:$0xf] %vm1162, %v1087
      %1217 = vst.msk [vmem:[%s257 + $0xd8] sm:$0xf] %vm1162, %v1088
      %1218 = vst.msk [vmem:[%s257 + $0xdc] sm:$0xf] %vm1162, %v1089
      %1219 = vst.msk [vmem:[%s257 + $0xe0] sm:$0xf] %vm1162, %v1090
      %1220 = vst.msk [vmem:[%s257 + $0xe4] sm:$0xf] %vm1162, %v1091
      %1221 = vst.msk [vmem:[%s257 + $0xe8] sm:$0xf] %vm1162, %v1092
      %1222 = vst.msk [vmem:[%s257 + $0xec] sm:$0xf] %vm1162, %v1093
      %1223 = vst.msk [vmem:[%s257 + $0xf0] sm:$0xf] %vm1162, %v1094
      %1224 = vst.msk [vmem:[%s257 + $0xf4] sm:$0xf] %vm1162, %v1095
      %1225 = vst.msk [vmem:[%s257 + $0xf8] sm:$0xf] %vm1162, %v1096
      %1226 = vst.msk [vmem:[%s257 + $0xfc] sm:$0xf] %vm1162, %v1097
      %vm1227 = vcmask 113664
      %v1228 = vsel %vm1227, %v652, 0.0
      %v1229 = vsel %vm1227, %v655, 0.0
      %v1230 = vadd.f32 %v1228, %v1229
      %v1231 = vsel %vm1227, %v660, 0.0
      %v1232 = vadd.f32 %v1230, %v1231
      %v1233 = vsel %vm1227, %v663, 0.0
      %v1234 = vadd.f32 %v1232, %v1233
      %v1235 = vsel %vm1227, %v668, 0.0
      %v1236 = vadd.f32 %v1234, %v1235
      %v1237 = vsel %vm1227, %v671, 0.0
      %v1238 = vadd.f32 %v1236, %v1237
      %v1239 = vsel %vm1227, %v676, 0.0
      %v1240 = vadd.f32 %v1238, %v1239
      %v1241 = vsel %vm1227, %v679, 0.0
      %v1242 = vadd.f32 %v1240, %v1241
      %v1243 = vsel %vm1227, %v684, 0.0
      %v1244 = vadd.f32 %v1242, %v1243
      %v1245 = vsel %vm1227, %v687, 0.0
      %v1246 = vadd.f32 %v1244, %v1245
      %v1247 = vsel %vm1227, %v692, 0.0
      %v1248 = vadd.f32 %v1246, %v1247
      %v1249 = vsel %vm1227, %v695, 0.0
      %v1250 = vadd.f32 %v1248, %v1249
      %v1251 = vsel %vm1227, %v700, 0.0
      %v1252 = vadd.f32 %v1250, %v1251
      %v1253 = vsel %vm1227, %v703, 0.0
      %v1254 = vadd.f32 %v1252, %v1253
      %v1255 = vsel %vm1227, %v708, 0.0
      %v1256 = vadd.f32 %v1254, %v1255
      %v1257 = vsel %vm1227, %v711, 0.0
      %v1258 = vadd.f32 %v1256, %v1257
      %v1259 = vsel %vm1227, %v716, 0.0
      %v1260 = vadd.f32 %v1258, %v1259
      %v1261 = vsel %vm1227, %v719, 0.0
      %v1262 = vadd.f32 %v1260, %v1261
      %v1263 = vsel %vm1227, %v724, 0.0
      %v1264 = vadd.f32 %v1262, %v1263
      %v1265 = vsel %vm1227, %v727, 0.0
      %v1266 = vadd.f32 %v1264, %v1265
      %v1267 = vsel %vm1227, %v732, 0.0
      %v1268 = vadd.f32 %v1266, %v1267
      %v1269 = vsel %vm1227, %v735, 0.0
      %v1270 = vadd.f32 %v1268, %v1269
      %v1271 = vsel %vm1227, %v740, 0.0
      %v1272 = vadd.f32 %v1270, %v1271
      %v1273 = vsel %vm1227, %v743, 0.0
      %v1274 = vadd.f32 %v1272, %v1273
      %v1275 = vsel %vm1227, %v748, 0.0
      %v1276 = vadd.f32 %v1274, %v1275
      %v1277 = vsel %vm1227, %v751, 0.0
      %v1278 = vadd.f32 %v1276, %v1277
      %v1279 = vsel %vm1227, %v756, 0.0
      %v1280 = vadd.f32 %v1278, %v1279
      %v1281 = vsel %vm1227, %v759, 0.0
      %v1282 = vadd.f32 %v1280, %v1281
      %v1283 = vsel %vm1227, %v764, 0.0
      %v1284 = vadd.f32 %v1282, %v1283
      %v1285 = vsel %vm1227, %v767, 0.0
      %v1286 = vadd.f32 %v1284, %v1285
      %v1287 = vsel %vm1227, %v772, 0.0
      %v1288 = vadd.f32 %v1286, %v1287
      %v1289 = vsel %vm1227, %v775, 0.0
      %v1290 = vadd.f32 %v1288, %v1289
      %v1291 = vsel %vm1227, %v780, 0.0
      %v1292 = vadd.f32 %v1290, %v1291
      %v1293 = vsel %vm1227, %v783, 0.0
      %v1294 = vadd.f32 %v1292, %v1293
      %v1295 = vsel %vm1227, %v788, 0.0
      %v1296 = vadd.f32 %v1294, %v1295
      %v1297 = vsel %vm1227, %v791, 0.0
      %v1298 = vadd.f32 %v1296, %v1297
      %v1299 = vsel %vm1227, %v796, 0.0
      %v1300 = vadd.f32 %v1298, %v1299
      %v1301 = vsel %vm1227, %v799, 0.0
      %v1302 = vadd.f32 %v1300, %v1301
      %v1303 = vsel %vm1227, %v804, 0.0
      %v1304 = vadd.f32 %v1302, %v1303
      %v1305 = vsel %vm1227, %v807, 0.0
      %v1306 = vadd.f32 %v1304, %v1305
      %v1307 = vsel %vm1227, %v812, 0.0
      %v1308 = vadd.f32 %v1306, %v1307
      %v1309 = vsel %vm1227, %v815, 0.0
      %v1310 = vadd.f32 %v1308, %v1309
      %v1311 = vsel %vm1227, %v820, 0.0
      %v1312 = vadd.f32 %v1310, %v1311
      %v1313 = vsel %vm1227, %v823, 0.0
      %v1314 = vadd.f32 %v1312, %v1313
      %v1315 = vsel %vm1227, %v828, 0.0
      %v1316 = vadd.f32 %v1314, %v1315
      %v1317 = vsel %vm1227, %v831, 0.0
      %v1318 = vadd.f32 %v1316, %v1317
      %v1319 = vsel %vm1227, %v836, 0.0
      %v1320 = vadd.f32 %v1318, %v1319
      %v1321 = vsel %vm1227, %v839, 0.0
      %v1322 = vadd.f32 %v1320, %v1321
      %v1323 = vsel %vm1227, %v844, 0.0
      %v1324 = vadd.f32 %v1322, %v1323
      %v1325 = vsel %vm1227, %v847, 0.0
      %v1326 = vadd.f32 %v1324, %v1325
      %v1327 = vsel %vm1227, %v852, 0.0
      %v1328 = vadd.f32 %v1326, %v1327
      %v1329 = vsel %vm1227, %v855, 0.0
      %v1330 = vadd.f32 %v1328, %v1329
      %v1331 = vsel %vm1227, %v860, 0.0
      %v1332 = vadd.f32 %v1330, %v1331
      %v1333 = vsel %vm1227, %v863, 0.0
      %v1334 = vadd.f32 %v1332, %v1333
      %v1335 = vsel %vm1227, %v868, 0.0
      %v1336 = vadd.f32 %v1334, %v1335
      %v1337 = vsel %vm1227, %v871, 0.0
      %v1338 = vadd.f32 %v1336, %v1337
      %v1339 = vsel %vm1227, %v876, 0.0
      %v1340 = vadd.f32 %v1338, %v1339
      %v1341 = vsel %vm1227, %v879, 0.0
      %v1342 = vadd.f32 %v1340, %v1341
      %v1343 = vsel %vm1227, %v884, 0.0
      %v1344 = vadd.f32 %v1342, %v1343
      %v1345 = vsel %vm1227, %v887, 0.0
      %v1346 = vadd.f32 %v1344, %v1345
      %v1347 = vsel %vm1227, %v892, 0.0
      %v1348 = vadd.f32 %v1346, %v1347
      %v1349 = vsel %vm1227, %v895, 0.0
      %v1350 = vadd.f32 %v1348, %v1349
      %v1351 = vsel %vm1227, %v900, 0.0
      %v1352 = vadd.f32 %v1350, %v1351
      %v1353 = vsel %vm1227, %v903, 0.0
      %v1354 = vadd.f32 %v1352, %v1353
      %v1355 = vrot.slane %v1354, 4
      %v1356 = vadd.f32 %v1354, %v1355
      %v1357 = vrot.slane %v1356, 2
      %v1358 = vadd.f32 %v1356, %v1357
      %v1359 = vrot.slane %v1358, 1
      %v1360 = vadd.f32 %v1358, %v1359
      %vm1361 = vcmask 106496
      %1362 = vst.msk [vmem:[%s264] sm:$0x1] %vm1361, %v1360
      %v1363 = vmul.f32 %v652, %v652
      %v1364 = vmul.f32 %v655, %v655
      %v1365 = vmul.f32 %v660, %v660
      %v1366 = vmul.f32 %v663, %v663
      %v1367 = vmul.f32 %v668, %v668
      %v1368 = vmul.f32 %v671, %v671
      %v1369 = vmul.f32 %v676, %v676
      %v1370 = vmul.f32 %v679, %v679
      %v1371 = vmul.f32 %v684, %v684
      %v1372 = vmul.f32 %v687, %v687
      %v1373 = vmul.f32 %v692, %v692
      %v1374 = vmul.f32 %v695, %v695
      %v1375 = vmul.f32 %v700, %v700
      %v1376 = vmul.f32 %v703, %v703
      %v1377 = vmul.f32 %v708, %v708
      %v1378 = vmul.f32 %v711, %v711
      %v1379 = vmul.f32 %v716, %v716
      %v1380 = vmul.f32 %v719, %v719
      %v1381 = vmul.f32 %v724, %v724
      %v1382 = vmul.f32 %v727, %v727
      %v1383 = vmul.f32 %v732, %v732
      %v1384 = vmul.f32 %v735, %v735
      %v1385 = vmul.f32 %v740, %v740
      %v1386 = vmul.f32 %v743, %v743
      %v1387 = vmul.f32 %v748, %v748
      %v1388 = vmul.f32 %v751, %v751
      %v1389 = vmul.f32 %v756, %v756
      %v1390 = vmul.f32 %v759, %v759
      %v1391 = vmul.f32 %v764, %v764
      %v1392 = vmul.f32 %v767, %v767
      %v1393 = vmul.f32 %v772, %v772
      %v1394 = vmul.f32 %v775, %v775
      %v1395 = vmul.f32 %v780, %v780
      %v1396 = vmul.f32 %v783, %v783
      %v1397 = vmul.f32 %v788, %v788
      %v1398 = vmul.f32 %v791, %v791
      %v1399 = vmul.f32 %v796, %v796
      %v1400 = vmul.f32 %v799, %v799
      %v1401 = vmul.f32 %v804, %v804
      %v1402 = vmul.f32 %v807, %v807
      %v1403 = vmul.f32 %v812, %v812
      %v1404 = vmul.f32 %v815, %v815
      %v1405 = vmul.f32 %v820, %v820
      %v1406 = vmul.f32 %v823, %v823
      %v1407 = vmul.f32 %v828, %v828
      %v1408 = vmul.f32 %v831, %v831
      %v1409 = vmul.f32 %v836, %v836
      %v1410 = vmul.f32 %v839, %v839
      %v1411 = vmul.f32 %v844, %v844
      %v1412 = vmul.f32 %v847, %v847
      %v1413 = vmul.f32 %v852, %v852
      %v1414 = vmul.f32 %v855, %v855
      %v1415 = vmul.f32 %v860, %v860
      %v1416 = vmul.f32 %v863, %v863
      %v1417 = vmul.f32 %v868, %v868
      %v1418 = vmul.f32 %v871, %v871
      %v1419 = vmul.f32 %v876, %v876
      %v1420 = vmul.f32 %v879, %v879
      %v1421 = vmul.f32 %v884, %v884
      %v1422 = vmul.f32 %v887, %v887
      %v1423 = vmul.f32 %v892, %v892
      %v1424 = vmul.f32 %v895, %v895
      %v1425 = vmul.f32 %v900, %v900
      %v1426 = vmul.f32 %v903, %v903
      %v1427 = vsel %vm1227, %v1363, 0.0
      %v1428 = vsel %vm1227, %v1364, 0.0
      %v1429 = vadd.f32 %v1427, %v1428
      %v1430 = vsel %vm1227, %v1365, 0.0
      %v1431 = vadd.f32 %v1429, %v1430
      %v1432 = vsel %vm1227, %v1366, 0.0
      %v1433 = vadd.f32 %v1431, %v1432
      %v1434 = vsel %vm1227, %v1367, 0.0
      %v1435 = vadd.f32 %v1433, %v1434
      %v1436 = vsel %vm1227, %v1368, 0.0
      %v1437 = vadd.f32 %v1435, %v1436
      %v1438 = vsel %vm1227, %v1369, 0.0
      %v1439 = vadd.f32 %v1437, %v1438
      %v1440 = vsel %vm1227, %v1370, 0.0
      %v1441 = vadd.f32 %v1439, %v1440
      %v1442 = vsel %vm1227, %v1371, 0.0
      %v1443 = vadd.f32 %v1441, %v1442
      %v1444 = vsel %vm1227, %v1372, 0.0
      %v1445 = vadd.f32 %v1443, %v1444
      %v1446 = vsel %vm1227, %v1373, 0.0
      %v1447 = vadd.f32 %v1445, %v1446
      %v1448 = vsel %vm1227, %v1374, 0.0
      %v1449 = vadd.f32 %v1447, %v1448
      %v1450 = vsel %vm1227, %v1375, 0.0
      %v1451 = vadd.f32 %v1449, %v1450
      %v1452 = vsel %vm1227, %v1376, 0.0
      %v1453 = vadd.f32 %v1451, %v1452
      %v1454 = vsel %vm1227, %v1377, 0.0
      %v1455 = vadd.f32 %v1453, %v1454
      %v1456 = vsel %vm1227, %v1378, 0.0
      %v1457 = vadd.f32 %v1455, %v1456
      %v1458 = vsel %vm1227, %v1379, 0.0
      %v1459 = vadd.f32 %v1457, %v1458
      %v1460 = vsel %vm1227, %v1380, 0.0
      %v1461 = vadd.f32 %v1459, %v1460
      %v1462 = vsel %vm1227, %v1381, 0.0
      %v1463 = vadd.f32 %v1461, %v1462
      %v1464 = vsel %vm1227, %v1382, 0.0
      %v1465 = vadd.f32 %v1463, %v1464
      %v1466 = vsel %vm1227, %v1383, 0.0
      %v1467 = vadd.f32 %v1465, %v1466
      %v1468 = vsel %vm1227, %v1384, 0.0
      %v1469 = vadd.f32 %v1467, %v1468
      %v1470 = vsel %vm1227, %v1385, 0.0
      %v1471 = vadd.f32 %v1469, %v1470
      %v1472 = vsel %vm1227, %v1386, 0.0
      %v1473 = vadd.f32 %v1471, %v1472
      %v1474 = vsel %vm1227, %v1387, 0.0
      %v1475 = vadd.f32 %v1473, %v1474
      %v1476 = vsel %vm1227, %v1388, 0.0
      %v1477 = vadd.f32 %v1475, %v1476
      %v1478 = vsel %vm1227, %v1389, 0.0
      %v1479 = vadd.f32 %v1477, %v1478
      %v1480 = vsel %vm1227, %v1390, 0.0
      %v1481 = vadd.f32 %v1479, %v1480
      %v1482 = vsel %vm1227, %v1391, 0.0
      %v1483 = vadd.f32 %v1481, %v1482
      %v1484 = vsel %vm1227, %v1392, 0.0
      %v1485 = vadd.f32 %v1483, %v1484
      %v1486 = vsel %vm1227, %v1393, 0.0
      %v1487 = vadd.f32 %v1485, %v1486
      %v1488 = vsel %vm1227, %v1394, 0.0
      %v1489 = vadd.f32 %v1487, %v1488
      %v1490 = vsel %vm1227, %v1395, 0.0
      %v1491 = vadd.f32 %v1489, %v1490
      %v1492 = vsel %vm1227, %v1396, 0.0
      %v1493 = vadd.f32 %v1491, %v1492
      %v1494 = vsel %vm1227, %v1397, 0.0
      %v1495 = vadd.f32 %v1493, %v1494
      %v1496 = vsel %vm1227, %v1398, 0.0
      %v1497 = vadd.f32 %v1495, %v1496
      %v1498 = vsel %vm1227, %v1399, 0.0
      %v1499 = vadd.f32 %v1497, %v1498
      %v1500 = vsel %vm1227, %v1400, 0.0
      %v1501 = vadd.f32 %v1499, %v1500
      %v1502 = vsel %vm1227, %v1401, 0.0
      %v1503 = vadd.f32 %v1501, %v1502
      %v1504 = vsel %vm1227, %v1402, 0.0
      %v1505 = vadd.f32 %v1503, %v1504
      %v1506 = vsel %vm1227, %v1403, 0.0
      %v1507 = vadd.f32 %v1505, %v1506
      %v1508 = vsel %vm1227, %v1404, 0.0
      %v1509 = vadd.f32 %v1507, %v1508
      %v1510 = vsel %vm1227, %v1405, 0.0
      %v1511 = vadd.f32 %v1509, %v1510
      %v1512 = vsel %vm1227, %v1406, 0.0
      %v1513 = vadd.f32 %v1511, %v1512
      %v1514 = vsel %vm1227, %v1407, 0.0
      %v1515 = vadd.f32 %v1513, %v1514
      %v1516 = vsel %vm1227, %v1408, 0.0
      %v1517 = vadd.f32 %v1515, %v1516
      %v1518 = vsel %vm1227, %v1409, 0.0
      %v1519 = vadd.f32 %v1517, %v1518
      %v1520 = vsel %vm1227, %v1410, 0.0
      %v1521 = vadd.f32 %v1519, %v1520
      %v1522 = vsel %vm1227, %v1411, 0.0
      %v1523 = vadd.f32 %v1521, %v1522
      %v1524 = vsel %vm1227, %v1412, 0.0
      %v1525 = vadd.f32 %v1523, %v1524
      %v1526 = vsel %vm1227, %v1413, 0.0
      %v1527 = vadd.f32 %v1525, %v1526
      %v1528 = vsel %vm1227, %v1414, 0.0
      %v1529 = vadd.f32 %v1527, %v1528
      %v1530 = vsel %vm1227, %v1415, 0.0
      %v1531 = vadd.f32 %v1529, %v1530
      %v1532 = vsel %vm1227, %v1416, 0.0
      %v1533 = vadd.f32 %v1531, %v1532
      %v1534 = vsel %vm1227, %v1417, 0.0
      %v1535 = vadd.f32 %v1533, %v1534
      %v1536 = vsel %vm1227, %v1418, 0.0
      %v1537 = vadd.f32 %v1535, %v1536
      %v1538 = vsel %vm1227, %v1419, 0.0
      %v1539 = vadd.f32 %v1537, %v1538
      %v1540 = vsel %vm1227, %v1420, 0.0
      %v1541 = vadd.f32 %v1539, %v1540
      %v1542 = vsel %vm1227, %v1421, 0.0
      %v1543 = vadd.f32 %v1541, %v1542
      %v1544 = vsel %vm1227, %v1422, 0.0
      %v1545 = vadd.f32 %v1543, %v1544
      %v1546 = vsel %vm1227, %v1423, 0.0
      %v1547 = vadd.f32 %v1545, %v1546
      %v1548 = vsel %vm1227, %v1424, 0.0
      %v1549 = vadd.f32 %v1547, %v1548
      %v1550 = vsel %vm1227, %v1425, 0.0
      %v1551 = vadd.f32 %v1549, %v1550
      %v1552 = vsel %vm1227, %v1426, 0.0
      %v1553 = vadd.f32 %v1551, %v1552
      %v1554 = vrot.slane %v1553, 4
      %v1555 = vadd.f32 %v1553, %v1554
      %v1556 = vrot.slane %v1555, 2
      %v1557 = vadd.f32 %v1555, %v1556
      %v1558 = vrot.slane %v1557, 1
      %v1559 = vadd.f32 %v1557, %v1558
      %1560 = vst.msk [vmem:[%s270] sm:$0x1] %vm1361, %v1559
      %s1561 = smul.u32 64, %s20
      %p1562 = scmp.lt.s32.totalorder %s1561, 127
      %s1563 = scalar_select %p1562, %s1561, 127
      %p1564 = scmp.lt.s32.totalorder %s21, 0
      %s1565 = scalar_select %p1564, %s21, 0
      %s1566 = sadd.s32 %s1565, %s1563
      %s1567 = smul.addr %s1566, 4
      %s1568 = scalar_lea.vmem %s2, %s1567
      %p1569 = scmp.lt.s32.totalorder %s20, 1
      %s1570 = scalar_select %p1569, %s20, 1
      %p1571 = scmp.lt.s32.totalorder %s21, 0
      %s1572 = scalar_select %p1571, %s21, 0
      %s1573 = sadd.s32 %s1572, %s1570
      %s1574 = scalar_lea.vmem %s3, %s1573
      %p1575 = scmp.lt.s32.totalorder %s20, 1
      %s1576 = scalar_select %p1575, %s20, 1
      %p1577 = scmp.lt.s32.totalorder %s21, 0
      %s1578 = scalar_select %p1577, %s21, 0
      %s1579 = sadd.s32 %s1578, %s1576
      %s1580 = scalar_lea.vmem %s4, %s1579
      // Predicated region
      $region29: #{res_layer_forward.12} parent=27 // pred_check
        %p1581 = pneg %p100
      $region30: #{res_layer_forward.12} parent=27 // pred_check_branch
        %1583 = sbr.rel (%p1581) target = $region32
      $region31: #{res_layer_forward.12} parent=27 // pred_region
        %s1584 = smul.u32 64, %s20
      $region32: #{res_layer_forward.12} parent=27 // pred_fallthru
        _
      // Predicated region
      $region33: #{res_layer_forward.12} parent=27 // pred_check
        %p1585 = pneg %p128
      $region34: #{res_layer_forward.12} parent=27 // pred_check_branch
        %1587 = sbr.rel (%p1585) target = $region36
      $region35: #{res_layer_forward.12} parent=27 // pred_region
        _
      $region36: #{res_layer_forward.12} parent=27 // pred_fallthru
        _
      // Predicated region
      $region37: #{res_layer_forward.12} parent=27 // pred_check
        %p1588 = pneg %p156
      $region38: #{res_layer_forward.12} parent=27 // pred_check_branch
        %1590 = sbr.rel (%p1588) target = $region40
      $region39: #{res_layer_forward.12} parent=27 // pred_region
        _
      $region40: #{res_layer_forward.12} parent=27 // pred_fallthru
        _
    $region28: #{res_layer_forward.12} parent=5 // pred_fallthru
      _
    %p1591 = scmp.le.s32.totalorder 2, %s11
    // Predicated region
    $region41: #{res_layer_forward.12} parent=5 // pred_check
      %p1592 = pneg %p1591
    $region42: #{res_layer_forward.12} parent=5 // pred_check_branch
      %1594 = sbr.rel (%p1592) target = $region44
    $region43: #{res_layer_forward.12} parent=5 // pred_region
      %s1595 = ssub.s32 %s11, 2
      // Predicated region
      $region45: #{res_layer_forward.12} parent=43 // pred_check
        %p1596 = pneg %p106
      $region46: #{res_layer_forward.12} parent=43 // pred_check_branch
        %1598 = sbr.rel (%p1596) target = $region48
      $region47: #{res_layer_forward.12} parent=43 // pred_region
        %s1599 = smul.u32 64, %s22
        %p1600 = scmp.lt.s32.totalorder %s1599, 127
        %s1601 = scalar_select %p1600, %s1599, 127
        %p1602 = scmp.lt.s32.totalorder %s23, 0
        %s1603 = scalar_select %p1602, %s23, 0
        %s1604 = sadd.s32 %s1603, %s1601
        %s1605 = smul.addr %s1604, 4
        %s1606 = scalar_lea.vmem %s2, %s1605
      $region48: #{res_layer_forward.12} parent=43 // pred_fallthru
        _
      // Predicated region
      $region49: #{res_layer_forward.12} parent=43 // pred_check
        %p1607 = pneg %p134
      $region50: #{res_layer_forward.12} parent=43 // pred_check_branch
        %1609 = sbr.rel (%p1607) target = $region52
      $region51: #{res_layer_forward.12} parent=43 // pred_region
        %p1610 = scmp.lt.s32.totalorder %s22, 1
        %s1611 = scalar_select %p1610, %s22, 1
        %p1612 = scmp.lt.s32.totalorder %s23, 0
        %s1613 = scalar_select %p1612, %s23, 0
        %s1614 = sadd.s32 %s1613, %s1611
        %s1615 = scalar_lea.vmem %s3, %s1614
      $region52: #{res_layer_forward.12} parent=43 // pred_fallthru
        _
      // Predicated region
      $region53: #{res_layer_forward.12} parent=43 // pred_check
        %p1616 = pneg %p162
      $region54: #{res_layer_forward.12} parent=43 // pred_check_branch
        %1618 = sbr.rel (%p1616) target = $region56
      $region55: #{res_layer_forward.12} parent=43 // pred_region
        %p1619 = scmp.lt.s32.totalorder %s22, 1
        %s1620 = scalar_select %p1619, %s22, 1
        %p1621 = scmp.lt.s32.totalorder %s23, 0
        %s1622 = scalar_select %p1621, %s23, 0
        %s1623 = sadd.s32 %s1622, %s1620
        %s1624 = scalar_lea.vmem %s4, %s1623
      $region56: #{res_layer_forward.12} parent=43 // pred_fallthru
        _
    $region44: #{res_layer_forward.12} parent=5 // pred_fallthru
      _
  $region6: #{res_layer_forward.12} parent=0 // loop_footer
    %s15 = sadd.s32 1, %s11
  $region7: #{res_layer_forward.12} parent=0 // loop_footer_branch
    %10 = sbr.rel target = $region3
  $region8: #{res_layer_forward.12} parent=0 // loop_exit
    _

// kernel: res_layer_forward.13
$region0: #{res_layer_forward.13}
  #allocation0 [shape = 'u32[]', space=smem, size = 0x4, offset = 0x4, fixed_abs, tag = 'smem constant byte address 0x4 - core index']
  #allocation1 [shape = 'u32[144,128]{1,0:T(1,128)}', space=vmem, size = 0x12000, scoped, tag = 'internal scratch']
  #allocation2 [shape = 'f32[64,8]{1,0:T(8,128)}', space=vmem, size = 0x8000, scoped, tag = 'scratch operand']
  %s0 = inlined_call_operand.vmem [shape: bf16[2,10,64,14], index: 0, kind: input, shape index: {}]
  %s1 = inlined_call_operand.vmem [shape: bf16[3,14,8], index: 1, kind: input, shape index: {}]
  %s2 = inlined_call_operand.vmem [shape: f32[1,14], index: 2, kind: input, shape index: {}]
  %s3 = inlined_call_operand.vmem [shape: f32[1,14], index: 3, kind: input, shape index: {}]
  %s4 = inlined_call_operand.vmem [shape: bf16[2,4,64,8], index: 4, kind: output, shape index: {0}]
  %s5 = inlined_call_operand.vmem [shape: f32[8,1,8], index: 5, kind: output, shape index: {1}]
  %s6 = inlined_call_operand.vmem [shape: f32[8,1,8], index: 6, kind: output, shape index: {2}]
  %7 = xla_tuple %s4, %s5, %s6
  %s8 = sld [smem:[#allocation0]]
  $region73: #{res_layer_forward.13} parent=0
    _
  %s10 = ssub.s32 1, %s8
  %s11 = scalar_select 0, %s10, %s8
  loop: start=0, step=1, limit=26
  $region2: #{res_layer_forward.13} parent=0 // loop_pre_header
    _
  $region3: #{res_layer_forward.13} parent=0 // loop_header
    %s13 = sphi 0, %s17
    %p14 = scmp.ge.s32.totalorder %s13, 26
    %s20 = sphi 0, %s39
    %s21 = sphi 0, %s35
    %s22 = sphi 0, %s31
    %s23 = sphi 0, %s20
    %s24 = sphi 0, %s21
    %s25 = sphi 0, %s22
    %s26 = sphi 0, %s23
    %s27 = sphi 0, %s24
    %s28 = sphi 0, %s25
    %s48 = sphi 0, %s50
    %s51 = sphi 0, %s48
    %s52 = sphi 0, %s51
    %s68 = sphi 0, %s52
    %s74 = sphi 0, %s76
    %s77 = sphi 0, %s74
    %s78 = sphi 0, %s77
    %s94 = sphi 0, %s78
    %s98 = sphi 0, %s98
    %s100 = sphi 0, %s98
    %s101 = sphi 0, %s100
    %s115 = sphi 0, %s101
    %s119 = sphi 0, %s119
    %s121 = sphi 0, %s119
    %s122 = sphi 0, %s121
    %s136 = sphi 0, %s122
    %s144 = sphi 0, %s146
    %s147 = sphi 0, %s144
    %s148 = sphi 0, %s147
    %s164 = sphi 0, %s148
    %s174 = sphi 0, %s176
    %s177 = sphi 0, %s174
    %s178 = sphi 0, %s177
    %s194 = sphi 0, %s178
    %s204 = sphi 0, %s206
    %s207 = sphi 0, %s204
    %s208 = sphi 0, %s207
    %s224 = sphi 0, %s208
  $region4: #{res_layer_forward.13} parent=0 // loop_header_branch
    %16 = sbr.rel (%p14) target = $region8
  $region5: #{res_layer_forward.13} parent=0 // loop_body
    %s18 = ssub.s32 %s13, 1
    %s19 = ssub.s32 %s13, 2
    %s29 = sadd.s32 1, %s22
    %p30 = scmp.ge.s32.totalorder %s29, 3
    %s31 = scalar_select %p30, 0, %s29
    %s32 = sadd.s32 1, %s21
    %s33 = scalar_select %p30, %s32, %s21
    %p34 = scmp.ge.s32.totalorder %s33, 4
    %s35 = scalar_select %p34, 0, %s33
    %s36 = sadd.s32 1, %s20
    %s37 = scalar_select %p34, %s36, %s20
    %p38 = scmp.ge.s32.totalorder %s37, 2
    %s39 = scalar_select %p38, 0, %s37
    %s40 = smul.u32 %s21, 2
    %s41 = sadd.s32 %s40, %s22
    %s42 = smul.u32 %s35, 2
    %s43 = sadd.s32 %s42, %s31
    %s44 = ssub.s32 %s20, %s39
    %s45 = ssub.s32 %s41, %s43
    %s46 = sor.u32 %s44, %s45
    %p47 = scmp.eq.s32.totalorder %s46, 0
    %s49 = sadd.s32 %s48, 1
    %s50 = scalar_select %p47, %s48, %s49
    %p53 = pneg %p47
    %p54 = scmp.eq.s32.totalorder %s13, 23
    %p55 = por %p53, %p54
    %p56 = scmp.ne.s32.totalorder %s48, %s51
    %p57 = scmp.eq.s32.totalorder %s13, 0
    %p58 = por %p56, %p57
    %p59 = scmp.ne.s32.totalorder %s48, %s51
    %p60 = scmp.eq.s32.totalorder %s18, 23
    %p61 = por %p59, %p60
    %p62 = scmp.ne.s32.totalorder %s51, %s52
    %p63 = scmp.eq.s32.totalorder %s18, 0
    %p64 = por %p62, %p63
    %p65 = scmp.ne.s32.totalorder %s51, %s52
    %p66 = scmp.eq.s32.totalorder %s19, 23
    %p67 = por %p65, %p66
    %p69 = scmp.ne.s32.totalorder %s52, %s68
    %p70 = scmp.eq.s32.totalorder %s19, 0
    %p71 = por %p69, %p70
    %s72 = ssub.s32 %s22, %s31
    %p73 = scmp.eq.s32.totalorder %s72, 0
    %s75 = sadd.s32 %s74, 1
    %s76 = scalar_select %p73, %s74, %s75
    %p79 = pneg %p73
    %p80 = scmp.eq.s32.totalorder %s13, 23
    %p81 = por %p79, %p80
    %p82 = scmp.ne.s32.totalorder %s74, %s77
    %p83 = scmp.eq.s32.totalorder %s13, 0
    %p84 = por %p82, %p83
    %p85 = scmp.ne.s32.totalorder %s74, %s77
    %p86 = scmp.eq.s32.totalorder %s18, 23
    %p87 = por %p85, %p86
    %p88 = scmp.ne.s32.totalorder %s77, %s78
    %p89 = scmp.eq.s32.totalorder %s18, 0
    %p90 = por %p88, %p89
    %p91 = scmp.ne.s32.totalorder %s77, %s78
    %p92 = scmp.eq.s32.totalorder %s19, 23
    %p93 = por %p91, %p92
    %p95 = scmp.ne.s32.totalorder %s78, %s94
    %p96 = scmp.eq.s32.totalorder %s19, 0
    %p97 = por %p95, %p96
    %s99 = sadd.s32 %s98, 1
    %p102 = scmp.eq.s32.totalorder %s13, 23
    %p103 = scmp.ne.s32.totalorder %s98, %s100
    %p104 = scmp.eq.s32.totalorder %s13, 0
    %p105 = por %p103, %p104
    %p106 = scmp.ne.s32.totalorder %s98, %s100
    %p107 = scmp.eq.s32.totalorder %s18, 23
    %p108 = por %p106, %p107
    %p109 = scmp.ne.s32.totalorder %s100, %s101
    %p110 = scmp.eq.s32.totalorder %s18, 0
    %p111 = por %p109, %p110
    %p112 = scmp.ne.s32.totalorder %s100, %s101
    %p113 = scmp.eq.s32.totalorder %s19, 23
    %p114 = por %p112, %p113
    %p116 = scmp.ne.s32.totalorder %s101, %s115
    %p117 = scmp.eq.s32.totalorder %s19, 0
    %p118 = por %p116, %p117
    %s120 = sadd.s32 %s119, 1
    %p123 = scmp.eq.s32.totalorder %s13, 23
    %p124 = scmp.ne.s32.totalorder %s119, %s121
    %p125 = scmp.eq.s32.totalorder %s13, 0
    %p126 = por %p124, %p125
    %p127 = scmp.ne.s32.totalorder %s119, %s121
    %p128 = scmp.eq.s32.totalorder %s18, 23
    %p129 = por %p127, %p128
    %p130 = scmp.ne.s32.totalorder %s121, %s122
    %p131 = scmp.eq.s32.totalorder %s18, 0
    %p132 = por %p130, %p131
    %p133 = scmp.ne.s32.totalorder %s121, %s122
    %p134 = scmp.eq.s32.totalorder %s19, 23
    %p135 = por %p133, %p134
    %p137 = scmp.ne.s32.totalorder %s122, %s136
    %p138 = scmp.eq.s32.totalorder %s19, 0
    %p139 = por %p137, %p138
    %s140 = ssub.s32 %s20, %s39
    %s141 = ssub.s32 %s21, %s35
    %s142 = sor.u32 %s140, %s141
    %p143 = scmp.eq.s32.totalorder %s142, 0
    %s145 = sadd.s32 %s144, 1
    %s146 = scalar_select %p143, %s144, %s145
    %p149 = pneg %p143
    %p150 = scmp.eq.s32.totalorder %s13, 23
    %p151 = por %p149, %p150
    %p152 = scmp.ne.s32.totalorder %s144, %s147
    %p153 = scmp.eq.s32.totalorder %s13, 0
    %p154 = por %p152, %p153
    %p155 = scmp.ne.s32.totalorder %s144, %s147
    %p156 = scmp.eq.s32.totalorder %s18, 23
    %p157 = por %p155, %p156
    %p158 = scmp.ne.s32.totalorder %s147, %s148
    %p159 = scmp.eq.s32.totalorder %s18, 0
    %p160 = por %p158, %p159
    %p161 = scmp.ne.s32.totalorder %s147, %s148
    %p162 = scmp.eq.s32.totalorder %s19, 23
    %p163 = por %p161, %p162
    %p165 = scmp.ne.s32.totalorder %s148, %s164
    %p166 = scmp.eq.s32.totalorder %s19, 0
    %p167 = por %p165, %p166
    %s168 = smul.u32 %s20, 4
    %s169 = sadd.s32 %s168, %s21
    %s170 = smul.u32 %s39, 4
    %s171 = sadd.s32 %s170, %s35
    %s172 = ssub.s32 %s169, %s171
    %p173 = scmp.eq.s32.totalorder %s172, 0
    %s175 = sadd.s32 %s174, 1
    %s176 = scalar_select %p173, %s174, %s175
    %p179 = pneg %p173
    %p180 = scmp.eq.s32.totalorder %s13, 23
    %p181 = por %p179, %p180
    %p182 = scmp.ne.s32.totalorder %s174, %s177
    %p183 = scmp.eq.s32.totalorder %s13, 0
    %p184 = por %p182, %p183
    %p185 = scmp.ne.s32.totalorder %s174, %s177
    %p186 = scmp.eq.s32.totalorder %s18, 23
    %p187 = por %p185, %p186
    %p188 = scmp.ne.s32.totalorder %s177, %s178
    %p189 = scmp.eq.s32.totalorder %s18, 0
    %p190 = por %p188, %p189
    %p191 = scmp.ne.s32.totalorder %s177, %s178
    %p192 = scmp.eq.s32.totalorder %s19, 23
    %p193 = por %p191, %p192
    %p195 = scmp.ne.s32.totalorder %s178, %s194
    %p196 = scmp.eq.s32.totalorder %s19, 0
    %p197 = por %p195, %p196
    %s198 = smul.u32 %s20, 4
    %s199 = sadd.s32 %s198, %s21
    %s200 = smul.u32 %s39, 4
    %s201 = sadd.s32 %s200, %s35
    %s202 = ssub.s32 %s199, %s201
    %p203 = scmp.eq.s32.totalorder %s202, 0
    %s205 = sadd.s32 %s204, 1
    %s206 = scalar_select %p203, %s204, %s205
    %p209 = pneg %p203
    %p210 = scmp.eq.s32.totalorder %s13, 23
    %p211 = por %p209, %p210
    %p212 = scmp.ne.s32.totalorder %s204, %s207
    %p213 = scmp.eq.s32.totalorder %s13, 0
    %p214 = por %p212, %p213
    %p215 = scmp.ne.s32.totalorder %s204, %s207
    %p216 = scmp.eq.s32.totalorder %s18, 23
    %p217 = por %p215, %p216
    %p218 = scmp.ne.s32.totalorder %s207, %s208
    %p219 = scmp.eq.s32.totalorder %s18, 0
    %p220 = por %p218, %p219
    %p221 = scmp.ne.s32.totalorder %s207, %s208
    %p222 = scmp.eq.s32.totalorder %s19, 23
    %p223 = por %p221, %p222
    %p225 = scmp.ne.s32.totalorder %s208, %s224
    %p226 = scmp.eq.s32.totalorder %s19, 0
    %p227 = por %p225, %p226
    %p228 = scmp.le.s32.totalorder 1, %s13
    %p229 = scmp.lt.s32.totalorder %s13, 25
    %p230 = pnand %p228, %p229
    %p231 = pneg %p230
    // Predicated region
    $region9: #{res_layer_forward.13} parent=5 // pred_check
      _
    $region10: #{res_layer_forward.13} parent=5 // pred_check_branch
      %233 = sbr.rel (%p230) target = $region12
    $region11: #{res_layer_forward.13} parent=5 // pred_region
      %s234 = ssub.s32 %s13, 1
      // Predicated region
      $region13: #{res_layer_forward.13} parent=11 // pred_check
        %p235 = pneg %p111
      $region14: #{res_layer_forward.13} parent=11 // pred_check_branch
        %237 = sbr.rel (%p235) target = $region16
      $region15: #{res_layer_forward.13} parent=11 // pred_region
        _
      $region16: #{res_layer_forward.13} parent=11 // pred_fallthru
        _
      // Predicated region
      $region17: #{res_layer_forward.13} parent=11 // pred_check
        %p238 = pneg %p132
      $region18: #{res_layer_forward.13} parent=11 // pred_check_branch
        %240 = sbr.rel (%p238) target = $region20
      $region19: #{res_layer_forward.13} parent=11 // pred_region
        _
      $region20: #{res_layer_forward.13} parent=11 // pred_fallthru
        _
    $region12: #{res_layer_forward.13} parent=5 // pred_fallthru
      _
    %p241 = scmp.lt.s32.totalorder %s13, 24
    // Predicated region
    $region21: #{res_layer_forward.13} parent=5 // pred_check
      %p242 = pneg %p241
    $region22: #{res_layer_forward.13} parent=5 // pred_check_branch
      %244 = sbr.rel (%p242) target = $region24
    $region23: #{res_layer_forward.13} parent=5 // pred_region
      // Predicated region
      $region25: #{res_layer_forward.13} parent=23 // pred_check
        %p245 = pneg %p58
      $region26: #{res_layer_forward.13} parent=23 // pred_check_branch
        %247 = sbr.rel (%p245) target = $region28
      $region27: #{res_layer_forward.13} parent=23 // pred_region
        %s248 = smul.u32 %s21, 2
        %s249 = sadd.s32 %s248, %s22
        %p250 = scmp.lt.s32.totalorder %s20, 1
        %s251 = scalar_select %p250, %s20, 1
        %p252 = scmp.lt.s32.totalorder %s249, 9
        %s253 = scalar_select %p252, %s249, 9
        %s254 = smul.addr %s253, 8
        %s255 = smul.addr %s251, 80
        %s256 = sadd.s32 %s254, %s255
        %s257 = smul.addr %s256, 4
        %s258 = scalar_lea.vmem %s0, %s257
        %s259 = smul.u32 %s21, 2
        %s260 = sadd.s32 %s259, %s22
      $region28: #{res_layer_forward.13} parent=23 // pred_fallthru
        _
      // Predicated region
      $region29: #{res_layer_forward.13} parent=23 // pred_check
        %p261 = pneg %p84
      $region30: #{res_layer_forward.13} parent=23 // pred_check_branch
        %263 = sbr.rel (%p261) target = $region32
      $region31: #{res_layer_forward.13} parent=23 // pred_region
        %p264 = scmp.lt.s32.totalorder %s22, 2
        %s265 = scalar_select %p264, %s22, 2
        %s266 = smul.addr %s265, 2
        %s267 = smul.addr %s266, 4
        %s268 = scalar_lea.vmem %s1, %s267
      $region32: #{res_layer_forward.13} parent=23 // pred_fallthru
        _
    $region24: #{res_layer_forward.13} parent=5 // pred_fallthru
      _
    %p269 = scmp.le.s32.totalorder 1, %s13
    %p270 = scmp.lt.s32.totalorder %s13, 25
    %p271 = pnand %p269, %p270
    %p272 = pneg %p271
    // Predicated region
    $region33: #{res_layer_forward.13} parent=5 // pred_check
      _
    $region34: #{res_layer_forward.13} parent=5 // pred_check_branch
      %274 = sbr.rel (%p271) target = $region36
    $region35: #{res_layer_forward.13} parent=5 // pred_region
      %s275 = ssub.s32 %s13, 1
      %s276 = smul.u32 %s24, 2
      %s277 = sadd.s32 %s276, %s25
      %p278 = scmp.lt.s32.totalorder %s23, 1
      %s279 = scalar_select %p278, %s23, 1
      %p280 = scmp.lt.s32.totalorder %s277, 9
      %s281 = scalar_select %p280, %s277, 9
      %s282 = smul.addr %s281, 8
      %s283 = smul.addr %s279, 80
      %s284 = sadd.s32 %s282, %s283
      %s285 = smul.addr %s284, 4
      %s286 = scalar_lea.vmem %s0, %s285
      %p287 = pneg %p64
      %p288 = pneg %p61
      %p289 = scmp.lt.s32.totalorder %s25, 2
      %s290 = scalar_select %p289, %s25, 2
      %s291 = smul.addr %s290, 2
      %s292 = smul.addr %s291, 4
      %s293 = scalar_lea.vmem %s1, %s292
      %p294 = pneg %p90
      %p295 = pneg %p87
      %p296 = pneg %p111
      %p297 = pneg %p108
      %p298 = pneg %p132
      %p299 = pneg %p129
      %p300 = pneg %p160
      %p301 = pneg %p157
      %p302 = scmp.lt.s32.totalorder %s23, 1
      %s303 = scalar_select %p302, %s23, 1
      %p304 = scmp.lt.s32.totalorder %s24, 3
      %s305 = scalar_select %p304, %s24, 3
      %s306 = smul.addr %s305, 8
      %s307 = smul.addr %s303, 32
      %s308 = sadd.s32 %s306, %s307
      %s309 = smul.addr %s308, 4
      %s310 = scalar_lea.vmem %s4, %s309
      %p311 = pneg %p190
      %p312 = pneg %p187
      %s313 = smul.u32 %s23, 4
      %s314 = sadd.s32 %s313, %s24
      %p315 = scmp.lt.s32.totalorder %s314, 7
      %s316 = scalar_select %p315, %s314, 7
      %s317 = scalar_lea.vmem %s5, %s316
      %p318 = pneg %p220
      %p319 = pneg %p217
      %s320 = smul.u32 %s23, 4
      %s321 = sadd.s32 %s320, %s24
      %p322 = scmp.lt.s32.totalorder %s321, 7
      %s323 = scalar_select %p322, %s321, 7
      %s324 = scalar_lea.vmem %s6, %s323
      %s325 = smul.u32 %s24, 2
      %s326 = sadd.s32 %s325, %s25
      %p327 = scmp.lt.s32.totalorder %s23, 1
      %s328 = scalar_select %p327, %s23, 1
      %p329 = scmp.lt.s32.totalorder %s326, 9
      %s330 = scalar_select %p329, %s326, 9
      %s331 = smul.addr %s330, 8
      %s332 = smul.addr %s328, 80
      %s333 = sadd.s32 %s331, %s332
      %s334 = smul.addr %s333, 4
      %s335 = scalar_lea.vmem %s0, %s334
      %s336 = smul.u32 %s24, 2
      %s337 = sadd.s32 %s336, %s25
      %p338 = scmp.lt.s32.totalorder %s25, 2
      %s339 = scalar_select %p338, %s25, 2
      %s340 = smul.addr %s339, 2
      %s341 = smul.addr %s340, 4
      %s342 = scalar_lea.vmem %s1, %s341
      %p343 = scmp.lt.s32.totalorder %s23, 1
      %s344 = scalar_select %p343, %s23, 1
      %p345 = scmp.lt.s32.totalorder %s24, 3
      %s346 = scalar_select %p345, %s24, 3
      %s347 = smul.addr %s346, 8
      %s348 = smul.addr %s344, 32
      %s349 = sadd.s32 %s347, %s348
      %s350 = smul.addr %s349, 4
      %s351 = scalar_lea.vmem %s4, %s350
      %s352 = smul.u32 %s23, 4
      %s353 = sadd.s32 %s352, %s24
      %p354 = scmp.lt.s32.totalorder %s353, 7
      %s355 = scalar_select %p354, %s353, 7
      %s356 = scalar_lea.vmem %s5, %s355
      %s357 = smul.u32 %s23, 4
      %s358 = sadd.s32 %s357, %s24
      %s359 = smul.u32 %s23, 4
      %s360 = sadd.s32 %s359, %s24
      %p361 = scmp.lt.s32.totalorder %s360, 7
      %s362 = scalar_select %p361, %s360, 7
      %s363 = scalar_lea.vmem %s6, %s362
      %s364 = smul.u32 %s23, 4
      %s365 = sadd.s32 %s364, %s24
      %p367 = scmp.eq.s32.totalorder %s25, 0
      // Predicated region
      $region37: #{res_layer_forward.13} parent=35 // pred_check
        %p368 = pneg %p367
      $region38: #{res_layer_forward.13} parent=35 // pred_check_branch
        %370 = sbr.rel (%p368) target = $region40
      $region39: #{res_layer_forward.13} parent=35 // pred_region
        %vm371 = vcmask 64512
        %372 = vst.msk [vmem:[#allocation2] sm:$0xff] %vm371, 0.0
        %373 = vst.msk [vmem:[#allocation2 + $0x8] sm:$0xff] %vm371, 0.0
        %374 = vst.msk [vmem:[#allocation2 + $0x10] sm:$0xff] %vm371, 0.0
        %375 = vst.msk [vmem:[#allocation2 + $0x18] sm:$0xff] %vm371, 0.0
        %376 = vst.msk [vmem:[#allocation2 + $0x20] sm:$0xff] %vm371, 0.0
        %377 = vst.msk [vmem:[#allocation2 + $0x28] sm:$0xff] %vm371, 0.0
        %378 = vst.msk [vmem:[#allocation2 + $0x30] sm:$0xff] %vm371, 0.0
        %379 = vst.msk [vmem:[#allocation2 + $0x38] sm:$0xff] %vm371, 0.0
      $region40: #{res_layer_forward.13} parent=35 // pred_fallthru
        _
      %v380 = vld [vmem:[%s335] sm:$0xf]
      %v381 = vld [vmem:[%s335 + $0x4] sm:$0xf]
      %v382 = vld [vmem:[%s335 + $0x8] sm:$0xf]
      %v383 = vld [vmem:[%s335 + $0xc] sm:$0xf]
      %v384 = vld [vmem:[%s335 + $0x10] sm:$0xf]
      %v385 = vld [vmem:[%s335 + $0x14] sm:$0xf]
      %v386 = vld [vmem:[%s335 + $0x18] sm:$0xf]
      %v387 = vld [vmem:[%s335 + $0x1c] sm:$0xf]
      %v388 = vunpack.c.l.bf16 %v380
      %v389 = vunpack.c.l.bf16 %v381
      %v390 = vunpack.c.l.bf16 %v382
      %v391 = vunpack.c.l.bf16 %v383
      %v392 = vunpack.c.l.bf16 %v384
      %v393 = vunpack.c.l.bf16 %v385
      %v394 = vunpack.c.l.bf16 %v386
      %v395 = vunpack.c.l.bf16 %v387
      %v396 = vld [vmem:[%s2] sm:$0x1]
      %v398 = vlaneseq
      %v399 = vshrl.u32 %v398, 7
      %v400 = vsub.s32 0, %v399
      %v401 = vrot.slane %v396, %v400
      %v403 = vmul.f32 %v388, %v401
      %v404 = vmul.f32 %v389, %v401
      %v405 = vmul.f32 %v390, %v401
      %v406 = vmul.f32 %v391, %v401
      %v407 = vmul.f32 %v392, %v401
      %v408 = vmul.f32 %v393, %v401
      %v409 = vmul.f32 %v394, %v401
      %v410 = vmul.f32 %v395, %v401
      %v411 = vld [vmem:[%s3] sm:$0x1]
      %v413 = vlaneseq
      %v414 = vshrl.u32 %v413, 7
      %v415 = vsub.s32 0, %v414
      %v416 = vrot.slane %v411, %v415
      %v418 = vadd.f32 %v403, %v416
      %v419 = vadd.f32 %v404, %v416
      %v420 = vadd.f32 %v405, %v416
      %v421 = vadd.f32 %v406, %v416
      %v422 = vadd.f32 %v407, %v416
      %v423 = vadd.f32 %v408, %v416
      %v424 = vadd.f32 %v409, %v416
      %v425 = vadd.f32 %v410, %v416
      %v426 = vmax.f32 %v418, 0.0
      %v427 = vmax.f32 %v419, 0.0
      %v428 = vmax.f32 %v420, 0.0
      %v429 = vmax.f32 %v421, 0.0
      %v430 = vmax.f32 %v422, 0.0
      %v431 = vmax.f32 %v423, 0.0
      %v432 = vmax.f32 %v424, 0.0
      %v433 = vmax.f32 %v425, 0.0
      %v434 = vld [vmem:[#allocation2] sm:$0xff]
      %v435 = vld [vmem:[#allocation2 + $0x8] sm:$0xff]
      %v436 = vld [vmem:[#allocation2 + $0x10] sm:$0xff]
      %v437 = vld [vmem:[#allocation2 + $0x18] sm:$0xff]
      %v438 = vld [vmem:[#allocation2 + $0x20] sm:$0xff]
      %v439 = vld [vmem:[#allocation2 + $0x28] sm:$0xff]
      %v440 = vld [vmem:[#allocation2 + $0x30] sm:$0xff]
      %v441 = vld [vmem:[#allocation2 + $0x38] sm:$0xff]
      %v442 = vpack.c.bf16 %v427, %v426
      %v443 = vpack.c.bf16 %v429, %v428
      %v444 = vpack.c.bf16 %v431, %v430
      %v445 = vpack.c.bf16 %v433, %v432
      %v446 = vld [vmem:[%s342] sm:$0xf]
      %v447 = vld [vmem:[%s342 + $0x4] sm:$0x7]
      %v450 = vunpack.c.l.b16 %v446
      %v451 = vunpack.c.l.b16 %v447
      %v452 = vpack.c.b16 %v451, %v450
      %vm453 = vcmask 113664
      %v455 = vsel %vm453, %v442, 0
      %v458 = vsel %vm453, %v443, 0
      %v461 = vsel %vm453, %v444, 0
      %v464 = vsel %vm453, %v445, 0
      %vm466 = vcmask 1046528
      %v468 = vsel %vm466, %v452, 0
      %470 = vmatprep.subr.bf16.mxu0 0
      %471 = vmatpush1.bf16.msra.mxu0 0
      %472 = vmatprep.subr.bf16.mxu0 0
      %473 = vmatpush1.bf16.msra.mxu0 0
      %474 = vmatprep.subr.bf16.mxu0 0
      %475 = vmatpush1.bf16.msra.mxu0 0
      %476 = vmatprep.subr.bf16.mxu0 0
      %477 = vmatpush1.bf16.msra.mxu0 0
      %478 = vmatprep.subr.bf16.mxu0 0
      %479 = vmatpush1.bf16.msra.mxu0 0
      %480 = vmatprep.subr.bf16.mxu0 0
      %481 = vmatpush1.bf16.msra.mxu0 0
      %482 = vmatprep.subr.bf16.mxu0 0
      %483 = vmatpush1.bf16.msra.mxu0 0
      %484 = vmatprep.subr.bf16.mxu0 0
      %485 = vmatpush1.bf16.msra.mxu0 %v468
      %486 = vmatprep.subr.bf16.mxu0 0
      %487 = vmatpush2.bf16.msra.mxu0 0
      %488 = vmatprep.subr.bf16.mxu0 0
      %489 = vmatpush2.bf16.msra.mxu0 0
      %490 = vmatprep.subr.bf16.mxu0 0
      %491 = vmatpush2.bf16.msra.mxu0 0
      %492 = vmatprep.subr.bf16.mxu0 0
      %493 = vmatpush2.bf16.msra.mxu0 0
      %494 = vmatprep.subr.bf16.mxu0 0
      %495 = vmatpush2.bf16.msra.mxu0 0
      %496 = vmatprep.subr.bf16.mxu0 0
      %497 = vmatpush2.bf16.msra.mxu0 0
      %498 = vmatprep.subr.bf16.mxu0 0
      %499 = vmatpush2.bf16.msra.mxu0 0
      %500 = vmatprep.subr.bf16.mxu0 0
      %501 = vmatpush2.bf16.msra.mxu0 0
      %502 = vmatprep.mubr.bf16.mxu0 0
      %503 = vmatmul.mubr.bf16.gmra.mxu0 %v455
      %v504 = vpop.f32.mrf.mxu0
      %v505 = vadd.f32 0.0, %v504
      %v506 = vpop.f32.mrf.mxu0
      %v507 = vpop.f32.mrf.mxu0
      %v508 = vadd.f32 0.0, %v507
      %v509 = vpop.f32.mrf.mxu0
      %510 = vmatprep.mubr.bf16.mxu0 0
      %511 = vmatmul.mubr.bf16.gmra.mxu0 %v458
      %v512 = vpop.f32.mrf.mxu0
      %v513 = vadd.f32 0.0, %v512
      %v514 = vpop.f32.mrf.mxu0
      %v515 = vpop.f32.mrf.mxu0
      %v516 = vadd.f32 0.0, %v515
      %v517 = vpop.f32.mrf.mxu0
      %518 = vmatprep.mubr.bf16.mxu0 0
      %519 = vmatmul.mubr.bf16.gmra.mxu0 %v461
      %v520 = vpop.f32.mrf.mxu0
      %v521 = vadd.f32 0.0, %v520
      %v522 = vpop.f32.mrf.mxu0
      %v523 = vpop.f32.mrf.mxu0
      %v524 = vadd.f32 0.0, %v523
      %v525 = vpop.f32.mrf.mxu0
      %526 = vmatprep.mubr.bf16.mxu0 0
      %527 = vmatmul.mubr.bf16.gmra.mxu0 %v464
      %v528 = vpop.f32.mrf.mxu0
      %v529 = vadd.f32 0.0, %v528
      %v530 = vpop.f32.mrf.mxu0
      %v531 = vpop.f32.mrf.mxu0
      %v532 = vadd.f32 0.0, %v531
      %v533 = vpop.f32.mrf.mxu0
      %534 = vdwg.mxu0
      %v535 = vadd.f32 %v434, %v505
      %v536 = vadd.f32 %v435, %v508
      %v537 = vadd.f32 %v436, %v513
      %v538 = vadd.f32 %v437, %v516
      %v539 = vadd.f32 %v438, %v521
      %v540 = vadd.f32 %v439, %v524
      %v541 = vadd.f32 %v440, %v529
      %v542 = vadd.f32 %v441, %v532
      %vm543 = vcmask 64512
      %544 = vst.msk [vmem:[#allocation2] sm:$0xff] %vm543, %v535
      %545 = vst.msk [vmem:[#allocation2 + $0x8] sm:$0xff] %vm543, %v536
      %546 = vst.msk [vmem:[#allocation2 + $0x10] sm:$0xff] %vm543, %v537
      %547 = vst.msk [vmem:[#allocation2 + $0x18] sm:$0xff] %vm543, %v538
      %548 = vst.msk [vmem:[#allocation2 + $0x20] sm:$0xff] %vm543, %v539
      %549 = vst.msk [vmem:[#allocation2 + $0x28] sm:$0xff] %vm543, %v540
      %550 = vst.msk [vmem:[#allocation2 + $0x30] sm:$0xff] %vm543, %v541
      %551 = vst.msk [vmem:[#allocation2 + $0x38] sm:$0xff] %vm543, %v542
      %p552 = scmp.eq.s32.totalorder %s25, 2
      // Predicated region
      $region41: #{res_layer_forward.13} parent=35 // pred_check
        %p553 = pneg %p552
      $region42: #{res_layer_forward.13} parent=35 // pred_check_branch
        %555 = sbr.rel (%p553) target = $region44
      $region43: #{res_layer_forward.13} parent=35 // pred_region
        %v556 = vld [vmem:[#allocation2] sm:$0xff]
        %v557 = vld [vmem:[#allocation2 + $0x8] sm:$0xff]
        %v558 = vld [vmem:[#allocation2 + $0x10] sm:$0xff]
        %v559 = vld [vmem:[#allocation2 + $0x18] sm:$0xff]
        %v560 = vld [vmem:[#allocation2 + $0x20] sm:$0xff]
        %v561 = vld [vmem:[#allocation2 + $0x28] sm:$0xff]
        %v562 = vld [vmem:[#allocation2 + $0x30] sm:$0xff]
        %v563 = vld [vmem:[#allocation2 + $0x38] sm:$0xff]
        %v564 = vpack.c.bf16 %v557, %v556
        %v565 = vpack.c.bf16 %v559, %v558
        %v566 = vpack.c.bf16 %v561, %v560
        %v567 = vpack.c.bf16 %v563, %v562
        %v572 = vunpack.c.l.b16 %v564
        %v573 = vunpack.c.h.b16 %v564
        %v574 = vunpack.c.l.b16 %v565
        %v575 = vunpack.c.h.b16 %v565
        %v576 = vunpack.c.l.b16 %v566
        %v577 = vunpack.c.h.b16 %v566
        %v578 = vunpack.c.l.b16 %v567
        %v579 = vunpack.c.h.b16 %v567
        %v580 = vpack.c.b16 %v572, %v572
        %v581 = vpack.c.b16 %v573, %v573
        %v582 = vpack.c.b16 %v574, %v574
        %v583 = vpack.c.b16 %v575, %v575
        %v584 = vpack.c.b16 %v576, %v576
        %v585 = vpack.c.b16 %v577, %v577
        %v586 = vpack.c.b16 %v578, %v578
        %v587 = vpack.c.b16 %v579, %v579
        %vm596 = vcmask 60416
        %597 = vst.msk [vmem:[%s351] sm:$0xf] %vm596, %v580
        %598 = vst.msk [vmem:[%s351 + $0x4] sm:$0xf] %vm596, %v581
        %599 = vst.msk [vmem:[%s351 + $0x8] sm:$0xf] %vm596, %v582
        %600 = vst.msk [vmem:[%s351 + $0xc] sm:$0xf] %vm596, %v583
        %601 = vst.msk [vmem:[%s351 + $0x10] sm:$0xf] %vm596, %v584
        %602 = vst.msk [vmem:[%s351 + $0x14] sm:$0xf] %vm596, %v585
        %603 = vst.msk [vmem:[%s351 + $0x18] sm:$0xf] %vm596, %v586
        %604 = vst.msk [vmem:[%s351 + $0x1c] sm:$0xf] %vm596, %v587
        %v605 = vsel %vm543, %v556, 0.0
        %v606 = vsel %vm543, %v557, 0.0
        %v607 = vadd.f32 %v605, %v606
        %v608 = vsel %vm543, %v558, 0.0
        %v609 = vadd.f32 %v607, %v608
        %v610 = vsel %vm543, %v559, 0.0
        %v611 = vadd.f32 %v609, %v610
        %v612 = vsel %vm543, %v560, 0.0
        %v613 = vadd.f32 %v611, %v612
        %v614 = vsel %vm543, %v561, 0.0
        %v615 = vadd.f32 %v613, %v614
        %v616 = vsel %vm543, %v562, 0.0
        %v617 = vadd.f32 %v615, %v616
        %v618 = vsel %vm543, %v563, 0.0
        %v619 = vadd.f32 %v617, %v618
        %v620 = vrot.slane %v619, 4
        %v621 = vadd.f32 %v619, %v620
        %v622 = vrot.slane %v621, 2
        %v623 = vadd.f32 %v621, %v622
        %v624 = vrot.slane %v623, 1
        %v625 = vadd.f32 %v623, %v624
        %vm626 = vcmask 57344
        %627 = vst.msk [vmem:[%s356] sm:$0x1] %vm626, %v625
        %v628 = vmul.f32 %v556, %v556
        %v629 = vmul.f32 %v557, %v557
        %v630 = vmul.f32 %v558, %v558
        %v631 = vmul.f32 %v559, %v559
        %v632 = vmul.f32 %v560, %v560
        %v633 = vmul.f32 %v561, %v561
        %v634 = vmul.f32 %v562, %v562
        %v635 = vmul.f32 %v563, %v563
        %v636 = vsel %vm543, %v628, 0.0
        %v637 = vsel %vm543, %v629, 0.0
        %v638 = vadd.f32 %v636, %v637
        %v639 = vsel %vm543, %v630, 0.0
        %v640 = vadd.f32 %v638, %v639
        %v641 = vsel %vm543, %v631, 0.0
        %v642 = vadd.f32 %v640, %v641
        %v643 = vsel %vm543, %v632, 0.0
        %v644 = vadd.f32 %v642, %v643
        %v645 = vsel %vm543, %v633, 0.0
        %v646 = vadd.f32 %v644, %v645
        %v647 = vsel %vm543, %v634, 0.0
        %v648 = vadd.f32 %v646, %v647
        %v649 = vsel %vm543, %v635, 0.0
        %v650 = vadd.f32 %v648, %v649
        %v651 = vrot.slane %v650, 4
        %v652 = vadd.f32 %v650, %v651
        %v653 = vrot.slane %v652, 2
        %v654 = vadd.f32 %v652, %v653
        %v655 = vrot.slane %v654, 1
        %v656 = vadd.f32 %v654, %v655
        %657 = vst.msk [vmem:[%s363] sm:$0x1] %vm626, %v656
      $region44: #{res_layer_forward.13} parent=35 // pred_fallthru
        _
      %p658 = scmp.lt.s32.totalorder %s23, 1
      %s659 = scalar_select %p658, %s23, 1
      %p660 = scmp.lt.s32.totalorder %s24, 3
      %s661 = scalar_select %p660, %s24, 3
      %s662 = smul.addr %s661, 8
      %s663 = smul.addr %s659, 32
      %s664 = sadd.s32 %s662, %s663
      %s665 = smul.addr %s664, 4
      %s666 = scalar_lea.vmem %s4, %s665
      %s667 = smul.u32 %s23, 4
      %s668 = sadd.s32 %s667, %s24
      %p669 = scmp.lt.s32.totalorder %s668, 7
      %s670 = scalar_select %p669, %s668, 7
      %s671 = scalar_lea.vmem %s5, %s670
      %s672 = smul.u32 %s23, 4
      %s673 = sadd.s32 %s672, %s24
      %p674 = scmp.lt.s32.totalorder %s673, 7
      %s675 = scalar_select %p674, %s673, 7
      %s676 = scalar_lea.vmem %s6, %s675
      // Predicated region
      $region45: #{res_layer_forward.13} parent=35 // pred_check
        %p677 = pneg %p157
      $region46: #{res_layer_forward.13} parent=35 // pred_check_branch
        %679 = sbr.rel (%p677) target = $region48
      $region47: #{res_layer_forward.13} parent=35 // pred_region
        _
      $region48: #{res_layer_forward.13} parent=35 // pred_fallthru
        _
      // Predicated region
      $region49: #{res_layer_forward.13} parent=35 // pred_check
        %p680 = pneg %p187
      $region50: #{res_layer_forward.13} parent=35 // pred_check_branch
        %682 = sbr.rel (%p680) target = $region52
      $region51: #{res_layer_forward.13} parent=35 // pred_region
        %s683 = smul.u32 %s23, 4
        %s684 = sadd.s32 %s683, %s24
      $region52: #{res_layer_forward.13} parent=35 // pred_fallthru
        _
      // Predicated region
      $region53: #{res_layer_forward.13} parent=35 // pred_check
        %p685 = pneg %p217
      $region54: #{res_layer_forward.13} parent=35 // pred_check_branch
        %687 = sbr.rel (%p685) target = $region56
      $region55: #{res_layer_forward.13} parent=35 // pred_region
        %s688 = smul.u32 %s23, 4
        %s689 = sadd.s32 %s688, %s24
      $region56: #{res_layer_forward.13} parent=35 // pred_fallthru
        _
    $region36: #{res_layer_forward.13} parent=5 // pred_fallthru
      _
    %p690 = scmp.le.s32.totalorder 2, %s13
    // Predicated region
    $region57: #{res_layer_forward.13} parent=5 // pred_check
      %p691 = pneg %p690
    $region58: #{res_layer_forward.13} parent=5 // pred_check_branch
      %693 = sbr.rel (%p691) target = $region60
    $region59: #{res_layer_forward.13} parent=5 // pred_region
      %s694 = ssub.s32 %s13, 2
      // Predicated region
      $region61: #{res_layer_forward.13} parent=59 // pred_check
        %p695 = pneg %p163
      $region62: #{res_layer_forward.13} parent=59 // pred_check_branch
        %697 = sbr.rel (%p695) target = $region64
      $region63: #{res_layer_forward.13} parent=59 // pred_region
        %p698 = scmp.lt.s32.totalorder %s26, 1
        %s699 = scalar_select %p698, %s26, 1
        %p700 = scmp.lt.s32.totalorder %s27, 3
        %s701 = scalar_select %p700, %s27, 3
        %s702 = smul.addr %s701, 8
        %s703 = smul.addr %s699, 32
        %s704 = sadd.s32 %s702, %s703
        %s705 = smul.addr %s704, 4
        %s706 = scalar_lea.vmem %s4, %s705
      $region64: #{res_layer_forward.13} parent=59 // pred_fallthru
        _
      // Predicated region
      $region65: #{res_layer_forward.13} parent=59 // pred_check
        %p707 = pneg %p193
      $region66: #{res_layer_forward.13} parent=59 // pred_check_branch
        %709 = sbr.rel (%p707) target = $region68
      $region67: #{res_layer_forward.13} parent=59 // pred_region
        %s710 = smul.u32 %s26, 4
        %s711 = sadd.s32 %s710, %s27
        %p712 = scmp.lt.s32.totalorder %s711, 7
        %s713 = scalar_select %p712, %s711, 7
        %s714 = scalar_lea.vmem %s5, %s713
      $region68: #{res_layer_forward.13} parent=59 // pred_fallthru
        _
      // Predicated region
      $region69: #{res_layer_forward.13} parent=59 // pred_check
        %p715 = pneg %p223
      $region70: #{res_layer_forward.13} parent=59 // pred_check_branch
        %717 = sbr.rel (%p715) target = $region72
      $region71: #{res_layer_forward.13} parent=59 // pred_region
        %s718 = smul.u32 %s26, 4
        %s719 = sadd.s32 %s718, %s27
        %p720 = scmp.lt.s32.totalorder %s719, 7
        %s721 = scalar_select %p720, %s719, 7
        %s722 = scalar_lea.vmem %s6, %s721
      $region72: #{res_layer_forward.13} parent=59 // pred_fallthru
        _
    $region60: #{res_layer_forward.13} parent=5 // pred_fallthru
      _
  $region6: #{res_layer_forward.13} parent=0 // loop_footer
    %s17 = sadd.s32 1, %s13
  $region7: #{res_layer_forward.13} parent=0 // loop_footer_branch
    %12 = sbr.rel target = $region3
  $region8: #{res_layer_forward.13} parent=0 // loop_exit
    _

// kernel: res_layer_forward.14
$region0: #{res_layer_forward.14}
  #allocation0 [shape = 'u32[]', space=smem, size = 0x4, offset = 0x4, fixed_abs, tag = 'smem constant byte address 0x4 - core index']
  #allocation1 [shape = 'u32[144,128]{1,0:T(1,128)}', space=vmem, size = 0x12000, scoped, tag = 'internal scratch']
  %s0 = inlined_call_operand.vmem [shape: bf16[512,72], index: 0, kind: input, shape index: {}]
  %s1 = inlined_call_operand.vmem [shape: bf16[72,18], index: 1, kind: input, shape index: {}]
  %s2 = inlined_call_operand.vmem [shape: f32[1,72], index: 2, kind: input, shape index: {}]
  %s3 = inlined_call_operand.vmem [shape: f32[1,72], index: 3, kind: input, shape index: {}]
  %s4 = inlined_call_operand.vmem [shape: bf16[512,18], index: 4, kind: output, shape index: {0}]
  %s5 = inlined_call_operand.vmem [shape: f32[1,1,18], index: 5, kind: output, shape index: {1}]
  %s6 = inlined_call_operand.vmem [shape: f32[1,1,18], index: 6, kind: output, shape index: {2}]
  %7 = xla_tuple %s4, %s5, %s6
  %s8 = sld [smem:[#allocation0]]
  $region42: #{res_layer_forward.14} parent=0
    _
  %s10 = ssub.s32 1, %s8
  %s11 = scalar_select 0, %s10, %s8
  // Predicated region
  $region2: #{res_layer_forward.14} parent=0 // pred_check
    _
  $region3: #{res_layer_forward.14} parent=0 // pred_check_branch
    %13 = sbr.rel (0) target = $region5
  $region4: #{res_layer_forward.14} parent=0 // pred_region
    _
  $region5: #{res_layer_forward.14} parent=0 // pred_fallthru
    _
  // Predicated region
  $region6: #{res_layer_forward.14} parent=0 // pred_check
    _
  $region7: #{res_layer_forward.14} parent=0 // pred_check_branch
    %15 = sbr.rel (0) target = $region9
  $region8: #{res_layer_forward.14} parent=0 // pred_region
    _
  $region9: #{res_layer_forward.14} parent=0 // pred_fallthru
    _
  // Predicated region
  $region10: #{res_layer_forward.14} parent=0 // pred_check
    _
  $region11: #{res_layer_forward.14} parent=0 // pred_check_branch
    %17 = sbr.rel (0) target = $region13
  $region12: #{res_layer_forward.14} parent=0 // pred_region
    _
  $region13: #{res_layer_forward.14} parent=0 // pred_fallthru
    _
  // Predicated region
  $region14: #{res_layer_forward.14} parent=0 // pred_check
    _
  $region15: #{res_layer_forward.14} parent=0 // pred_check_branch
    %19 = sbr.rel (0) target = $region17
  $region16: #{res_layer_forward.14} parent=0 // pred_region
    _
  $region17: #{res_layer_forward.14} parent=0 // pred_fallthru
    _
  %v21 = vld [vmem:[%s0] sm:$0xf]
  %v22 = vld [vmem:[%s0 + $0x4] sm:$0xf]
  %v23 = vld [vmem:[%s0 + $0x8] sm:$0xf]
  %v24 = vld [vmem:[%s0 + $0xc] sm:$0xf]
  %v25 = vld [vmem:[%s0 + $0x10] sm:$0xf]
  %v26 = vld [vmem:[%s0 + $0x14] sm:$0xf]
  %v27 = vld [vmem:[%s0 + $0x18] sm:$0xf]
  %v28 = vld [vmem:[%s0 + $0x1c] sm:$0xf]
  %v29 = vld [vmem:[%s0 + $0x20] sm:$0xf]
  %v30 = vld [vmem:[%s0 + $0x24] sm:$0xf]
  %v31 = vld [vmem:[%s0 + $0x28] sm:$0xf]
  %v32 = vld [vmem:[%s0 + $0x2c] sm:$0xf]
  %v33 = vld [vmem:[%s0 + $0x30] sm:$0xf]
  %v34 = vld [vmem:[%s0 + $0x34] sm:$0xf]
  %v35 = vld [vmem:[%s0 + $0x38] sm:$0xf]
  %v36 = vld [vmem:[%s0 + $0x3c] sm:$0xf]
  %v37 = vld [vmem:[%s0 + $0x40] sm:$0xf]
  %v38 = vld [vmem:[%s0 + $0x44] sm:$0xf]
  %v39 = vld [vmem:[%s0 + $0x48] sm:$0xf]
  %v40 = vld [vmem:[%s0 + $0x4c] sm:$0xf]
  %v41 = vld [vmem:[%s0 + $0x50] sm:$0xf]
  %v42 = vld [vmem:[%s0 + $0x54] sm:$0xf]
  %v43 = vld [vmem:[%s0 + $0x58] sm:$0xf]
  %v44 = vld [vmem:[%s0 + $0x5c] sm:$0xf]
  %v45 = vld [vmem:[%s0 + $0x60] sm:$0xf]
  %v46 = vld [vmem:[%s0 + $0x64] sm:$0xf]
  %v47 = vld [vmem:[%s0 + $0x68] sm:$0xf]
  %v48 = vld [vmem:[%s0 + $0x6c] sm:$0xf]
  %v49 = vld [vmem:[%s0 + $0x70] sm:$0xf]
  %v50 = vld [vmem:[%s0 + $0x74] sm:$0xf]
  %v51 = vld [vmem:[%s0 + $0x78] sm:$0xf]
  %v52 = vld [vmem:[%s0 + $0x7c] sm:$0xf]
  %v53 = vld [vmem:[%s0 + $0x80] sm:$0xf]
  %v54 = vld [vmem:[%s0 + $0x84] sm:$0xf]
  %v55 = vld [vmem:[%s0 + $0x88] sm:$0xf]
  %v56 = vld [vmem:[%s0 + $0x8c] sm:$0xf]
  %v57 = vld [vmem:[%s0 + $0x90] sm:$0xf]
  %v58 = vld [vmem:[%s0 + $0x94] sm:$0xf]
  %v59 = vld [vmem:[%s0 + $0x98] sm:$0xf]
  %v60 = vld [vmem:[%s0 + $0x9c] sm:$0xf]
  %v61 = vld [vmem:[%s0 + $0xa0] sm:$0xf]
  %v62 = vld [vmem:[%s0 + $0xa4] sm:$0xf]
  %v63 = vld [vmem:[%s0 + $0xa8] sm:$0xf]
  %v64 = vld [vmem:[%s0 + $0xac] sm:$0xf]
  %v65 = vld [vmem:[%s0 + $0xb0] sm:$0xf]
  %v66 = vld [vmem:[%s0 + $0xb4] sm:$0xf]
  %v67 = vld [vmem:[%s0 + $0xb8] sm:$0xf]
  %v68 = vld [vmem:[%s0 + $0xbc] sm:$0xf]
  %v69 = vld [vmem:[%s0 + $0xc0] sm:$0xf]
  %v70 = vld [vmem:[%s0 + $0xc4] sm:$0xf]
  %v71 = vld [vmem:[%s0 + $0xc8] sm:$0xf]
  %v72 = vld [vmem:[%s0 + $0xcc] sm:$0xf]
  %v73 = vld [vmem:[%s0 + $0xd0] sm:$0xf]
  %v74 = vld [vmem:[%s0 + $0xd4] sm:$0xf]
  %v75 = vld [vmem:[%s0 + $0xd8] sm:$0xf]
  %v76 = vld [vmem:[%s0 + $0xdc] sm:$0xf]
  %v77 = vld [vmem:[%s0 + $0xe0] sm:$0xf]
  %v78 = vld [vmem:[%s0 + $0xe4] sm:$0xf]
  %v79 = vld [vmem:[%s0 + $0xe8] sm:$0xf]
  %v80 = vld [vmem:[%s0 + $0xec] sm:$0xf]
  %v81 = vld [vmem:[%s0 + $0xf0] sm:$0xf]
  %v82 = vld [vmem:[%s0 + $0xf4] sm:$0xf]
  %v83 = vld [vmem:[%s0 + $0xf8] sm:$0xf]
  %v84 = vld [vmem:[%s0 + $0xfc] sm:$0xf]
  %v85 = vunpack.c.l.bf16 %v21
  %v86 = vunpack.c.l.bf16 %v22
  %v87 = vunpack.c.l.bf16 %v23
  %v88 = vunpack.c.l.bf16 %v24
  %v89 = vunpack.c.l.bf16 %v25
  %v90 = vunpack.c.l.bf16 %v26
  %v91 = vunpack.c.l.bf16 %v27
  %v92 = vunpack.c.l.bf16 %v28
  %v93 = vunpack.c.l.bf16 %v29
  %v94 = vunpack.c.l.bf16 %v30
  %v95 = vunpack.c.l.bf16 %v31
  %v96 = vunpack.c.l.bf16 %v32
  %v97 = vunpack.c.l.bf16 %v33
  %v98 = vunpack.c.l.bf16 %v34
  %v99 = vunpack.c.l.bf16 %v35
  %v100 = vunpack.c.l.bf16 %v36
  %v101 = vunpack.c.l.bf16 %v37
  %v102 = vunpack.c.l.bf16 %v38
  %v103 = vunpack.c.l.bf16 %v39
  %v104 = vunpack.c.l.bf16 %v40
  %v105 = vunpack.c.l.bf16 %v41
  %v106 = vunpack.c.l.bf16 %v42
  %v107 = vunpack.c.l.bf16 %v43
  %v108 = vunpack.c.l.bf16 %v44
  %v109 = vunpack.c.l.bf16 %v45
  %v110 = vunpack.c.l.bf16 %v46
  %v111 = vunpack.c.l.bf16 %v47
  %v112 = vunpack.c.l.bf16 %v48
  %v113 = vunpack.c.l.bf16 %v49
  %v114 = vunpack.c.l.bf16 %v50
  %v115 = vunpack.c.l.bf16 %v51
  %v116 = vunpack.c.l.bf16 %v52
  %v117 = vunpack.c.l.bf16 %v53
  %v118 = vunpack.c.l.bf16 %v54
  %v119 = vunpack.c.l.bf16 %v55
  %v120 = vunpack.c.l.bf16 %v56
  %v121 = vunpack.c.l.bf16 %v57
  %v122 = vunpack.c.l.bf16 %v58
  %v123 = vunpack.c.l.bf16 %v59
  %v124 = vunpack.c.l.bf16 %v60
  %v125 = vunpack.c.l.bf16 %v61
  %v126 = vunpack.c.l.bf16 %v62
  %v127 = vunpack.c.l.bf16 %v63
  %v128 = vunpack.c.l.bf16 %v64
  %v129 = vunpack.c.l.bf16 %v65
  %v130 = vunpack.c.l.bf16 %v66
  %v131 = vunpack.c.l.bf16 %v67
  %v132 = vunpack.c.l.bf16 %v68
  %v133 = vunpack.c.l.bf16 %v69
  %v134 = vunpack.c.l.bf16 %v70
  %v135 = vunpack.c.l.bf16 %v71
  %v136 = vunpack.c.l.bf16 %v72
  %v137 = vunpack.c.l.bf16 %v73
  %v138 = vunpack.c.l.bf16 %v74
  %v139 = vunpack.c.l.bf16 %v75
  %v140 = vunpack.c.l.bf16 %v76
  %v141 = vunpack.c.l.bf16 %v77
  %v142 = vunpack.c.l.bf16 %v78
  %v143 = vunpack.c.l.bf16 %v79
  %v144 = vunpack.c.l.bf16 %v80
  %v145 = vunpack.c.l.bf16 %v81
  %v146 = vunpack.c.l.bf16 %v82
  %v147 = vunpack.c.l.bf16 %v83
  %v148 = vunpack.c.l.bf16 %v84
  %v149 = vld [vmem:[%s2] sm:$0x1]
  %v151 = vlaneseq
  %v152 = vshrl.u32 %v151, 7
  %v153 = vsub.s32 0, %v152
  %v154 = vrot.slane %v149, %v153
  %v156 = vmul.f32 %v85, %v154
  %v157 = vmul.f32 %v86, %v154
  %v158 = vmul.f32 %v87, %v154
  %v159 = vmul.f32 %v88, %v154
  %v160 = vmul.f32 %v89, %v154
  %v161 = vmul.f32 %v90, %v154
  %v162 = vmul.f32 %v91, %v154
  %v163 = vmul.f32 %v92, %v154
  %v164 = vmul.f32 %v93, %v154
  %v165 = vmul.f32 %v94, %v154
  %v166 = vmul.f32 %v95, %v154
  %v167 = vmul.f32 %v96, %v154
  %v168 = vmul.f32 %v97, %v154
  %v169 = vmul.f32 %v98, %v154
  %v170 = vmul.f32 %v99, %v154
  %v171 = vmul.f32 %v100, %v154
  %v172 = vmul.f32 %v101, %v154
  %v173 = vmul.f32 %v102, %v154
  %v174 = vmul.f32 %v103, %v154
  %v175 = vmul.f32 %v104, %v154
  %v176 = vmul.f32 %v105, %v154
  %v177 = vmul.f32 %v106, %v154
  %v178 = vmul.f32 %v107, %v154
  %v179 = vmul.f32 %v108, %v154
  %v180 = vmul.f32 %v109, %v154
  %v181 = vmul.f32 %v110, %v154
  %v182 = vmul.f32 %v111, %v154
  %v183 = vmul.f32 %v112, %v154
  %v184 = vmul.f32 %v113, %v154
  %v185 = vmul.f32 %v114, %v154
  %v186 = vmul.f32 %v115, %v154
  %v187 = vmul.f32 %v116, %v154
  %v188 = vmul.f32 %v117, %v154
  %v189 = vmul.f32 %v118, %v154
  %v190 = vmul.f32 %v119, %v154
  %v191 = vmul.f32 %v120, %v154
  %v192 = vmul.f32 %v121, %v154
  %v193 = vmul.f32 %v122, %v154
  %v194 = vmul.f32 %v123, %v154
  %v195 = vmul.f32 %v124, %v154
  %v196 = vmul.f32 %v125, %v154
  %v197 = vmul.f32 %v126, %v154
  %v198 = vmul.f32 %v127, %v154
  %v199 = vmul.f32 %v128, %v154
  %v200 = vmul.f32 %v129, %v154
  %v201 = vmul.f32 %v130, %v154
  %v202 = vmul.f32 %v131, %v154
  %v203 = vmul.f32 %v132, %v154
  %v204 = vmul.f32 %v133, %v154
  %v205 = vmul.f32 %v134, %v154
  %v206 = vmul.f32 %v135, %v154
  %v207 = vmul.f32 %v136, %v154
  %v208 = vmul.f32 %v137, %v154
  %v209 = vmul.f32 %v138, %v154
  %v210 = vmul.f32 %v139, %v154
  %v211 = vmul.f32 %v140, %v154
  %v212 = vmul.f32 %v141, %v154
  %v213 = vmul.f32 %v142, %v154
  %v214 = vmul.f32 %v143, %v154
  %v215 = vmul.f32 %v144, %v154
  %v216 = vmul.f32 %v145, %v154
  %v217 = vmul.f32 %v146, %v154
  %v218 = vmul.f32 %v147, %v154
  %v219 = vmul.f32 %v148, %v154
  %v220 = vld [vmem:[%s3] sm:$0x1]
  %v222 = vlaneseq
  %v223 = vshrl.u32 %v222, 7
  %v224 = vsub.s32 0, %v223
  %v225 = vrot.slane %v220, %v224
  %v227 = vadd.f32 %v156, %v225
  %v228 = vadd.f32 %v157, %v225
  %v229 = vadd.f32 %v158, %v225
  %v230 = vadd.f32 %v159, %v225
  %v231 = vadd.f32 %v160, %v225
  %v232 = vadd.f32 %v161, %v225
  %v233 = vadd.f32 %v162, %v225
  %v234 = vadd.f32 %v163, %v225
  %v235 = vadd.f32 %v164, %v225
  %v236 = vadd.f32 %v165, %v225
  %v237 = vadd.f32 %v166, %v225
  %v238 = vadd.f32 %v167, %v225
  %v239 = vadd.f32 %v168, %v225
  %v240 = vadd.f32 %v169, %v225
  %v241 = vadd.f32 %v170, %v225
  %v242 = vadd.f32 %v171, %v225
  %v243 = vadd.f32 %v172, %v225
  %v244 = vadd.f32 %v173, %v225
  %v245 = vadd.f32 %v174, %v225
  %v246 = vadd.f32 %v175, %v225
  %v247 = vadd.f32 %v176, %v225
  %v248 = vadd.f32 %v177, %v225
  %v249 = vadd.f32 %v178, %v225
  %v250 = vadd.f32 %v179, %v225
  %v251 = vadd.f32 %v180, %v225
  %v252 = vadd.f32 %v181, %v225
  %v253 = vadd.f32 %v182, %v225
  %v254 = vadd.f32 %v183, %v225
  %v255 = vadd.f32 %v184, %v225
  %v256 = vadd.f32 %v185, %v225
  %v257 = vadd.f32 %v186, %v225
  %v258 = vadd.f32 %v187, %v225
  %v259 = vadd.f32 %v188, %v225
  %v260 = vadd.f32 %v189, %v225
  %v261 = vadd.f32 %v190, %v225
  %v262 = vadd.f32 %v191, %v225
  %v263 = vadd.f32 %v192, %v225
  %v264 = vadd.f32 %v193, %v225
  %v265 = vadd.f32 %v194, %v225
  %v266 = vadd.f32 %v195, %v225
  %v267 = vadd.f32 %v196, %v225
  %v268 = vadd.f32 %v197, %v225
  %v269 = vadd.f32 %v198, %v225
  %v270 = vadd.f32 %v199, %v225
  %v271 = vadd.f32 %v200, %v225
  %v272 = vadd.f32 %v201, %v225
  %v273 = vadd.f32 %v202, %v225
  %v274 = vadd.f32 %v203, %v225
  %v275 = vadd.f32 %v204, %v225
  %v276 = vadd.f32 %v205, %v225
  %v277 = vadd.f32 %v206, %v225
  %v278 = vadd.f32 %v207, %v225
  %v279 = vadd.f32 %v208, %v225
  %v280 = vadd.f32 %v209, %v225
  %v281 = vadd.f32 %v210, %v225
  %v282 = vadd.f32 %v211, %v225
  %v283 = vadd.f32 %v212, %v225
  %v284 = vadd.f32 %v213, %v225
  %v285 = vadd.f32 %v214, %v225
  %v286 = vadd.f32 %v215, %v225
  %v287 = vadd.f32 %v216, %v225
  %v288 = vadd.f32 %v217, %v225
  %v289 = vadd.f32 %v218, %v225
  %v290 = vadd.f32 %v219, %v225
  %v291 = vmax.f32 %v227, 0.0
  %v292 = vmax.f32 %v228, 0.0
  %v293 = vmax.f32 %v229, 0.0
  %v294 = vmax.f32 %v230, 0.0
  %v295 = vmax.f32 %v231, 0.0
  %v296 = vmax.f32 %v232, 0.0
  %v297 = vmax.f32 %v233, 0.0
  %v298 = vmax.f32 %v234, 0.0
  %v299 = vmax.f32 %v235, 0.0
  %v300 = vmax.f32 %v236, 0.0
  %v301 = vmax.f32 %v237, 0.0
  %v302 = vmax.f32 %v238, 0.0
  %v303 = vmax.f32 %v239, 0.0
  %v304 = vmax.f32 %v240, 0.0
  %v305 = vmax.f32 %v241, 0.0
  %v306 = vmax.f32 %v242, 0.0
  %v307 = vmax.f32 %v243, 0.0
  %v308 = vmax.f32 %v244, 0.0
  %v309 = vmax.f32 %v245, 0.0
  %v310 = vmax.f32 %v246, 0.0
  %v311 = vmax.f32 %v247, 0.0
  %v312 = vmax.f32 %v248, 0.0
  %v313 = vmax.f32 %v249, 0.0
  %v314 = vmax.f32 %v250, 0.0
  %v315 = vmax.f32 %v251, 0.0
  %v316 = vmax.f32 %v252, 0.0
  %v317 = vmax.f32 %v253, 0.0
  %v318 = vmax.f32 %v254, 0.0
  %v319 = vmax.f32 %v255, 0.0
  %v320 = vmax.f32 %v256, 0.0
  %v321 = vmax.f32 %v257, 0.0
  %v322 = vmax.f32 %v258, 0.0
  %v323 = vmax.f32 %v259, 0.0
  %v324 = vmax.f32 %v260, 0.0
  %v325 = vmax.f32 %v261, 0.0
  %v326 = vmax.f32 %v262, 0.0
  %v327 = vmax.f32 %v263, 0.0
  %v328 = vmax.f32 %v264, 0.0
  %v329 = vmax.f32 %v265, 0.0
  %v330 = vmax.f32 %v266, 0.0
  %v331 = vmax.f32 %v267, 0.0
  %v332 = vmax.f32 %v268, 0.0
  %v333 = vmax.f32 %v269, 0.0
  %v334 = vmax.f32 %v270, 0.0
  %v335 = vmax.f32 %v271, 0.0
  %v336 = vmax.f32 %v272, 0.0
  %v337 = vmax.f32 %v273, 0.0
  %v338 = vmax.f32 %v274, 0.0
  %v339 = vmax.f32 %v275, 0.0
  %v340 = vmax.f32 %v276, 0.0
  %v341 = vmax.f32 %v277, 0.0
  %v342 = vmax.f32 %v278, 0.0
  %v343 = vmax.f32 %v279, 0.0
  %v344 = vmax.f32 %v280, 0.0
  %v345 = vmax.f32 %v281, 0.0
  %v346 = vmax.f32 %v282, 0.0
  %v347 = vmax.f32 %v283, 0.0
  %v348 = vmax.f32 %v284, 0.0
  %v349 = vmax.f32 %v285, 0.0
  %v350 = vmax.f32 %v286, 0.0
  %v351 = vmax.f32 %v287, 0.0
  %v352 = vmax.f32 %v288, 0.0
  %v353 = vmax.f32 %v289, 0.0
  %v354 = vmax.f32 %v290, 0.0
  %v355 = vpack.c.bf16 %v292, %v291
  %v356 = vpack.c.bf16 %v294, %v293
  %v357 = vpack.c.bf16 %v296, %v295
  %v358 = vpack.c.bf16 %v298, %v297
  %v359 = vpack.c.bf16 %v300, %v299
  %v360 = vpack.c.bf16 %v302, %v301
  %v361 = vpack.c.bf16 %v304, %v303
  %v362 = vpack.c.bf16 %v306, %v305
  %v363 = vpack.c.bf16 %v308, %v307
  %v364 = vpack.c.bf16 %v310, %v309
  %v365 = vpack.c.bf16 %v312, %v311
  %v366 = vpack.c.bf16 %v314, %v313
  %v367 = vpack.c.bf16 %v316, %v315
  %v368 = vpack.c.bf16 %v318, %v317
  %v369 = vpack.c.bf16 %v320, %v319
  %v370 = vpack.c.bf16 %v322, %v321
  %v371 = vpack.c.bf16 %v324, %v323
  %v372 = vpack.c.bf16 %v326, %v325
  %v373 = vpack.c.bf16 %v328, %v327
  %v374 = vpack.c.bf16 %v330, %v329
  %v375 = vpack.c.bf16 %v332, %v331
  %v376 = vpack.c.bf16 %v334, %v333
  %v377 = vpack.c.bf16 %v336, %v335
  %v378 = vpack.c.bf16 %v338, %v337
  %v379 = vpack.c.bf16 %v340, %v339
  %v380 = vpack.c.bf16 %v342, %v341
  %v381 = vpack.c.bf16 %v344, %v343
  %v382 = vpack.c.bf16 %v346, %v345
  %v383 = vpack.c.bf16 %v348, %v347
  %v384 = vpack.c.bf16 %v350, %v349
  %v385 = vpack.c.bf16 %v352, %v351
  %v386 = vpack.c.bf16 %v354, %v353
  %v387 = vld [vmem:[%s1] sm:$0xf]
  %v388 = vld [vmem:[%s1 + $0x4] sm:$0xf]
  %v389 = vld [vmem:[%s1 + $0x8] sm:$0xf]
  %v390 = vld [vmem:[%s1 + $0xc] sm:$0xf]
  %v391 = vld [vmem:[%s1 + $0x10] sm:$0xf]
  %v392 = vld [vmem:[%s1 + $0x14] sm:$0xf]
  %v393 = vld [vmem:[%s1 + $0x18] sm:$0xf]
  %v394 = vld [vmem:[%s1 + $0x1c] sm:$0xf]
  %v395 = vld [vmem:[%s1 + $0x20] sm:$0xf]
  %v405 = vunpack.c.l.b16 %v387
  %v406 = vunpack.c.l.b16 %v388
  %v407 = vunpack.c.l.b16 %v389
  %v408 = vunpack.c.l.b16 %v390
  %v409 = vunpack.c.l.b16 %v391
  %v410 = vunpack.c.l.b16 %v392
  %v411 = vunpack.c.l.b16 %v393
  %v412 = vunpack.c.l.b16 %v394
  %v413 = vunpack.c.l.b16 %v395
  %v414 = vpack.c.b16 %v406, %v405
  %v415 = vpack.c.b16 %v408, %v407
  %v416 = vpack.c.b16 %v410, %v409
  %v417 = vpack.c.b16 %v412, %v411
  %v418 = vpack.c.b16 %v413, %v413
  %vm423 = vcmask 588800
  %v425 = vsel %vm423, %v355, 0
  %v428 = vsel %vm423, %v356, 0
  %v431 = vsel %vm423, %v357, 0
  %v434 = vsel %vm423, %v358, 0
  %v437 = vsel %vm423, %v359, 0
  %v440 = vsel %vm423, %v360, 0
  %v443 = vsel %vm423, %v361, 0
  %v446 = vsel %vm423, %v362, 0
  %v449 = vsel %vm423, %v363, 0
  %v452 = vsel %vm423, %v364, 0
  %v455 = vsel %vm423, %v365, 0
  %v458 = vsel %vm423, %v366, 0
  %v461 = vsel %vm423, %v367, 0
  %v464 = vsel %vm423, %v368, 0
  %v467 = vsel %vm423, %v369, 0
  %v470 = vsel %vm423, %v370, 0
  %v473 = vsel %vm423, %v371, 0
  %v476 = vsel %vm423, %v372, 0
  %v479 = vsel %vm423, %v373, 0
  %v482 = vsel %vm423, %v374, 0
  %v485 = vsel %vm423, %v375, 0
  %v488 = vsel %vm423, %v376, 0
  %v491 = vsel %vm423, %v377, 0
  %v494 = vsel %vm423, %v378, 0
  %v497 = vsel %vm423, %v379, 0
  %v500 = vsel %vm423, %v380, 0
  %v503 = vsel %vm423, %v381, 0
  %v506 = vsel %vm423, %v382, 0
  %v509 = vsel %vm423, %v383, 0
  %v512 = vsel %vm423, %v384, 0
  %v515 = vsel %vm423, %v385, 0
  %v518 = vsel %vm423, %v386, 0
  %vm520 = vcmask 1043456
  %v522 = vsel %vm520, %v418, 0
  %524 = vmatprep.subr.bf16.mxu0 0
  %525 = vmatpush1.bf16.msra.mxu0 0
  %526 = vmatprep.subr.bf16.mxu0 0
  %527 = vmatpush1.bf16.msra.mxu0 0
  %528 = vmatprep.subr.bf16.mxu0 0
  %529 = vmatpush1.bf16.msra.mxu0 0
  %530 = vmatprep.subr.bf16.mxu0 0
  %531 = vmatpush1.bf16.msra.mxu0 %v522
  %532 = vmatprep.subr.bf16.mxu0 0
  %533 = vmatpush1.bf16.msra.mxu0 %v417
  %534 = vmatprep.subr.bf16.mxu0 0
  %535 = vmatpush1.bf16.msra.mxu0 %v416
  %536 = vmatprep.subr.bf16.mxu0 0
  %537 = vmatpush1.bf16.msra.mxu0 %v415
  %538 = vmatprep.subr.bf16.mxu0 0
  %539 = vmatpush1.bf16.msra.mxu0 %v414
  %540 = vmatprep.subr.bf16.mxu0 0
  %541 = vmatpush2.bf16.msra.mxu0 0
  %542 = vmatprep.subr.bf16.mxu0 0
  %543 = vmatpush2.bf16.msra.mxu0 0
  %544 = vmatprep.subr.bf16.mxu0 0
  %545 = vmatpush2.bf16.msra.mxu0 0
  %546 = vmatprep.subr.bf16.mxu0 0
  %547 = vmatpush2.bf16.msra.mxu0 0
  %548 = vmatprep.subr.bf16.mxu0 0
  %549 = vmatpush2.bf16.msra.mxu0 0
  %550 = vmatprep.subr.bf16.mxu0 0
  %551 = vmatpush2.bf16.msra.mxu0 0
  %552 = vmatprep.subr.bf16.mxu0 0
  %553 = vmatpush2.bf16.msra.mxu0 0
  %554 = vmatprep.subr.bf16.mxu0 0
  %555 = vmatpush2.bf16.msra.mxu0 0
  %556 = vmatprep.mubr.bf16.mxu0 0
  %557 = vmatmul.mubr.bf16.gmra.mxu0 %v425
  %v558 = vpop.f32.mrf.mxu0
  %v559 = vadd.f32 0.0, %v558
  %v560 = vpop.f32.mrf.mxu0
  %v561 = vpop.f32.mrf.mxu0
  %v562 = vadd.f32 0.0, %v561
  %v563 = vpop.f32.mrf.mxu0
  %564 = vmatprep.mubr.bf16.mxu0 0
  %565 = vmatmul.mubr.bf16.gmra.mxu0 %v428
  %v566 = vpop.f32.mrf.mxu0
  %v567 = vadd.f32 0.0, %v566
  %v568 = vpop.f32.mrf.mxu0
  %v569 = vpop.f32.mrf.mxu0
  %v570 = vadd.f32 0.0, %v569
  %v571 = vpop.f32.mrf.mxu0
  %572 = vmatprep.mubr.bf16.mxu0 0
  %573 = vmatmul.mubr.bf16.gmra.mxu0 %v431
  %v574 = vpop.f32.mrf.mxu0
  %v575 = vadd.f32 0.0, %v574
  %v576 = vpop.f32.mrf.mxu0
  %v577 = vpop.f32.mrf.mxu0
  %v578 = vadd.f32 0.0, %v577
  %v579 = vpop.f32.mrf.mxu0
  %580 = vmatprep.mubr.bf16.mxu0 0
  %581 = vmatmul.mubr.bf16.gmra.mxu0 %v434
  %v582 = vpop.f32.mrf.mxu0
  %v583 = vadd.f32 0.0, %v582
  %v584 = vpop.f32.mrf.mxu0
  %v585 = vpop.f32.mrf.mxu0
  %v586 = vadd.f32 0.0, %v585
  %v587 = vpop.f32.mrf.mxu0
  %588 = vmatprep.mubr.bf16.mxu0 0
  %589 = vmatmul.mubr.bf16.gmra.mxu0 %v437
  %v590 = vpop.f32.mrf.mxu0
  %v591 = vadd.f32 0.0, %v590
  %v592 = vpop.f32.mrf.mxu0
  %v593 = vpop.f32.mrf.mxu0
  %v594 = vadd.f32 0.0, %v593
  %v595 = vpop.f32.mrf.mxu0
  %596 = vmatprep.mubr.bf16.mxu0 0
  %597 = vmatmul.mubr.bf16.gmra.mxu0 %v440
  %v598 = vpop.f32.mrf.mxu0
  %v599 = vadd.f32 0.0, %v598
  %v600 = vpop.f32.mrf.mxu0
  %v601 = vpop.f32.mrf.mxu0
  %v602 = vadd.f32 0.0, %v601
  %v603 = vpop.f32.mrf.mxu0
  %604 = vmatprep.mubr.bf16.mxu0 0
  %605 = vmatmul.mubr.bf16.gmra.mxu0 %v443
  %v606 = vpop.f32.mrf.mxu0
  %v607 = vadd.f32 0.0, %v606
  %v608 = vpop.f32.mrf.mxu0
  %v609 = vpop.f32.mrf.mxu0
  %v610 = vadd.f32 0.0, %v609
  %v611 = vpop.f32.mrf.mxu0
  %612 = vmatprep.mubr.bf16.mxu0 0
  %613 = vmatmul.mubr.bf16.gmra.mxu0 %v446
  %v614 = vpop.f32.mrf.mxu0
  %v615 = vadd.f32 0.0, %v614
  %v616 = vpop.f32.mrf.mxu0
  %v617 = vpop.f32.mrf.mxu0
  %v618 = vadd.f32 0.0, %v617
  %v619 = vpop.f32.mrf.mxu0
  %620 = vmatprep.mubr.bf16.mxu0 0
  %621 = vmatmul.mubr.bf16.gmra.mxu0 %v449
  %v622 = vpop.f32.mrf.mxu0
  %v623 = vadd.f32 0.0, %v622
  %v624 = vpop.f32.mrf.mxu0
  %v625 = vpop.f32.mrf.mxu0
  %v626 = vadd.f32 0.0, %v625
  %v627 = vpop.f32.mrf.mxu0
  %628 = vmatprep.mubr.bf16.mxu0 0
  %629 = vmatmul.mubr.bf16.gmra.mxu0 %v452
  %v630 = vpop.f32.mrf.mxu0
  %v631 = vadd.f32 0.0, %v630
  %v632 = vpop.f32.mrf.mxu0
  %v633 = vpop.f32.mrf.mxu0
  %v634 = vadd.f32 0.0, %v633
  %v635 = vpop.f32.mrf.mxu0
  %636 = vmatprep.mubr.bf16.mxu0 0
  %637 = vmatmul.mubr.bf16.gmra.mxu0 %v455
  %v638 = vpop.f32.mrf.mxu0
  %v639 = vadd.f32 0.0, %v638
  %v640 = vpop.f32.mrf.mxu0
  %v641 = vpop.f32.mrf.mxu0
  %v642 = vadd.f32 0.0, %v641
  %v643 = vpop.f32.mrf.mxu0
  %644 = vmatprep.mubr.bf16.mxu0 0
  %645 = vmatmul.mubr.bf16.gmra.mxu0 %v458
  %v646 = vpop.f32.mrf.mxu0
  %v647 = vadd.f32 0.0, %v646
  %v648 = vpop.f32.mrf.mxu0
  %v649 = vpop.f32.mrf.mxu0
  %v650 = vadd.f32 0.0, %v649
  %v651 = vpop.f32.mrf.mxu0
  %652 = vmatprep.mubr.bf16.mxu0 0
  %653 = vmatmul.mubr.bf16.gmra.mxu0 %v461
  %v654 = vpop.f32.mrf.mxu0
  %v655 = vadd.f32 0.0, %v654
  %v656 = vpop.f32.mrf.mxu0
  %v657 = vpop.f32.mrf.mxu0
  %v658 = vadd.f32 0.0, %v657
  %v659 = vpop.f32.mrf.mxu0
  %660 = vmatprep.mubr.bf16.mxu0 0
  %661 = vmatmul.mubr.bf16.gmra.mxu0 %v464
  %v662 = vpop.f32.mrf.mxu0
  %v663 = vadd.f32 0.0, %v662
  %v664 = vpop.f32.mrf.mxu0
  %v665 = vpop.f32.mrf.mxu0
  %v666 = vadd.f32 0.0, %v665
  %v667 = vpop.f32.mrf.mxu0
  %668 = vmatprep.mubr.bf16.mxu0 0
  %669 = vmatmul.mubr.bf16.gmra.mxu0 %v467
  %v670 = vpop.f32.mrf.mxu0
  %v671 = vadd.f32 0.0, %v670
  %v672 = vpop.f32.mrf.mxu0
  %v673 = vpop.f32.mrf.mxu0
  %v674 = vadd.f32 0.0, %v673
  %v675 = vpop.f32.mrf.mxu0
  %676 = vmatprep.mubr.bf16.mxu0 0
  %677 = vmatmul.mubr.bf16.gmra.mxu0 %v470
  %v678 = vpop.f32.mrf.mxu0
  %v679 = vadd.f32 0.0, %v678
  %v680 = vpop.f32.mrf.mxu0
  %v681 = vpop.f32.mrf.mxu0
  %v682 = vadd.f32 0.0, %v681
  %v683 = vpop.f32.mrf.mxu0
  %684 = vmatprep.mubr.bf16.mxu0 0
  %685 = vmatmul.mubr.bf16.gmra.mxu0 %v473
  %v686 = vpop.f32.mrf.mxu0
  %v687 = vadd.f32 0.0, %v686
  %v688 = vpop.f32.mrf.mxu0
  %v689 = vpop.f32.mrf.mxu0
  %v690 = vadd.f32 0.0, %v689
  %v691 = vpop.f32.mrf.mxu0
  %692 = vmatprep.mubr.bf16.mxu0 0
  %693 = vmatmul.mubr.bf16.gmra.mxu0 %v476
  %v694 = vpop.f32.mrf.mxu0
  %v695 = vadd.f32 0.0, %v694
  %v696 = vpop.f32.mrf.mxu0
  %v697 = vpop.f32.mrf.mxu0
  %v698 = vadd.f32 0.0, %v697
  %v699 = vpop.f32.mrf.mxu0
  %700 = vmatprep.mubr.bf16.mxu0 0
  %701 = vmatmul.mubr.bf16.gmra.mxu0 %v479
  %v702 = vpop.f32.mrf.mxu0
  %v703 = vadd.f32 0.0, %v702
  %v704 = vpop.f32.mrf.mxu0
  %v705 = vpop.f32.mrf.mxu0
  %v706 = vadd.f32 0.0, %v705
  %v707 = vpop.f32.mrf.mxu0
  %708 = vmatprep.mubr.bf16.mxu0 0
  %709 = vmatmul.mubr.bf16.gmra.mxu0 %v482
  %v710 = vpop.f32.mrf.mxu0
  %v711 = vadd.f32 0.0, %v710
  %v712 = vpop.f32.mrf.mxu0
  %v713 = vpop.f32.mrf.mxu0
  %v714 = vadd.f32 0.0, %v713
  %v715 = vpop.f32.mrf.mxu0
  %716 = vmatprep.mubr.bf16.mxu0 0
  %717 = vmatmul.mubr.bf16.gmra.mxu0 %v485
  %v718 = vpop.f32.mrf.mxu0
  %v719 = vadd.f32 0.0, %v718
  %v720 = vpop.f32.mrf.mxu0
  %v721 = vpop.f32.mrf.mxu0
  %v722 = vadd.f32 0.0, %v721
  %v723 = vpop.f32.mrf.mxu0
  %724 = vmatprep.mubr.bf16.mxu0 0
  %725 = vmatmul.mubr.bf16.gmra.mxu0 %v488
  %v726 = vpop.f32.mrf.mxu0
  %v727 = vadd.f32 0.0, %v726
  %v728 = vpop.f32.mrf.mxu0
  %v729 = vpop.f32.mrf.mxu0
  %v730 = vadd.f32 0.0, %v729
  %v731 = vpop.f32.mrf.mxu0
  %732 = vmatprep.mubr.bf16.mxu0 0
  %733 = vmatmul.mubr.bf16.gmra.mxu0 %v491
  %v734 = vpop.f32.mrf.mxu0
  %v735 = vadd.f32 0.0, %v734
  %v736 = vpop.f32.mrf.mxu0
  %v737 = vpop.f32.mrf.mxu0
  %v738 = vadd.f32 0.0, %v737
  %v739 = vpop.f32.mrf.mxu0
  %740 = vmatprep.mubr.bf16.mxu0 0
  %741 = vmatmul.mubr.bf16.gmra.mxu0 %v494
  %v742 = vpop.f32.mrf.mxu0
  %v743 = vadd.f32 0.0, %v742
  %v744 = vpop.f32.mrf.mxu0
  %v745 = vpop.f32.mrf.mxu0
  %v746 = vadd.f32 0.0, %v745
  %v747 = vpop.f32.mrf.mxu0
  %748 = vmatprep.mubr.bf16.mxu0 0
  %749 = vmatmul.mubr.bf16.gmra.mxu0 %v497
  %v750 = vpop.f32.mrf.mxu0
  %v751 = vadd.f32 0.0, %v750
  %v752 = vpop.f32.mrf.mxu0
  %v753 = vpop.f32.mrf.mxu0
  %v754 = vadd.f32 0.0, %v753
  %v755 = vpop.f32.mrf.mxu0
  %756 = vmatprep.mubr.bf16.mxu0 0
  %757 = vmatmul.mubr.bf16.gmra.mxu0 %v500
  %v758 = vpop.f32.mrf.mxu0
  %v759 = vadd.f32 0.0, %v758
  %v760 = vpop.f32.mrf.mxu0
  %v761 = vpop.f32.mrf.mxu0
  %v762 = vadd.f32 0.0, %v761
  %v763 = vpop.f32.mrf.mxu0
  %764 = vmatprep.mubr.bf16.mxu0 0
  %765 = vmatmul.mubr.bf16.gmra.mxu0 %v503
  %v766 = vpop.f32.mrf.mxu0
  %v767 = vadd.f32 0.0, %v766
  %v768 = vpop.f32.mrf.mxu0
  %v769 = vpop.f32.mrf.mxu0
  %v770 = vadd.f32 0.0, %v769
  %v771 = vpop.f32.mrf.mxu0
  %772 = vmatprep.mubr.bf16.mxu0 0
  %773 = vmatmul.mubr.bf16.gmra.mxu0 %v506
  %v774 = vpop.f32.mrf.mxu0
  %v775 = vadd.f32 0.0, %v774
  %v776 = vpop.f32.mrf.mxu0
  %v777 = vpop.f32.mrf.mxu0
  %v778 = vadd.f32 0.0, %v777
  %v779 = vpop.f32.mrf.mxu0
  %780 = vmatprep.mubr.bf16.mxu0 0
  %781 = vmatmul.mubr.bf16.gmra.mxu0 %v509
  %v782 = vpop.f32.mrf.mxu0
  %v783 = vadd.f32 0.0, %v782
  %v784 = vpop.f32.mrf.mxu0
  %v785 = vpop.f32.mrf.mxu0
  %v786 = vadd.f32 0.0, %v785
  %v787 = vpop.f32.mrf.mxu0
  %788 = vmatprep.mubr.bf16.mxu0 0
  %789 = vmatmul.mubr.bf16.gmra.mxu0 %v512
  %v790 = vpop.f32.mrf.mxu0
  %v791 = vadd.f32 0.0, %v790
  %v792 = vpop.f32.mrf.mxu0
  %v793 = vpop.f32.mrf.mxu0
  %v794 = vadd.f32 0.0, %v793
  %v795 = vpop.f32.mrf.mxu0
  %796 = vmatprep.mubr.bf16.mxu0 0
  %797 = vmatmul.mubr.bf16.gmra.mxu0 %v515
  %v798 = vpop.f32.mrf.mxu0
  %v799 = vadd.f32 0.0, %v798
  %v800 = vpop.f32.mrf.mxu0
  %v801 = vpop.f32.mrf.mxu0
  %v802 = vadd.f32 0.0, %v801
  %v803 = vpop.f32.mrf.mxu0
  %804 = vmatprep.mubr.bf16.mxu0 0
  %805 = vmatmul.mubr.bf16.gmra.mxu0 %v518
  %v806 = vpop.f32.mrf.mxu0
  %v807 = vadd.f32 0.0, %v806
  %v808 = vpop.f32.mrf.mxu0
  %v809 = vpop.f32.mrf.mxu0
  %v810 = vadd.f32 0.0, %v809
  %v811 = vpop.f32.mrf.mxu0
  %812 = vdwg.mxu0
  %v813 = vpack.c.bf16 %v562, %v559
  %v814 = vpack.c.bf16 %v570, %v567
  %v815 = vpack.c.bf16 %v578, %v575
  %v816 = vpack.c.bf16 %v586, %v583
  %v817 = vpack.c.bf16 %v594, %v591
  %v818 = vpack.c.bf16 %v602, %v599
  %v819 = vpack.c.bf16 %v610, %v607
  %v820 = vpack.c.bf16 %v618, %v615
  %v821 = vpack.c.bf16 %v626, %v623
  %v822 = vpack.c.bf16 %v634, %v631
  %v823 = vpack.c.bf16 %v642, %v639
  %v824 = vpack.c.bf16 %v650, %v647
  %v825 = vpack.c.bf16 %v658, %v655
  %v826 = vpack.c.bf16 %v666, %v663
  %v827 = vpack.c.bf16 %v674, %v671
  %v828 = vpack.c.bf16 %v682, %v679
  %v829 = vpack.c.bf16 %v690, %v687
  %v830 = vpack.c.bf16 %v698, %v695
  %v831 = vpack.c.bf16 %v706, %v703
  %v832 = vpack.c.bf16 %v714, %v711
  %v833 = vpack.c.bf16 %v722, %v719
  %v834 = vpack.c.bf16 %v730, %v727
  %v835 = vpack.c.bf16 %v738, %v735
  %v836 = vpack.c.bf16 %v746, %v743
  %v837 = vpack.c.bf16 %v754, %v751
  %v838 = vpack.c.bf16 %v762, %v759
  %v839 = vpack.c.bf16 %v770, %v767
  %v840 = vpack.c.bf16 %v778, %v775
  %v841 = vpack.c.bf16 %v786, %v783
  %v842 = vpack.c.bf16 %v794, %v791
  %v843 = vpack.c.bf16 %v802, %v799
  %v844 = vpack.c.bf16 %v810, %v807
  %v877 = vunpack.c.l.b16 %v813
  %v878 = vunpack.c.h.b16 %v813
  %v879 = vunpack.c.l.b16 %v814
  %v880 = vunpack.c.h.b16 %v814
  %v881 = vunpack.c.l.b16 %v815
  %v882 = vunpack.c.h.b16 %v815
  %v883 = vunpack.c.l.b16 %v816
  %v884 = vunpack.c.h.b16 %v816
  %v885 = vunpack.c.l.b16 %v817
  %v886 = vunpack.c.h.b16 %v817
  %v887 = vunpack.c.l.b16 %v818
  %v888 = vunpack.c.h.b16 %v818
  %v889 = vunpack.c.l.b16 %v819
  %v890 = vunpack.c.h.b16 %v819
  %v891 = vunpack.c.l.b16 %v820
  %v892 = vunpack.c.h.b16 %v820
  %v893 = vunpack.c.l.b16 %v821
  %v894 = vunpack.c.h.b16 %v821
  %v895 = vunpack.c.l.b16 %v822
  %v896 = vunpack.c.h.b16 %v822
  %v897 = vunpack.c.l.b16 %v823
  %v898 = vunpack.c.h.b16 %v823
  %v899 = vunpack.c.l.b16 %v824
  %v900 = vunpack.c.h.b16 %v824
  %v901 = vunpack.c.l.b16 %v825
  %v902 = vunpack.c.h.b16 %v825
  %v903 = vunpack.c.l.b16 %v826
  %v904 = vunpack.c.h.b16 %v826
  %v905 = vunpack.c.l.b16 %v827
  %v906 = vunpack.c.h.b16 %v827
  %v907 = vunpack.c.l.b16 %v828
  %v908 = vunpack.c.h.b16 %v828
  %v909 = vunpack.c.l.b16 %v829
  %v910 = vunpack.c.h.b16 %v829
  %v911 = vunpack.c.l.b16 %v830
  %v912 = vunpack.c.h.b16 %v830
  %v913 = vunpack.c.l.b16 %v831
  %v914 = vunpack.c.h.b16 %v831
  %v915 = vunpack.c.l.b16 %v832
  %v916 = vunpack.c.h.b16 %v832
  %v917 = vunpack.c.l.b16 %v833
  %v918 = vunpack.c.h.b16 %v833
  %v919 = vunpack.c.l.b16 %v834
  %v920 = vunpack.c.h.b16 %v834
  %v921 = vunpack.c.l.b16 %v835
  %v922 = vunpack.c.h.b16 %v835
  %v923 = vunpack.c.l.b16 %v836
  %v924 = vunpack.c.h.b16 %v836
  %v925 = vunpack.c.l.b16 %v837
  %v926 = vunpack.c.h.b16 %v837
  %v927 = vunpack.c.l.b16 %v838
  %v928 = vunpack.c.h.b16 %v838
  %v929 = vunpack.c.l.b16 %v839
  %v930 = vunpack.c.h.b16 %v839
  %v931 = vunpack.c.l.b16 %v840
  %v932 = vunpack.c.h.b16 %v840
  %v933 = vunpack.c.l.b16 %v841
  %v934 = vunpack.c.h.b16 %v841
  %v935 = vunpack.c.l.b16 %v842
  %v936 = vunpack.c.h.b16 %v842
  %v937 = vunpack.c.l.b16 %v843
  %v938 = vunpack.c.h.b16 %v843
  %v939 = vunpack.c.l.b16 %v844
  %v940 = vunpack.c.h.b16 %v844
  %v941 = vpack.c.b16 %v877, %v877
  %v942 = vpack.c.b16 %v878, %v878
  %v943 = vpack.c.b16 %v879, %v879
  %v944 = vpack.c.b16 %v880, %v880
  %v945 = vpack.c.b16 %v881, %v881
  %v946 = vpack.c.b16 %v882, %v882
  %v947 = vpack.c.b16 %v883, %v883
  %v948 = vpack.c.b16 %v884, %v884
  %v949 = vpack.c.b16 %v885, %v885
  %v950 = vpack.c.b16 %v886, %v886
  %v951 = vpack.c.b16 %v887, %v887
  %v952 = vpack.c.b16 %v888, %v888
  %v953 = vpack.c.b16 %v889, %v889
  %v954 = vpack.c.b16 %v890, %v890
  %v955 = vpack.c.b16 %v891, %v891
  %v956 = vpack.c.b16 %v892, %v892
  %v957 = vpack.c.b16 %v893, %v893
  %v958 = vpack.c.b16 %v894, %v894
  %v959 = vpack.c.b16 %v895, %v895
  %v960 = vpack.c.b16 %v896, %v896
  %v961 = vpack.c.b16 %v897, %v897
  %v962 = vpack.c.b16 %v898, %v898
  %v963 = vpack.c.b16 %v899, %v899
  %v964 = vpack.c.b16 %v900, %v900
  %v965 = vpack.c.b16 %v901, %v901
  %v966 = vpack.c.b16 %v902, %v902
  %v967 = vpack.c.b16 %v903, %v903
  %v968 = vpack.c.b16 %v904, %v904
  %v969 = vpack.c.b16 %v905, %v905
  %v970 = vpack.c.b16 %v906, %v906
  %v971 = vpack.c.b16 %v907, %v907
  %v972 = vpack.c.b16 %v908, %v908
  %v973 = vpack.c.b16 %v909, %v909
  %v974 = vpack.c.b16 %v910, %v910
  %v975 = vpack.c.b16 %v911, %v911
  %v976 = vpack.c.b16 %v912, %v912
  %v977 = vpack.c.b16 %v913, %v913
  %v978 = vpack.c.b16 %v914, %v914
  %v979 = vpack.c.b16 %v915, %v915
  %v980 = vpack.c.b16 %v916, %v916
  %v981 = vpack.c.b16 %v917, %v917
  %v982 = vpack.c.b16 %v918, %v918
  %v983 = vpack.c.b16 %v919, %v919
  %v984 = vpack.c.b16 %v920, %v920
  %v985 = vpack.c.b16 %v921, %v921
  %v986 = vpack.c.b16 %v922, %v922
  %v987 = vpack.c.b16 %v923, %v923
  %v988 = vpack.c.b16 %v924, %v924
  %v989 = vpack.c.b16 %v925, %v925
  %v990 = vpack.c.b16 %v926, %v926
  %v991 = vpack.c.b16 %v927, %v927
  %v992 = vpack.c.b16 %v928, %v928
  %v993 = vpack.c.b16 %v929, %v929
  %v994 = vpack.c.b16 %v930, %v930
  %v995 = vpack.c.b16 %v931, %v931
  %v996 = vpack.c.b16 %v932, %v932
  %v997 = vpack.c.b16 %v933, %v933
  %v998 = vpack.c.b16 %v934, %v934
  %v999 = vpack.c.b16 %v935, %v935
  %v1000 = vpack.c.b16 %v936, %v936
  %v1001 = vpack.c.b16 %v937, %v937
  %v1002 = vpack.c.b16 %v938, %v938
  %v1003 = vpack.c.b16 %v939, %v939
  %v1004 = vpack.c.b16 %v940, %v940
  %vm1069 = vcmask 142336
  %1070 = vst.msk [vmem:[%s4] sm:$0xf] %vm1069, %v941
  %1071 = vst.msk [vmem:[%s4 + $0x4] sm:$0xf] %vm1069, %v942
  %1072 = vst.msk [vmem:[%s4 + $0x8] sm:$0xf] %vm1069, %v943
  %1073 = vst.msk [vmem:[%s4 + $0xc] sm:$0xf] %vm1069, %v944
  %1074 = vst.msk [vmem:[%s4 + $0x10] sm:$0xf] %vm1069, %v945
  %1075 = vst.msk [vmem:[%s4 + $0x14] sm:$0xf] %vm1069, %v946
  %1076 = vst.msk [vmem:[%s4 + $0x18] sm:$0xf] %vm1069, %v947
  %1077 = vst.msk [vmem:[%s4 + $0x1c] sm:$0xf] %vm1069, %v948
  %1078 = vst.msk [vmem:[%s4 + $0x20] sm:$0xf] %vm1069, %v949
  %1079 = vst.msk [vmem:[%s4 + $0x24] sm:$0xf] %vm1069, %v950
  %1080 = vst.msk [vmem:[%s4 + $0x28] sm:$0xf] %vm1069, %v951
  %1081 = vst.msk [vmem:[%s4 + $0x2c] sm:$0xf] %vm1069, %v952
  %1082 = vst.msk [vmem:[%s4 + $0x30] sm:$0xf] %vm1069, %v953
  %1083 = vst.msk [vmem:[%s4 + $0x34] sm:$0xf] %vm1069, %v954
  %1084 = vst.msk [vmem:[%s4 + $0x38] sm:$0xf] %vm1069, %v955
  %1085 = vst.msk [vmem:[%s4 + $0x3c] sm:$0xf] %vm1069, %v956
  %1086 = vst.msk [vmem:[%s4 + $0x40] sm:$0xf] %vm1069, %v957
  %1087 = vst.msk [vmem:[%s4 + $0x44] sm:$0xf] %vm1069, %v958
  %1088 = vst.msk [vmem:[%s4 + $0x48] sm:$0xf] %vm1069, %v959
  %1089 = vst.msk [vmem:[%s4 + $0x4c] sm:$0xf] %vm1069, %v960
  %1090 = vst.msk [vmem:[%s4 + $0x50] sm:$0xf] %vm1069, %v961
  %1091 = vst.msk [vmem:[%s4 + $0x54] sm:$0xf] %vm1069, %v962
  %1092 = vst.msk [vmem:[%s4 + $0x58] sm:$0xf] %vm1069, %v963
  %1093 = vst.msk [vmem:[%s4 + $0x5c] sm:$0xf] %vm1069, %v964
  %1094 = vst.msk [vmem:[%s4 + $0x60] sm:$0xf] %vm1069, %v965
  %1095 = vst.msk [vmem:[%s4 + $0x64] sm:$0xf] %vm1069, %v966
  %1096 = vst.msk [vmem:[%s4 + $0x68] sm:$0xf] %vm1069, %v967
  %1097 = vst.msk [vmem:[%s4 + $0x6c] sm:$0xf] %vm1069, %v968
  %1098 = vst.msk [vmem:[%s4 + $0x70] sm:$0xf] %vm1069, %v969
  %1099 = vst.msk [vmem:[%s4 + $0x74] sm:$0xf] %vm1069, %v970
  %1100 = vst.msk [vmem:[%s4 + $0x78] sm:$0xf] %vm1069, %v971
  %1101 = vst.msk [vmem:[%s4 + $0x7c] sm:$0xf] %vm1069, %v972
  %1102 = vst.msk [vmem:[%s4 + $0x80] sm:$0xf] %vm1069, %v973
  %1103 = vst.msk [vmem:[%s4 + $0x84] sm:$0xf] %vm1069, %v974
  %1104 = vst.msk [vmem:[%s4 + $0x88] sm:$0xf] %vm1069, %v975
  %1105 = vst.msk [vmem:[%s4 + $0x8c] sm:$0xf] %vm1069, %v976
  %1106 = vst.msk [vmem:[%s4 + $0x90] sm:$0xf] %vm1069, %v977
  %1107 = vst.msk [vmem:[%s4 + $0x94] sm:$0xf] %vm1069, %v978
  %1108 = vst.msk [vmem:[%s4 + $0x98] sm:$0xf] %vm1069, %v979
  %1109 = vst.msk [vmem:[%s4 + $0x9c] sm:$0xf] %vm1069, %v980
  %1110 = vst.msk [vmem:[%s4 + $0xa0] sm:$0xf] %vm1069, %v981
  %1111 = vst.msk [vmem:[%s4 + $0xa4] sm:$0xf] %vm1069, %v982
  %1112 = vst.msk [vmem:[%s4 + $0xa8] sm:$0xf] %vm1069, %v983
  %1113 = vst.msk [vmem:[%s4 + $0xac] sm:$0xf] %vm1069, %v984
  %1114 = vst.msk [vmem:[%s4 + $0xb0] sm:$0xf] %vm1069, %v985
  %1115 = vst.msk [vmem:[%s4 + $0xb4] sm:$0xf] %vm1069, %v986
  %1116 = vst.msk [vmem:[%s4 + $0xb8] sm:$0xf] %vm1069, %v987
  %1117 = vst.msk [vmem:[%s4 + $0xbc] sm:$0xf] %vm1069, %v988
  %1118 = vst.msk [vmem:[%s4 + $0xc0] sm:$0xf] %vm1069, %v989
  %1119 = vst.msk [vmem:[%s4 + $0xc4] sm:$0xf] %vm1069, %v990
  %1120 = vst.msk [vmem:[%s4 + $0xc8] sm:$0xf] %vm1069, %v991
  %1121 = vst.msk [vmem:[%s4 + $0xcc] sm:$0xf] %vm1069, %v992
  %1122 = vst.msk [vmem:[%s4 + $0xd0] sm:$0xf] %vm1069, %v993
  %1123 = vst.msk [vmem:[%s4 + $0xd4] sm:$0xf] %vm1069, %v994
  %1124 = vst.msk [vmem:[%s4 + $0xd8] sm:$0xf] %vm1069, %v995
  %1125 = vst.msk [vmem:[%s4 + $0xdc] sm:$0xf] %vm1069, %v996
  %1126 = vst.msk [vmem:[%s4 + $0xe0] sm:$0xf] %vm1069, %v997
  %1127 = vst.msk [vmem:[%s4 + $0xe4] sm:$0xf] %vm1069, %v998
  %1128 = vst.msk [vmem:[%s4 + $0xe8] sm:$0xf] %vm1069, %v999
  %1129 = vst.msk [vmem:[%s4 + $0xec] sm:$0xf] %vm1069, %v1000
  %1130 = vst.msk [vmem:[%s4 + $0xf0] sm:$0xf] %vm1069, %v1001
  %1131 = vst.msk [vmem:[%s4 + $0xf4] sm:$0xf] %vm1069, %v1002
  %1132 = vst.msk [vmem:[%s4 + $0xf8] sm:$0xf] %vm1069, %v1003
  %1133 = vst.msk [vmem:[%s4 + $0xfc] sm:$0xf] %vm1069, %v1004
  %vm1134 = vcmask 146432
  %v1135 = vsel %vm1134, %v559, 0.0
  %v1136 = vsel %vm1134, %v562, 0.0
  %v1137 = vadd.f32 %v1135, %v1136
  %v1138 = vsel %vm1134, %v567, 0.0
  %v1139 = vadd.f32 %v1137, %v1138
  %v1140 = vsel %vm1134, %v570, 0.0
  %v1141 = vadd.f32 %v1139, %v1140
  %v1142 = vsel %vm1134, %v575, 0.0
  %v1143 = vadd.f32 %v1141, %v1142
  %v1144 = vsel %vm1134, %v578, 0.0
  %v1145 = vadd.f32 %v1143, %v1144
  %v1146 = vsel %vm1134, %v583, 0.0
  %v1147 = vadd.f32 %v1145, %v1146
  %v1148 = vsel %vm1134, %v586, 0.0
  %v1149 = vadd.f32 %v1147, %v1148
  %v1150 = vsel %vm1134, %v591, 0.0
  %v1151 = vadd.f32 %v1149, %v1150
  %v1152 = vsel %vm1134, %v594, 0.0
  %v1153 = vadd.f32 %v1151, %v1152
  %v1154 = vsel %vm1134, %v599, 0.0
  %v1155 = vadd.f32 %v1153, %v1154
  %v1156 = vsel %vm1134, %v602, 0.0
  %v1157 = vadd.f32 %v1155, %v1156
  %v1158 = vsel %vm1134, %v607, 0.0
  %v1159 = vadd.f32 %v1157, %v1158
  %v1160 = vsel %vm1134, %v610, 0.0
  %v1161 = vadd.f32 %v1159, %v1160
  %v1162 = vsel %vm1134, %v615, 0.0
  %v1163 = vadd.f32 %v1161, %v1162
  %v1164 = vsel %vm1134, %v618, 0.0
  %v1165 = vadd.f32 %v1163, %v1164
  %v1166 = vsel %vm1134, %v623, 0.0
  %v1167 = vadd.f32 %v1165, %v1166
  %v1168 = vsel %vm1134, %v626, 0.0
  %v1169 = vadd.f32 %v1167, %v1168
  %v1170 = vsel %vm1134, %v631, 0.0
  %v1171 = vadd.f32 %v1169, %v1170
  %v1172 = vsel %vm1134, %v634, 0.0
  %v1173 = vadd.f32 %v1171, %v1172
  %v1174 = vsel %vm1134, %v639, 0.0
  %v1175 = vadd.f32 %v1173, %v1174
  %v1176 = vsel %vm1134, %v642, 0.0
  %v1177 = vadd.f32 %v1175, %v1176
  %v1178 = vsel %vm1134, %v647, 0.0
  %v1179 = vadd.f32 %v1177, %v1178
  %v1180 = vsel %vm1134, %v650, 0.0
  %v1181 = vadd.f32 %v1179, %v1180
  %v1182 = vsel %vm1134, %v655, 0.0
  %v1183 = vadd.f32 %v1181, %v1182
  %v1184 = vsel %vm1134, %v658, 0.0
  %v1185 = vadd.f32 %v1183, %v1184
  %v1186 = vsel %vm1134, %v663, 0.0
  %v1187 = vadd.f32 %v1185, %v1186
  %v1188 = vsel %vm1134, %v666, 0.0
  %v1189 = vadd.f32 %v1187, %v1188
  %v1190 = vsel %vm1134, %v671, 0.0
  %v1191 = vadd.f32 %v1189, %v1190
  %v1192 = vsel %vm1134, %v674, 0.0
  %v1193 = vadd.f32 %v1191, %v1192
  %v1194 = vsel %vm1134, %v679, 0.0
  %v1195 = vadd.f32 %v1193, %v1194
  %v1196 = vsel %vm1134, %v682, 0.0
  %v1197 = vadd.f32 %v1195, %v1196
  %v1198 = vsel %vm1134, %v687, 0.0
  %v1199 = vadd.f32 %v1197, %v1198
  %v1200 = vsel %vm1134, %v690, 0.0
  %v1201 = vadd.f32 %v1199, %v1200
  %v1202 = vsel %vm1134, %v695, 0.0
  %v1203 = vadd.f32 %v1201, %v1202
  %v1204 = vsel %vm1134, %v698, 0.0
  %v1205 = vadd.f32 %v1203, %v1204
  %v1206 = vsel %vm1134, %v703, 0.0
  %v1207 = vadd.f32 %v1205, %v1206
  %v1208 = vsel %vm1134, %v706, 0.0
  %v1209 = vadd.f32 %v1207, %v1208
  %v1210 = vsel %vm1134, %v711, 0.0
  %v1211 = vadd.f32 %v1209, %v1210
  %v1212 = vsel %vm1134, %v714, 0.0
  %v1213 = vadd.f32 %v1211, %v1212
  %v1214 = vsel %vm1134, %v719, 0.0
  %v1215 = vadd.f32 %v1213, %v1214
  %v1216 = vsel %vm1134, %v722, 0.0
  %v1217 = vadd.f32 %v1215, %v1216
  %v1218 = vsel %vm1134, %v727, 0.0
  %v1219 = vadd.f32 %v1217, %v1218
  %v1220 = vsel %vm1134, %v730, 0.0
  %v1221 = vadd.f32 %v1219, %v1220
  %v1222 = vsel %vm1134, %v735, 0.0
  %v1223 = vadd.f32 %v1221, %v1222
  %v1224 = vsel %vm1134, %v738, 0.0
  %v1225 = vadd.f32 %v1223, %v1224
  %v1226 = vsel %vm1134, %v743, 0.0
  %v1227 = vadd.f32 %v1225, %v1226
  %v1228 = vsel %vm1134, %v746, 0.0
  %v1229 = vadd.f32 %v1227, %v1228
  %v1230 = vsel %vm1134, %v751, 0.0
  %v1231 = vadd.f32 %v1229, %v1230
  %v1232 = vsel %vm1134, %v754, 0.0
  %v1233 = vadd.f32 %v1231, %v1232
  %v1234 = vsel %vm1134, %v759, 0.0
  %v1235 = vadd.f32 %v1233, %v1234
  %v1236 = vsel %vm1134, %v762, 0.0
  %v1237 = vadd.f32 %v1235, %v1236
  %v1238 = vsel %vm1134, %v767, 0.0
  %v1239 = vadd.f32 %v1237, %v1238
  %v1240 = vsel %vm1134, %v770, 0.0
  %v1241 = vadd.f32 %v1239, %v1240
  %v1242 = vsel %vm1134, %v775, 0.0
  %v1243 = vadd.f32 %v1241, %v1242
  %v1244 = vsel %vm1134, %v778, 0.0
  %v1245 = vadd.f32 %v1243, %v1244
  %v1246 = vsel %vm1134, %v783, 0.0
  %v1247 = vadd.f32 %v1245, %v1246
  %v1248 = vsel %vm1134, %v786, 0.0
  %v1249 = vadd.f32 %v1247, %v1248
  %v1250 = vsel %vm1134, %v791, 0.0
  %v1251 = vadd.f32 %v1249, %v1250
  %v1252 = vsel %vm1134, %v794, 0.0
  %v1253 = vadd.f32 %v1251, %v1252
  %v1254 = vsel %vm1134, %v799, 0.0
  %v1255 = vadd.f32 %v1253, %v1254
  %v1256 = vsel %vm1134, %v802, 0.0
  %v1257 = vadd.f32 %v1255, %v1256
  %v1258 = vsel %vm1134, %v807, 0.0
  %v1259 = vadd.f32 %v1257, %v1258
  %v1260 = vsel %vm1134, %v810, 0.0
  %v1261 = vadd.f32 %v1259, %v1260
  %v1262 = vrot.slane %v1261, 4
  %v1263 = vadd.f32 %v1261, %v1262
  %v1264 = vrot.slane %v1263, 2
  %v1265 = vadd.f32 %v1263, %v1264
  %v1266 = vrot.slane %v1265, 1
  %v1267 = vadd.f32 %v1265, %v1266
  %vm1268 = vcmask 139264
  %1269 = vst.msk [vmem:[%s5] sm:$0x1] %vm1268, %v1267
  %v1270 = vmul.f32 %v559, %v559
  %v1271 = vmul.f32 %v562, %v562
  %v1272 = vmul.f32 %v567, %v567
  %v1273 = vmul.f32 %v570, %v570
  %v1274 = vmul.f32 %v575, %v575
  %v1275 = vmul.f32 %v578, %v578
  %v1276 = vmul.f32 %v583, %v583
  %v1277 = vmul.f32 %v586, %v586
  %v1278 = vmul.f32 %v591, %v591
  %v1279 = vmul.f32 %v594, %v594
  %v1280 = vmul.f32 %v599, %v599
  %v1281 = vmul.f32 %v602, %v602
  %v1282 = vmul.f32 %v607, %v607
  %v1283 = vmul.f32 %v610, %v610
  %v1284 = vmul.f32 %v615, %v615
  %v1285 = vmul.f32 %v618, %v618
  %v1286 = vmul.f32 %v623, %v623
  %v1287 = vmul.f32 %v626, %v626
  %v1288 = vmul.f32 %v631, %v631
  %v1289 = vmul.f32 %v634, %v634
  %v1290 = vmul.f32 %v639, %v639
  %v1291 = vmul.f32 %v642, %v642
  %v1292 = vmul.f32 %v647, %v647
  %v1293 = vmul.f32 %v650, %v650
  %v1294 = vmul.f32 %v655, %v655
  %v1295 = vmul.f32 %v658, %v658
  %v1296 = vmul.f32 %v663, %v663
  %v1297 = vmul.f32 %v666, %v666
  %v1298 = vmul.f32 %v671, %v671
  %v1299 = vmul.f32 %v674, %v674
  %v1300 = vmul.f32 %v679, %v679
  %v1301 = vmul.f32 %v682, %v682
  %v1302 = vmul.f32 %v687, %v687
  %v1303 = vmul.f32 %v690, %v690
  %v1304 = vmul.f32 %v695, %v695
  %v1305 = vmul.f32 %v698, %v698
  %v1306 = vmul.f32 %v703, %v703
  %v1307 = vmul.f32 %v706, %v706
  %v1308 = vmul.f32 %v711, %v711
  %v1309 = vmul.f32 %v714, %v714
  %v1310 = vmul.f32 %v719, %v719
  %v1311 = vmul.f32 %v722, %v722
  %v1312 = vmul.f32 %v727, %v727
  %v1313 = vmul.f32 %v730, %v730
  %v1314 = vmul.f32 %v735, %v735
  %v1315 = vmul.f32 %v738, %v738
  %v1316 = vmul.f32 %v743, %v743
  %v1317 = vmul.f32 %v746, %v746
  %v1318 = vmul.f32 %v751, %v751
  %v1319 = vmul.f32 %v754, %v754
  %v1320 = vmul.f32 %v759, %v759
  %v1321 = vmul.f32 %v762, %v762
  %v1322 = vmul.f32 %v767, %v767
  %v1323 = vmul.f32 %v770, %v770
  %v1324 = vmul.f32 %v775, %v775
  %v1325 = vmul.f32 %v778, %v778
  %v1326 = vmul.f32 %v783, %v783
  %v1327 = vmul.f32 %v786, %v786
  %v1328 = vmul.f32 %v791, %v791
  %v1329 = vmul.f32 %v794, %v794
  %v1330 = vmul.f32 %v799, %v799
  %v1331 = vmul.f32 %v802, %v802
  %v1332 = vmul.f32 %v807, %v807
  %v1333 = vmul.f32 %v810, %v810
  %v1334 = vsel %vm1134, %v1270, 0.0
  %v1335 = vsel %vm1134, %v1271, 0.0
  %v1336 = vadd.f32 %v1334, %v1335
  %v1337 = vsel %vm1134, %v1272, 0.0
  %v1338 = vadd.f32 %v1336, %v1337
  %v1339 = vsel %vm1134, %v1273, 0.0
  %v1340 = vadd.f32 %v1338, %v1339
  %v1341 = vsel %vm1134, %v1274, 0.0
  %v1342 = vadd.f32 %v1340, %v1341
  %v1343 = vsel %vm1134, %v1275, 0.0
  %v1344 = vadd.f32 %v1342, %v1343
  %v1345 = vsel %vm1134, %v1276, 0.0
  %v1346 = vadd.f32 %v1344, %v1345
  %v1347 = vsel %vm1134, %v1277, 0.0
  %v1348 = vadd.f32 %v1346, %v1347
  %v1349 = vsel %vm1134, %v1278, 0.0
  %v1350 = vadd.f32 %v1348, %v1349
  %v1351 = vsel %vm1134, %v1279, 0.0
  %v1352 = vadd.f32 %v1350, %v1351
  %v1353 = vsel %vm1134, %v1280, 0.0
  %v1354 = vadd.f32 %v1352, %v1353
  %v1355 = vsel %vm1134, %v1281, 0.0
  %v1356 = vadd.f32 %v1354, %v1355
  %v1357 = vsel %vm1134, %v1282, 0.0
  %v1358 = vadd.f32 %v1356, %v1357
  %v1359 = vsel %vm1134, %v1283, 0.0
  %v1360 = vadd.f32 %v1358, %v1359
  %v1361 = vsel %vm1134, %v1284, 0.0
  %v1362 = vadd.f32 %v1360, %v1361
  %v1363 = vsel %vm1134, %v1285, 0.0
  %v1364 = vadd.f32 %v1362, %v1363
  %v1365 = vsel %vm1134, %v1286, 0.0
  %v1366 = vadd.f32 %v1364, %v1365
  %v1367 = vsel %vm1134, %v1287, 0.0
  %v1368 = vadd.f32 %v1366, %v1367
  %v1369 = vsel %vm1134, %v1288, 0.0
  %v1370 = vadd.f32 %v1368, %v1369
  %v1371 = vsel %vm1134, %v1289, 0.0
  %v1372 = vadd.f32 %v1370, %v1371
  %v1373 = vsel %vm1134, %v1290, 0.0
  %v1374 = vadd.f32 %v1372, %v1373
  %v1375 = vsel %vm1134, %v1291, 0.0
  %v1376 = vadd.f32 %v1374, %v1375
  %v1377 = vsel %vm1134, %v1292, 0.0
  %v1378 = vadd.f32 %v1376, %v1377
  %v1379 = vsel %vm1134, %v1293, 0.0
  %v1380 = vadd.f32 %v1378, %v1379
  %v1381 = vsel %vm1134, %v1294, 0.0
  %v1382 = vadd.f32 %v1380, %v1381
  %v1383 = vsel %vm1134, %v1295, 0.0
  %v1384 = vadd.f32 %v1382, %v1383
  %v1385 = vsel %vm1134, %v1296, 0.0
  %v1386 = vadd.f32 %v1384, %v1385
  %v1387 = vsel %vm1134, %v1297, 0.0
  %v1388 = vadd.f32 %v1386, %v1387
  %v1389 = vsel %vm1134, %v1298, 0.0
  %v1390 = vadd.f32 %v1388, %v1389
  %v1391 = vsel %vm1134, %v1299, 0.0
  %v1392 = vadd.f32 %v1390, %v1391
  %v1393 = vsel %vm1134, %v1300, 0.0
  %v1394 = vadd.f32 %v1392, %v1393
  %v1395 = vsel %vm1134, %v1301, 0.0
  %v1396 = vadd.f32 %v1394, %v1395
  %v1397 = vsel %vm1134, %v1302, 0.0
  %v1398 = vadd.f32 %v1396, %v1397
  %v1399 = vsel %vm1134, %v1303, 0.0
  %v1400 = vadd.f32 %v1398, %v1399
  %v1401 = vsel %vm1134, %v1304, 0.0
  %v1402 = vadd.f32 %v1400, %v1401
  %v1403 = vsel %vm1134, %v1305, 0.0
  %v1404 = vadd.f32 %v1402, %v1403
  %v1405 = vsel %vm1134, %v1306, 0.0
  %v1406 = vadd.f32 %v1404, %v1405
  %v1407 = vsel %vm1134, %v1307, 0.0
  %v1408 = vadd.f32 %v1406, %v1407
  %v1409 = vsel %vm1134, %v1308, 0.0
  %v1410 = vadd.f32 %v1408, %v1409
  %v1411 = vsel %vm1134, %v1309, 0.0
  %v1412 = vadd.f32 %v1410, %v1411
  %v1413 = vsel %vm1134, %v1310, 0.0
  %v1414 = vadd.f32 %v1412, %v1413
  %v1415 = vsel %vm1134, %v1311, 0.0
  %v1416 = vadd.f32 %v1414, %v1415
  %v1417 = vsel %vm1134, %v1312, 0.0
  %v1418 = vadd.f32 %v1416, %v1417
  %v1419 = vsel %vm1134, %v1313, 0.0
  %v1420 = vadd.f32 %v1418, %v1419
  %v1421 = vsel %vm1134, %v1314, 0.0
  %v1422 = vadd.f32 %v1420, %v1421
  %v1423 = vsel %vm1134, %v1315, 0.0
  %v1424 = vadd.f32 %v1422, %v1423
  %v1425 = vsel %vm1134, %v1316, 0.0
  %v1426 = vadd.f32 %v1424, %v1425
  %v1427 = vsel %vm1134, %v1317, 0.0
  %v1428 = vadd.f32 %v1426, %v1427
  %v1429 = vsel %vm1134, %v1318, 0.0
  %v1430 = vadd.f32 %v1428, %v1429
  %v1431 = vsel %vm1134, %v1319, 0.0
  %v1432 = vadd.f32 %v1430, %v1431
  %v1433 = vsel %vm1134, %v1320, 0.0
  %v1434 = vadd.f32 %v1432, %v1433
  %v1435 = vsel %vm1134, %v1321, 0.0
  %v1436 = vadd.f32 %v1434, %v1435
  %v1437 = vsel %vm1134, %v1322, 0.0
  %v1438 = vadd.f32 %v1436, %v1437
  %v1439 = vsel %vm1134, %v1323, 0.0
  %v1440 = vadd.f32 %v1438, %v1439
  %v1441 = vsel %vm1134, %v1324, 0.0
  %v1442 = vadd.f32 %v1440, %v1441
  %v1443 = vsel %vm1134, %v1325, 0.0
  %v1444 = vadd.f32 %v1442, %v1443
  %v1445 = vsel %vm1134, %v1326, 0.0
  %v1446 = vadd.f32 %v1444, %v1445
  %v1447 = vsel %vm1134, %v1327, 0.0
  %v1448 = vadd.f32 %v1446, %v1447
  %v1449 = vsel %vm1134, %v1328, 0.0
  %v1450 = vadd.f32 %v1448, %v1449
  %v1451 = vsel %vm1134, %v1329, 0.0
  %v1452 = vadd.f32 %v1450, %v1451
  %v1453 = vsel %vm1134, %v1330, 0.0
  %v1454 = vadd.f32 %v1452, %v1453
  %v1455 = vsel %vm1134, %v1331, 0.0
  %v1456 = vadd.f32 %v1454, %v1455
  %v1457 = vsel %vm1134, %v1332, 0.0
  %v1458 = vadd.f32 %v1456, %v1457
  %v1459 = vsel %vm1134, %v1333, 0.0
  %v1460 = vadd.f32 %v1458, %v1459
  %v1461 = vrot.slane %v1460, 4
  %v1462 = vadd.f32 %v1460, %v1461
  %v1463 = vrot.slane %v1462, 2
  %v1464 = vadd.f32 %v1462, %v1463
  %v1465 = vrot.slane %v1464, 1
  %v1466 = vadd.f32 %v1464, %v1465
  %1467 = vst.msk [vmem:[%s6] sm:$0x1] %vm1268, %v1466
  // Predicated region
  $region18: #{res_layer_forward.14} parent=0 // pred_check
    _
  $region19: #{res_layer_forward.14} parent=0 // pred_check_branch
    %1469 = sbr.rel (0) target = $region21
  $region20: #{res_layer_forward.14} parent=0 // pred_region
    _
  $region21: #{res_layer_forward.14} parent=0 // pred_fallthru
    _
  // Predicated region
  $region22: #{res_layer_forward.14} parent=0 // pred_check
    _
  $region23: #{res_layer_forward.14} parent=0 // pred_check_branch
    %1471 = sbr.rel (0) target = $region25
  $region24: #{res_layer_forward.14} parent=0 // pred_region
    _
  $region25: #{res_layer_forward.14} parent=0 // pred_fallthru
    _
  // Predicated region
  $region26: #{res_layer_forward.14} parent=0 // pred_check
    _
  $region27: #{res_layer_forward.14} parent=0 // pred_check_branch
    %1473 = sbr.rel (0) target = $region29
  $region28: #{res_layer_forward.14} parent=0 // pred_region
    _
  $region29: #{res_layer_forward.14} parent=0 // pred_fallthru
    _
  // Predicated region
  $region30: #{res_layer_forward.14} parent=0 // pred_check
    _
  $region31: #{res_layer_forward.14} parent=0 // pred_check_branch
    %1475 = sbr.rel (0) target = $region33
  $region32: #{res_layer_forward.14} parent=0 // pred_region
    _
  $region33: #{res_layer_forward.14} parent=0 // pred_fallthru
    _
  // Predicated region
  $region34: #{res_layer_forward.14} parent=0 // pred_check
    _
  $region35: #{res_layer_forward.14} parent=0 // pred_check_branch
    %1477 = sbr.rel (0) target = $region37
  $region36: #{res_layer_forward.14} parent=0 // pred_region
    _
  $region37: #{res_layer_forward.14} parent=0 // pred_fallthru
    _
  // Predicated region
  $region38: #{res_layer_forward.14} parent=0 // pred_check
    _
  $region39: #{res_layer_forward.14} parent=0 // pred_check_branch
    %1479 = sbr.rel (0) target = $region41
  $region40: #{res_layer_forward.14} parent=0 // pred_region
    _
  $region41: #{res_layer_forward.14} parent=0 // pred_fallthru
    _

// kernel: res_layer_forward.15
$region0: #{res_layer_forward.15}
  #allocation0 [shape = 'u32[]', space=smem, size = 0x4, offset = 0x4, fixed_abs, tag = 'smem constant byte address 0x4 - core index']
  #allocation1 [shape = 'u32[144,128]{1,0:T(1,128)}', space=vmem, size = 0x12000, scoped, tag = 'internal scratch']
  #allocation2 [shape = 'f32[64,8]{1,0:T(8,128)}', space=vmem, size = 0x8000, scoped, tag = 'scratch operand']
  %s0 = inlined_call_operand.vmem [shape: bf16[2,6,64,18], index: 0, kind: input, shape index: {}]
  %s1 = inlined_call_operand.vmem [shape: bf16[3,18,8], index: 1, kind: input, shape index: {}]
  %s2 = inlined_call_operand.vmem [shape: f32[1,18], index: 2, kind: input, shape index: {}]
  %s3 = inlined_call_operand.vmem [shape: f32[1,18], index: 3, kind: input, shape index: {}]
  %s4 = inlined_call_operand.vmem [shape: bf16[2,4,64,8], index: 4, kind: output, shape index: {0}]
  %s5 = inlined_call_operand.vmem [shape: f32[8,1,8], index: 5, kind: output, shape index: {1}]
  %s6 = inlined_call_operand.vmem [shape: f32[8,1,8], index: 6, kind: output, shape index: {2}]
  %7 = xla_tuple %s4, %s5, %s6
  %s8 = sld [smem:[#allocation0]]
  $region73: #{res_layer_forward.15} parent=0
    _
  %s10 = ssub.s32 1, %s8
  %s11 = scalar_select 0, %s10, %s8
  loop: start=0, step=1, limit=26
  $region2: #{res_layer_forward.15} parent=0 // loop_pre_header
    _
  $region3: #{res_layer_forward.15} parent=0 // loop_header
    %s13 = sphi 0, %s17
    %p14 = scmp.ge.s32.totalorder %s13, 26
    %s20 = sphi 0, %s39
    %s21 = sphi 0, %s35
    %s22 = sphi 0, %s31
    %s23 = sphi 0, %s20
    %s24 = sphi 0, %s21
    %s25 = sphi 0, %s22
    %s26 = sphi 0, %s23
    %s27 = sphi 0, %s24
    %s28 = sphi 0, %s25
    %s46 = sphi 0, %s48
    %s49 = sphi 0, %s46
    %s50 = sphi 0, %s49
    %s66 = sphi 0, %s50
    %s72 = sphi 0, %s74
    %s75 = sphi 0, %s72
    %s76 = sphi 0, %s75
    %s92 = sphi 0, %s76
    %s96 = sphi 0, %s96
    %s98 = sphi 0, %s96
    %s99 = sphi 0, %s98
    %s113 = sphi 0, %s99
    %s117 = sphi 0, %s117
    %s119 = sphi 0, %s117
    %s120 = sphi 0, %s119
    %s134 = sphi 0, %s120
    %s142 = sphi 0, %s144
    %s145 = sphi 0, %s142
    %s146 = sphi 0, %s145
    %s162 = sphi 0, %s146
    %s172 = sphi 0, %s174
    %s175 = sphi 0, %s172
    %s176 = sphi 0, %s175
    %s192 = sphi 0, %s176
    %s202 = sphi 0, %s204
    %s205 = sphi 0, %s202
    %s206 = sphi 0, %s205
    %s222 = sphi 0, %s206
  $region4: #{res_layer_forward.15} parent=0 // loop_header_branch
    %16 = sbr.rel (%p14) target = $region8
  $region5: #{res_layer_forward.15} parent=0 // loop_body
    %s18 = ssub.s32 %s13, 1
    %s19 = ssub.s32 %s13, 2
    %s29 = sadd.s32 1, %s22
    %p30 = scmp.ge.s32.totalorder %s29, 3
    %s31 = scalar_select %p30, 0, %s29
    %s32 = sadd.s32 1, %s21
    %s33 = scalar_select %p30, %s32, %s21
    %p34 = scmp.ge.s32.totalorder %s33, 4
    %s35 = scalar_select %p34, 0, %s33
    %s36 = sadd.s32 1, %s20
    %s37 = scalar_select %p34, %s36, %s20
    %p38 = scmp.ge.s32.totalorder %s37, 2
    %s39 = scalar_select %p38, 0, %s37
    %s40 = sadd.s32 %s21, %s22
    %s41 = sadd.s32 %s35, %s31
    %s42 = ssub.s32 %s20, %s39
    %s43 = ssub.s32 %s40, %s41
    %s44 = sor.u32 %s42, %s43
    %p45 = scmp.eq.s32.totalorder %s44, 0
    %s47 = sadd.s32 %s46, 1
    %s48 = scalar_select %p45, %s46, %s47
    %p51 = pneg %p45
    %p52 = scmp.eq.s32.totalorder %s13, 23
    %p53 = por %p51, %p52
    %p54 = scmp.ne.s32.totalorder %s46, %s49
    %p55 = scmp.eq.s32.totalorder %s13, 0
    %p56 = por %p54, %p55
    %p57 = scmp.ne.s32.totalorder %s46, %s49
    %p58 = scmp.eq.s32.totalorder %s18, 23
    %p59 = por %p57, %p58
    %p60 = scmp.ne.s32.totalorder %s49, %s50
    %p61 = scmp.eq.s32.totalorder %s18, 0
    %p62 = por %p60, %p61
    %p63 = scmp.ne.s32.totalorder %s49, %s50
    %p64 = scmp.eq.s32.totalorder %s19, 23
    %p65 = por %p63, %p64
    %p67 = scmp.ne.s32.totalorder %s50, %s66
    %p68 = scmp.eq.s32.totalorder %s19, 0
    %p69 = por %p67, %p68
    %s70 = ssub.s32 %s22, %s31
    %p71 = scmp.eq.s32.totalorder %s70, 0
    %s73 = sadd.s32 %s72, 1
    %s74 = scalar_select %p71, %s72, %s73
    %p77 = pneg %p71
    %p78 = scmp.eq.s32.totalorder %s13, 23
    %p79 = por %p77, %p78
    %p80 = scmp.ne.s32.totalorder %s72, %s75
    %p81 = scmp.eq.s32.totalorder %s13, 0
    %p82 = por %p80, %p81
    %p83 = scmp.ne.s32.totalorder %s72, %s75
    %p84 = scmp.eq.s32.totalorder %s18, 23
    %p85 = por %p83, %p84
    %p86 = scmp.ne.s32.totalorder %s75, %s76
    %p87 = scmp.eq.s32.totalorder %s18, 0
    %p88 = por %p86, %p87
    %p89 = scmp.ne.s32.totalorder %s75, %s76
    %p90 = scmp.eq.s32.totalorder %s19, 23
    %p91 = por %p89, %p90
    %p93 = scmp.ne.s32.totalorder %s76, %s92
    %p94 = scmp.eq.s32.totalorder %s19, 0
    %p95 = por %p93, %p94
    %s97 = sadd.s32 %s96, 1
    %p100 = scmp.eq.s32.totalorder %s13, 23
    %p101 = scmp.ne.s32.totalorder %s96, %s98
    %p102 = scmp.eq.s32.totalorder %s13, 0
    %p103 = por %p101, %p102
    %p104 = scmp.ne.s32.totalorder %s96, %s98
    %p105 = scmp.eq.s32.totalorder %s18, 23
    %p106 = por %p104, %p105
    %p107 = scmp.ne.s32.totalorder %s98, %s99
    %p108 = scmp.eq.s32.totalorder %s18, 0
    %p109 = por %p107, %p108
    %p110 = scmp.ne.s32.totalorder %s98, %s99
    %p111 = scmp.eq.s32.totalorder %s19, 23
    %p112 = por %p110, %p111
    %p114 = scmp.ne.s32.totalorder %s99, %s113
    %p115 = scmp.eq.s32.totalorder %s19, 0
    %p116 = por %p114, %p115
    %s118 = sadd.s32 %s117, 1
    %p121 = scmp.eq.s32.totalorder %s13, 23
    %p122 = scmp.ne.s32.totalorder %s117, %s119
    %p123 = scmp.eq.s32.totalorder %s13, 0
    %p124 = por %p122, %p123
    %p125 = scmp.ne.s32.totalorder %s117, %s119
    %p126 = scmp.eq.s32.totalorder %s18, 23
    %p127 = por %p125, %p126
    %p128 = scmp.ne.s32.totalorder %s119, %s120
    %p129 = scmp.eq.s32.totalorder %s18, 0
    %p130 = por %p128, %p129
    %p131 = scmp.ne.s32.totalorder %s119, %s120
    %p132 = scmp.eq.s32.totalorder %s19, 23
    %p133 = por %p131, %p132
    %p135 = scmp.ne.s32.totalorder %s120, %s134
    %p136 = scmp.eq.s32.totalorder %s19, 0
    %p137 = por %p135, %p136
    %s138 = ssub.s32 %s20, %s39
    %s139 = ssub.s32 %s21, %s35
    %s140 = sor.u32 %s138, %s139
    %p141 = scmp.eq.s32.totalorder %s140, 0
    %s143 = sadd.s32 %s142, 1
    %s144 = scalar_select %p141, %s142, %s143
    %p147 = pneg %p141
    %p148 = scmp.eq.s32.totalorder %s13, 23
    %p149 = por %p147, %p148
    %p150 = scmp.ne.s32.totalorder %s142, %s145
    %p151 = scmp.eq.s32.totalorder %s13, 0
    %p152 = por %p150, %p151
    %p153 = scmp.ne.s32.totalorder %s142, %s145
    %p154 = scmp.eq.s32.totalorder %s18, 23
    %p155 = por %p153, %p154
    %p156 = scmp.ne.s32.totalorder %s145, %s146
    %p157 = scmp.eq.s32.totalorder %s18, 0
    %p158 = por %p156, %p157
    %p159 = scmp.ne.s32.totalorder %s145, %s146
    %p160 = scmp.eq.s32.totalorder %s19, 23
    %p161 = por %p159, %p160
    %p163 = scmp.ne.s32.totalorder %s146, %s162
    %p164 = scmp.eq.s32.totalorder %s19, 0
    %p165 = por %p163, %p164
    %s166 = smul.u32 %s20, 4
    %s167 = sadd.s32 %s166, %s21
    %s168 = smul.u32 %s39, 4
    %s169 = sadd.s32 %s168, %s35
    %s170 = ssub.s32 %s167, %s169
    %p171 = scmp.eq.s32.totalorder %s170, 0
    %s173 = sadd.s32 %s172, 1
    %s174 = scalar_select %p171, %s172, %s173
    %p177 = pneg %p171
    %p178 = scmp.eq.s32.totalorder %s13, 23
    %p179 = por %p177, %p178
    %p180 = scmp.ne.s32.totalorder %s172, %s175
    %p181 = scmp.eq.s32.totalorder %s13, 0
    %p182 = por %p180, %p181
    %p183 = scmp.ne.s32.totalorder %s172, %s175
    %p184 = scmp.eq.s32.totalorder %s18, 23
    %p185 = por %p183, %p184
    %p186 = scmp.ne.s32.totalorder %s175, %s176
    %p187 = scmp.eq.s32.totalorder %s18, 0
    %p188 = por %p186, %p187
    %p189 = scmp.ne.s32.totalorder %s175, %s176
    %p190 = scmp.eq.s32.totalorder %s19, 23
    %p191 = por %p189, %p190
    %p193 = scmp.ne.s32.totalorder %s176, %s192
    %p194 = scmp.eq.s32.totalorder %s19, 0
    %p195 = por %p193, %p194
    %s196 = smul.u32 %s20, 4
    %s197 = sadd.s32 %s196, %s21
    %s198 = smul.u32 %s39, 4
    %s199 = sadd.s32 %s198, %s35
    %s200 = ssub.s32 %s197, %s199
    %p201 = scmp.eq.s32.totalorder %s200, 0
    %s203 = sadd.s32 %s202, 1
    %s204 = scalar_select %p201, %s202, %s203
    %p207 = pneg %p201
    %p208 = scmp.eq.s32.totalorder %s13, 23
    %p209 = por %p207, %p208
    %p210 = scmp.ne.s32.totalorder %s202, %s205
    %p211 = scmp.eq.s32.totalorder %s13, 0
    %p212 = por %p210, %p211
    %p213 = scmp.ne.s32.totalorder %s202, %s205
    %p214 = scmp.eq.s32.totalorder %s18, 23
    %p215 = por %p213, %p214
    %p216 = scmp.ne.s32.totalorder %s205, %s206
    %p217 = scmp.eq.s32.totalorder %s18, 0
    %p218 = por %p216, %p217
    %p219 = scmp.ne.s32.totalorder %s205, %s206
    %p220 = scmp.eq.s32.totalorder %s19, 23
    %p221 = por %p219, %p220
    %p223 = scmp.ne.s32.totalorder %s206, %s222
    %p224 = scmp.eq.s32.totalorder %s19, 0
    %p225 = por %p223, %p224
    %p226 = scmp.le.s32.totalorder 1, %s13
    %p227 = scmp.lt.s32.totalorder %s13, 25
    %p228 = pnand %p226, %p227
    %p229 = pneg %p228
    // Predicated region
    $region9: #{res_layer_forward.15} parent=5 // pred_check
      _
    $region10: #{res_layer_forward.15} parent=5 // pred_check_branch
      %231 = sbr.rel (%p228) target = $region12
    $region11: #{res_layer_forward.15} parent=5 // pred_region
      %s232 = ssub.s32 %s13, 1
      // Predicated region
      $region13: #{res_layer_forward.15} parent=11 // pred_check
        %p233 = pneg %p109
      $region14: #{res_layer_forward.15} parent=11 // pred_check_branch
        %235 = sbr.rel (%p233) target = $region16
      $region15: #{res_layer_forward.15} parent=11 // pred_region
        _
      $region16: #{res_layer_forward.15} parent=11 // pred_fallthru
        _
      // Predicated region
      $region17: #{res_layer_forward.15} parent=11 // pred_check
        %p236 = pneg %p130
      $region18: #{res_layer_forward.15} parent=11 // pred_check_branch
        %238 = sbr.rel (%p236) target = $region20
      $region19: #{res_layer_forward.15} parent=11 // pred_region
        _
      $region20: #{res_layer_forward.15} parent=11 // pred_fallthru
        _
    $region12: #{res_layer_forward.15} parent=5 // pred_fallthru
      _
    %p239 = scmp.lt.s32.totalorder %s13, 24
    // Predicated region
    $region21: #{res_layer_forward.15} parent=5 // pred_check
      %p240 = pneg %p239
    $region22: #{res_layer_forward.15} parent=5 // pred_check_branch
      %242 = sbr.rel (%p240) target = $region24
    $region23: #{res_layer_forward.15} parent=5 // pred_region
      // Predicated region
      $region25: #{res_layer_forward.15} parent=23 // pred_check
        %p243 = pneg %p56
      $region26: #{res_layer_forward.15} parent=23 // pred_check_branch
        %245 = sbr.rel (%p243) target = $region28
      $region27: #{res_layer_forward.15} parent=23 // pred_region
        %s246 = sadd.s32 %s21, %s22
        %p247 = scmp.lt.s32.totalorder %s20, 1
        %s248 = scalar_select %p247, %s20, 1
        %p249 = scmp.lt.s32.totalorder %s246, 5
        %s250 = scalar_select %p249, %s246, 5
        %s251 = smul.addr %s250, 8
        %s252 = smul.addr %s248, 48
        %s253 = sadd.s32 %s251, %s252
        %s254 = smul.addr %s253, 4
        %s255 = scalar_lea.vmem %s0, %s254
        %s256 = sadd.s32 %s21, %s22
      $region28: #{res_layer_forward.15} parent=23 // pred_fallthru
        _
      // Predicated region
      $region29: #{res_layer_forward.15} parent=23 // pred_check
        %p257 = pneg %p82
      $region30: #{res_layer_forward.15} parent=23 // pred_check_branch
        %259 = sbr.rel (%p257) target = $region32
      $region31: #{res_layer_forward.15} parent=23 // pred_region
        %p260 = scmp.lt.s32.totalorder %s22, 2
        %s261 = scalar_select %p260, %s22, 2
        %s262 = smul.addr %s261, 3
        %s263 = smul.addr %s262, 4
        %s264 = scalar_lea.vmem %s1, %s263
      $region32: #{res_layer_forward.15} parent=23 // pred_fallthru
        _
    $region24: #{res_layer_forward.15} parent=5 // pred_fallthru
      _
    %p265 = scmp.le.s32.totalorder 1, %s13
    %p266 = scmp.lt.s32.totalorder %s13, 25
    %p267 = pnand %p265, %p266
    %p268 = pneg %p267
    // Predicated region
    $region33: #{res_layer_forward.15} parent=5 // pred_check
      _
    $region34: #{res_layer_forward.15} parent=5 // pred_check_branch
      %270 = sbr.rel (%p267) target = $region36
    $region35: #{res_layer_forward.15} parent=5 // pred_region
      %s271 = ssub.s32 %s13, 1
      %s272 = sadd.s32 %s24, %s25
      %p273 = scmp.lt.s32.totalorder %s23, 1
      %s274 = scalar_select %p273, %s23, 1
      %p275 = scmp.lt.s32.totalorder %s272, 5
      %s276 = scalar_select %p275, %s272, 5
      %s277 = smul.addr %s276, 8
      %s278 = smul.addr %s274, 48
      %s279 = sadd.s32 %s277, %s278
      %s280 = smul.addr %s279, 4
      %s281 = scalar_lea.vmem %s0, %s280
      %p282 = pneg %p62
      %p283 = pneg %p59
      %p284 = scmp.lt.s32.totalorder %s25, 2
      %s285 = scalar_select %p284, %s25, 2
      %s286 = smul.addr %s285, 3
      %s287 = smul.addr %s286, 4
      %s288 = scalar_lea.vmem %s1, %s287
      %p289 = pneg %p88
      %p290 = pneg %p85
      %p291 = pneg %p109
      %p292 = pneg %p106
      %p293 = pneg %p130
      %p294 = pneg %p127
      %p295 = pneg %p158
      %p296 = pneg %p155
      %p297 = scmp.lt.s32.totalorder %s23, 1
      %s298 = scalar_select %p297, %s23, 1
      %p299 = scmp.lt.s32.totalorder %s24, 3
      %s300 = scalar_select %p299, %s24, 3
      %s301 = smul.addr %s300, 8
      %s302 = smul.addr %s298, 32
      %s303 = sadd.s32 %s301, %s302
      %s304 = smul.addr %s303, 4
      %s305 = scalar_lea.vmem %s4, %s304
      %p306 = pneg %p188
      %p307 = pneg %p185
      %s308 = smul.u32 %s23, 4
      %s309 = sadd.s32 %s308, %s24
      %p310 = scmp.lt.s32.totalorder %s309, 7
      %s311 = scalar_select %p310, %s309, 7
      %s312 = scalar_lea.vmem %s5, %s311
      %p313 = pneg %p218
      %p314 = pneg %p215
      %s315 = smul.u32 %s23, 4
      %s316 = sadd.s32 %s315, %s24
      %p317 = scmp.lt.s32.totalorder %s316, 7
      %s318 = scalar_select %p317, %s316, 7
      %s319 = scalar_lea.vmem %s6, %s318
      %s320 = sadd.s32 %s24, %s25
      %p321 = scmp.lt.s32.totalorder %s23, 1
      %s322 = scalar_select %p321, %s23, 1
      %p323 = scmp.lt.s32.totalorder %s320, 5
      %s324 = scalar_select %p323, %s320, 5
      %s325 = smul.addr %s324, 8
      %s326 = smul.addr %s322, 48
      %s327 = sadd.s32 %s325, %s326
      %s328 = smul.addr %s327, 4
      %s329 = scalar_lea.vmem %s0, %s328
      %s330 = sadd.s32 %s24, %s25
      %p331 = scmp.lt.s32.totalorder %s25, 2
      %s332 = scalar_select %p331, %s25, 2
      %s333 = smul.addr %s332, 3
      %s334 = smul.addr %s333, 4
      %s335 = scalar_lea.vmem %s1, %s334
      %p336 = scmp.lt.s32.totalorder %s23, 1
      %s337 = scalar_select %p336, %s23, 1
      %p338 = scmp.lt.s32.totalorder %s24, 3
      %s339 = scalar_select %p338, %s24, 3
      %s340 = smul.addr %s339, 8
      %s341 = smul.addr %s337, 32
      %s342 = sadd.s32 %s340, %s341
      %s343 = smul.addr %s342, 4
      %s344 = scalar_lea.vmem %s4, %s343
      %s345 = smul.u32 %s23, 4
      %s346 = sadd.s32 %s345, %s24
      %p347 = scmp.lt.s32.totalorder %s346, 7
      %s348 = scalar_select %p347, %s346, 7
      %s349 = scalar_lea.vmem %s5, %s348
      %s350 = smul.u32 %s23, 4
      %s351 = sadd.s32 %s350, %s24
      %s352 = smul.u32 %s23, 4
      %s353 = sadd.s32 %s352, %s24
      %p354 = scmp.lt.s32.totalorder %s353, 7
      %s355 = scalar_select %p354, %s353, 7
      %s356 = scalar_lea.vmem %s6, %s355
      %s357 = smul.u32 %s23, 4
      %s358 = sadd.s32 %s357, %s24
      %p360 = scmp.eq.s32.totalorder %s25, 0
      // Predicated region
      $region37: #{res_layer_forward.15} parent=35 // pred_check
        %p361 = pneg %p360
      $region38: #{res_layer_forward.15} parent=35 // pred_check_branch
        %363 = sbr.rel (%p361) target = $region40
      $region39: #{res_layer_forward.15} parent=35 // pred_region
        %vm364 = vcmask 64512
        %365 = vst.msk [vmem:[#allocation2] sm:$0xff] %vm364, 0.0
        %366 = vst.msk [vmem:[#allocation2 + $0x8] sm:$0xff] %vm364, 0.0
        %367 = vst.msk [vmem:[#allocation2 + $0x10] sm:$0xff] %vm364, 0.0
        %368 = vst.msk [vmem:[#allocation2 + $0x18] sm:$0xff] %vm364, 0.0
        %369 = vst.msk [vmem:[#allocation2 + $0x20] sm:$0xff] %vm364, 0.0
        %370 = vst.msk [vmem:[#allocation2 + $0x28] sm:$0xff] %vm364, 0.0
        %371 = vst.msk [vmem:[#allocation2 + $0x30] sm:$0xff] %vm364, 0.0
        %372 = vst.msk [vmem:[#allocation2 + $0x38] sm:$0xff] %vm364, 0.0
      $region40: #{res_layer_forward.15} parent=35 // pred_fallthru
        _
      %v373 = vld [vmem:[%s329] sm:$0xf]
      %v374 = vld [vmem:[%s329 + $0x4] sm:$0xf]
      %v375 = vld [vmem:[%s329 + $0x8] sm:$0xf]
      %v376 = vld [vmem:[%s329 + $0xc] sm:$0xf]
      %v377 = vld [vmem:[%s329 + $0x10] sm:$0xf]
      %v378 = vld [vmem:[%s329 + $0x14] sm:$0xf]
      %v379 = vld [vmem:[%s329 + $0x18] sm:$0xf]
      %v380 = vld [vmem:[%s329 + $0x1c] sm:$0xf]
      %v381 = vunpack.c.l.bf16 %v373
      %v382 = vunpack.c.l.bf16 %v374
      %v383 = vunpack.c.l.bf16 %v375
      %v384 = vunpack.c.l.bf16 %v376
      %v385 = vunpack.c.l.bf16 %v377
      %v386 = vunpack.c.l.bf16 %v378
      %v387 = vunpack.c.l.bf16 %v379
      %v388 = vunpack.c.l.bf16 %v380
      %v389 = vld [vmem:[%s2] sm:$0x1]
      %v391 = vlaneseq
      %v392 = vshrl.u32 %v391, 7
      %v393 = vsub.s32 0, %v392
      %v394 = vrot.slane %v389, %v393
      %v396 = vmul.f32 %v381, %v394
      %v397 = vmul.f32 %v382, %v394
      %v398 = vmul.f32 %v383, %v394
      %v399 = vmul.f32 %v384, %v394
      %v400 = vmul.f32 %v385, %v394
      %v401 = vmul.f32 %v386, %v394
      %v402 = vmul.f32 %v387, %v394
      %v403 = vmul.f32 %v388, %v394
      %v404 = vld [vmem:[%s3] sm:$0x1]
      %v406 = vlaneseq
      %v407 = vshrl.u32 %v406, 7
      %v408 = vsub.s32 0, %v407
      %v409 = vrot.slane %v404, %v408
      %v411 = vadd.f32 %v396, %v409
      %v412 = vadd.f32 %v397, %v409
      %v413 = vadd.f32 %v398, %v409
      %v414 = vadd.f32 %v399, %v409
      %v415 = vadd.f32 %v400, %v409
      %v416 = vadd.f32 %v401, %v409
      %v417 = vadd.f32 %v402, %v409
      %v418 = vadd.f32 %v403, %v409
      %v419 = vmax.f32 %v411, 0.0
      %v420 = vmax.f32 %v412, 0.0
      %v421 = vmax.f32 %v413, 0.0
      %v422 = vmax.f32 %v414, 0.0
      %v423 = vmax.f32 %v415, 0.0
      %v424 = vmax.f32 %v416, 0.0
      %v425 = vmax.f32 %v417, 0.0
      %v426 = vmax.f32 %v418, 0.0
      %v427 = vld [vmem:[#allocation2] sm:$0xff]
      %v428 = vld [vmem:[#allocation2 + $0x8] sm:$0xff]
      %v429 = vld [vmem:[#allocation2 + $0x10] sm:$0xff]
      %v430 = vld [vmem:[#allocation2 + $0x18] sm:$0xff]
      %v431 = vld [vmem:[#allocation2 + $0x20] sm:$0xff]
      %v432 = vld [vmem:[#allocation2 + $0x28] sm:$0xff]
      %v433 = vld [vmem:[#allocation2 + $0x30] sm:$0xff]
      %v434 = vld [vmem:[#allocation2 + $0x38] sm:$0xff]
      %v435 = vpack.c.bf16 %v420, %v419
      %v436 = vpack.c.bf16 %v422, %v421
      %v437 = vpack.c.bf16 %v424, %v423
      %v438 = vpack.c.bf16 %v426, %v425
      %v439 = vld [vmem:[%s335] sm:$0xf]
      %v440 = vld [vmem:[%s335 + $0x4] sm:$0xf]
      %v441 = vld [vmem:[%s335 + $0x8] sm:$0x1]
      %v445 = vunpack.c.l.b16 %v439
      %v446 = vunpack.c.l.b16 %v440
      %v447 = vunpack.c.l.b16 %v441
      %v448 = vpack.c.b16 %v446, %v445
      %v449 = vpack.c.b16 %v447, %v447
      %vm451 = vcmask 146432
      %v453 = vsel %vm451, %v435, 0
      %v456 = vsel %vm451, %v436, 0
      %v459 = vsel %vm451, %v437, 0
      %v462 = vsel %vm451, %v438, 0
      %vm464 = vcmask 1040384
      %v466 = vsel %vm464, %v449, 0
      %468 = vmatprep.subr.bf16.mxu0 0
      %469 = vmatpush1.bf16.msra.mxu0 0
      %470 = vmatprep.subr.bf16.mxu0 0
      %471 = vmatpush1.bf16.msra.mxu0 0
      %472 = vmatprep.subr.bf16.mxu0 0
      %473 = vmatpush1.bf16.msra.mxu0 0
      %474 = vmatprep.subr.bf16.mxu0 0
      %475 = vmatpush1.bf16.msra.mxu0 0
      %476 = vmatprep.subr.bf16.mxu0 0
      %477 = vmatpush1.bf16.msra.mxu0 0
      %478 = vmatprep.subr.bf16.mxu0 0
      %479 = vmatpush1.bf16.msra.mxu0 0
      %480 = vmatprep.subr.bf16.mxu0 0
      %481 = vmatpush1.bf16.msra.mxu0 %v466
      %482 = vmatprep.subr.bf16.mxu0 0
      %483 = vmatpush1.bf16.msra.mxu0 %v448
      %484 = vmatprep.subr.bf16.mxu0 0
      %485 = vmatpush2.bf16.msra.mxu0 0
      %486 = vmatprep.subr.bf16.mxu0 0
      %487 = vmatpush2.bf16.msra.mxu0 0
      %488 = vmatprep.subr.bf16.mxu0 0
      %489 = vmatpush2.bf16.msra.mxu0 0
      %490 = vmatprep.subr.bf16.mxu0 0
      %491 = vmatpush2.bf16.msra.mxu0 0
      %492 = vmatprep.subr.bf16.mxu0 0
      %493 = vmatpush2.bf16.msra.mxu0 0
      %494 = vmatprep.subr.bf16.mxu0 0
      %495 = vmatpush2.bf16.msra.mxu0 0
      %496 = vmatprep.subr.bf16.mxu0 0
      %497 = vmatpush2.bf16.msra.mxu0 0
      %498 = vmatprep.subr.bf16.mxu0 0
      %499 = vmatpush2.bf16.msra.mxu0 0
      %500 = vmatprep.mubr.bf16.mxu0 0
      %501 = vmatmul.mubr.bf16.gmra.mxu0 %v453
      %v502 = vpop.f32.mrf.mxu0
      %v503 = vadd.f32 0.0, %v502
      %v504 = vpop.f32.mrf.mxu0
      %v505 = vpop.f32.mrf.mxu0
      %v506 = vadd.f32 0.0, %v505
      %v507 = vpop.f32.mrf.mxu0
      %508 = vmatprep.mubr.bf16.mxu0 0
      %509 = vmatmul.mubr.bf16.gmra.mxu0 %v456
      %v510 = vpop.f32.mrf.mxu0
      %v511 = vadd.f32 0.0, %v510
      %v512 = vpop.f32.mrf.mxu0
      %v513 = vpop.f32.mrf.mxu0
      %v514 = vadd.f32 0.0, %v513
      %v515 = vpop.f32.mrf.mxu0
      %516 = vmatprep.mubr.bf16.mxu0 0
      %517 = vmatmul.mubr.bf16.gmra.mxu0 %v459
      %v518 = vpop.f32.mrf.mxu0
      %v519 = vadd.f32 0.0, %v518
      %v520 = vpop.f32.mrf.mxu0
      %v521 = vpop.f32.mrf.mxu0
      %v522 = vadd.f32 0.0, %v521
      %v523 = vpop.f32.mrf.mxu0
      %524 = vmatprep.mubr.bf16.mxu0 0
      %525 = vmatmul.mubr.bf16.gmra.mxu0 %v462
      %v526 = vpop.f32.mrf.mxu0
      %v527 = vadd.f32 0.0, %v526
      %v528 = vpop.f32.mrf.mxu0
      %v529 = vpop.f32.mrf.mxu0
      %v530 = vadd.f32 0.0, %v529
      %v531 = vpop.f32.mrf.mxu0
      %532 = vdwg.mxu0
      %v533 = vadd.f32 %v427, %v503
      %v534 = vadd.f32 %v428, %v506
      %v535 = vadd.f32 %v429, %v511
      %v536 = vadd.f32 %v430, %v514
      %v537 = vadd.f32 %v431, %v519
      %v538 = vadd.f32 %v432, %v522
      %v539 = vadd.f32 %v433, %v527
      %v540 = vadd.f32 %v434, %v530
      %vm541 = vcmask 64512
      %542 = vst.msk [vmem:[#allocation2] sm:$0xff] %vm541, %v533
      %543 = vst.msk [vmem:[#allocation2 + $0x8] sm:$0xff] %vm541, %v534
      %544 = vst.msk [vmem:[#allocation2 + $0x10] sm:$0xff] %vm541, %v535
      %545 = vst.msk [vmem:[#allocation2 + $0x18] sm:$0xff] %vm541, %v536
      %546 = vst.msk [vmem:[#allocation2 + $0x20] sm:$0xff] %vm541, %v537
      %547 = vst.msk [vmem:[#allocation2 + $0x28] sm:$0xff] %vm541, %v538
      %548 = vst.msk [vmem:[#allocation2 + $0x30] sm:$0xff] %vm541, %v539
      %549 = vst.msk [vmem:[#allocation2 + $0x38] sm:$0xff] %vm541, %v540
      %p550 = scmp.eq.s32.totalorder %s25, 2
      // Predicated region
      $region41: #{res_layer_forward.15} parent=35 // pred_check
        %p551 = pneg %p550
      $region42: #{res_layer_forward.15} parent=35 // pred_check_branch
        %553 = sbr.rel (%p551) target = $region44
      $region43: #{res_layer_forward.15} parent=35 // pred_region
        %v554 = vld [vmem:[#allocation2] sm:$0xff]
        %v555 = vld [vmem:[#allocation2 + $0x8] sm:$0xff]
        %v556 = vld [vmem:[#allocation2 + $0x10] sm:$0xff]
        %v557 = vld [vmem:[#allocation2 + $0x18] sm:$0xff]
        %v558 = vld [vmem:[#allocation2 + $0x20] sm:$0xff]
        %v559 = vld [vmem:[#allocation2 + $0x28] sm:$0xff]
        %v560 = vld [vmem:[#allocation2 + $0x30] sm:$0xff]
        %v561 = vld [vmem:[#allocation2 + $0x38] sm:$0xff]
        %v562 = vpack.c.bf16 %v555, %v554
        %v563 = vpack.c.bf16 %v557, %v556
        %v564 = vpack.c.bf16 %v559, %v558
        %v565 = vpack.c.bf16 %v561, %v560
        %v570 = vunpack.c.l.b16 %v562
        %v571 = vunpack.c.h.b16 %v562
        %v572 = vunpack.c.l.b16 %v563
        %v573 = vunpack.c.h.b16 %v563
        %v574 = vunpack.c.l.b16 %v564
        %v575 = vunpack.c.h.b16 %v564
        %v576 = vunpack.c.l.b16 %v565
        %v577 = vunpack.c.h.b16 %v565
        %v578 = vpack.c.b16 %v570, %v570
        %v579 = vpack.c.b16 %v571, %v571
        %v580 = vpack.c.b16 %v572, %v572
        %v581 = vpack.c.b16 %v573, %v573
        %v582 = vpack.c.b16 %v574, %v574
        %v583 = vpack.c.b16 %v575, %v575
        %v584 = vpack.c.b16 %v576, %v576
        %v585 = vpack.c.b16 %v577, %v577
        %vm594 = vcmask 60416
        %595 = vst.msk [vmem:[%s344] sm:$0xf] %vm594, %v578
        %596 = vst.msk [vmem:[%s344 + $0x4] sm:$0xf] %vm594, %v579
        %597 = vst.msk [vmem:[%s344 + $0x8] sm:$0xf] %vm594, %v580
        %598 = vst.msk [vmem:[%s344 + $0xc] sm:$0xf] %vm594, %v581
        %599 = vst.msk [vmem:[%s344 + $0x10] sm:$0xf] %vm594, %v582
        %600 = vst.msk [vmem:[%s344 + $0x14] sm:$0xf] %vm594, %v583
        %601 = vst.msk [vmem:[%s344 + $0x18] sm:$0xf] %vm594, %v584
        %602 = vst.msk [vmem:[%s344 + $0x1c] sm:$0xf] %vm594, %v585
        %v603 = vsel %vm541, %v554, 0.0
        %v604 = vsel %vm541, %v555, 0.0
        %v605 = vadd.f32 %v603, %v604
        %v606 = vsel %vm541, %v556, 0.0
        %v607 = vadd.f32 %v605, %v606
        %v608 = vsel %vm541, %v557, 0.0
        %v609 = vadd.f32 %v607, %v608
        %v610 = vsel %vm541, %v558, 0.0
        %v611 = vadd.f32 %v609, %v610
        %v612 = vsel %vm541, %v559, 0.0
        %v613 = vadd.f32 %v611, %v612
        %v614 = vsel %vm541, %v560, 0.0
        %v615 = vadd.f32 %v613, %v614
        %v616 = vsel %vm541, %v561, 0.0
        %v617 = vadd.f32 %v615, %v616
        %v618 = vrot.slane %v617, 4
        %v619 = vadd.f32 %v617, %v618
        %v620 = vrot.slane %v619, 2
        %v621 = vadd.f32 %v619, %v620
        %v622 = vrot.slane %v621, 1
        %v623 = vadd.f32 %v621, %v622
        %vm624 = vcmask 57344
        %625 = vst.msk [vmem:[%s349] sm:$0x1] %vm624, %v623
        %v626 = vmul.f32 %v554, %v554
        %v627 = vmul.f32 %v555, %v555
        %v628 = vmul.f32 %v556, %v556
        %v629 = vmul.f32 %v557, %v557
        %v630 = vmul.f32 %v558, %v558
        %v631 = vmul.f32 %v559, %v559
        %v632 = vmul.f32 %v560, %v560
        %v633 = vmul.f32 %v561, %v561
        %v634 = vsel %vm541, %v626, 0.0
        %v635 = vsel %vm541, %v627, 0.0
        %v636 = vadd.f32 %v634, %v635
        %v637 = vsel %vm541, %v628, 0.0
        %v638 = vadd.f32 %v636, %v637
        %v639 = vsel %vm541, %v629, 0.0
        %v640 = vadd.f32 %v638, %v639
        %v641 = vsel %vm541, %v630, 0.0
        %v642 = vadd.f32 %v640, %v641
        %v643 = vsel %vm541, %v631, 0.0
        %v644 = vadd.f32 %v642, %v643
        %v645 = vsel %vm541, %v632, 0.0
        %v646 = vadd.f32 %v644, %v645
        %v647 = vsel %vm541, %v633, 0.0
        %v648 = vadd.f32 %v646, %v647
        %v649 = vrot.slane %v648, 4
        %v650 = vadd.f32 %v648, %v649
        %v651 = vrot.slane %v650, 2
        %v652 = vadd.f32 %v650, %v651
        %v653 = vrot.slane %v652, 1
        %v654 = vadd.f32 %v652, %v653
        %655 = vst.msk [vmem:[%s356] sm:$0x1] %vm624, %v654
      $region44: #{res_layer_forward.15} parent=35 // pred_fallthru
        _
      %p656 = scmp.lt.s32.totalorder %s23, 1
      %s657 = scalar_select %p656, %s23, 1
      %p658 = scmp.lt.s32.totalorder %s24, 3
      %s659 = scalar_select %p658, %s24, 3
      %s660 = smul.addr %s659, 8
      %s661 = smul.addr %s657, 32
      %s662 = sadd.s32 %s660, %s661
      %s663 = smul.addr %s662, 4
      %s664 = scalar_lea.vmem %s4, %s663
      %s665 = smul.u32 %s23, 4
      %s666 = sadd.s32 %s665, %s24
      %p667 = scmp.lt.s32.totalorder %s666, 7
      %s668 = scalar_select %p667, %s666, 7
      %s669 = scalar_lea.vmem %s5, %s668
      %s670 = smul.u32 %s23, 4
      %s671 = sadd.s32 %s670, %s24
      %p672 = scmp.lt.s32.totalorder %s671, 7
      %s673 = scalar_select %p672, %s671, 7
      %s674 = scalar_lea.vmem %s6, %s673
      // Predicated region
      $region45: #{res_layer_forward.15} parent=35 // pred_check
        %p675 = pneg %p155
      $region46: #{res_layer_forward.15} parent=35 // pred_check_branch
        %677 = sbr.rel (%p675) target = $region48
      $region47: #{res_layer_forward.15} parent=35 // pred_region
        _
      $region48: #{res_layer_forward.15} parent=35 // pred_fallthru
        _
      // Predicated region
      $region49: #{res_layer_forward.15} parent=35 // pred_check
        %p678 = pneg %p185
      $region50: #{res_layer_forward.15} parent=35 // pred_check_branch
        %680 = sbr.rel (%p678) target = $region52
      $region51: #{res_layer_forward.15} parent=35 // pred_region
        %s681 = smul.u32 %s23, 4
        %s682 = sadd.s32 %s681, %s24
      $region52: #{res_layer_forward.15} parent=35 // pred_fallthru
        _
      // Predicated region
      $region53: #{res_layer_forward.15} parent=35 // pred_check
        %p683 = pneg %p215
      $region54: #{res_layer_forward.15} parent=35 // pred_check_branch
        %685 = sbr.rel (%p683) target = $region56
      $region55: #{res_layer_forward.15} parent=35 // pred_region
        %s686 = smul.u32 %s23, 4
        %s687 = sadd.s32 %s686, %s24
      $region56: #{res_layer_forward.15} parent=35 // pred_fallthru
        _
    $region36: #{res_layer_forward.15} parent=5 // pred_fallthru
      _
    %p688 = scmp.le.s32.totalorder 2, %s13
    // Predicated region
    $region57: #{res_layer_forward.15} parent=5 // pred_check
      %p689 = pneg %p688
    $region58: #{res_layer_forward.15} parent=5 // pred_check_branch
      %691 = sbr.rel (%p689) target = $region60
    $region59: #{res_layer_forward.15} parent=5 // pred_region
      %s692 = ssub.s32 %s13, 2
      // Predicated region
      $region61: #{res_layer_forward.15} parent=59 // pred_check
        %p693 = pneg %p161
      $region62: #{res_layer_forward.15} parent=59 // pred_check_branch
        %695 = sbr.rel (%p693) target = $region64
      $region63: #{res_layer_forward.15} parent=59 // pred_region
        %p696 = scmp.lt.s32.totalorder %s26, 1
        %s697 = scalar_select %p696, %s26, 1
        %p698 = scmp.lt.s32.totalorder %s27, 3
        %s699 = scalar_select %p698, %s27, 3
        %s700 = smul.addr %s699, 8
        %s701 = smul.addr %s697, 32
        %s702 = sadd.s32 %s700, %s701
        %s703 = smul.addr %s702, 4
        %s704 = scalar_lea.vmem %s4, %s703
      $region64: #{res_layer_forward.15} parent=59 // pred_fallthru
        _
      // Predicated region
      $region65: #{res_layer_forward.15} parent=59 // pred_check
        %p705 = pneg %p191
      $region66: #{res_layer_forward.15} parent=59 // pred_check_branch
        %707 = sbr.rel (%p705) target = $region68
      $region67: #{res_layer_forward.15} parent=59 // pred_region
        %s708 = smul.u32 %s26, 4
        %s709 = sadd.s32 %s708, %s27
        %p710 = scmp.lt.s32.totalorder %s709, 7
        %s711 = scalar_select %p710, %s709, 7
        %s712 = scalar_lea.vmem %s5, %s711
      $region68: #{res_layer_forward.15} parent=59 // pred_fallthru
        _
      // Predicated region
      $region69: #{res_layer_forward.15} parent=59 // pred_check
        %p713 = pneg %p221
      $region70: #{res_layer_forward.15} parent=59 // pred_check_branch
        %715 = sbr.rel (%p713) target = $region72
      $region71: #{res_layer_forward.15} parent=59 // pred_region
        %s716 = smul.u32 %s26, 4
        %s717 = sadd.s32 %s716, %s27
        %p718 = scmp.lt.s32.totalorder %s717, 7
        %s719 = scalar_select %p718, %s717, 7
        %s720 = scalar_lea.vmem %s6, %s719
      $region72: #{res_layer_forward.15} parent=59 // pred_fallthru
        _
    $region60: #{res_layer_forward.15} parent=5 // pred_fallthru
      _
  $region6: #{res_layer_forward.15} parent=0 // loop_footer
    %s17 = sadd.s32 1, %s13
  $region7: #{res_layer_forward.15} parent=0 // loop_footer_branch
    %12 = sbr.rel target = $region3
  $region8: #{res_layer_forward.15} parent=0 // loop_exit
    _

// kernel: res_layer_forward.16
$region0: #{res_layer_forward.16}
  #allocation0 [shape = 'u32[]', space=smem, size = 0x4, offset = 0x4, fixed_abs, tag = 'smem constant byte address 0x4 - core index']
  #allocation1 [shape = 'u32[144,128]{1,0:T(1,128)}', space=vmem, size = 0x12000, scoped, tag = 'internal scratch']
  %s0 = inlined_call_operand.vmem [shape: bf16[1024,4], index: 0, kind: input, shape index: {}]
  %s1 = inlined_call_operand.vmem [shape: bf16[4,2], index: 1, kind: input, shape index: {}]
  %s2 = inlined_call_operand.vmem [shape: bf16[1024,2], index: 2, kind: output, shape index: {0}]
  %s3 = inlined_call_operand.vmem [shape: f32[2,1,2], index: 3, kind: output, shape index: {1}]
  %s4 = inlined_call_operand.vmem [shape: f32[2,1,2], index: 4, kind: output, shape index: {2}]
  %5 = xla_tuple %s2, %s3, %s4
  %s6 = sld [smem:[#allocation0]]
  $region57: #{res_layer_forward.16} parent=0
    _
  %s8 = ssub.s32 1, %s6
  %s9 = scalar_select 0, %s8, %s6
  loop: start=0, step=1, limit=4
  $region2: #{res_layer_forward.16} parent=0 // loop_pre_header
    _
  $region3: #{res_layer_forward.16} parent=0 // loop_header
    %s11 = sphi 0, %s15
    %p12 = scmp.ge.s32.totalorder %s11, 4
    %s18 = sphi 0, %s30
    %s19 = sphi 0, %s26
    %s20 = sphi 0, %s18
    %s21 = sphi 0, %s19
    %s22 = sphi 0, %s20
    %s23 = sphi 0, %s21
    %s33 = sphi 0, %s35
    %s36 = sphi 0, %s33
    %s37 = sphi 0, %s36
    %s53 = sphi 0, %s37
    %s59 = sphi 0, %s61
    %s62 = sphi 0, %s59
    %s63 = sphi 0, %s62
    %s79 = sphi 0, %s63
    %s87 = sphi 0, %s89
    %s90 = sphi 0, %s87
    %s91 = sphi 0, %s90
    %s107 = sphi 0, %s91
    %s115 = sphi 0, %s117
    %s118 = sphi 0, %s115
    %s119 = sphi 0, %s118
    %s135 = sphi 0, %s119
    %s143 = sphi 0, %s145
    %s146 = sphi 0, %s143
    %s147 = sphi 0, %s146
    %s163 = sphi 0, %s147
  $region4: #{res_layer_forward.16} parent=0 // loop_header_branch
    %14 = sbr.rel (%p12) target = $region8
  $region5: #{res_layer_forward.16} parent=0 // loop_body
    %s16 = ssub.s32 %s11, 1
    %s17 = ssub.s32 %s11, 2
    %s24 = sadd.s32 1, %s19
    %p25 = scmp.ge.s32.totalorder %s24, 1
    %s26 = scalar_select %p25, 0, %s24
    %s27 = sadd.s32 1, %s18
    %s28 = scalar_select %p25, %s27, %s18
    %p29 = scmp.ge.s32.totalorder %s28, 2
    %s30 = scalar_select %p29, 0, %s28
    %s31 = ssub.s32 %s18, %s30
    %p32 = scmp.eq.s32.totalorder %s31, 0
    %s34 = sadd.s32 %s33, 1
    %s35 = scalar_select %p32, %s33, %s34
    %p38 = pneg %p32
    %p39 = scmp.eq.s32.totalorder %s11, 1
    %p40 = por %p38, %p39
    %p41 = scmp.ne.s32.totalorder %s33, %s36
    %p42 = scmp.eq.s32.totalorder %s11, 0
    %p43 = por %p41, %p42
    %p44 = scmp.ne.s32.totalorder %s33, %s36
    %p45 = scmp.eq.s32.totalorder %s16, 1
    %p46 = por %p44, %p45
    %p47 = scmp.ne.s32.totalorder %s36, %s37
    %p48 = scmp.eq.s32.totalorder %s16, 0
    %p49 = por %p47, %p48
    %p50 = scmp.ne.s32.totalorder %s36, %s37
    %p51 = scmp.eq.s32.totalorder %s17, 1
    %p52 = por %p50, %p51
    %p54 = scmp.ne.s32.totalorder %s37, %s53
    %p55 = scmp.eq.s32.totalorder %s17, 0
    %p56 = por %p54, %p55
    %s57 = ssub.s32 %s19, %s26
    %p58 = scmp.eq.s32.totalorder %s57, 0
    %s60 = sadd.s32 %s59, 1
    %s61 = scalar_select %p58, %s59, %s60
    %p64 = pneg %p58
    %p65 = scmp.eq.s32.totalorder %s11, 1
    %p66 = por %p64, %p65
    %p67 = scmp.ne.s32.totalorder %s59, %s62
    %p68 = scmp.eq.s32.totalorder %s11, 0
    %p69 = por %p67, %p68
    %p70 = scmp.ne.s32.totalorder %s59, %s62
    %p71 = scmp.eq.s32.totalorder %s16, 1
    %p72 = por %p70, %p71
    %p73 = scmp.ne.s32.totalorder %s62, %s63
    %p74 = scmp.eq.s32.totalorder %s16, 0
    %p75 = por %p73, %p74
    %p76 = scmp.ne.s32.totalorder %s62, %s63
    %p77 = scmp.eq.s32.totalorder %s17, 1
    %p78 = por %p76, %p77
    %p80 = scmp.ne.s32.totalorder %s63, %s79
    %p81 = scmp.eq.s32.totalorder %s17, 0
    %p82 = por %p80, %p81
    %s83 = ssub.s32 %s18, %s30
    %s84 = ssub.s32 %s19, %s26
    %s85 = sor.u32 %s83, %s84
    %p86 = scmp.eq.s32.totalorder %s85, 0
    %s88 = sadd.s32 %s87, 1
    %s89 = scalar_select %p86, %s87, %s88
    %p92 = pneg %p86
    %p93 = scmp.eq.s32.totalorder %s11, 1
    %p94 = por %p92, %p93
    %p95 = scmp.ne.s32.totalorder %s87, %s90
    %p96 = scmp.eq.s32.totalorder %s11, 0
    %p97 = por %p95, %p96
    %p98 = scmp.ne.s32.totalorder %s87, %s90
    %p99 = scmp.eq.s32.totalorder %s16, 1
    %p100 = por %p98, %p99
    %p101 = scmp.ne.s32.totalorder %s90, %s91
    %p102 = scmp.eq.s32.totalorder %s16, 0
    %p103 = por %p101, %p102
    %p104 = scmp.ne.s32.totalorder %s90, %s91
    %p105 = scmp.eq.s32.totalorder %s17, 1
    %p106 = por %p104, %p105
    %p108 = scmp.ne.s32.totalorder %s91, %s107
    %p109 = scmp.eq.s32.totalorder %s17, 0
    %p110 = por %p108, %p109
    %s111 = ssub.s32 %s18, %s30
    %s112 = ssub.s32 %s19, %s26
    %s113 = sor.u32 %s111, %s112
    %p114 = scmp.eq.s32.totalorder %s113, 0
    %s116 = sadd.s32 %s115, 1
    %s117 = scalar_select %p114, %s115, %s116
    %p120 = pneg %p114
    %p121 = scmp.eq.s32.totalorder %s11, 1
    %p122 = por %p120, %p121
    %p123 = scmp.ne.s32.totalorder %s115, %s118
    %p124 = scmp.eq.s32.totalorder %s11, 0
    %p125 = por %p123, %p124
    %p126 = scmp.ne.s32.totalorder %s115, %s118
    %p127 = scmp.eq.s32.totalorder %s16, 1
    %p128 = por %p126, %p127
    %p129 = scmp.ne.s32.totalorder %s118, %s119
    %p130 = scmp.eq.s32.totalorder %s16, 0
    %p131 = por %p129, %p130
    %p132 = scmp.ne.s32.totalorder %s118, %s119
    %p133 = scmp.eq.s32.totalorder %s17, 1
    %p134 = por %p132, %p133
    %p136 = scmp.ne.s32.totalorder %s119, %s135
    %p137 = scmp.eq.s32.totalorder %s17, 0
    %p138 = por %p136, %p137
    %s139 = ssub.s32 %s18, %s30
    %s140 = ssub.s32 %s19, %s26
    %s141 = sor.u32 %s139, %s140
    %p142 = scmp.eq.s32.totalorder %s141, 0
    %s144 = sadd.s32 %s143, 1
    %s145 = scalar_select %p142, %s143, %s144
    %p148 = pneg %p142
    %p149 = scmp.eq.s32.totalorder %s11, 1
    %p150 = por %p148, %p149
    %p151 = scmp.ne.s32.totalorder %s143, %s146
    %p152 = scmp.eq.s32.totalorder %s11, 0
    %p153 = por %p151, %p152
    %p154 = scmp.ne.s32.totalorder %s143, %s146
    %p155 = scmp.eq.s32.totalorder %s16, 1
    %p156 = por %p154, %p155
    %p157 = scmp.ne.s32.totalorder %s146, %s147
    %p158 = scmp.eq.s32.totalorder %s16, 0
    %p159 = por %p157, %p158
    %p160 = scmp.ne.s32.totalorder %s146, %s147
    %p161 = scmp.eq.s32.totalorder %s17, 1
    %p162 = por %p160, %p161
    %p164 = scmp.ne.s32.totalorder %s147, %s163
    %p165 = scmp.eq.s32.totalorder %s17, 0
    %p166 = por %p164, %p165
    %p167 = scmp.le.s32.totalorder 1, %s11
    %p168 = scmp.lt.s32.totalorder %s11, 3
    %p169 = pnand %p167, %p168
    %p170 = pneg %p169
    // Predicated region
    $region9: #{res_layer_forward.16} parent=5 // pred_check
      _
    $region10: #{res_layer_forward.16} parent=5 // pred_check_branch
      %172 = sbr.rel (%p169) target = $region12
    $region11: #{res_layer_forward.16} parent=5 // pred_region
      %s173 = ssub.s32 %s11, 1
      // Predicated region
      $region13: #{res_layer_forward.16} parent=11 // pred_check
        %p174 = pneg %p75
      $region14: #{res_layer_forward.16} parent=11 // pred_check_branch
        %176 = sbr.rel (%p174) target = $region16
      $region15: #{res_layer_forward.16} parent=11 // pred_region
        %p177 = scmp.lt.s32.totalorder %s21, 0
        %s178 = scalar_select %p177, %s21, 0
        %s179 = smul.addr %s178, 2
        %s180 = scalar_lea.vmem %s1, %s179
      $region16: #{res_layer_forward.16} parent=11 // pred_fallthru
        _
    $region12: #{res_layer_forward.16} parent=5 // pred_fallthru
      _
    %p181 = scmp.lt.s32.totalorder %s11, 2
    // Predicated region
    $region17: #{res_layer_forward.16} parent=5 // pred_check
      %p182 = pneg %p181
    $region18: #{res_layer_forward.16} parent=5 // pred_check_branch
      %184 = sbr.rel (%p182) target = $region20
    $region19: #{res_layer_forward.16} parent=5 // pred_region
      // Predicated region
      $region21: #{res_layer_forward.16} parent=19 // pred_check
        %p185 = pneg %p43
      $region22: #{res_layer_forward.16} parent=19 // pred_check_branch
        %187 = sbr.rel (%p185) target = $region24
      $region23: #{res_layer_forward.16} parent=19 // pred_region
        %s188 = smul.u32 64, %s18
        %p189 = scmp.lt.s32.totalorder %s188, 127
        %s190 = scalar_select %p189, %s188, 127
        %s191 = smul.addr %s190, 4
        %s192 = scalar_lea.vmem %s0, %s191
        %s193 = smul.u32 64, %s18
      $region24: #{res_layer_forward.16} parent=19 // pred_fallthru
        _
    $region20: #{res_layer_forward.16} parent=5 // pred_fallthru
      _
    %p194 = scmp.le.s32.totalorder 1, %s11
    %p195 = scmp.lt.s32.totalorder %s11, 3
    %p196 = pnand %p194, %p195
    %p197 = pneg %p196
    // Predicated region
    $region25: #{res_layer_forward.16} parent=5 // pred_check
      _
    $region26: #{res_layer_forward.16} parent=5 // pred_check_branch
      %199 = sbr.rel (%p196) target = $region28
    $region27: #{res_layer_forward.16} parent=5 // pred_region
      %s200 = ssub.s32 %s11, 1
      %s201 = smul.u32 64, %s20
      %p202 = scmp.lt.s32.totalorder %s201, 127
      %s203 = scalar_select %p202, %s201, 127
      %s204 = smul.addr %s203, 4
      %s205 = scalar_lea.vmem %s0, %s204
      %p206 = pneg %p49
      %p207 = pneg %p46
      %p208 = scmp.lt.s32.totalorder %s21, 0
      %s209 = scalar_select %p208, %s21, 0
      %s210 = smul.addr %s209, 2
      %s211 = scalar_lea.vmem %s1, %s210
      %p212 = pneg %p75
      %p213 = pneg %p72
      %p214 = pneg %p103
      %p215 = pneg %p100
      %s216 = smul.u32 64, %s20
      %p217 = scmp.lt.s32.totalorder %s216, 127
      %s218 = scalar_select %p217, %s216, 127
      %p219 = scmp.lt.s32.totalorder %s21, 0
      %s220 = scalar_select %p219, %s21, 0
      %s221 = sadd.s32 %s220, %s218
      %s222 = smul.addr %s221, 4
      %s223 = scalar_lea.vmem %s2, %s222
      %p224 = pneg %p131
      %p225 = pneg %p128
      %p226 = scmp.lt.s32.totalorder %s20, 1
      %s227 = scalar_select %p226, %s20, 1
      %p228 = scmp.lt.s32.totalorder %s21, 0
      %s229 = scalar_select %p228, %s21, 0
      %s230 = sadd.s32 %s229, %s227
      %s231 = scalar_lea.vmem %s3, %s230
      %p232 = pneg %p159
      %p233 = pneg %p156
      %p234 = scmp.lt.s32.totalorder %s20, 1
      %s235 = scalar_select %p234, %s20, 1
      %p236 = scmp.lt.s32.totalorder %s21, 0
      %s237 = scalar_select %p236, %s21, 0
      %s238 = sadd.s32 %s237, %s235
      %s239 = scalar_lea.vmem %s4, %s238
      %s240 = smul.u32 64, %s20
      %p241 = scmp.lt.s32.totalorder %s240, 127
      %s242 = scalar_select %p241, %s240, 127
      %s243 = smul.addr %s242, 4
      %s244 = scalar_lea.vmem %s0, %s243
      %s245 = smul.u32 64, %s20
      %p246 = scmp.lt.s32.totalorder %s21, 0
      %s247 = scalar_select %p246, %s21, 0
      %s248 = smul.addr %s247, 2
      %s249 = scalar_lea.vmem %s1, %s248
      %s250 = smul.u32 64, %s20
      %p251 = scmp.lt.s32.totalorder %s250, 127
      %s252 = scalar_select %p251, %s250, 127
      %p253 = scmp.lt.s32.totalorder %s21, 0
      %s254 = scalar_select %p253, %s21, 0
      %s255 = sadd.s32 %s254, %s252
      %s256 = smul.addr %s255, 4
      %s257 = scalar_lea.vmem %s2, %s256
      %s258 = smul.u32 64, %s20
      %p259 = scmp.lt.s32.totalorder %s20, 1
      %s260 = scalar_select %p259, %s20, 1
      %p261 = scmp.lt.s32.totalorder %s21, 0
      %s262 = scalar_select %p261, %s21, 0
      %s263 = sadd.s32 %s262, %s260
      %s264 = scalar_lea.vmem %s3, %s263
      %p265 = scmp.lt.s32.totalorder %s20, 1
      %s266 = scalar_select %p265, %s20, 1
      %p267 = scmp.lt.s32.totalorder %s21, 0
      %s268 = scalar_select %p267, %s21, 0
      %s269 = sadd.s32 %s268, %s266
      %s270 = scalar_lea.vmem %s4, %s269
      %v272 = vld [vmem:[%s244] sm:$0xf]
      %v273 = vld [vmem:[%s244 + $0x4] sm:$0xf]
      %v274 = vld [vmem:[%s244 + $0x8] sm:$0xf]
      %v275 = vld [vmem:[%s244 + $0xc] sm:$0xf]
      %v276 = vld [vmem:[%s244 + $0x10] sm:$0xf]
      %v277 = vld [vmem:[%s244 + $0x14] sm:$0xf]
      %v278 = vld [vmem:[%s244 + $0x18] sm:$0xf]
      %v279 = vld [vmem:[%s244 + $0x1c] sm:$0xf]
      %v280 = vld [vmem:[%s244 + $0x20] sm:$0xf]
      %v281 = vld [vmem:[%s244 + $0x24] sm:$0xf]
      %v282 = vld [vmem:[%s244 + $0x28] sm:$0xf]
      %v283 = vld [vmem:[%s244 + $0x2c] sm:$0xf]
      %v284 = vld [vmem:[%s244 + $0x30] sm:$0xf]
      %v285 = vld [vmem:[%s244 + $0x34] sm:$0xf]
      %v286 = vld [vmem:[%s244 + $0x38] sm:$0xf]
      %v287 = vld [vmem:[%s244 + $0x3c] sm:$0xf]
      %v288 = vld [vmem:[%s244 + $0x40] sm:$0xf]
      %v289 = vld [vmem:[%s244 + $0x44] sm:$0xf]
      %v290 = vld [vmem:[%s244 + $0x48] sm:$0xf]
      %v291 = vld [vmem:[%s244 + $0x4c] sm:$0xf]
      %v292 = vld [vmem:[%s244 + $0x50] sm:$0xf]
      %v293 = vld [vmem:[%s244 + $0x54] sm:$0xf]
      %v294 = vld [vmem:[%s244 + $0x58] sm:$0xf]
      %v295 = vld [vmem:[%s244 + $0x5c] sm:$0xf]
      %v296 = vld [vmem:[%s244 + $0x60] sm:$0xf]
      %v297 = vld [vmem:[%s244 + $0x64] sm:$0xf]
      %v298 = vld [vmem:[%s244 + $0x68] sm:$0xf]
      %v299 = vld [vmem:[%s244 + $0x6c] sm:$0xf]
      %v300 = vld [vmem:[%s244 + $0x70] sm:$0xf]
      %v301 = vld [vmem:[%s244 + $0x74] sm:$0xf]
      %v302 = vld [vmem:[%s244 + $0x78] sm:$0xf]
      %v303 = vld [vmem:[%s244 + $0x7c] sm:$0xf]
      %v304 = vld [vmem:[%s244 + $0x80] sm:$0xf]
      %v305 = vld [vmem:[%s244 + $0x84] sm:$0xf]
      %v306 = vld [vmem:[%s244 + $0x88] sm:$0xf]
      %v307 = vld [vmem:[%s244 + $0x8c] sm:$0xf]
      %v308 = vld [vmem:[%s244 + $0x90] sm:$0xf]
      %v309 = vld [vmem:[%s244 + $0x94] sm:$0xf]
      %v310 = vld [vmem:[%s244 + $0x98] sm:$0xf]
      %v311 = vld [vmem:[%s244 + $0x9c] sm:$0xf]
      %v312 = vld [vmem:[%s244 + $0xa0] sm:$0xf]
      %v313 = vld [vmem:[%s244 + $0xa4] sm:$0xf]
      %v314 = vld [vmem:[%s244 + $0xa8] sm:$0xf]
      %v315 = vld [vmem:[%s244 + $0xac] sm:$0xf]
      %v316 = vld [vmem:[%s244 + $0xb0] sm:$0xf]
      %v317 = vld [vmem:[%s244 + $0xb4] sm:$0xf]
      %v318 = vld [vmem:[%s244 + $0xb8] sm:$0xf]
      %v319 = vld [vmem:[%s244 + $0xbc] sm:$0xf]
      %v320 = vld [vmem:[%s244 + $0xc0] sm:$0xf]
      %v321 = vld [vmem:[%s244 + $0xc4] sm:$0xf]
      %v322 = vld [vmem:[%s244 + $0xc8] sm:$0xf]
      %v323 = vld [vmem:[%s244 + $0xcc] sm:$0xf]
      %v324 = vld [vmem:[%s244 + $0xd0] sm:$0xf]
      %v325 = vld [vmem:[%s244 + $0xd4] sm:$0xf]
      %v326 = vld [vmem:[%s244 + $0xd8] sm:$0xf]
      %v327 = vld [vmem:[%s244 + $0xdc] sm:$0xf]
      %v328 = vld [vmem:[%s244 + $0xe0] sm:$0xf]
      %v329 = vld [vmem:[%s244 + $0xe4] sm:$0xf]
      %v330 = vld [vmem:[%s244 + $0xe8] sm:$0xf]
      %v331 = vld [vmem:[%s244 + $0xec] sm:$0xf]
      %v332 = vld [vmem:[%s244 + $0xf0] sm:$0xf]
      %v333 = vld [vmem:[%s244 + $0xf4] sm:$0xf]
      %v334 = vld [vmem:[%s244 + $0xf8] sm:$0xf]
      %v335 = vld [vmem:[%s244 + $0xfc] sm:$0xf]
      %v336 = vld [vmem:[%s249] sm:$0x3]
      %v401 = vunpack.c.l.b16 %v272
      %v402 = vunpack.c.l.b16 %v273
      %v403 = vunpack.c.l.b16 %v274
      %v404 = vunpack.c.l.b16 %v275
      %v405 = vunpack.c.l.b16 %v276
      %v406 = vunpack.c.l.b16 %v277
      %v407 = vunpack.c.l.b16 %v278
      %v408 = vunpack.c.l.b16 %v279
      %v409 = vunpack.c.l.b16 %v280
      %v410 = vunpack.c.l.b16 %v281
      %v411 = vunpack.c.l.b16 %v282
      %v412 = vunpack.c.l.b16 %v283
      %v413 = vunpack.c.l.b16 %v284
      %v414 = vunpack.c.l.b16 %v285
      %v415 = vunpack.c.l.b16 %v286
      %v416 = vunpack.c.l.b16 %v287
      %v417 = vunpack.c.l.b16 %v288
      %v418 = vunpack.c.l.b16 %v289
      %v419 = vunpack.c.l.b16 %v290
      %v420 = vunpack.c.l.b16 %v291
      %v421 = vunpack.c.l.b16 %v292
      %v422 = vunpack.c.l.b16 %v293
      %v423 = vunpack.c.l.b16 %v294
      %v424 = vunpack.c.l.b16 %v295
      %v425 = vunpack.c.l.b16 %v296
      %v426 = vunpack.c.l.b16 %v297
      %v427 = vunpack.c.l.b16 %v298
      %v428 = vunpack.c.l.b16 %v299
      %v429 = vunpack.c.l.b16 %v300
      %v430 = vunpack.c.l.b16 %v301
      %v431 = vunpack.c.l.b16 %v302
      %v432 = vunpack.c.l.b16 %v303
      %v433 = vunpack.c.l.b16 %v304
      %v434 = vunpack.c.l.b16 %v305
      %v435 = vunpack.c.l.b16 %v306
      %v436 = vunpack.c.l.b16 %v307
      %v437 = vunpack.c.l.b16 %v308
      %v438 = vunpack.c.l.b16 %v309
      %v439 = vunpack.c.l.b16 %v310
      %v440 = vunpack.c.l.b16 %v311
      %v441 = vunpack.c.l.b16 %v312
      %v442 = vunpack.c.l.b16 %v313
      %v443 = vunpack.c.l.b16 %v314
      %v444 = vunpack.c.l.b16 %v315
      %v445 = vunpack.c.l.b16 %v316
      %v446 = vunpack.c.l.b16 %v317
      %v447 = vunpack.c.l.b16 %v318
      %v448 = vunpack.c.l.b16 %v319
      %v449 = vunpack.c.l.b16 %v320
      %v450 = vunpack.c.l.b16 %v321
      %v451 = vunpack.c.l.b16 %v322
      %v452 = vunpack.c.l.b16 %v323
      %v453 = vunpack.c.l.b16 %v324
      %v454 = vunpack.c.l.b16 %v325
      %v455 = vunpack.c.l.b16 %v326
      %v456 = vunpack.c.l.b16 %v327
      %v457 = vunpack.c.l.b16 %v328
      %v458 = vunpack.c.l.b16 %v329
      %v459 = vunpack.c.l.b16 %v330
      %v460 = vunpack.c.l.b16 %v331
      %v461 = vunpack.c.l.b16 %v332
      %v462 = vunpack.c.l.b16 %v333
      %v463 = vunpack.c.l.b16 %v334
      %v464 = vunpack.c.l.b16 %v335
      %v465 = vpack.c.b16 %v402, %v401
      %v466 = vpack.c.b16 %v404, %v403
      %v467 = vpack.c.b16 %v406, %v405
      %v468 = vpack.c.b16 %v408, %v407
      %v469 = vpack.c.b16 %v410, %v409
      %v470 = vpack.c.b16 %v412, %v411
      %v471 = vpack.c.b16 %v414, %v413
      %v472 = vpack.c.b16 %v416, %v415
      %v473 = vpack.c.b16 %v418, %v417
      %v474 = vpack.c.b16 %v420, %v419
      %v475 = vpack.c.b16 %v422, %v421
      %v476 = vpack.c.b16 %v424, %v423
      %v477 = vpack.c.b16 %v426, %v425
      %v478 = vpack.c.b16 %v428, %v427
      %v479 = vpack.c.b16 %v430, %v429
      %v480 = vpack.c.b16 %v432, %v431
      %v481 = vpack.c.b16 %v434, %v433
      %v482 = vpack.c.b16 %v436, %v435
      %v483 = vpack.c.b16 %v438, %v437
      %v484 = vpack.c.b16 %v440, %v439
      %v485 = vpack.c.b16 %v442, %v441
      %v486 = vpack.c.b16 %v444, %v443
      %v487 = vpack.c.b16 %v446, %v445
      %v488 = vpack.c.b16 %v448, %v447
      %v489 = vpack.c.b16 %v450, %v449
      %v490 = vpack.c.b16 %v452, %v451
      %v491 = vpack.c.b16 %v454, %v453
      %v492 = vpack.c.b16 %v456, %v455
      %v493 = vpack.c.b16 %v458, %v457
      %v494 = vpack.c.b16 %v460, %v459
      %v495 = vpack.c.b16 %v462, %v461
      %v496 = vpack.c.b16 %v464, %v463
      %vm497 = vcmask 31744
      %v499 = vsel %vm497, %v465, 0
      %v502 = vsel %vm497, %v466, 0
      %v505 = vsel %vm497, %v467, 0
      %v508 = vsel %vm497, %v468, 0
      %v511 = vsel %vm497, %v469, 0
      %v514 = vsel %vm497, %v470, 0
      %v517 = vsel %vm497, %v471, 0
      %v520 = vsel %vm497, %v472, 0
      %v523 = vsel %vm497, %v473, 0
      %v526 = vsel %vm497, %v474, 0
      %v529 = vsel %vm497, %v475, 0
      %v532 = vsel %vm497, %v476, 0
      %v535 = vsel %vm497, %v477, 0
      %v538 = vsel %vm497, %v478, 0
      %v541 = vsel %vm497, %v479, 0
      %v544 = vsel %vm497, %v480, 0
      %v547 = vsel %vm497, %v481, 0
      %v550 = vsel %vm497, %v482, 0
      %v553 = vsel %vm497, %v483, 0
      %v556 = vsel %vm497, %v484, 0
      %v559 = vsel %vm497, %v485, 0
      %v562 = vsel %vm497, %v486, 0
      %v565 = vsel %vm497, %v487, 0
      %v568 = vsel %vm497, %v488, 0
      %v571 = vsel %vm497, %v489, 0
      %v574 = vsel %vm497, %v490, 0
      %v577 = vsel %vm497, %v491, 0
      %v580 = vsel %vm497, %v492, 0
      %v583 = vsel %vm497, %v493, 0
      %v586 = vsel %vm497, %v494, 0
      %v589 = vsel %vm497, %v495, 0
      %v592 = vsel %vm497, %v496, 0
      %vm594 = vcmask 1041408
      %v596 = vsel %vm594, %v336, 0
      %598 = vmatprep.subr.bf16.mxu0 0
      %599 = vmatpush1.bf16.msra.mxu0 0
      %600 = vmatprep.subr.bf16.mxu0 0
      %601 = vmatpush1.bf16.msra.mxu0 0
      %602 = vmatprep.subr.bf16.mxu0 0
      %603 = vmatpush1.bf16.msra.mxu0 0
      %604 = vmatprep.subr.bf16.mxu0 0
      %605 = vmatpush1.bf16.msra.mxu0 0
      %606 = vmatprep.subr.bf16.mxu0 0
      %607 = vmatpush1.bf16.msra.mxu0 0
      %608 = vmatprep.subr.bf16.mxu0 0
      %609 = vmatpush1.bf16.msra.mxu0 0
      %610 = vmatprep.subr.bf16.mxu0 0
      %611 = vmatpush1.bf16.msra.mxu0 0
      %612 = vmatprep.subr.bf16.mxu0 0
      %613 = vmatpush1.bf16.msra.mxu0 %v596
      %614 = vmatprep.subr.bf16.mxu0 0
      %615 = vmatpush2.bf16.msra.mxu0 0
      %616 = vmatprep.subr.bf16.mxu0 0
      %617 = vmatpush2.bf16.msra.mxu0 0
      %618 = vmatprep.subr.bf16.mxu0 0
      %619 = vmatpush2.bf16.msra.mxu0 0
      %620 = vmatprep.subr.bf16.mxu0 0
      %621 = vmatpush2.bf16.msra.mxu0 0
      %622 = vmatprep.subr.bf16.mxu0 0
      %623 = vmatpush2.bf16.msra.mxu0 0
      %624 = vmatprep.subr.bf16.mxu0 0
      %625 = vmatpush2.bf16.msra.mxu0 0
      %626 = vmatprep.subr.bf16.mxu0 0
      %627 = vmatpush2.bf16.msra.mxu0 0
      %628 = vmatprep.subr.bf16.mxu0 0
      %629 = vmatpush2.bf16.msra.mxu0 0
      %630 = vmatprep.mubr.bf16.mxu0 0
      %631 = vmatmul.mubr.bf16.gmra.mxu0 %v499
      %v632 = vpop.f32.mrf.mxu0
      %v633 = vadd.f32 0.0, %v632
      %v634 = vpop.f32.mrf.mxu0
      %v635 = vpop.f32.mrf.mxu0
      %v636 = vadd.f32 0.0, %v635
      %v637 = vpop.f32.mrf.mxu0
      %638 = vmatprep.mubr.bf16.mxu0 0
      %639 = vmatmul.mubr.bf16.gmra.mxu0 %v502
      %v640 = vpop.f32.mrf.mxu0
      %v641 = vadd.f32 0.0, %v640
      %v642 = vpop.f32.mrf.mxu0
      %v643 = vpop.f32.mrf.mxu0
      %v644 = vadd.f32 0.0, %v643
      %v645 = vpop.f32.mrf.mxu0
      %646 = vmatprep.mubr.bf16.mxu0 0
      %647 = vmatmul.mubr.bf16.gmra.mxu0 %v505
      %v648 = vpop.f32.mrf.mxu0
      %v649 = vadd.f32 0.0, %v648
      %v650 = vpop.f32.mrf.mxu0
      %v651 = vpop.f32.mrf.mxu0
      %v652 = vadd.f32 0.0, %v651
      %v653 = vpop.f32.mrf.mxu0
      %654 = vmatprep.mubr.bf16.mxu0 0
      %655 = vmatmul.mubr.bf16.gmra.mxu0 %v508
      %v656 = vpop.f32.mrf.mxu0
      %v657 = vadd.f32 0.0, %v656
      %v658 = vpop.f32.mrf.mxu0
      %v659 = vpop.f32.mrf.mxu0
      %v660 = vadd.f32 0.0, %v659
      %v661 = vpop.f32.mrf.mxu0
      %662 = vmatprep.mubr.bf16.mxu0 0
      %663 = vmatmul.mubr.bf16.gmra.mxu0 %v511
      %v664 = vpop.f32.mrf.mxu0
      %v665 = vadd.f32 0.0, %v664
      %v666 = vpop.f32.mrf.mxu0
      %v667 = vpop.f32.mrf.mxu0
      %v668 = vadd.f32 0.0, %v667
      %v669 = vpop.f32.mrf.mxu0
      %670 = vmatprep.mubr.bf16.mxu0 0
      %671 = vmatmul.mubr.bf16.gmra.mxu0 %v514
      %v672 = vpop.f32.mrf.mxu0
      %v673 = vadd.f32 0.0, %v672
      %v674 = vpop.f32.mrf.mxu0
      %v675 = vpop.f32.mrf.mxu0
      %v676 = vadd.f32 0.0, %v675
      %v677 = vpop.f32.mrf.mxu0
      %678 = vmatprep.mubr.bf16.mxu0 0
      %679 = vmatmul.mubr.bf16.gmra.mxu0 %v517
      %v680 = vpop.f32.mrf.mxu0
      %v681 = vadd.f32 0.0, %v680
      %v682 = vpop.f32.mrf.mxu0
      %v683 = vpop.f32.mrf.mxu0
      %v684 = vadd.f32 0.0, %v683
      %v685 = vpop.f32.mrf.mxu0
      %686 = vmatprep.mubr.bf16.mxu0 0
      %687 = vmatmul.mubr.bf16.gmra.mxu0 %v520
      %v688 = vpop.f32.mrf.mxu0
      %v689 = vadd.f32 0.0, %v688
      %v690 = vpop.f32.mrf.mxu0
      %v691 = vpop.f32.mrf.mxu0
      %v692 = vadd.f32 0.0, %v691
      %v693 = vpop.f32.mrf.mxu0
      %694 = vmatprep.mubr.bf16.mxu0 0
      %695 = vmatmul.mubr.bf16.gmra.mxu0 %v523
      %v696 = vpop.f32.mrf.mxu0
      %v697 = vadd.f32 0.0, %v696
      %v698 = vpop.f32.mrf.mxu0
      %v699 = vpop.f32.mrf.mxu0
      %v700 = vadd.f32 0.0, %v699
      %v701 = vpop.f32.mrf.mxu0
      %702 = vmatprep.mubr.bf16.mxu0 0
      %703 = vmatmul.mubr.bf16.gmra.mxu0 %v526
      %v704 = vpop.f32.mrf.mxu0
      %v705 = vadd.f32 0.0, %v704
      %v706 = vpop.f32.mrf.mxu0
      %v707 = vpop.f32.mrf.mxu0
      %v708 = vadd.f32 0.0, %v707
      %v709 = vpop.f32.mrf.mxu0
      %710 = vmatprep.mubr.bf16.mxu0 0
      %711 = vmatmul.mubr.bf16.gmra.mxu0 %v529
      %v712 = vpop.f32.mrf.mxu0
      %v713 = vadd.f32 0.0, %v712
      %v714 = vpop.f32.mrf.mxu0
      %v715 = vpop.f32.mrf.mxu0
      %v716 = vadd.f32 0.0, %v715
      %v717 = vpop.f32.mrf.mxu0
      %718 = vmatprep.mubr.bf16.mxu0 0
      %719 = vmatmul.mubr.bf16.gmra.mxu0 %v532
      %v720 = vpop.f32.mrf.mxu0
      %v721 = vadd.f32 0.0, %v720
      %v722 = vpop.f32.mrf.mxu0
      %v723 = vpop.f32.mrf.mxu0
      %v724 = vadd.f32 0.0, %v723
      %v725 = vpop.f32.mrf.mxu0
      %726 = vmatprep.mubr.bf16.mxu0 0
      %727 = vmatmul.mubr.bf16.gmra.mxu0 %v535
      %v728 = vpop.f32.mrf.mxu0
      %v729 = vadd.f32 0.0, %v728
      %v730 = vpop.f32.mrf.mxu0
      %v731 = vpop.f32.mrf.mxu0
      %v732 = vadd.f32 0.0, %v731
      %v733 = vpop.f32.mrf.mxu0
      %734 = vmatprep.mubr.bf16.mxu0 0
      %735 = vmatmul.mubr.bf16.gmra.mxu0 %v538
      %v736 = vpop.f32.mrf.mxu0
      %v737 = vadd.f32 0.0, %v736
      %v738 = vpop.f32.mrf.mxu0
      %v739 = vpop.f32.mrf.mxu0
      %v740 = vadd.f32 0.0, %v739
      %v741 = vpop.f32.mrf.mxu0
      %742 = vmatprep.mubr.bf16.mxu0 0
      %743 = vmatmul.mubr.bf16.gmra.mxu0 %v541
      %v744 = vpop.f32.mrf.mxu0
      %v745 = vadd.f32 0.0, %v744
      %v746 = vpop.f32.mrf.mxu0
      %v747 = vpop.f32.mrf.mxu0
      %v748 = vadd.f32 0.0, %v747
      %v749 = vpop.f32.mrf.mxu0
      %750 = vmatprep.mubr.bf16.mxu0 0
      %751 = vmatmul.mubr.bf16.gmra.mxu0 %v544
      %v752 = vpop.f32.mrf.mxu0
      %v753 = vadd.f32 0.0, %v752
      %v754 = vpop.f32.mrf.mxu0
      %v755 = vpop.f32.mrf.mxu0
      %v756 = vadd.f32 0.0, %v755
      %v757 = vpop.f32.mrf.mxu0
      %758 = vmatprep.mubr.bf16.mxu0 0
      %759 = vmatmul.mubr.bf16.gmra.mxu0 %v547
      %v760 = vpop.f32.mrf.mxu0
      %v761 = vadd.f32 0.0, %v760
      %v762 = vpop.f32.mrf.mxu0
      %v763 = vpop.f32.mrf.mxu0
      %v764 = vadd.f32 0.0, %v763
      %v765 = vpop.f32.mrf.mxu0
      %766 = vmatprep.mubr.bf16.mxu0 0
      %767 = vmatmul.mubr.bf16.gmra.mxu0 %v550
      %v768 = vpop.f32.mrf.mxu0
      %v769 = vadd.f32 0.0, %v768
      %v770 = vpop.f32.mrf.mxu0
      %v771 = vpop.f32.mrf.mxu0
      %v772 = vadd.f32 0.0, %v771
      %v773 = vpop.f32.mrf.mxu0
      %774 = vmatprep.mubr.bf16.mxu0 0
      %775 = vmatmul.mubr.bf16.gmra.mxu0 %v553
      %v776 = vpop.f32.mrf.mxu0
      %v777 = vadd.f32 0.0, %v776
      %v778 = vpop.f32.mrf.mxu0
      %v779 = vpop.f32.mrf.mxu0
      %v780 = vadd.f32 0.0, %v779
      %v781 = vpop.f32.mrf.mxu0
      %782 = vmatprep.mubr.bf16.mxu0 0
      %783 = vmatmul.mubr.bf16.gmra.mxu0 %v556
      %v784 = vpop.f32.mrf.mxu0
      %v785 = vadd.f32 0.0, %v784
      %v786 = vpop.f32.mrf.mxu0
      %v787 = vpop.f32.mrf.mxu0
      %v788 = vadd.f32 0.0, %v787
      %v789 = vpop.f32.mrf.mxu0
      %790 = vmatprep.mubr.bf16.mxu0 0
      %791 = vmatmul.mubr.bf16.gmra.mxu0 %v559
      %v792 = vpop.f32.mrf.mxu0
      %v793 = vadd.f32 0.0, %v792
      %v794 = vpop.f32.mrf.mxu0
      %v795 = vpop.f32.mrf.mxu0
      %v796 = vadd.f32 0.0, %v795
      %v797 = vpop.f32.mrf.mxu0
      %798 = vmatprep.mubr.bf16.mxu0 0
      %799 = vmatmul.mubr.bf16.gmra.mxu0 %v562
      %v800 = vpop.f32.mrf.mxu0
      %v801 = vadd.f32 0.0, %v800
      %v802 = vpop.f32.mrf.mxu0
      %v803 = vpop.f32.mrf.mxu0
      %v804 = vadd.f32 0.0, %v803
      %v805 = vpop.f32.mrf.mxu0
      %806 = vmatprep.mubr.bf16.mxu0 0
      %807 = vmatmul.mubr.bf16.gmra.mxu0 %v565
      %v808 = vpop.f32.mrf.mxu0
      %v809 = vadd.f32 0.0, %v808
      %v810 = vpop.f32.mrf.mxu0
      %v811 = vpop.f32.mrf.mxu0
      %v812 = vadd.f32 0.0, %v811
      %v813 = vpop.f32.mrf.mxu0
      %814 = vmatprep.mubr.bf16.mxu0 0
      %815 = vmatmul.mubr.bf16.gmra.mxu0 %v568
      %v816 = vpop.f32.mrf.mxu0
      %v817 = vadd.f32 0.0, %v816
      %v818 = vpop.f32.mrf.mxu0
      %v819 = vpop.f32.mrf.mxu0
      %v820 = vadd.f32 0.0, %v819
      %v821 = vpop.f32.mrf.mxu0
      %822 = vmatprep.mubr.bf16.mxu0 0
      %823 = vmatmul.mubr.bf16.gmra.mxu0 %v571
      %v824 = vpop.f32.mrf.mxu0
      %v825 = vadd.f32 0.0, %v824
      %v826 = vpop.f32.mrf.mxu0
      %v827 = vpop.f32.mrf.mxu0
      %v828 = vadd.f32 0.0, %v827
      %v829 = vpop.f32.mrf.mxu0
      %830 = vmatprep.mubr.bf16.mxu0 0
      %831 = vmatmul.mubr.bf16.gmra.mxu0 %v574
      %v832 = vpop.f32.mrf.mxu0
      %v833 = vadd.f32 0.0, %v832
      %v834 = vpop.f32.mrf.mxu0
      %v835 = vpop.f32.mrf.mxu0
      %v836 = vadd.f32 0.0, %v835
      %v837 = vpop.f32.mrf.mxu0
      %838 = vmatprep.mubr.bf16.mxu0 0
      %839 = vmatmul.mubr.bf16.gmra.mxu0 %v577
      %v840 = vpop.f32.mrf.mxu0
      %v841 = vadd.f32 0.0, %v840
      %v842 = vpop.f32.mrf.mxu0
      %v843 = vpop.f32.mrf.mxu0
      %v844 = vadd.f32 0.0, %v843
      %v845 = vpop.f32.mrf.mxu0
      %846 = vmatprep.mubr.bf16.mxu0 0
      %847 = vmatmul.mubr.bf16.gmra.mxu0 %v580
      %v848 = vpop.f32.mrf.mxu0
      %v849 = vadd.f32 0.0, %v848
      %v850 = vpop.f32.mrf.mxu0
      %v851 = vpop.f32.mrf.mxu0
      %v852 = vadd.f32 0.0, %v851
      %v853 = vpop.f32.mrf.mxu0
      %854 = vmatprep.mubr.bf16.mxu0 0
      %855 = vmatmul.mubr.bf16.gmra.mxu0 %v583
      %v856 = vpop.f32.mrf.mxu0
      %v857 = vadd.f32 0.0, %v856
      %v858 = vpop.f32.mrf.mxu0
      %v859 = vpop.f32.mrf.mxu0
      %v860 = vadd.f32 0.0, %v859
      %v861 = vpop.f32.mrf.mxu0
      %862 = vmatprep.mubr.bf16.mxu0 0
      %863 = vmatmul.mubr.bf16.gmra.mxu0 %v586
      %v864 = vpop.f32.mrf.mxu0
      %v865 = vadd.f32 0.0, %v864
      %v866 = vpop.f32.mrf.mxu0
      %v867 = vpop.f32.mrf.mxu0
      %v868 = vadd.f32 0.0, %v867
      %v869 = vpop.f32.mrf.mxu0
      %870 = vmatprep.mubr.bf16.mxu0 0
      %871 = vmatmul.mubr.bf16.gmra.mxu0 %v589
      %v872 = vpop.f32.mrf.mxu0
      %v873 = vadd.f32 0.0, %v872
      %v874 = vpop.f32.mrf.mxu0
      %v875 = vpop.f32.mrf.mxu0
      %v876 = vadd.f32 0.0, %v875
      %v877 = vpop.f32.mrf.mxu0
      %878 = vmatprep.mubr.bf16.mxu0 0
      %879 = vmatmul.mubr.bf16.gmra.mxu0 %v592
      %v880 = vpop.f32.mrf.mxu0
      %v881 = vadd.f32 0.0, %v880
      %v882 = vpop.f32.mrf.mxu0
      %v883 = vpop.f32.mrf.mxu0
      %v884 = vadd.f32 0.0, %v883
      %v885 = vpop.f32.mrf.mxu0
      %886 = vdwg.mxu0
      %v887 = vpack.c.bf16 %v636, %v633
      %v888 = vpack.c.bf16 %v644, %v641
      %v889 = vpack.c.bf16 %v652, %v649
      %v890 = vpack.c.bf16 %v660, %v657
      %v891 = vpack.c.bf16 %v668, %v665
      %v892 = vpack.c.bf16 %v676, %v673
      %v893 = vpack.c.bf16 %v684, %v681
      %v894 = vpack.c.bf16 %v692, %v689
      %v895 = vpack.c.bf16 %v700, %v697
      %v896 = vpack.c.bf16 %v708, %v705
      %v897 = vpack.c.bf16 %v716, %v713
      %v898 = vpack.c.bf16 %v724, %v721
      %v899 = vpack.c.bf16 %v732, %v729
      %v900 = vpack.c.bf16 %v740, %v737
      %v901 = vpack.c.bf16 %v748, %v745
      %v902 = vpack.c.bf16 %v756, %v753
      %v903 = vpack.c.bf16 %v764, %v761
      %v904 = vpack.c.bf16 %v772, %v769
      %v905 = vpack.c.bf16 %v780, %v777
      %v906 = vpack.c.bf16 %v788, %v785
      %v907 = vpack.c.bf16 %v796, %v793
      %v908 = vpack.c.bf16 %v804, %v801
      %v909 = vpack.c.bf16 %v812, %v809
      %v910 = vpack.c.bf16 %v820, %v817
      %v911 = vpack.c.bf16 %v828, %v825
      %v912 = vpack.c.bf16 %v836, %v833
      %v913 = vpack.c.bf16 %v844, %v841
      %v914 = vpack.c.bf16 %v852, %v849
      %v915 = vpack.c.bf16 %v860, %v857
      %v916 = vpack.c.bf16 %v868, %v865
      %v917 = vpack.c.bf16 %v876, %v873
      %v918 = vpack.c.bf16 %v884, %v881
      %v951 = vunpack.c.l.b16 %v887
      %v952 = vunpack.c.h.b16 %v887
      %v953 = vunpack.c.l.b16 %v888
      %v954 = vunpack.c.h.b16 %v888
      %v955 = vunpack.c.l.b16 %v889
      %v956 = vunpack.c.h.b16 %v889
      %v957 = vunpack.c.l.b16 %v890
      %v958 = vunpack.c.h.b16 %v890
      %v959 = vunpack.c.l.b16 %v891
      %v960 = vunpack.c.h.b16 %v891
      %v961 = vunpack.c.l.b16 %v892
      %v962 = vunpack.c.h.b16 %v892
      %v963 = vunpack.c.l.b16 %v893
      %v964 = vunpack.c.h.b16 %v893
      %v965 = vunpack.c.l.b16 %v894
      %v966 = vunpack.c.h.b16 %v894
      %v967 = vunpack.c.l.b16 %v895
      %v968 = vunpack.c.h.b16 %v895
      %v969 = vunpack.c.l.b16 %v896
      %v970 = vunpack.c.h.b16 %v896
      %v971 = vunpack.c.l.b16 %v897
      %v972 = vunpack.c.h.b16 %v897
      %v973 = vunpack.c.l.b16 %v898
      %v974 = vunpack.c.h.b16 %v898
      %v975 = vunpack.c.l.b16 %v899
      %v976 = vunpack.c.h.b16 %v899
      %v977 = vunpack.c.l.b16 %v900
      %v978 = vunpack.c.h.b16 %v900
      %v979 = vunpack.c.l.b16 %v901
      %v980 = vunpack.c.h.b16 %v901
      %v981 = vunpack.c.l.b16 %v902
      %v982 = vunpack.c.h.b16 %v902
      %v983 = vunpack.c.l.b16 %v903
      %v984 = vunpack.c.h.b16 %v903
      %v985 = vunpack.c.l.b16 %v904
      %v986 = vunpack.c.h.b16 %v904
      %v987 = vunpack.c.l.b16 %v905
      %v988 = vunpack.c.h.b16 %v905
      %v989 = vunpack.c.l.b16 %v906
      %v990 = vunpack.c.h.b16 %v906
      %v991 = vunpack.c.l.b16 %v907
      %v992 = vunpack.c.h.b16 %v907
      %v993 = vunpack.c.l.b16 %v908
      %v994 = vunpack.c.h.b16 %v908
      %v995 = vunpack.c.l.b16 %v909
      %v996 = vunpack.c.h.b16 %v909
      %v997 = vunpack.c.l.b16 %v910
      %v998 = vunpack.c.h.b16 %v910
      %v999 = vunpack.c.l.b16 %v911
      %v1000 = vunpack.c.h.b16 %v911
      %v1001 = vunpack.c.l.b16 %v912
      %v1002 = vunpack.c.h.b16 %v912
      %v1003 = vunpack.c.l.b16 %v913
      %v1004 = vunpack.c.h.b16 %v913
      %v1005 = vunpack.c.l.b16 %v914
      %v1006 = vunpack.c.h.b16 %v914
      %v1007 = vunpack.c.l.b16 %v915
      %v1008 = vunpack.c.h.b16 %v915
      %v1009 = vunpack.c.l.b16 %v916
      %v1010 = vunpack.c.h.b16 %v916
      %v1011 = vunpack.c.l.b16 %v917
      %v1012 = vunpack.c.h.b16 %v917
      %v1013 = vunpack.c.l.b16 %v918
      %v1014 = vunpack.c.h.b16 %v918
      %v1015 = vpack.c.b16 %v951, %v951
      %v1016 = vpack.c.b16 %v952, %v952
      %v1017 = vpack.c.b16 %v953, %v953
      %v1018 = vpack.c.b16 %v954, %v954
      %v1019 = vpack.c.b16 %v955, %v955
      %v1020 = vpack.c.b16 %v956, %v956
      %v1021 = vpack.c.b16 %v957, %v957
      %v1022 = vpack.c.b16 %v958, %v958
      %v1023 = vpack.c.b16 %v959, %v959
      %v1024 = vpack.c.b16 %v960, %v960
      %v1025 = vpack.c.b16 %v961, %v961
      %v1026 = vpack.c.b16 %v962, %v962
      %v1027 = vpack.c.b16 %v963, %v963
      %v1028 = vpack.c.b16 %v964, %v964
      %v1029 = vpack.c.b16 %v965, %v965
      %v1030 = vpack.c.b16 %v966, %v966
      %v1031 = vpack.c.b16 %v967, %v967
      %v1032 = vpack.c.b16 %v968, %v968
      %v1033 = vpack.c.b16 %v969, %v969
      %v1034 = vpack.c.b16 %v970, %v970
      %v1035 = vpack.c.b16 %v971, %v971
      %v1036 = vpack.c.b16 %v972, %v972
      %v1037 = vpack.c.b16 %v973, %v973
      %v1038 = vpack.c.b16 %v974, %v974
      %v1039 = vpack.c.b16 %v975, %v975
      %v1040 = vpack.c.b16 %v976, %v976
      %v1041 = vpack.c.b16 %v977, %v977
      %v1042 = vpack.c.b16 %v978, %v978
      %v1043 = vpack.c.b16 %v979, %v979
      %v1044 = vpack.c.b16 %v980, %v980
      %v1045 = vpack.c.b16 %v981, %v981
      %v1046 = vpack.c.b16 %v982, %v982
      %v1047 = vpack.c.b16 %v983, %v983
      %v1048 = vpack.c.b16 %v984, %v984
      %v1049 = vpack.c.b16 %v985, %v985
      %v1050 = vpack.c.b16 %v986, %v986
      %v1051 = vpack.c.b16 %v987, %v987
      %v1052 = vpack.c.b16 %v988, %v988
      %v1053 = vpack.c.b16 %v989, %v989
      %v1054 = vpack.c.b16 %v990, %v990
      %v1055 = vpack.c.b16 %v991, %v991
      %v1056 = vpack.c.b16 %v992, %v992
      %v1057 = vpack.c.b16 %v993, %v993
      %v1058 = vpack.c.b16 %v994, %v994
      %v1059 = vpack.c.b16 %v995, %v995
      %v1060 = vpack.c.b16 %v996, %v996
      %v1061 = vpack.c.b16 %v997, %v997
      %v1062 = vpack.c.b16 %v998, %v998
      %v1063 = vpack.c.b16 %v999, %v999
      %v1064 = vpack.c.b16 %v1000, %v1000
      %v1065 = vpack.c.b16 %v1001, %v1001
      %v1066 = vpack.c.b16 %v1002, %v1002
      %v1067 = vpack.c.b16 %v1003, %v1003
      %v1068 = vpack.c.b16 %v1004, %v1004
      %v1069 = vpack.c.b16 %v1005, %v1005
      %v1070 = vpack.c.b16 %v1006, %v1006
      %v1071 = vpack.c.b16 %v1007, %v1007
      %v1072 = vpack.c.b16 %v1008, %v1008
      %v1073 = vpack.c.b16 %v1009, %v1009
      %v1074 = vpack.c.b16 %v1010, %v1010
      %v1075 = vpack.c.b16 %v1011, %v1011
      %v1076 = vpack.c.b16 %v1012, %v1012
      %v1077 = vpack.c.b16 %v1013, %v1013
      %v1078 = vpack.c.b16 %v1014, %v1014
      %vm1143 = vcmask 11264
      %1144 = vst.msk [vmem:[%s257] sm:$0xf] %vm1143, %v1015
      %1145 = vst.msk [vmem:[%s257 + $0x4] sm:$0xf] %vm1143, %v1016
      %1146 = vst.msk [vmem:[%s257 + $0x8] sm:$0xf] %vm1143, %v1017
      %1147 = vst.msk [vmem:[%s257 + $0xc] sm:$0xf] %vm1143, %v1018
      %1148 = vst.msk [vmem:[%s257 + $0x10] sm:$0xf] %vm1143, %v1019
      %1149 = vst.msk [vmem:[%s257 + $0x14] sm:$0xf] %vm1143, %v1020
      %1150 = vst.msk [vmem:[%s257 + $0x18] sm:$0xf] %vm1143, %v1021
      %1151 = vst.msk [vmem:[%s257 + $0x1c] sm:$0xf] %vm1143, %v1022
      %1152 = vst.msk [vmem:[%s257 + $0x20] sm:$0xf] %vm1143, %v1023
      %1153 = vst.msk [vmem:[%s257 + $0x24] sm:$0xf] %vm1143, %v1024
      %1154 = vst.msk [vmem:[%s257 + $0x28] sm:$0xf] %vm1143, %v1025
      %1155 = vst.msk [vmem:[%s257 + $0x2c] sm:$0xf] %vm1143, %v1026
      %1156 = vst.msk [vmem:[%s257 + $0x30] sm:$0xf] %vm1143, %v1027
      %1157 = vst.msk [vmem:[%s257 + $0x34] sm:$0xf] %vm1143, %v1028
      %1158 = vst.msk [vmem:[%s257 + $0x38] sm:$0xf] %vm1143, %v1029
      %1159 = vst.msk [vmem:[%s257 + $0x3c] sm:$0xf] %vm1143, %v1030
      %1160 = vst.msk [vmem:[%s257 + $0x40] sm:$0xf] %vm1143, %v1031
      %1161 = vst.msk [vmem:[%s257 + $0x44] sm:$0xf] %vm1143, %v1032
      %1162 = vst.msk [vmem:[%s257 + $0x48] sm:$0xf] %vm1143, %v1033
      %1163 = vst.msk [vmem:[%s257 + $0x4c] sm:$0xf] %vm1143, %v1034
      %1164 = vst.msk [vmem:[%s257 + $0x50] sm:$0xf] %vm1143, %v1035
      %1165 = vst.msk [vmem:[%s257 + $0x54] sm:$0xf] %vm1143, %v1036
      %1166 = vst.msk [vmem:[%s257 + $0x58] sm:$0xf] %vm1143, %v1037
      %1167 = vst.msk [vmem:[%s257 + $0x5c] sm:$0xf] %vm1143, %v1038
      %1168 = vst.msk [vmem:[%s257 + $0x60] sm:$0xf] %vm1143, %v1039
      %1169 = vst.msk [vmem:[%s257 + $0x64] sm:$0xf] %vm1143, %v1040
      %1170 = vst.msk [vmem:[%s257 + $0x68] sm:$0xf] %vm1143, %v1041
      %1171 = vst.msk [vmem:[%s257 + $0x6c] sm:$0xf] %vm1143, %v1042
      %1172 = vst.msk [vmem:[%s257 + $0x70] sm:$0xf] %vm1143, %v1043
      %1173 = vst.msk [vmem:[%s257 + $0x74] sm:$0xf] %vm1143, %v1044
      %1174 = vst.msk [vmem:[%s257 + $0x78] sm:$0xf] %vm1143, %v1045
      %1175 = vst.msk [vmem:[%s257 + $0x7c] sm:$0xf] %vm1143, %v1046
      %1176 = vst.msk [vmem:[%s257 + $0x80] sm:$0xf] %vm1143, %v1047
      %1177 = vst.msk [vmem:[%s257 + $0x84] sm:$0xf] %vm1143, %v1048
      %1178 = vst.msk [vmem:[%s257 + $0x88] sm:$0xf] %vm1143, %v1049
      %1179 = vst.msk [vmem:[%s257 + $0x8c] sm:$0xf] %vm1143, %v1050
      %1180 = vst.msk [vmem:[%s257 + $0x90] sm:$0xf] %vm1143, %v1051
      %1181 = vst.msk [vmem:[%s257 + $0x94] sm:$0xf] %vm1143, %v1052
      %1182 = vst.msk [vmem:[%s257 + $0x98] sm:$0xf] %vm1143, %v1053
      %1183 = vst.msk [vmem:[%s257 + $0x9c] sm:$0xf] %vm1143, %v1054
      %1184 = vst.msk [vmem:[%s257 + $0xa0] sm:$0xf] %vm1143, %v1055
      %1185 = vst.msk [vmem:[%s257 + $0xa4] sm:$0xf] %vm1143, %v1056
      %1186 = vst.msk [vmem:[%s257 + $0xa8] sm:$0xf] %vm1143, %v1057
      %1187 = vst.msk [vmem:[%s257 + $0xac] sm:$0xf] %vm1143, %v1058
      %1188 = vst.msk [vmem:[%s257 + $0xb0] sm:$0xf] %vm1143, %v1059
      %1189 = vst.msk [vmem:[%s257 + $0xb4] sm:$0xf] %vm1143, %v1060
      %1190 = vst.msk [vmem:[%s257 + $0xb8] sm:$0xf] %vm1143, %v1061
      %1191 = vst.msk [vmem:[%s257 + $0xbc] sm:$0xf] %vm1143, %v1062
      %1192 = vst.msk [vmem:[%s257 + $0xc0] sm:$0xf] %vm1143, %v1063
      %1193 = vst.msk [vmem:[%s257 + $0xc4] sm:$0xf] %vm1143, %v1064
      %1194 = vst.msk [vmem:[%s257 + $0xc8] sm:$0xf] %vm1143, %v1065
      %1195 = vst.msk [vmem:[%s257 + $0xcc] sm:$0xf] %vm1143, %v1066
      %1196 = vst.msk [vmem:[%s257 + $0xd0] sm:$0xf] %vm1143, %v1067
      %1197 = vst.msk [vmem:[%s257 + $0xd4] sm:$0xf] %vm1143, %v1068
      %1198 = vst.msk [vmem:[%s257 + $0xd8] sm:$0xf] %vm1143, %v1069
      %1199 = vst.msk [vmem:[%s257 + $0xdc] sm:$0xf] %vm1143, %v1070
      %1200 = vst.msk [vmem:[%s257 + $0xe0] sm:$0xf] %vm1143, %v1071
      %1201 = vst.msk [vmem:[%s257 + $0xe4] sm:$0xf] %vm1143, %v1072
      %1202 = vst.msk [vmem:[%s257 + $0xe8] sm:$0xf] %vm1143, %v1073
      %1203 = vst.msk [vmem:[%s257 + $0xec] sm:$0xf] %vm1143, %v1074
      %1204 = vst.msk [vmem:[%s257 + $0xf0] sm:$0xf] %vm1143, %v1075
      %1205 = vst.msk [vmem:[%s257 + $0xf4] sm:$0xf] %vm1143, %v1076
      %1206 = vst.msk [vmem:[%s257 + $0xf8] sm:$0xf] %vm1143, %v1077
      %1207 = vst.msk [vmem:[%s257 + $0xfc] sm:$0xf] %vm1143, %v1078
      %vm1208 = vcmask 15360
      %v1209 = vsel %vm1208, %v633, 0.0
      %v1210 = vsel %vm1208, %v636, 0.0
      %v1211 = vadd.f32 %v1209, %v1210
      %v1212 = vsel %vm1208, %v641, 0.0
      %v1213 = vadd.f32 %v1211, %v1212
      %v1214 = vsel %vm1208, %v644, 0.0
      %v1215 = vadd.f32 %v1213, %v1214
      %v1216 = vsel %vm1208, %v649, 0.0
      %v1217 = vadd.f32 %v1215, %v1216
      %v1218 = vsel %vm1208, %v652, 0.0
      %v1219 = vadd.f32 %v1217, %v1218
      %v1220 = vsel %vm1208, %v657, 0.0
      %v1221 = vadd.f32 %v1219, %v1220
      %v1222 = vsel %vm1208, %v660, 0.0
      %v1223 = vadd.f32 %v1221, %v1222
      %v1224 = vsel %vm1208, %v665, 0.0
      %v1225 = vadd.f32 %v1223, %v1224
      %v1226 = vsel %vm1208, %v668, 0.0
      %v1227 = vadd.f32 %v1225, %v1226
      %v1228 = vsel %vm1208, %v673, 0.0
      %v1229 = vadd.f32 %v1227, %v1228
      %v1230 = vsel %vm1208, %v676, 0.0
      %v1231 = vadd.f32 %v1229, %v1230
      %v1232 = vsel %vm1208, %v681, 0.0
      %v1233 = vadd.f32 %v1231, %v1232
      %v1234 = vsel %vm1208, %v684, 0.0
      %v1235 = vadd.f32 %v1233, %v1234
      %v1236 = vsel %vm1208, %v689, 0.0
      %v1237 = vadd.f32 %v1235, %v1236
      %v1238 = vsel %vm1208, %v692, 0.0
      %v1239 = vadd.f32 %v1237, %v1238
      %v1240 = vsel %vm1208, %v697, 0.0
      %v1241 = vadd.f32 %v1239, %v1240
      %v1242 = vsel %vm1208, %v700, 0.0
      %v1243 = vadd.f32 %v1241, %v1242
      %v1244 = vsel %vm1208, %v705, 0.0
      %v1245 = vadd.f32 %v1243, %v1244
      %v1246 = vsel %vm1208, %v708, 0.0
      %v1247 = vadd.f32 %v1245, %v1246
      %v1248 = vsel %vm1208, %v713, 0.0
      %v1249 = vadd.f32 %v1247, %v1248
      %v1250 = vsel %vm1208, %v716, 0.0
      %v1251 = vadd.f32 %v1249, %v1250
      %v1252 = vsel %vm1208, %v721, 0.0
      %v1253 = vadd.f32 %v1251, %v1252
      %v1254 = vsel %vm1208, %v724, 0.0
      %v1255 = vadd.f32 %v1253, %v1254
      %v1256 = vsel %vm1208, %v729, 0.0
      %v1257 = vadd.f32 %v1255, %v1256
      %v1258 = vsel %vm1208, %v732, 0.0
      %v1259 = vadd.f32 %v1257, %v1258
      %v1260 = vsel %vm1208, %v737, 0.0
      %v1261 = vadd.f32 %v1259, %v1260
      %v1262 = vsel %vm1208, %v740, 0.0
      %v1263 = vadd.f32 %v1261, %v1262
      %v1264 = vsel %vm1208, %v745, 0.0
      %v1265 = vadd.f32 %v1263, %v1264
      %v1266 = vsel %vm1208, %v748, 0.0
      %v1267 = vadd.f32 %v1265, %v1266
      %v1268 = vsel %vm1208, %v753, 0.0
      %v1269 = vadd.f32 %v1267, %v1268
      %v1270 = vsel %vm1208, %v756, 0.0
      %v1271 = vadd.f32 %v1269, %v1270
      %v1272 = vsel %vm1208, %v761, 0.0
      %v1273 = vadd.f32 %v1271, %v1272
      %v1274 = vsel %vm1208, %v764, 0.0
      %v1275 = vadd.f32 %v1273, %v1274
      %v1276 = vsel %vm1208, %v769, 0.0
      %v1277 = vadd.f32 %v1275, %v1276
      %v1278 = vsel %vm1208, %v772, 0.0
      %v1279 = vadd.f32 %v1277, %v1278
      %v1280 = vsel %vm1208, %v777, 0.0
      %v1281 = vadd.f32 %v1279, %v1280
      %v1282 = vsel %vm1208, %v780, 0.0
      %v1283 = vadd.f32 %v1281, %v1282
      %v1284 = vsel %vm1208, %v785, 0.0
      %v1285 = vadd.f32 %v1283, %v1284
      %v1286 = vsel %vm1208, %v788, 0.0
      %v1287 = vadd.f32 %v1285, %v1286
      %v1288 = vsel %vm1208, %v793, 0.0
      %v1289 = vadd.f32 %v1287, %v1288
      %v1290 = vsel %vm1208, %v796, 0.0
      %v1291 = vadd.f32 %v1289, %v1290
      %v1292 = vsel %vm1208, %v801, 0.0
      %v1293 = vadd.f32 %v1291, %v1292
      %v1294 = vsel %vm1208, %v804, 0.0
      %v1295 = vadd.f32 %v1293, %v1294
      %v1296 = vsel %vm1208, %v809, 0.0
      %v1297 = vadd.f32 %v1295, %v1296
      %v1298 = vsel %vm1208, %v812, 0.0
      %v1299 = vadd.f32 %v1297, %v1298
      %v1300 = vsel %vm1208, %v817, 0.0
      %v1301 = vadd.f32 %v1299, %v1300
      %v1302 = vsel %vm1208, %v820, 0.0
      %v1303 = vadd.f32 %v1301, %v1302
      %v1304 = vsel %vm1208, %v825, 0.0
      %v1305 = vadd.f32 %v1303, %v1304
      %v1306 = vsel %vm1208, %v828, 0.0
      %v1307 = vadd.f32 %v1305, %v1306
      %v1308 = vsel %vm1208, %v833, 0.0
      %v1309 = vadd.f32 %v1307, %v1308
      %v1310 = vsel %vm1208, %v836, 0.0
      %v1311 = vadd.f32 %v1309, %v1310
      %v1312 = vsel %vm1208, %v841, 0.0
      %v1313 = vadd.f32 %v1311, %v1312
      %v1314 = vsel %vm1208, %v844, 0.0
      %v1315 = vadd.f32 %v1313, %v1314
      %v1316 = vsel %vm1208, %v849, 0.0
      %v1317 = vadd.f32 %v1315, %v1316
      %v1318 = vsel %vm1208, %v852, 0.0
      %v1319 = vadd.f32 %v1317, %v1318
      %v1320 = vsel %vm1208, %v857, 0.0
      %v1321 = vadd.f32 %v1319, %v1320
      %v1322 = vsel %vm1208, %v860, 0.0
      %v1323 = vadd.f32 %v1321, %v1322
      %v1324 = vsel %vm1208, %v865, 0.0
      %v1325 = vadd.f32 %v1323, %v1324
      %v1326 = vsel %vm1208, %v868, 0.0
      %v1327 = vadd.f32 %v1325, %v1326
      %v1328 = vsel %vm1208, %v873, 0.0
      %v1329 = vadd.f32 %v1327, %v1328
      %v1330 = vsel %vm1208, %v876, 0.0
      %v1331 = vadd.f32 %v1329, %v1330
      %v1332 = vsel %vm1208, %v881, 0.0
      %v1333 = vadd.f32 %v1331, %v1332
      %v1334 = vsel %vm1208, %v884, 0.0
      %v1335 = vadd.f32 %v1333, %v1334
      %v1336 = vrot.slane %v1335, 4
      %v1337 = vadd.f32 %v1335, %v1336
      %v1338 = vrot.slane %v1337, 2
      %v1339 = vadd.f32 %v1337, %v1338
      %v1340 = vrot.slane %v1339, 1
      %v1341 = vadd.f32 %v1339, %v1340
      %vm1342 = vcmask 8192
      %1343 = vst.msk [vmem:[%s264] sm:$0x1] %vm1342, %v1341
      %v1344 = vmul.f32 %v633, %v633
      %v1345 = vmul.f32 %v636, %v636
      %v1346 = vmul.f32 %v641, %v641
      %v1347 = vmul.f32 %v644, %v644
      %v1348 = vmul.f32 %v649, %v649
      %v1349 = vmul.f32 %v652, %v652
      %v1350 = vmul.f32 %v657, %v657
      %v1351 = vmul.f32 %v660, %v660
      %v1352 = vmul.f32 %v665, %v665
      %v1353 = vmul.f32 %v668, %v668
      %v1354 = vmul.f32 %v673, %v673
      %v1355 = vmul.f32 %v676, %v676
      %v1356 = vmul.f32 %v681, %v681
      %v1357 = vmul.f32 %v684, %v684
      %v1358 = vmul.f32 %v689, %v689
      %v1359 = vmul.f32 %v692, %v692
      %v1360 = vmul.f32 %v697, %v697
      %v1361 = vmul.f32 %v700, %v700
      %v1362 = vmul.f32 %v705, %v705
      %v1363 = vmul.f32 %v708, %v708
      %v1364 = vmul.f32 %v713, %v713
      %v1365 = vmul.f32 %v716, %v716
      %v1366 = vmul.f32 %v721, %v721
      %v1367 = vmul.f32 %v724, %v724
      %v1368 = vmul.f32 %v729, %v729
      %v1369 = vmul.f32 %v732, %v732
      %v1370 = vmul.f32 %v737, %v737
      %v1371 = vmul.f32 %v740, %v740
      %v1372 = vmul.f32 %v745, %v745
      %v1373 = vmul.f32 %v748, %v748
      %v1374 = vmul.f32 %v753, %v753
      %v1375 = vmul.f32 %v756, %v756
      %v1376 = vmul.f32 %v761, %v761
      %v1377 = vmul.f32 %v764, %v764
      %v1378 = vmul.f32 %v769, %v769
      %v1379 = vmul.f32 %v772, %v772
      %v1380 = vmul.f32 %v777, %v777
      %v1381 = vmul.f32 %v780, %v780
      %v1382 = vmul.f32 %v785, %v785
      %v1383 = vmul.f32 %v788, %v788
      %v1384 = vmul.f32 %v793, %v793
      %v1385 = vmul.f32 %v796, %v796
      %v1386 = vmul.f32 %v801, %v801
      %v1387 = vmul.f32 %v804, %v804
      %v1388 = vmul.f32 %v809, %v809
      %v1389 = vmul.f32 %v812, %v812
      %v1390 = vmul.f32 %v817, %v817
      %v1391 = vmul.f32 %v820, %v820
      %v1392 = vmul.f32 %v825, %v825
      %v1393 = vmul.f32 %v828, %v828
      %v1394 = vmul.f32 %v833, %v833
      %v1395 = vmul.f32 %v836, %v836
      %v1396 = vmul.f32 %v841, %v841
      %v1397 = vmul.f32 %v844, %v844
      %v1398 = vmul.f32 %v849, %v849
      %v1399 = vmul.f32 %v852, %v852
      %v1400 = vmul.f32 %v857, %v857
      %v1401 = vmul.f32 %v860, %v860
      %v1402 = vmul.f32 %v865, %v865
      %v1403 = vmul.f32 %v868, %v868
      %v1404 = vmul.f32 %v873, %v873
      %v1405 = vmul.f32 %v876, %v876
      %v1406 = vmul.f32 %v881, %v881
      %v1407 = vmul.f32 %v884, %v884
      %v1408 = vsel %vm1208, %v1344, 0.0
      %v1409 = vsel %vm1208, %v1345, 0.0
      %v1410 = vadd.f32 %v1408, %v1409
      %v1411 = vsel %vm1208, %v1346, 0.0
      %v1412 = vadd.f32 %v1410, %v1411
      %v1413 = vsel %vm1208, %v1347, 0.0
      %v1414 = vadd.f32 %v1412, %v1413
      %v1415 = vsel %vm1208, %v1348, 0.0
      %v1416 = vadd.f32 %v1414, %v1415
      %v1417 = vsel %vm1208, %v1349, 0.0
      %v1418 = vadd.f32 %v1416, %v1417
      %v1419 = vsel %vm1208, %v1350, 0.0
      %v1420 = vadd.f32 %v1418, %v1419
      %v1421 = vsel %vm1208, %v1351, 0.0
      %v1422 = vadd.f32 %v1420, %v1421
      %v1423 = vsel %vm1208, %v1352, 0.0
      %v1424 = vadd.f32 %v1422, %v1423
      %v1425 = vsel %vm1208, %v1353, 0.0
      %v1426 = vadd.f32 %v1424, %v1425
      %v1427 = vsel %vm1208, %v1354, 0.0
      %v1428 = vadd.f32 %v1426, %v1427
      %v1429 = vsel %vm1208, %v1355, 0.0
      %v1430 = vadd.f32 %v1428, %v1429
      %v1431 = vsel %vm1208, %v1356, 0.0
      %v1432 = vadd.f32 %v1430, %v1431
      %v1433 = vsel %vm1208, %v1357, 0.0
      %v1434 = vadd.f32 %v1432, %v1433
      %v1435 = vsel %vm1208, %v1358, 0.0
      %v1436 = vadd.f32 %v1434, %v1435
      %v1437 = vsel %vm1208, %v1359, 0.0
      %v1438 = vadd.f32 %v1436, %v1437
      %v1439 = vsel %vm1208, %v1360, 0.0
      %v1440 = vadd.f32 %v1438, %v1439
      %v1441 = vsel %vm1208, %v1361, 0.0
      %v1442 = vadd.f32 %v1440, %v1441
      %v1443 = vsel %vm1208, %v1362, 0.0
      %v1444 = vadd.f32 %v1442, %v1443
      %v1445 = vsel %vm1208, %v1363, 0.0
      %v1446 = vadd.f32 %v1444, %v1445
      %v1447 = vsel %vm1208, %v1364, 0.0
      %v1448 = vadd.f32 %v1446, %v1447
      %v1449 = vsel %vm1208, %v1365, 0.0
      %v1450 = vadd.f32 %v1448, %v1449
      %v1451 = vsel %vm1208, %v1366, 0.0
      %v1452 = vadd.f32 %v1450, %v1451
      %v1453 = vsel %vm1208, %v1367, 0.0
      %v1454 = vadd.f32 %v1452, %v1453
      %v1455 = vsel %vm1208, %v1368, 0.0
      %v1456 = vadd.f32 %v1454, %v1455
      %v1457 = vsel %vm1208, %v1369, 0.0
      %v1458 = vadd.f32 %v1456, %v1457
      %v1459 = vsel %vm1208, %v1370, 0.0
      %v1460 = vadd.f32 %v1458, %v1459
      %v1461 = vsel %vm1208, %v1371, 0.0
      %v1462 = vadd.f32 %v1460, %v1461
      %v1463 = vsel %vm1208, %v1372, 0.0
      %v1464 = vadd.f32 %v1462, %v1463
      %v1465 = vsel %vm1208, %v1373, 0.0
      %v1466 = vadd.f32 %v1464, %v1465
      %v1467 = vsel %vm1208, %v1374, 0.0
      %v1468 = vadd.f32 %v1466, %v1467
      %v1469 = vsel %vm1208, %v1375, 0.0
      %v1470 = vadd.f32 %v1468, %v1469
      %v1471 = vsel %vm1208, %v1376, 0.0
      %v1472 = vadd.f32 %v1470, %v1471
      %v1473 = vsel %vm1208, %v1377, 0.0
      %v1474 = vadd.f32 %v1472, %v1473
      %v1475 = vsel %vm1208, %v1378, 0.0
      %v1476 = vadd.f32 %v1474, %v1475
      %v1477 = vsel %vm1208, %v1379, 0.0
      %v1478 = vadd.f32 %v1476, %v1477
      %v1479 = vsel %vm1208, %v1380, 0.0
      %v1480 = vadd.f32 %v1478, %v1479
      %v1481 = vsel %vm1208, %v1381, 0.0
      %v1482 = vadd.f32 %v1480, %v1481
      %v1483 = vsel %vm1208, %v1382, 0.0
      %v1484 = vadd.f32 %v1482, %v1483
      %v1485 = vsel %vm1208, %v1383, 0.0
      %v1486 = vadd.f32 %v1484, %v1485
      %v1487 = vsel %vm1208, %v1384, 0.0
      %v1488 = vadd.f32 %v1486, %v1487
      %v1489 = vsel %vm1208, %v1385, 0.0
      %v1490 = vadd.f32 %v1488, %v1489
      %v1491 = vsel %vm1208, %v1386, 0.0
      %v1492 = vadd.f32 %v1490, %v1491
      %v1493 = vsel %vm1208, %v1387, 0.0
      %v1494 = vadd.f32 %v1492, %v1493
      %v1495 = vsel %vm1208, %v1388, 0.0
      %v1496 = vadd.f32 %v1494, %v1495
      %v1497 = vsel %vm1208, %v1389, 0.0
      %v1498 = vadd.f32 %v1496, %v1497
      %v1499 = vsel %vm1208, %v1390, 0.0
      %v1500 = vadd.f32 %v1498, %v1499
      %v1501 = vsel %vm1208, %v1391, 0.0
      %v1502 = vadd.f32 %v1500, %v1501
      %v1503 = vsel %vm1208, %v1392, 0.0
      %v1504 = vadd.f32 %v1502, %v1503
      %v1505 = vsel %vm1208, %v1393, 0.0
      %v1506 = vadd.f32 %v1504, %v1505
      %v1507 = vsel %vm1208, %v1394, 0.0
      %v1508 = vadd.f32 %v1506, %v1507
      %v1509 = vsel %vm1208, %v1395, 0.0
      %v1510 = vadd.f32 %v1508, %v1509
      %v1511 = vsel %vm1208, %v1396, 0.0
      %v1512 = vadd.f32 %v1510, %v1511
      %v1513 = vsel %vm1208, %v1397, 0.0
      %v1514 = vadd.f32 %v1512, %v1513
      %v1515 = vsel %vm1208, %v1398, 0.0
      %v1516 = vadd.f32 %v1514, %v1515
      %v1517 = vsel %vm1208, %v1399, 0.0
      %v1518 = vadd.f32 %v1516, %v1517
      %v1519 = vsel %vm1208, %v1400, 0.0
      %v1520 = vadd.f32 %v1518, %v1519
      %v1521 = vsel %vm1208, %v1401, 0.0
      %v1522 = vadd.f32 %v1520, %v1521
      %v1523 = vsel %vm1208, %v1402, 0.0
      %v1524 = vadd.f32 %v1522, %v1523
      %v1525 = vsel %vm1208, %v1403, 0.0
      %v1526 = vadd.f32 %v1524, %v1525
      %v1527 = vsel %vm1208, %v1404, 0.0
      %v1528 = vadd.f32 %v1526, %v1527
      %v1529 = vsel %vm1208, %v1405, 0.0
      %v1530 = vadd.f32 %v1528, %v1529
      %v1531 = vsel %vm1208, %v1406, 0.0
      %v1532 = vadd.f32 %v1530, %v1531
      %v1533 = vsel %vm1208, %v1407, 0.0
      %v1534 = vadd.f32 %v1532, %v1533
      %v1535 = vrot.slane %v1534, 4
      %v1536 = vadd.f32 %v1534, %v1535
      %v1537 = vrot.slane %v1536, 2
      %v1538 = vadd.f32 %v1536, %v1537
      %v1539 = vrot.slane %v1538, 1
      %v1540 = vadd.f32 %v1538, %v1539
      %1541 = vst.msk [vmem:[%s270] sm:$0x1] %vm1342, %v1540
      %s1542 = smul.u32 64, %s20
      %p1543 = scmp.lt.s32.totalorder %s1542, 127
      %s1544 = scalar_select %p1543, %s1542, 127
      %p1545 = scmp.lt.s32.totalorder %s21, 0
      %s1546 = scalar_select %p1545, %s21, 0
      %s1547 = sadd.s32 %s1546, %s1544
      %s1548 = smul.addr %s1547, 4
      %s1549 = scalar_lea.vmem %s2, %s1548
      %p1550 = scmp.lt.s32.totalorder %s20, 1
      %s1551 = scalar_select %p1550, %s20, 1
      %p1552 = scmp.lt.s32.totalorder %s21, 0
      %s1553 = scalar_select %p1552, %s21, 0
      %s1554 = sadd.s32 %s1553, %s1551
      %s1555 = scalar_lea.vmem %s3, %s1554
      %p1556 = scmp.lt.s32.totalorder %s20, 1
      %s1557 = scalar_select %p1556, %s20, 1
      %p1558 = scmp.lt.s32.totalorder %s21, 0
      %s1559 = scalar_select %p1558, %s21, 0
      %s1560 = sadd.s32 %s1559, %s1557
      %s1561 = scalar_lea.vmem %s4, %s1560
      // Predicated region
      $region29: #{res_layer_forward.16} parent=27 // pred_check
        %p1562 = pneg %p100
      $region30: #{res_layer_forward.16} parent=27 // pred_check_branch
        %1564 = sbr.rel (%p1562) target = $region32
      $region31: #{res_layer_forward.16} parent=27 // pred_region
        %s1565 = smul.u32 64, %s20
      $region32: #{res_layer_forward.16} parent=27 // pred_fallthru
        _
      // Predicated region
      $region33: #{res_layer_forward.16} parent=27 // pred_check
        %p1566 = pneg %p128
      $region34: #{res_layer_forward.16} parent=27 // pred_check_branch
        %1568 = sbr.rel (%p1566) target = $region36
      $region35: #{res_layer_forward.16} parent=27 // pred_region
        _
      $region36: #{res_layer_forward.16} parent=27 // pred_fallthru
        _
      // Predicated region
      $region37: #{res_layer_forward.16} parent=27 // pred_check
        %p1569 = pneg %p156
      $region38: #{res_layer_forward.16} parent=27 // pred_check_branch
        %1571 = sbr.rel (%p1569) target = $region40
      $region39: #{res_layer_forward.16} parent=27 // pred_region
        _
      $region40: #{res_layer_forward.16} parent=27 // pred_fallthru
        _
    $region28: #{res_layer_forward.16} parent=5 // pred_fallthru
      _
    %p1572 = scmp.le.s32.totalorder 2, %s11
    // Predicated region
    $region41: #{res_layer_forward.16} parent=5 // pred_check
      %p1573 = pneg %p1572
    $region42: #{res_layer_forward.16} parent=5 // pred_check_branch
      %1575 = sbr.rel (%p1573) target = $region44
    $region43: #{res_layer_forward.16} parent=5 // pred_region
      %s1576 = ssub.s32 %s11, 2
      // Predicated region
      $region45: #{res_layer_forward.16} parent=43 // pred_check
        %p1577 = pneg %p106
      $region46: #{res_layer_forward.16} parent=43 // pred_check_branch
        %1579 = sbr.rel (%p1577) target = $region48
      $region47: #{res_layer_forward.16} parent=43 // pred_region
        %s1580 = smul.u32 64, %s22
        %p1581 = scmp.lt.s32.totalorder %s1580, 127
        %s1582 = scalar_select %p1581, %s1580, 127
        %p1583 = scmp.lt.s32.totalorder %s23, 0
        %s1584 = scalar_select %p1583, %s23, 0
        %s1585 = sadd.s32 %s1584, %s1582
        %s1586 = smul.addr %s1585, 4
        %s1587 = scalar_lea.vmem %s2, %s1586
      $region48: #{res_layer_forward.16} parent=43 // pred_fallthru
        _
      // Predicated region
      $region49: #{res_layer_forward.16} parent=43 // pred_check
        %p1588 = pneg %p134
      $region50: #{res_layer_forward.16} parent=43 // pred_check_branch
        %1590 = sbr.rel (%p1588) target = $region52
      $region51: #{res_layer_forward.16} parent=43 // pred_region
        %p1591 = scmp.lt.s32.totalorder %s22, 1
        %s1592 = scalar_select %p1591, %s22, 1
        %p1593 = scmp.lt.s32.totalorder %s23, 0
        %s1594 = scalar_select %p1593, %s23, 0
        %s1595 = sadd.s32 %s1594, %s1592
        %s1596 = scalar_lea.vmem %s3, %s1595
      $region52: #{res_layer_forward.16} parent=43 // pred_fallthru
        _
      // Predicated region
      $region53: #{res_layer_forward.16} parent=43 // pred_check
        %p1597 = pneg %p162
      $region54: #{res_layer_forward.16} parent=43 // pred_check_branch
        %1599 = sbr.rel (%p1597) target = $region56
      $region55: #{res_layer_forward.16} parent=43 // pred_region
        %p1600 = scmp.lt.s32.totalorder %s22, 1
        %s1601 = scalar_select %p1600, %s22, 1
        %p1602 = scmp.lt.s32.totalorder %s23, 0
        %s1603 = scalar_select %p1602, %s23, 0
        %s1604 = sadd.s32 %s1603, %s1601
        %s1605 = scalar_lea.vmem %s4, %s1604
      $region56: #{res_layer_forward.16} parent=43 // pred_fallthru
        _
    $region44: #{res_layer_forward.16} parent=5 // pred_fallthru
      _
  $region6: #{res_layer_forward.16} parent=0 // loop_footer
    %s15 = sadd.s32 1, %s11
  $region7: #{res_layer_forward.16} parent=0 // loop_footer_branch
    %10 = sbr.rel target = $region3
  $region8: #{res_layer_forward.16} parent=0 // loop_exit
    _

// kernel: res_layer_forward.18
$region0: #{res_layer_forward.18}
  #allocation0 [shape = 'u32[]', space=smem, size = 0x4, offset = 0x4, fixed_abs, tag = 'smem constant byte address 0x4 - core index']
  #allocation1 [shape = 'u32[144,128]{1,0:T(1,128)}', space=vmem, size = 0x12000, scoped, tag = 'internal scratch']
  %s0 = inlined_call_operand.vmem [shape: bf16[8,512], index: 0, kind: input, shape index: {}]
  %s1 = inlined_call_operand.vmem [shape: bf16[8,512], index: 1, kind: input, shape index: {}]
  %s2 = inlined_call_operand.vmem [shape: f32[1,512], index: 2, kind: input, shape index: {}]
  %s3 = inlined_call_operand.vmem [shape: f32[1,512], index: 3, kind: input, shape index: {}]
  %s4 = inlined_call_operand.vmem [shape: f32[1,512], index: 4, kind: input, shape index: {}]
  %s5 = inlined_call_operand.vmem [shape: f32[1,512], index: 5, kind: input, shape index: {}]
  %s6 = inlined_call_operand.vmem [shape: bf16[8,512], index: 6, kind: output, shape index: {}]
  %s7 = sld [smem:[#allocation0]]
  $region34: #{res_layer_forward.18} parent=0
    _
  %s9 = ssub.s32 1, %s7
  %s10 = scalar_select 0, %s9, %s7
  // Predicated region
  $region2: #{res_layer_forward.18} parent=0 // pred_check
    _
  $region3: #{res_layer_forward.18} parent=0 // pred_check_branch
    %12 = sbr.rel (0) target = $region5
  $region4: #{res_layer_forward.18} parent=0 // pred_region
    _
  $region5: #{res_layer_forward.18} parent=0 // pred_fallthru
    _
  // Predicated region
  $region6: #{res_layer_forward.18} parent=0 // pred_check
    _
  $region7: #{res_layer_forward.18} parent=0 // pred_check_branch
    %14 = sbr.rel (0) target = $region9
  $region8: #{res_layer_forward.18} parent=0 // pred_region
    _
  $region9: #{res_layer_forward.18} parent=0 // pred_fallthru
    _
  // Predicated region
  $region10: #{res_layer_forward.18} parent=0 // pred_check
    _
  $region11: #{res_layer_forward.18} parent=0 // pred_check_branch
    %16 = sbr.rel (0) target = $region13
  $region12: #{res_layer_forward.18} parent=0 // pred_region
    _
  $region13: #{res_layer_forward.18} parent=0 // pred_fallthru
    _
  // Predicated region
  $region14: #{res_layer_forward.18} parent=0 // pred_check
    _
  $region15: #{res_layer_forward.18} parent=0 // pred_check_branch
    %18 = sbr.rel (0) target = $region17
  $region16: #{res_layer_forward.18} parent=0 // pred_region
    _
  $region17: #{res_layer_forward.18} parent=0 // pred_fallthru
    _
  // Predicated region
  $region18: #{res_layer_forward.18} parent=0 // pred_check
    _
  $region19: #{res_layer_forward.18} parent=0 // pred_check_branch
    %20 = sbr.rel (0) target = $region21
  $region20: #{res_layer_forward.18} parent=0 // pred_region
    _
  $region21: #{res_layer_forward.18} parent=0 // pred_fallthru
    _
  // Predicated region
  $region22: #{res_layer_forward.18} parent=0 // pred_check
    _
  $region23: #{res_layer_forward.18} parent=0 // pred_check_branch
    %22 = sbr.rel (0) target = $region25
  $region24: #{res_layer_forward.18} parent=0 // pred_region
    _
  $region25: #{res_layer_forward.18} parent=0 // pred_fallthru
    _
  %v23 = vld [vmem:[%s0] sm:$0xff]
  %v24 = vld [vmem:[%s0 + $0x8] sm:$0xff]
  %v25 = vunpack.c.l.bf16 %v23
  %v26 = vunpack.c.h.bf16 %v23
  %v27 = vunpack.c.l.bf16 %v24
  %v28 = vunpack.c.h.bf16 %v24
  %v29 = vld [vmem:[%s2] sm:$0xf]
  %v31 = vlaneseq
  %v32 = vshrl.u32 %v31, 7
  %v33 = vsub.s32 0, %v32
  %v34 = vrot.slane %v29, %v33
  %v35 = vlaneseq
  %v36 = vshrl.u32 %v35, 7
  %v37 = vsub.s32 1, %v36
  %v38 = vrot.slane %v29, %v37
  %v39 = vlaneseq
  %v40 = vshrl.u32 %v39, 7
  %v41 = vsub.s32 2, %v40
  %v42 = vrot.slane %v29, %v41
  %v43 = vlaneseq
  %v44 = vshrl.u32 %v43, 7
  %v45 = vsub.s32 3, %v44
  %v46 = vrot.slane %v29, %v45
  %v51 = vmul.f32 %v25, %v34
  %v52 = vmul.f32 %v26, %v38
  %v53 = vmul.f32 %v27, %v42
  %v54 = vmul.f32 %v28, %v46
  %v55 = vld [vmem:[%s3] sm:$0xf]
  %v57 = vlaneseq
  %v58 = vshrl.u32 %v57, 7
  %v59 = vsub.s32 0, %v58
  %v60 = vrot.slane %v55, %v59
  %v61 = vlaneseq
  %v62 = vshrl.u32 %v61, 7
  %v63 = vsub.s32 1, %v62
  %v64 = vrot.slane %v55, %v63
  %v65 = vlaneseq
  %v66 = vshrl.u32 %v65, 7
  %v67 = vsub.s32 2, %v66
  %v68 = vrot.slane %v55, %v67
  %v69 = vlaneseq
  %v70 = vshrl.u32 %v69, 7
  %v71 = vsub.s32 3, %v70
  %v72 = vrot.slane %v55, %v71
  %v77 = vadd.f32 %v51, %v60
  %v78 = vadd.f32 %v52, %v64
  %v79 = vadd.f32 %v53, %v68
  %v80 = vadd.f32 %v54, %v72
  %v81 = vld [vmem:[%s1] sm:$0xff]
  %v82 = vld [vmem:[%s1 + $0x8] sm:$0xff]
  %v83 = vunpack.c.l.bf16 %v81
  %v84 = vunpack.c.h.bf16 %v81
  %v85 = vunpack.c.l.bf16 %v82
  %v86 = vunpack.c.h.bf16 %v82
  %v87 = vld [vmem:[%s4] sm:$0xf]
  %v89 = vlaneseq
  %v90 = vshrl.u32 %v89, 7
  %v91 = vsub.s32 0, %v90
  %v92 = vrot.slane %v87, %v91
  %v93 = vlaneseq
  %v94 = vshrl.u32 %v93, 7
  %v95 = vsub.s32 1, %v94
  %v96 = vrot.slane %v87, %v95
  %v97 = vlaneseq
  %v98 = vshrl.u32 %v97, 7
  %v99 = vsub.s32 2, %v98
  %v100 = vrot.slane %v87, %v99
  %v101 = vlaneseq
  %v102 = vshrl.u32 %v101, 7
  %v103 = vsub.s32 3, %v102
  %v104 = vrot.slane %v87, %v103
  %v109 = vmul.f32 %v83, %v92
  %v110 = vmul.f32 %v84, %v96
  %v111 = vmul.f32 %v85, %v100
  %v112 = vmul.f32 %v86, %v104
  %v113 = vadd.f32 %v77, %v109
  %v114 = vadd.f32 %v78, %v110
  %v115 = vadd.f32 %v79, %v111
  %v116 = vadd.f32 %v80, %v112
  %v117 = vld [vmem:[%s5] sm:$0xf]
  %v119 = vlaneseq
  %v120 = vshrl.u32 %v119, 7
  %v121 = vsub.s32 0, %v120
  %v122 = vrot.slane %v117, %v121
  %v123 = vlaneseq
  %v124 = vshrl.u32 %v123, 7
  %v125 = vsub.s32 1, %v124
  %v126 = vrot.slane %v117, %v125
  %v127 = vlaneseq
  %v128 = vshrl.u32 %v127, 7
  %v129 = vsub.s32 2, %v128
  %v130 = vrot.slane %v117, %v129
  %v131 = vlaneseq
  %v132 = vshrl.u32 %v131, 7
  %v133 = vsub.s32 3, %v132
  %v134 = vrot.slane %v117, %v133
  %v139 = vadd.f32 %v113, %v122
  %v140 = vadd.f32 %v114, %v126
  %v141 = vadd.f32 %v115, %v130
  %v142 = vadd.f32 %v116, %v134
  %v143 = vmax.f32 %v139, 0.0
  %v144 = vmax.f32 %v140, 0.0
  %v145 = vmax.f32 %v141, 0.0
  %v146 = vmax.f32 %v142, 0.0
  %v147 = vpack.c.bf16 %v143, %v143
  %v148 = vpack.c.bf16 %v144, %v144
  %v149 = vpack.c.bf16 %v145, %v145
  %v150 = vpack.c.bf16 %v146, %v146
  %v155 = vunpack.c.l.b16 %v147
  %v156 = vunpack.c.l.b16 %v148
  %v157 = vunpack.c.l.b16 %v149
  %v158 = vunpack.c.l.b16 %v150
  %v159 = vpack.c.b16 %v156, %v155
  %v160 = vpack.c.b16 %v158, %v157
  %163 = vst [vmem:[%s6] sm:$0xff] %v159
  %164 = vst [vmem:[%s6 + $0x8] sm:$0xff] %v160
  // Predicated region
  $region26: #{res_layer_forward.18} parent=0 // pred_check
    _
  $region27: #{res_layer_forward.18} parent=0 // pred_check_branch
    %166 = sbr.rel (0) target = $region29
  $region28: #{res_layer_forward.18} parent=0 // pred_region
    _
  $region29: #{res_layer_forward.18} parent=0 // pred_fallthru
    _
  // Predicated region
  $region30: #{res_layer_forward.18} parent=0 // pred_check
    _
  $region31: #{res_layer_forward.18} parent=0 // pred_check_branch
    %168 = sbr.rel (0) target = $region33
  $region32: #{res_layer_forward.18} parent=0 // pred_region
    _
  $region33: #{res_layer_forward.18} parent=0 // pred_fallthru
    _

// kernel: res_layer_forward.17
$region0: #{res_layer_forward.17}
  #allocation0 [shape = 'u32[]', space=smem, size = 0x4, offset = 0x4, fixed_abs, tag = 'smem constant byte address 0x4 - core index']
  #allocation1 [shape = 'u32[144,128]{1,0:T(1,128)}', space=vmem, size = 0x12000, scoped, tag = 'internal scratch']
  #allocation2 [shape = 'f32[64,8]{1,0:T(8,128)}', space=vmem, size = 0x8000, scoped, tag = 'scratch operand']
  %s0 = inlined_call_operand.vmem [shape: bf16[2,8,64,2], index: 0, kind: input, shape index: {}]
  %s1 = inlined_call_operand.vmem [shape: bf16[1,2,8], index: 1, kind: input, shape index: {}]
  %s2 = inlined_call_operand.vmem [shape: f32[1,2], index: 2, kind: input, shape index: {}]
  %s3 = inlined_call_operand.vmem [shape: f32[1,2], index: 3, kind: input, shape index: {}]
  %s4 = inlined_call_operand.vmem [shape: bf16[2,4,64,8], index: 4, kind: output, shape index: {0}]
  %s5 = inlined_call_operand.vmem [shape: f32[8,1,8], index: 5, kind: output, shape index: {1}]
  %s6 = inlined_call_operand.vmem [shape: f32[8,1,8], index: 6, kind: output, shape index: {2}]
  %7 = xla_tuple %s4, %s5, %s6
  %s8 = sld [smem:[#allocation0]]
  $region73: #{res_layer_forward.17} parent=0
    _
  %s10 = ssub.s32 1, %s8
  %s11 = scalar_select 0, %s10, %s8
  loop: start=0, step=1, limit=10
  $region2: #{res_layer_forward.17} parent=0 // loop_pre_header
    _
  $region3: #{res_layer_forward.17} parent=0 // loop_header
    %s13 = sphi 0, %s17
    %p14 = scmp.ge.s32.totalorder %s13, 10
    %s20 = sphi 0, %s39
    %s21 = sphi 0, %s35
    %s22 = sphi 0, %s31
    %s23 = sphi 0, %s20
    %s24 = sphi 0, %s21
    %s25 = sphi 0, %s22
    %s26 = sphi 0, %s23
    %s27 = sphi 0, %s24
    %s28 = sphi 0, %s25
    %s48 = sphi 0, %s50
    %s51 = sphi 0, %s48
    %s52 = sphi 0, %s51
    %s68 = sphi 0, %s52
    %s74 = sphi 0, %s76
    %s77 = sphi 0, %s74
    %s78 = sphi 0, %s77
    %s94 = sphi 0, %s78
    %s98 = sphi 0, %s98
    %s100 = sphi 0, %s98
    %s101 = sphi 0, %s100
    %s115 = sphi 0, %s101
    %s119 = sphi 0, %s119
    %s121 = sphi 0, %s119
    %s122 = sphi 0, %s121
    %s136 = sphi 0, %s122
    %s144 = sphi 0, %s146
    %s147 = sphi 0, %s144
    %s148 = sphi 0, %s147
    %s164 = sphi 0, %s148
    %s174 = sphi 0, %s176
    %s177 = sphi 0, %s174
    %s178 = sphi 0, %s177
    %s194 = sphi 0, %s178
    %s204 = sphi 0, %s206
    %s207 = sphi 0, %s204
    %s208 = sphi 0, %s207
    %s224 = sphi 0, %s208
  $region4: #{res_layer_forward.17} parent=0 // loop_header_branch
    %16 = sbr.rel (%p14) target = $region8
  $region5: #{res_layer_forward.17} parent=0 // loop_body
    %s18 = ssub.s32 %s13, 1
    %s19 = ssub.s32 %s13, 2
    %s29 = sadd.s32 1, %s22
    %p30 = scmp.ge.s32.totalorder %s29, 1
    %s31 = scalar_select %p30, 0, %s29
    %s32 = sadd.s32 1, %s21
    %s33 = scalar_select %p30, %s32, %s21
    %p34 = scmp.ge.s32.totalorder %s33, 4
    %s35 = scalar_select %p34, 0, %s33
    %s36 = sadd.s32 1, %s20
    %s37 = scalar_select %p34, %s36, %s20
    %p38 = scmp.ge.s32.totalorder %s37, 2
    %s39 = scalar_select %p38, 0, %s37
    %s40 = smul.u32 %s21, 2
    %s41 = sadd.s32 %s40, %s22
    %s42 = smul.u32 %s35, 2
    %s43 = sadd.s32 %s42, %s31
    %s44 = ssub.s32 %s20, %s39
    %s45 = ssub.s32 %s41, %s43
    %s46 = sor.u32 %s44, %s45
    %p47 = scmp.eq.s32.totalorder %s46, 0
    %s49 = sadd.s32 %s48, 1
    %s50 = scalar_select %p47, %s48, %s49
    %p53 = pneg %p47
    %p54 = scmp.eq.s32.totalorder %s13, 7
    %p55 = por %p53, %p54
    %p56 = scmp.ne.s32.totalorder %s48, %s51
    %p57 = scmp.eq.s32.totalorder %s13, 0
    %p58 = por %p56, %p57
    %p59 = scmp.ne.s32.totalorder %s48, %s51
    %p60 = scmp.eq.s32.totalorder %s18, 7
    %p61 = por %p59, %p60
    %p62 = scmp.ne.s32.totalorder %s51, %s52
    %p63 = scmp.eq.s32.totalorder %s18, 0
    %p64 = por %p62, %p63
    %p65 = scmp.ne.s32.totalorder %s51, %s52
    %p66 = scmp.eq.s32.totalorder %s19, 7
    %p67 = por %p65, %p66
    %p69 = scmp.ne.s32.totalorder %s52, %s68
    %p70 = scmp.eq.s32.totalorder %s19, 0
    %p71 = por %p69, %p70
    %s72 = ssub.s32 %s22, %s31
    %p73 = scmp.eq.s32.totalorder %s72, 0
    %s75 = sadd.s32 %s74, 1
    %s76 = scalar_select %p73, %s74, %s75
    %p79 = pneg %p73
    %p80 = scmp.eq.s32.totalorder %s13, 7
    %p81 = por %p79, %p80
    %p82 = scmp.ne.s32.totalorder %s74, %s77
    %p83 = scmp.eq.s32.totalorder %s13, 0
    %p84 = por %p82, %p83
    %p85 = scmp.ne.s32.totalorder %s74, %s77
    %p86 = scmp.eq.s32.totalorder %s18, 7
    %p87 = por %p85, %p86
    %p88 = scmp.ne.s32.totalorder %s77, %s78
    %p89 = scmp.eq.s32.totalorder %s18, 0
    %p90 = por %p88, %p89
    %p91 = scmp.ne.s32.totalorder %s77, %s78
    %p92 = scmp.eq.s32.totalorder %s19, 7
    %p93 = por %p91, %p92
    %p95 = scmp.ne.s32.totalorder %s78, %s94
    %p96 = scmp.eq.s32.totalorder %s19, 0
    %p97 = por %p95, %p96
    %s99 = sadd.s32 %s98, 1
    %p102 = scmp.eq.s32.totalorder %s13, 7
    %p103 = scmp.ne.s32.totalorder %s98, %s100
    %p104 = scmp.eq.s32.totalorder %s13, 0
    %p105 = por %p103, %p104
    %p106 = scmp.ne.s32.totalorder %s98, %s100
    %p107 = scmp.eq.s32.totalorder %s18, 7
    %p108 = por %p106, %p107
    %p109 = scmp.ne.s32.totalorder %s100, %s101
    %p110 = scmp.eq.s32.totalorder %s18, 0
    %p111 = por %p109, %p110
    %p112 = scmp.ne.s32.totalorder %s100, %s101
    %p113 = scmp.eq.s32.totalorder %s19, 7
    %p114 = por %p112, %p113
    %p116 = scmp.ne.s32.totalorder %s101, %s115
    %p117 = scmp.eq.s32.totalorder %s19, 0
    %p118 = por %p116, %p117
    %s120 = sadd.s32 %s119, 1
    %p123 = scmp.eq.s32.totalorder %s13, 7
    %p124 = scmp.ne.s32.totalorder %s119, %s121
    %p125 = scmp.eq.s32.totalorder %s13, 0
    %p126 = por %p124, %p125
    %p127 = scmp.ne.s32.totalorder %s119, %s121
    %p128 = scmp.eq.s32.totalorder %s18, 7
    %p129 = por %p127, %p128
    %p130 = scmp.ne.s32.totalorder %s121, %s122
    %p131 = scmp.eq.s32.totalorder %s18, 0
    %p132 = por %p130, %p131
    %p133 = scmp.ne.s32.totalorder %s121, %s122
    %p134 = scmp.eq.s32.totalorder %s19, 7
    %p135 = por %p133, %p134
    %p137 = scmp.ne.s32.totalorder %s122, %s136
    %p138 = scmp.eq.s32.totalorder %s19, 0
    %p139 = por %p137, %p138
    %s140 = ssub.s32 %s20, %s39
    %s141 = ssub.s32 %s21, %s35
    %s142 = sor.u32 %s140, %s141
    %p143 = scmp.eq.s32.totalorder %s142, 0
    %s145 = sadd.s32 %s144, 1
    %s146 = scalar_select %p143, %s144, %s145
    %p149 = pneg %p143
    %p150 = scmp.eq.s32.totalorder %s13, 7
    %p151 = por %p149, %p150
    %p152 = scmp.ne.s32.totalorder %s144, %s147
    %p153 = scmp.eq.s32.totalorder %s13, 0
    %p154 = por %p152, %p153
    %p155 = scmp.ne.s32.totalorder %s144, %s147
    %p156 = scmp.eq.s32.totalorder %s18, 7
    %p157 = por %p155, %p156
    %p158 = scmp.ne.s32.totalorder %s147, %s148
    %p159 = scmp.eq.s32.totalorder %s18, 0
    %p160 = por %p158, %p159
    %p161 = scmp.ne.s32.totalorder %s147, %s148
    %p162 = scmp.eq.s32.totalorder %s19, 7
    %p163 = por %p161, %p162
    %p165 = scmp.ne.s32.totalorder %s148, %s164
    %p166 = scmp.eq.s32.totalorder %s19, 0
    %p167 = por %p165, %p166
    %s168 = smul.u32 %s20, 4
    %s169 = sadd.s32 %s168, %s21
    %s170 = smul.u32 %s39, 4
    %s171 = sadd.s32 %s170, %s35
    %s172 = ssub.s32 %s169, %s171
    %p173 = scmp.eq.s32.totalorder %s172, 0
    %s175 = sadd.s32 %s174, 1
    %s176 = scalar_select %p173, %s174, %s175
    %p179 = pneg %p173
    %p180 = scmp.eq.s32.totalorder %s13, 7
    %p181 = por %p179, %p180
    %p182 = scmp.ne.s32.totalorder %s174, %s177
    %p183 = scmp.eq.s32.totalorder %s13, 0
    %p184 = por %p182, %p183
    %p185 = scmp.ne.s32.totalorder %s174, %s177
    %p186 = scmp.eq.s32.totalorder %s18, 7
    %p187 = por %p185, %p186
    %p188 = scmp.ne.s32.totalorder %s177, %s178
    %p189 = scmp.eq.s32.totalorder %s18, 0
    %p190 = por %p188, %p189
    %p191 = scmp.ne.s32.totalorder %s177, %s178
    %p192 = scmp.eq.s32.totalorder %s19, 7
    %p193 = por %p191, %p192
    %p195 = scmp.ne.s32.totalorder %s178, %s194
    %p196 = scmp.eq.s32.totalorder %s19, 0
    %p197 = por %p195, %p196
    %s198 = smul.u32 %s20, 4
    %s199 = sadd.s32 %s198, %s21
    %s200 = smul.u32 %s39, 4
    %s201 = sadd.s32 %s200, %s35
    %s202 = ssub.s32 %s199, %s201
    %p203 = scmp.eq.s32.totalorder %s202, 0
    %s205 = sadd.s32 %s204, 1
    %s206 = scalar_select %p203, %s204, %s205
    %p209 = pneg %p203
    %p210 = scmp.eq.s32.totalorder %s13, 7
    %p211 = por %p209, %p210
    %p212 = scmp.ne.s32.totalorder %s204, %s207
    %p213 = scmp.eq.s32.totalorder %s13, 0
    %p214 = por %p212, %p213
    %p215 = scmp.ne.s32.totalorder %s204, %s207
    %p216 = scmp.eq.s32.totalorder %s18, 7
    %p217 = por %p215, %p216
    %p218 = scmp.ne.s32.totalorder %s207, %s208
    %p219 = scmp.eq.s32.totalorder %s18, 0
    %p220 = por %p218, %p219
    %p221 = scmp.ne.s32.totalorder %s207, %s208
    %p222 = scmp.eq.s32.totalorder %s19, 7
    %p223 = por %p221, %p222
    %p225 = scmp.ne.s32.totalorder %s208, %s224
    %p226 = scmp.eq.s32.totalorder %s19, 0
    %p227 = por %p225, %p226
    %p228 = scmp.le.s32.totalorder 1, %s13
    %p229 = scmp.lt.s32.totalorder %s13, 9
    %p230 = pnand %p228, %p229
    %p231 = pneg %p230
    // Predicated region
    $region9: #{res_layer_forward.17} parent=5 // pred_check
      _
    $region10: #{res_layer_forward.17} parent=5 // pred_check_branch
      %233 = sbr.rel (%p230) target = $region12
    $region11: #{res_layer_forward.17} parent=5 // pred_region
      %s234 = ssub.s32 %s13, 1
      // Predicated region
      $region13: #{res_layer_forward.17} parent=11 // pred_check
        %p235 = pneg %p90
      $region14: #{res_layer_forward.17} parent=11 // pred_check_branch
        %237 = sbr.rel (%p235) target = $region16
      $region15: #{res_layer_forward.17} parent=11 // pred_region
        %p238 = scmp.lt.s32.totalorder %s25, 0
        %s239 = scalar_select %p238, %s25, 0
        %s240 = scalar_lea.vmem %s1, %s239
      $region16: #{res_layer_forward.17} parent=11 // pred_fallthru
        _
      // Predicated region
      $region17: #{res_layer_forward.17} parent=11 // pred_check
        %p241 = pneg %p111
      $region18: #{res_layer_forward.17} parent=11 // pred_check_branch
        %243 = sbr.rel (%p241) target = $region20
      $region19: #{res_layer_forward.17} parent=11 // pred_region
        _
      $region20: #{res_layer_forward.17} parent=11 // pred_fallthru
        _
      // Predicated region
      $region21: #{res_layer_forward.17} parent=11 // pred_check
        %p244 = pneg %p132
      $region22: #{res_layer_forward.17} parent=11 // pred_check_branch
        %246 = sbr.rel (%p244) target = $region24
      $region23: #{res_layer_forward.17} parent=11 // pred_region
        _
      $region24: #{res_layer_forward.17} parent=11 // pred_fallthru
        _
    $region12: #{res_layer_forward.17} parent=5 // pred_fallthru
      _
    %p247 = scmp.lt.s32.totalorder %s13, 8
    // Predicated region
    $region25: #{res_layer_forward.17} parent=5 // pred_check
      %p248 = pneg %p247
    $region26: #{res_layer_forward.17} parent=5 // pred_check_branch
      %250 = sbr.rel (%p248) target = $region28
    $region27: #{res_layer_forward.17} parent=5 // pred_region
      // Predicated region
      $region29: #{res_layer_forward.17} parent=27 // pred_check
        %p251 = pneg %p58
      $region30: #{res_layer_forward.17} parent=27 // pred_check_branch
        %253 = sbr.rel (%p251) target = $region32
      $region31: #{res_layer_forward.17} parent=27 // pred_region
        %s254 = smul.u32 %s21, 2
        %s255 = sadd.s32 %s254, %s22
        %p256 = scmp.lt.s32.totalorder %s20, 1
        %s257 = scalar_select %p256, %s20, 1
        %p258 = scmp.lt.s32.totalorder %s255, 7
        %s259 = scalar_select %p258, %s255, 7
        %s260 = smul.addr %s259, 8
        %s261 = smul.addr %s257, 64
        %s262 = sadd.s32 %s260, %s261
        %s263 = smul.addr %s262, 4
        %s264 = scalar_lea.vmem %s0, %s263
        %s265 = smul.u32 %s21, 2
        %s266 = sadd.s32 %s265, %s22
      $region32: #{res_layer_forward.17} parent=27 // pred_fallthru
        _
    $region28: #{res_layer_forward.17} parent=5 // pred_fallthru
      _
    %p267 = scmp.le.s32.totalorder 1, %s13
    %p268 = scmp.lt.s32.totalorder %s13, 9
    %p269 = pnand %p267, %p268
    %p270 = pneg %p269
    // Predicated region
    $region33: #{res_layer_forward.17} parent=5 // pred_check
      _
    $region34: #{res_layer_forward.17} parent=5 // pred_check_branch
      %272 = sbr.rel (%p269) target = $region36
    $region35: #{res_layer_forward.17} parent=5 // pred_region
      %s273 = ssub.s32 %s13, 1
      %s274 = smul.u32 %s24, 2
      %s275 = sadd.s32 %s274, %s25
      %p276 = scmp.lt.s32.totalorder %s23, 1
      %s277 = scalar_select %p276, %s23, 1
      %p278 = scmp.lt.s32.totalorder %s275, 7
      %s279 = scalar_select %p278, %s275, 7
      %s280 = smul.addr %s279, 8
      %s281 = smul.addr %s277, 64
      %s282 = sadd.s32 %s280, %s281
      %s283 = smul.addr %s282, 4
      %s284 = scalar_lea.vmem %s0, %s283
      %p285 = pneg %p64
      %p286 = pneg %p61
      %p287 = scmp.lt.s32.totalorder %s25, 0
      %s288 = scalar_select %p287, %s25, 0
      %s289 = scalar_lea.vmem %s1, %s288
      %p290 = pneg %p90
      %p291 = pneg %p87
      %p292 = pneg %p111
      %p293 = pneg %p108
      %p294 = pneg %p132
      %p295 = pneg %p129
      %p296 = pneg %p160
      %p297 = pneg %p157
      %p298 = scmp.lt.s32.totalorder %s23, 1
      %s299 = scalar_select %p298, %s23, 1
      %p300 = scmp.lt.s32.totalorder %s24, 3
      %s301 = scalar_select %p300, %s24, 3
      %s302 = smul.addr %s301, 8
      %s303 = smul.addr %s299, 32
      %s304 = sadd.s32 %s302, %s303
      %s305 = smul.addr %s304, 4
      %s306 = scalar_lea.vmem %s4, %s305
      %p307 = pneg %p190
      %p308 = pneg %p187
      %s309 = smul.u32 %s23, 4
      %s310 = sadd.s32 %s309, %s24
      %p311 = scmp.lt.s32.totalorder %s310, 7
      %s312 = scalar_select %p311, %s310, 7
      %s313 = scalar_lea.vmem %s5, %s312
      %p314 = pneg %p220
      %p315 = pneg %p217
      %s316 = smul.u32 %s23, 4
      %s317 = sadd.s32 %s316, %s24
      %p318 = scmp.lt.s32.totalorder %s317, 7
      %s319 = scalar_select %p318, %s317, 7
      %s320 = scalar_lea.vmem %s6, %s319
      %s321 = smul.u32 %s24, 2
      %s322 = sadd.s32 %s321, %s25
      %p323 = scmp.lt.s32.totalorder %s23, 1
      %s324 = scalar_select %p323, %s23, 1
      %p325 = scmp.lt.s32.totalorder %s322, 7
      %s326 = scalar_select %p325, %s322, 7
      %s327 = smul.addr %s326, 8
      %s328 = smul.addr %s324, 64
      %s329 = sadd.s32 %s327, %s328
      %s330 = smul.addr %s329, 4
      %s331 = scalar_lea.vmem %s0, %s330
      %s332 = smul.u32 %s24, 2
      %s333 = sadd.s32 %s332, %s25
      %p334 = scmp.lt.s32.totalorder %s25, 0
      %s335 = scalar_select %p334, %s25, 0
      %s336 = scalar_lea.vmem %s1, %s335
      %p337 = scmp.lt.s32.totalorder %s23, 1
      %s338 = scalar_select %p337, %s23, 1
      %p339 = scmp.lt.s32.totalorder %s24, 3
      %s340 = scalar_select %p339, %s24, 3
      %s341 = smul.addr %s340, 8
      %s342 = smul.addr %s338, 32
      %s343 = sadd.s32 %s341, %s342
      %s344 = smul.addr %s343, 4
      %s345 = scalar_lea.vmem %s4, %s344
      %s346 = smul.u32 %s23, 4
      %s347 = sadd.s32 %s346, %s24
      %p348 = scmp.lt.s32.totalorder %s347, 7
      %s349 = scalar_select %p348, %s347, 7
      %s350 = scalar_lea.vmem %s5, %s349
      %s351 = smul.u32 %s23, 4
      %s352 = sadd.s32 %s351, %s24
      %s353 = smul.u32 %s23, 4
      %s354 = sadd.s32 %s353, %s24
      %p355 = scmp.lt.s32.totalorder %s354, 7
      %s356 = scalar_select %p355, %s354, 7
      %s357 = scalar_lea.vmem %s6, %s356
      %s358 = smul.u32 %s23, 4
      %s359 = sadd.s32 %s358, %s24
      %p361 = scmp.eq.s32.totalorder %s25, 0
      // Predicated region
      $region37: #{res_layer_forward.17} parent=35 // pred_check
        %p362 = pneg %p361
      $region38: #{res_layer_forward.17} parent=35 // pred_check_branch
        %364 = sbr.rel (%p362) target = $region40
      $region39: #{res_layer_forward.17} parent=35 // pred_region
        %vm365 = vcmask 64512
        %366 = vst.msk [vmem:[#allocation2] sm:$0xff] %vm365, 0.0
        %367 = vst.msk [vmem:[#allocation2 + $0x8] sm:$0xff] %vm365, 0.0
        %368 = vst.msk [vmem:[#allocation2 + $0x10] sm:$0xff] %vm365, 0.0
        %369 = vst.msk [vmem:[#allocation2 + $0x18] sm:$0xff] %vm365, 0.0
        %370 = vst.msk [vmem:[#allocation2 + $0x20] sm:$0xff] %vm365, 0.0
        %371 = vst.msk [vmem:[#allocation2 + $0x28] sm:$0xff] %vm365, 0.0
        %372 = vst.msk [vmem:[#allocation2 + $0x30] sm:$0xff] %vm365, 0.0
        %373 = vst.msk [vmem:[#allocation2 + $0x38] sm:$0xff] %vm365, 0.0
      $region40: #{res_layer_forward.17} parent=35 // pred_fallthru
        _
      %v374 = vld [vmem:[%s331] sm:$0xf]
      %v375 = vld [vmem:[%s331 + $0x4] sm:$0xf]
      %v376 = vld [vmem:[%s331 + $0x8] sm:$0xf]
      %v377 = vld [vmem:[%s331 + $0xc] sm:$0xf]
      %v378 = vld [vmem:[%s331 + $0x10] sm:$0xf]
      %v379 = vld [vmem:[%s331 + $0x14] sm:$0xf]
      %v380 = vld [vmem:[%s331 + $0x18] sm:$0xf]
      %v381 = vld [vmem:[%s331 + $0x1c] sm:$0xf]
      %v382 = vunpack.c.l.bf16 %v374
      %v383 = vunpack.c.l.bf16 %v375
      %v384 = vunpack.c.l.bf16 %v376
      %v385 = vunpack.c.l.bf16 %v377
      %v386 = vunpack.c.l.bf16 %v378
      %v387 = vunpack.c.l.bf16 %v379
      %v388 = vunpack.c.l.bf16 %v380
      %v389 = vunpack.c.l.bf16 %v381
      %v390 = vld [vmem:[%s2] sm:$0x1]
      %v392 = vlaneseq
      %v393 = vshrl.u32 %v392, 7
      %v394 = vsub.s32 0, %v393
      %v395 = vrot.slane %v390, %v394
      %v397 = vmul.f32 %v382, %v395
      %v398 = vmul.f32 %v383, %v395
      %v399 = vmul.f32 %v384, %v395
      %v400 = vmul.f32 %v385, %v395
      %v401 = vmul.f32 %v386, %v395
      %v402 = vmul.f32 %v387, %v395
      %v403 = vmul.f32 %v388, %v395
      %v404 = vmul.f32 %v389, %v395
      %v405 = vld [vmem:[%s3] sm:$0x1]
      %v407 = vlaneseq
      %v408 = vshrl.u32 %v407, 7
      %v409 = vsub.s32 0, %v408
      %v410 = vrot.slane %v405, %v409
      %v412 = vadd.f32 %v397, %v410
      %v413 = vadd.f32 %v398, %v410
      %v414 = vadd.f32 %v399, %v410
      %v415 = vadd.f32 %v400, %v410
      %v416 = vadd.f32 %v401, %v410
      %v417 = vadd.f32 %v402, %v410
      %v418 = vadd.f32 %v403, %v410
      %v419 = vadd.f32 %v404, %v410
      %v420 = vmax.f32 %v412, 0.0
      %v421 = vmax.f32 %v413, 0.0
      %v422 = vmax.f32 %v414, 0.0
      %v423 = vmax.f32 %v415, 0.0
      %v424 = vmax.f32 %v416, 0.0
      %v425 = vmax.f32 %v417, 0.0
      %v426 = vmax.f32 %v418, 0.0
      %v427 = vmax.f32 %v419, 0.0
      %v428 = vld [vmem:[#allocation2] sm:$0xff]
      %v429 = vld [vmem:[#allocation2 + $0x8] sm:$0xff]
      %v430 = vld [vmem:[#allocation2 + $0x10] sm:$0xff]
      %v431 = vld [vmem:[#allocation2 + $0x18] sm:$0xff]
      %v432 = vld [vmem:[#allocation2 + $0x20] sm:$0xff]
      %v433 = vld [vmem:[#allocation2 + $0x28] sm:$0xff]
      %v434 = vld [vmem:[#allocation2 + $0x30] sm:$0xff]
      %v435 = vld [vmem:[#allocation2 + $0x38] sm:$0xff]
      %v436 = vpack.c.bf16 %v421, %v420
      %v437 = vpack.c.bf16 %v423, %v422
      %v438 = vpack.c.bf16 %v425, %v424
      %v439 = vpack.c.bf16 %v427, %v426
      %v440 = vld [vmem:[%s336] sm:$0x1]
      %vm441 = vcmask 15360
      %v443 = vsel %vm441, %v436, 0
      %v446 = vsel %vm441, %v437, 0
      %v449 = vsel %vm441, %v438, 0
      %v452 = vsel %vm441, %v439, 0
      %vm454 = vcmask 1040384
      %v456 = vsel %vm454, %v440, 0
      %458 = vmatprep.subr.bf16.mxu0 0
      %459 = vmatpush1.bf16.msra.mxu0 0
      %460 = vmatprep.subr.bf16.mxu0 0
      %461 = vmatpush1.bf16.msra.mxu0 0
      %462 = vmatprep.subr.bf16.mxu0 0
      %463 = vmatpush1.bf16.msra.mxu0 0
      %464 = vmatprep.subr.bf16.mxu0 0
      %465 = vmatpush1.bf16.msra.mxu0 0
      %466 = vmatprep.subr.bf16.mxu0 0
      %467 = vmatpush1.bf16.msra.mxu0 0
      %468 = vmatprep.subr.bf16.mxu0 0
      %469 = vmatpush1.bf16.msra.mxu0 0
      %470 = vmatprep.subr.bf16.mxu0 0
      %471 = vmatpush1.bf16.msra.mxu0 0
      %472 = vmatprep.subr.bf16.mxu0 0
      %473 = vmatpush1.bf16.msra.mxu0 %v456
      %474 = vmatprep.subr.bf16.mxu0 0
      %475 = vmatpush2.bf16.msra.mxu0 0
      %476 = vmatprep.subr.bf16.mxu0 0
      %477 = vmatpush2.bf16.msra.mxu0 0
      %478 = vmatprep.subr.bf16.mxu0 0
      %479 = vmatpush2.bf16.msra.mxu0 0
      %480 = vmatprep.subr.bf16.mxu0 0
      %481 = vmatpush2.bf16.msra.mxu0 0
      %482 = vmatprep.subr.bf16.mxu0 0
      %483 = vmatpush2.bf16.msra.mxu0 0
      %484 = vmatprep.subr.bf16.mxu0 0
      %485 = vmatpush2.bf16.msra.mxu0 0
      %486 = vmatprep.subr.bf16.mxu0 0
      %487 = vmatpush2.bf16.msra.mxu0 0
      %488 = vmatprep.subr.bf16.mxu0 0
      %489 = vmatpush2.bf16.msra.mxu0 0
      %490 = vmatprep.mubr.bf16.mxu0 0
      %491 = vmatmul.mubr.bf16.gmra.mxu0 %v443
      %v492 = vpop.f32.mrf.mxu0
      %v493 = vadd.f32 0.0, %v492
      %v494 = vpop.f32.mrf.mxu0
      %v495 = vpop.f32.mrf.mxu0
      %v496 = vadd.f32 0.0, %v495
      %v497 = vpop.f32.mrf.mxu0
      %498 = vmatprep.mubr.bf16.mxu0 0
      %499 = vmatmul.mubr.bf16.gmra.mxu0 %v446
      %v500 = vpop.f32.mrf.mxu0
      %v501 = vadd.f32 0.0, %v500
      %v502 = vpop.f32.mrf.mxu0
      %v503 = vpop.f32.mrf.mxu0
      %v504 = vadd.f32 0.0, %v503
      %v505 = vpop.f32.mrf.mxu0
      %506 = vmatprep.mubr.bf16.mxu0 0
      %507 = vmatmul.mubr.bf16.gmra.mxu0 %v449
      %v508 = vpop.f32.mrf.mxu0
      %v509 = vadd.f32 0.0, %v508
      %v510 = vpop.f32.mrf.mxu0
      %v511 = vpop.f32.mrf.mxu0
      %v512 = vadd.f32 0.0, %v511
      %v513 = vpop.f32.mrf.mxu0
      %514 = vmatprep.mubr.bf16.mxu0 0
      %515 = vmatmul.mubr.bf16.gmra.mxu0 %v452
      %v516 = vpop.f32.mrf.mxu0
      %v517 = vadd.f32 0.0, %v516
      %v518 = vpop.f32.mrf.mxu0
      %v519 = vpop.f32.mrf.mxu0
      %v520 = vadd.f32 0.0, %v519
      %v521 = vpop.f32.mrf.mxu0
      %522 = vdwg.mxu0
      %v523 = vadd.f32 %v428, %v493
      %v524 = vadd.f32 %v429, %v496
      %v525 = vadd.f32 %v430, %v501
      %v526 = vadd.f32 %v431, %v504
      %v527 = vadd.f32 %v432, %v509
      %v528 = vadd.f32 %v433, %v512
      %v529 = vadd.f32 %v434, %v517
      %v530 = vadd.f32 %v435, %v520
      %vm531 = vcmask 64512
      %532 = vst.msk [vmem:[#allocation2] sm:$0xff] %vm531, %v523
      %533 = vst.msk [vmem:[#allocation2 + $0x8] sm:$0xff] %vm531, %v524
      %534 = vst.msk [vmem:[#allocation2 + $0x10] sm:$0xff] %vm531, %v525
      %535 = vst.msk [vmem:[#allocation2 + $0x18] sm:$0xff] %vm531, %v526
      %536 = vst.msk [vmem:[#allocation2 + $0x20] sm:$0xff] %vm531, %v527
      %537 = vst.msk [vmem:[#allocation2 + $0x28] sm:$0xff] %vm531, %v528
      %538 = vst.msk [vmem:[#allocation2 + $0x30] sm:$0xff] %vm531, %v529
      %539 = vst.msk [vmem:[#allocation2 + $0x38] sm:$0xff] %vm531, %v530
      // Predicated region
      $region41: #{res_layer_forward.17} parent=35 // pred_check
        %p540 = pneg %p361
      $region42: #{res_layer_forward.17} parent=35 // pred_check_branch
        %542 = sbr.rel (%p540) target = $region44
      $region43: #{res_layer_forward.17} parent=35 // pred_region
        %v543 = vld [vmem:[#allocation2] sm:$0xff]
        %v544 = vld [vmem:[#allocation2 + $0x8] sm:$0xff]
        %v545 = vld [vmem:[#allocation2 + $0x10] sm:$0xff]
        %v546 = vld [vmem:[#allocation2 + $0x18] sm:$0xff]
        %v547 = vld [vmem:[#allocation2 + $0x20] sm:$0xff]
        %v548 = vld [vmem:[#allocation2 + $0x28] sm:$0xff]
        %v549 = vld [vmem:[#allocation2 + $0x30] sm:$0xff]
        %v550 = vld [vmem:[#allocation2 + $0x38] sm:$0xff]
        %v551 = vpack.c.bf16 %v544, %v543
        %v552 = vpack.c.bf16 %v546, %v545
        %v553 = vpack.c.bf16 %v548, %v547
        %v554 = vpack.c.bf16 %v550, %v549
        %v559 = vunpack.c.l.b16 %v551
        %v560 = vunpack.c.h.b16 %v551
        %v561 = vunpack.c.l.b16 %v552
        %v562 = vunpack.c.h.b16 %v552
        %v563 = vunpack.c.l.b16 %v553
        %v564 = vunpack.c.h.b16 %v553
        %v565 = vunpack.c.l.b16 %v554
        %v566 = vunpack.c.h.b16 %v554
        %v567 = vpack.c.b16 %v559, %v559
        %v568 = vpack.c.b16 %v560, %v560
        %v569 = vpack.c.b16 %v561, %v561
        %v570 = vpack.c.b16 %v562, %v562
        %v571 = vpack.c.b16 %v563, %v563
        %v572 = vpack.c.b16 %v564, %v564
        %v573 = vpack.c.b16 %v565, %v565
        %v574 = vpack.c.b16 %v566, %v566
        %vm583 = vcmask 60416
        %584 = vst.msk [vmem:[%s345] sm:$0xf] %vm583, %v567
        %585 = vst.msk [vmem:[%s345 + $0x4] sm:$0xf] %vm583, %v568
        %586 = vst.msk [vmem:[%s345 + $0x8] sm:$0xf] %vm583, %v569
        %587 = vst.msk [vmem:[%s345 + $0xc] sm:$0xf] %vm583, %v570
        %588 = vst.msk [vmem:[%s345 + $0x10] sm:$0xf] %vm583, %v571
        %589 = vst.msk [vmem:[%s345 + $0x14] sm:$0xf] %vm583, %v572
        %590 = vst.msk [vmem:[%s345 + $0x18] sm:$0xf] %vm583, %v573
        %591 = vst.msk [vmem:[%s345 + $0x1c] sm:$0xf] %vm583, %v574
        %v592 = vsel %vm531, %v543, 0.0
        %v593 = vsel %vm531, %v544, 0.0
        %v594 = vadd.f32 %v592, %v593
        %v595 = vsel %vm531, %v545, 0.0
        %v596 = vadd.f32 %v594, %v595
        %v597 = vsel %vm531, %v546, 0.0
        %v598 = vadd.f32 %v596, %v597
        %v599 = vsel %vm531, %v547, 0.0
        %v600 = vadd.f32 %v598, %v599
        %v601 = vsel %vm531, %v548, 0.0
        %v602 = vadd.f32 %v600, %v601
        %v603 = vsel %vm531, %v549, 0.0
        %v604 = vadd.f32 %v602, %v603
        %v605 = vsel %vm531, %v550, 0.0
        %v606 = vadd.f32 %v604, %v605
        %v607 = vrot.slane %v606, 4
        %v608 = vadd.f32 %v606, %v607
        %v609 = vrot.slane %v608, 2
        %v610 = vadd.f32 %v608, %v609
        %v611 = vrot.slane %v610, 1
        %v612 = vadd.f32 %v610, %v611
        %vm613 = vcmask 57344
        %614 = vst.msk [vmem:[%s350] sm:$0x1] %vm613, %v612
        %v615 = vmul.f32 %v543, %v543
        %v616 = vmul.f32 %v544, %v544
        %v617 = vmul.f32 %v545, %v545
        %v618 = vmul.f32 %v546, %v546
        %v619 = vmul.f32 %v547, %v547
        %v620 = vmul.f32 %v548, %v548
        %v621 = vmul.f32 %v549, %v549
        %v622 = vmul.f32 %v550, %v550
        %v623 = vsel %vm531, %v615, 0.0
        %v624 = vsel %vm531, %v616, 0.0
        %v625 = vadd.f32 %v623, %v624
        %v626 = vsel %vm531, %v617, 0.0
        %v627 = vadd.f32 %v625, %v626
        %v628 = vsel %vm531, %v618, 0.0
        %v629 = vadd.f32 %v627, %v628
        %v630 = vsel %vm531, %v619, 0.0
        %v631 = vadd.f32 %v629, %v630
        %v632 = vsel %vm531, %v620, 0.0
        %v633 = vadd.f32 %v631, %v632
        %v634 = vsel %vm531, %v621, 0.0
        %v635 = vadd.f32 %v633, %v634
        %v636 = vsel %vm531, %v622, 0.0
        %v637 = vadd.f32 %v635, %v636
        %v638 = vrot.slane %v637, 4
        %v639 = vadd.f32 %v637, %v638
        %v640 = vrot.slane %v639, 2
        %v641 = vadd.f32 %v639, %v640
        %v642 = vrot.slane %v641, 1
        %v643 = vadd.f32 %v641, %v642
        %644 = vst.msk [vmem:[%s357] sm:$0x1] %vm613, %v643
      $region44: #{res_layer_forward.17} parent=35 // pred_fallthru
        _
      %p645 = scmp.lt.s32.totalorder %s23, 1
      %s646 = scalar_select %p645, %s23, 1
      %p647 = scmp.lt.s32.totalorder %s24, 3
      %s648 = scalar_select %p647, %s24, 3
      %s649 = smul.addr %s648, 8
      %s650 = smul.addr %s646, 32
      %s651 = sadd.s32 %s649, %s650
      %s652 = smul.addr %s651, 4
      %s653 = scalar_lea.vmem %s4, %s652
      %s654 = smul.u32 %s23, 4
      %s655 = sadd.s32 %s654, %s24
      %p656 = scmp.lt.s32.totalorder %s655, 7
      %s657 = scalar_select %p656, %s655, 7
      %s658 = scalar_lea.vmem %s5, %s657
      %s659 = smul.u32 %s23, 4
      %s660 = sadd.s32 %s659, %s24
      %p661 = scmp.lt.s32.totalorder %s660, 7
      %s662 = scalar_select %p661, %s660, 7
      %s663 = scalar_lea.vmem %s6, %s662
      // Predicated region
      $region45: #{res_layer_forward.17} parent=35 // pred_check
        %p664 = pneg %p157
      $region46: #{res_layer_forward.17} parent=35 // pred_check_branch
        %666 = sbr.rel (%p664) target = $region48
      $region47: #{res_layer_forward.17} parent=35 // pred_region
        _
      $region48: #{res_layer_forward.17} parent=35 // pred_fallthru
        _
      // Predicated region
      $region49: #{res_layer_forward.17} parent=35 // pred_check
        %p667 = pneg %p187
      $region50: #{res_layer_forward.17} parent=35 // pred_check_branch
        %669 = sbr.rel (%p667) target = $region52
      $region51: #{res_layer_forward.17} parent=35 // pred_region
        %s670 = smul.u32 %s23, 4
        %s671 = sadd.s32 %s670, %s24
      $region52: #{res_layer_forward.17} parent=35 // pred_fallthru
        _
      // Predicated region
      $region53: #{res_layer_forward.17} parent=35 // pred_check
        %p672 = pneg %p217
      $region54: #{res_layer_forward.17} parent=35 // pred_check_branch
        %674 = sbr.rel (%p672) target = $region56
      $region55: #{res_layer_forward.17} parent=35 // pred_region
        %s675 = smul.u32 %s23, 4
        %s676 = sadd.s32 %s675, %s24
      $region56: #{res_layer_forward.17} parent=35 // pred_fallthru
        _
    $region36: #{res_layer_forward.17} parent=5 // pred_fallthru
      _
    %p677 = scmp.le.s32.totalorder 2, %s13
    // Predicated region
    $region57: #{res_layer_forward.17} parent=5 // pred_check
      %p678 = pneg %p677
    $region58: #{res_layer_forward.17} parent=5 // pred_check_branch
      %680 = sbr.rel (%p678) target = $region60
    $region59: #{res_layer_forward.17} parent=5 // pred_region
      %s681 = ssub.s32 %s13, 2
      // Predicated region
      $region61: #{res_layer_forward.17} parent=59 // pred_check
        %p682 = pneg %p163
      $region62: #{res_layer_forward.17} parent=59 // pred_check_branch
        %684 = sbr.rel (%p682) target = $region64
      $region63: #{res_layer_forward.17} parent=59 // pred_region
        %p685 = scmp.lt.s32.totalorder %s26, 1
        %s686 = scalar_select %p685, %s26, 1
        %p687 = scmp.lt.s32.totalorder %s27, 3
        %s688 = scalar_select %p687, %s27, 3
        %s689 = smul.addr %s688, 8
        %s690 = smul.addr %s686, 32
        %s691 = sadd.s32 %s689, %s690
        %s692 = smul.addr %s691, 4
        %s693 = scalar_lea.vmem %s4, %s692
      $region64: #{res_layer_forward.17} parent=59 // pred_fallthru
        _
      // Predicated region
      $region65: #{res_layer_forward.17} parent=59 // pred_check
        %p694 = pneg %p193
      $region66: #{res_layer_forward.17} parent=59 // pred_check_branch
        %696 = sbr.rel (%p694) target = $region68
      $region67: #{res_layer_forward.17} parent=59 // pred_region
        %s697 = smul.u32 %s26, 4
        %s698 = sadd.s32 %s697, %s27
        %p699 = scmp.lt.s32.totalorder %s698, 7
        %s700 = scalar_select %p699, %s698, 7
        %s701 = scalar_lea.vmem %s5, %s700
      $region68: #{res_layer_forward.17} parent=59 // pred_fallthru
        _
      // Predicated region
      $region69: #{res_layer_forward.17} parent=59 // pred_check
        %p702 = pneg %p223
      $region70: #{res_layer_forward.17} parent=59 // pred_check_branch
        %704 = sbr.rel (%p702) target = $region72
      $region71: #{res_layer_forward.17} parent=59 // pred_region
        %s705 = smul.u32 %s26, 4
        %s706 = sadd.s32 %s705, %s27
        %p707 = scmp.lt.s32.totalorder %s706, 7
        %s708 = scalar_select %p707, %s706, 7
        %s709 = scalar_lea.vmem %s6, %s708
      $region72: #{res_layer_forward.17} parent=59 // pred_fallthru
        _
    $region60: #{res_layer_forward.17} parent=5 // pred_fallthru
      _
  $region6: #{res_layer_forward.17} parent=0 // loop_footer
    %s17 = sadd.s32 1, %s13
  $region7: #{res_layer_forward.17} parent=0 // loop_footer_branch
    %12 = sbr.rel target = $region3
  $region8: #{res_layer_forward.17} parent=0 // loop_exit
    _

// kernel: res_layer_forward.23
$region0: #{res_layer_forward.23}
  #allocation0 [shape = 'u32[]', space=smem, size = 0x4, offset = 0x4, fixed_abs, tag = 'smem constant byte address 0x4 - core index']
  #allocation1 [shape = 'u32[144,128]{1,0:T(1,128)}', space=vmem, size = 0x12000, scoped, tag = 'internal scratch']
  %s0 = inlined_call_operand.vmem [shape: bf16[8,512], index: 0, kind: input, shape index: {}]
  %s1 = inlined_call_operand.vmem [shape: bf16[8,512], index: 1, kind: input, shape index: {}]
  %s2 = inlined_call_operand.vmem [shape: f32[1,512], index: 2, kind: input, shape index: {}]
  %s3 = inlined_call_operand.vmem [shape: f32[1,512], index: 3, kind: input, shape index: {}]
  %s4 = inlined_call_operand.vmem [shape: bf16[8,512], index: 4, kind: output, shape index: {}]
  %s5 = sld [smem:[#allocation0]]
  $region26: #{res_layer_forward.23} parent=0
    _
  %s7 = ssub.s32 1, %s5
  %s8 = scalar_select 0, %s7, %s5
  // Predicated region
  $region2: #{res_layer_forward.23} parent=0 // pred_check
    _
  $region3: #{res_layer_forward.23} parent=0 // pred_check_branch
    %10 = sbr.rel (0) target = $region5
  $region4: #{res_layer_forward.23} parent=0 // pred_region
    _
  $region5: #{res_layer_forward.23} parent=0 // pred_fallthru
    _
  // Predicated region
  $region6: #{res_layer_forward.23} parent=0 // pred_check
    _
  $region7: #{res_layer_forward.23} parent=0 // pred_check_branch
    %12 = sbr.rel (0) target = $region9
  $region8: #{res_layer_forward.23} parent=0 // pred_region
    _
  $region9: #{res_layer_forward.23} parent=0 // pred_fallthru
    _
  // Predicated region
  $region10: #{res_layer_forward.23} parent=0 // pred_check
    _
  $region11: #{res_layer_forward.23} parent=0 // pred_check_branch
    %14 = sbr.rel (0) target = $region13
  $region12: #{res_layer_forward.23} parent=0 // pred_region
    _
  $region13: #{res_layer_forward.23} parent=0 // pred_fallthru
    _
  // Predicated region
  $region14: #{res_layer_forward.23} parent=0 // pred_check
    _
  $region15: #{res_layer_forward.23} parent=0 // pred_check_branch
    %16 = sbr.rel (0) target = $region17
  $region16: #{res_layer_forward.23} parent=0 // pred_region
    _
  $region17: #{res_layer_forward.23} parent=0 // pred_fallthru
    _
  %v17 = vld [vmem:[%s0] sm:$0xff]
  %v18 = vld [vmem:[%s0 + $0x8] sm:$0xff]
  %v19 = vunpack.c.l.bf16 %v17
  %v20 = vunpack.c.h.bf16 %v17
  %v21 = vunpack.c.l.bf16 %v18
  %v22 = vunpack.c.h.bf16 %v18
  %v23 = vld [vmem:[%s2] sm:$0xf]
  %v25 = vlaneseq
  %v26 = vshrl.u32 %v25, 7
  %v27 = vsub.s32 0, %v26
  %v28 = vrot.slane %v23, %v27
  %v29 = vlaneseq
  %v30 = vshrl.u32 %v29, 7
  %v31 = vsub.s32 1, %v30
  %v32 = vrot.slane %v23, %v31
  %v33 = vlaneseq
  %v34 = vshrl.u32 %v33, 7
  %v35 = vsub.s32 2, %v34
  %v36 = vrot.slane %v23, %v35
  %v37 = vlaneseq
  %v38 = vshrl.u32 %v37, 7
  %v39 = vsub.s32 3, %v38
  %v40 = vrot.slane %v23, %v39
  %v45 = vmul.f32 %v19, %v28
  %v46 = vmul.f32 %v20, %v32
  %v47 = vmul.f32 %v21, %v36
  %v48 = vmul.f32 %v22, %v40
  %v49 = vld [vmem:[%s3] sm:$0xf]
  %v51 = vlaneseq
  %v52 = vshrl.u32 %v51, 7
  %v53 = vsub.s32 0, %v52
  %v54 = vrot.slane %v49, %v53
  %v55 = vlaneseq
  %v56 = vshrl.u32 %v55, 7
  %v57 = vsub.s32 1, %v56
  %v58 = vrot.slane %v49, %v57
  %v59 = vlaneseq
  %v60 = vshrl.u32 %v59, 7
  %v61 = vsub.s32 2, %v60
  %v62 = vrot.slane %v49, %v61
  %v63 = vlaneseq
  %v64 = vshrl.u32 %v63, 7
  %v65 = vsub.s32 3, %v64
  %v66 = vrot.slane %v49, %v65
  %v71 = vadd.f32 %v45, %v54
  %v72 = vadd.f32 %v46, %v58
  %v73 = vadd.f32 %v47, %v62
  %v74 = vadd.f32 %v48, %v66
  %v75 = vld [vmem:[%s1] sm:$0xff]
  %v76 = vld [vmem:[%s1 + $0x8] sm:$0xff]
  %v77 = vunpack.c.l.bf16 %v75
  %v78 = vunpack.c.h.bf16 %v75
  %v79 = vunpack.c.l.bf16 %v76
  %v80 = vunpack.c.h.bf16 %v76
  %v81 = vadd.f32 %v71, %v77
  %v82 = vadd.f32 %v72, %v78
  %v83 = vadd.f32 %v73, %v79
  %v84 = vadd.f32 %v74, %v80
  %v85 = vmax.f32 %v81, 0.0
  %v86 = vmax.f32 %v82, 0.0
  %v87 = vmax.f32 %v83, 0.0
  %v88 = vmax.f32 %v84, 0.0
  %v89 = vpack.c.bf16 %v85, %v85
  %v90 = vpack.c.bf16 %v86, %v86
  %v91 = vpack.c.bf16 %v87, %v87
  %v92 = vpack.c.bf16 %v88, %v88
  %v97 = vunpack.c.l.b16 %v89
  %v98 = vunpack.c.l.b16 %v90
  %v99 = vunpack.c.l.b16 %v91
  %v100 = vunpack.c.l.b16 %v92
  %v101 = vpack.c.b16 %v98, %v97
  %v102 = vpack.c.b16 %v100, %v99
  %105 = vst [vmem:[%s4] sm:$0xff] %v101
  %106 = vst [vmem:[%s4 + $0x8] sm:$0xff] %v102
  // Predicated region
  $region18: #{res_layer_forward.23} parent=0 // pred_check
    _
  $region19: #{res_layer_forward.23} parent=0 // pred_check_branch
    %108 = sbr.rel (0) target = $region21
  $region20: #{res_layer_forward.23} parent=0 // pred_region
    _
  $region21: #{res_layer_forward.23} parent=0 // pred_fallthru
    _
  // Predicated region
  $region22: #{res_layer_forward.23} parent=0 // pred_check
    _
  $region23: #{res_layer_forward.23} parent=0 // pred_check_branch
    %110 = sbr.rel (0) target = $region25
  $region24: #{res_layer_forward.23} parent=0 // pred_region
    _
  $region25: #{res_layer_forward.23} parent=0 // pred_fallthru
    _

// kernel: res_layer_forward.19
$region0: #{res_layer_forward.19}
  #allocation0 [shape = 'u32[]', space=smem, size = 0x4, offset = 0x4, fixed_abs, tag = 'smem constant byte address 0x4 - core index']
  #allocation1 [shape = 'u32[144,128]{1,0:T(1,128)}', space=vmem, size = 0x12000, scoped, tag = 'internal scratch']
  %s0 = inlined_call_operand.vmem [shape: bf16[512,72], index: 0, kind: input, shape index: {}]
  %s1 = inlined_call_operand.vmem [shape: bf16[72,18], index: 1, kind: input, shape index: {}]
  %s2 = inlined_call_operand.vmem [shape: bf16[512,18], index: 2, kind: output, shape index: {0}]
  %s3 = inlined_call_operand.vmem [shape: f32[1,1,18], index: 3, kind: output, shape index: {1}]
  %s4 = inlined_call_operand.vmem [shape: f32[1,1,18], index: 4, kind: output, shape index: {2}]
  %5 = xla_tuple %s2, %s3, %s4
  %s6 = sld [smem:[#allocation0]]
  $region34: #{res_layer_forward.19} parent=0
    _
  %s8 = ssub.s32 1, %s6
  %s9 = scalar_select 0, %s8, %s6
  // Predicated region
  $region2: #{res_layer_forward.19} parent=0 // pred_check
    _
  $region3: #{res_layer_forward.19} parent=0 // pred_check_branch
    %11 = sbr.rel (0) target = $region5
  $region4: #{res_layer_forward.19} parent=0 // pred_region
    _
  $region5: #{res_layer_forward.19} parent=0 // pred_fallthru
    _
  // Predicated region
  $region6: #{res_layer_forward.19} parent=0 // pred_check
    _
  $region7: #{res_layer_forward.19} parent=0 // pred_check_branch
    %13 = sbr.rel (0) target = $region9
  $region8: #{res_layer_forward.19} parent=0 // pred_region
    _
  $region9: #{res_layer_forward.19} parent=0 // pred_fallthru
    _
  %v15 = vld [vmem:[%s0] sm:$0xf]
  %v16 = vld [vmem:[%s0 + $0x4] sm:$0xf]
  %v17 = vld [vmem:[%s0 + $0x8] sm:$0xf]
  %v18 = vld [vmem:[%s0 + $0xc] sm:$0xf]
  %v19 = vld [vmem:[%s0 + $0x10] sm:$0xf]
  %v20 = vld [vmem:[%s0 + $0x14] sm:$0xf]
  %v21 = vld [vmem:[%s0 + $0x18] sm:$0xf]
  %v22 = vld [vmem:[%s0 + $0x1c] sm:$0xf]
  %v23 = vld [vmem:[%s0 + $0x20] sm:$0xf]
  %v24 = vld [vmem:[%s0 + $0x24] sm:$0xf]
  %v25 = vld [vmem:[%s0 + $0x28] sm:$0xf]
  %v26 = vld [vmem:[%s0 + $0x2c] sm:$0xf]
  %v27 = vld [vmem:[%s0 + $0x30] sm:$0xf]
  %v28 = vld [vmem:[%s0 + $0x34] sm:$0xf]
  %v29 = vld [vmem:[%s0 + $0x38] sm:$0xf]
  %v30 = vld [vmem:[%s0 + $0x3c] sm:$0xf]
  %v31 = vld [vmem:[%s0 + $0x40] sm:$0xf]
  %v32 = vld [vmem:[%s0 + $0x44] sm:$0xf]
  %v33 = vld [vmem:[%s0 + $0x48] sm:$0xf]
  %v34 = vld [vmem:[%s0 + $0x4c] sm:$0xf]
  %v35 = vld [vmem:[%s0 + $0x50] sm:$0xf]
  %v36 = vld [vmem:[%s0 + $0x54] sm:$0xf]
  %v37 = vld [vmem:[%s0 + $0x58] sm:$0xf]
  %v38 = vld [vmem:[%s0 + $0x5c] sm:$0xf]
  %v39 = vld [vmem:[%s0 + $0x60] sm:$0xf]
  %v40 = vld [vmem:[%s0 + $0x64] sm:$0xf]
  %v41 = vld [vmem:[%s0 + $0x68] sm:$0xf]
  %v42 = vld [vmem:[%s0 + $0x6c] sm:$0xf]
  %v43 = vld [vmem:[%s0 + $0x70] sm:$0xf]
  %v44 = vld [vmem:[%s0 + $0x74] sm:$0xf]
  %v45 = vld [vmem:[%s0 + $0x78] sm:$0xf]
  %v46 = vld [vmem:[%s0 + $0x7c] sm:$0xf]
  %v47 = vld [vmem:[%s0 + $0x80] sm:$0xf]
  %v48 = vld [vmem:[%s0 + $0x84] sm:$0xf]
  %v49 = vld [vmem:[%s0 + $0x88] sm:$0xf]
  %v50 = vld [vmem:[%s0 + $0x8c] sm:$0xf]
  %v51 = vld [vmem:[%s0 + $0x90] sm:$0xf]
  %v52 = vld [vmem:[%s0 + $0x94] sm:$0xf]
  %v53 = vld [vmem:[%s0 + $0x98] sm:$0xf]
  %v54 = vld [vmem:[%s0 + $0x9c] sm:$0xf]
  %v55 = vld [vmem:[%s0 + $0xa0] sm:$0xf]
  %v56 = vld [vmem:[%s0 + $0xa4] sm:$0xf]
  %v57 = vld [vmem:[%s0 + $0xa8] sm:$0xf]
  %v58 = vld [vmem:[%s0 + $0xac] sm:$0xf]
  %v59 = vld [vmem:[%s0 + $0xb0] sm:$0xf]
  %v60 = vld [vmem:[%s0 + $0xb4] sm:$0xf]
  %v61 = vld [vmem:[%s0 + $0xb8] sm:$0xf]
  %v62 = vld [vmem:[%s0 + $0xbc] sm:$0xf]
  %v63 = vld [vmem:[%s0 + $0xc0] sm:$0xf]
  %v64 = vld [vmem:[%s0 + $0xc4] sm:$0xf]
  %v65 = vld [vmem:[%s0 + $0xc8] sm:$0xf]
  %v66 = vld [vmem:[%s0 + $0xcc] sm:$0xf]
  %v67 = vld [vmem:[%s0 + $0xd0] sm:$0xf]
  %v68 = vld [vmem:[%s0 + $0xd4] sm:$0xf]
  %v69 = vld [vmem:[%s0 + $0xd8] sm:$0xf]
  %v70 = vld [vmem:[%s0 + $0xdc] sm:$0xf]
  %v71 = vld [vmem:[%s0 + $0xe0] sm:$0xf]
  %v72 = vld [vmem:[%s0 + $0xe4] sm:$0xf]
  %v73 = vld [vmem:[%s0 + $0xe8] sm:$0xf]
  %v74 = vld [vmem:[%s0 + $0xec] sm:$0xf]
  %v75 = vld [vmem:[%s0 + $0xf0] sm:$0xf]
  %v76 = vld [vmem:[%s0 + $0xf4] sm:$0xf]
  %v77 = vld [vmem:[%s0 + $0xf8] sm:$0xf]
  %v78 = vld [vmem:[%s0 + $0xfc] sm:$0xf]
  %v79 = vld [vmem:[%s1] sm:$0xf]
  %v80 = vld [vmem:[%s1 + $0x4] sm:$0xf]
  %v81 = vld [vmem:[%s1 + $0x8] sm:$0xf]
  %v82 = vld [vmem:[%s1 + $0xc] sm:$0xf]
  %v83 = vld [vmem:[%s1 + $0x10] sm:$0xf]
  %v84 = vld [vmem:[%s1 + $0x14] sm:$0xf]
  %v85 = vld [vmem:[%s1 + $0x18] sm:$0xf]
  %v86 = vld [vmem:[%s1 + $0x1c] sm:$0xf]
  %v87 = vld [vmem:[%s1 + $0x20] sm:$0xf]
  %v152 = vunpack.c.l.b16 %v15
  %v153 = vunpack.c.l.b16 %v16
  %v154 = vunpack.c.l.b16 %v17
  %v155 = vunpack.c.l.b16 %v18
  %v156 = vunpack.c.l.b16 %v19
  %v157 = vunpack.c.l.b16 %v20
  %v158 = vunpack.c.l.b16 %v21
  %v159 = vunpack.c.l.b16 %v22
  %v160 = vunpack.c.l.b16 %v23
  %v161 = vunpack.c.l.b16 %v24
  %v162 = vunpack.c.l.b16 %v25
  %v163 = vunpack.c.l.b16 %v26
  %v164 = vunpack.c.l.b16 %v27
  %v165 = vunpack.c.l.b16 %v28
  %v166 = vunpack.c.l.b16 %v29
  %v167 = vunpack.c.l.b16 %v30
  %v168 = vunpack.c.l.b16 %v31
  %v169 = vunpack.c.l.b16 %v32
  %v170 = vunpack.c.l.b16 %v33
  %v171 = vunpack.c.l.b16 %v34
  %v172 = vunpack.c.l.b16 %v35
  %v173 = vunpack.c.l.b16 %v36
  %v174 = vunpack.c.l.b16 %v37
  %v175 = vunpack.c.l.b16 %v38
  %v176 = vunpack.c.l.b16 %v39
  %v177 = vunpack.c.l.b16 %v40
  %v178 = vunpack.c.l.b16 %v41
  %v179 = vunpack.c.l.b16 %v42
  %v180 = vunpack.c.l.b16 %v43
  %v181 = vunpack.c.l.b16 %v44
  %v182 = vunpack.c.l.b16 %v45
  %v183 = vunpack.c.l.b16 %v46
  %v184 = vunpack.c.l.b16 %v47
  %v185 = vunpack.c.l.b16 %v48
  %v186 = vunpack.c.l.b16 %v49
  %v187 = vunpack.c.l.b16 %v50
  %v188 = vunpack.c.l.b16 %v51
  %v189 = vunpack.c.l.b16 %v52
  %v190 = vunpack.c.l.b16 %v53
  %v191 = vunpack.c.l.b16 %v54
  %v192 = vunpack.c.l.b16 %v55
  %v193 = vunpack.c.l.b16 %v56
  %v194 = vunpack.c.l.b16 %v57
  %v195 = vunpack.c.l.b16 %v58
  %v196 = vunpack.c.l.b16 %v59
  %v197 = vunpack.c.l.b16 %v60
  %v198 = vunpack.c.l.b16 %v61
  %v199 = vunpack.c.l.b16 %v62
  %v200 = vunpack.c.l.b16 %v63
  %v201 = vunpack.c.l.b16 %v64
  %v202 = vunpack.c.l.b16 %v65
  %v203 = vunpack.c.l.b16 %v66
  %v204 = vunpack.c.l.b16 %v67
  %v205 = vunpack.c.l.b16 %v68
  %v206 = vunpack.c.l.b16 %v69
  %v207 = vunpack.c.l.b16 %v70
  %v208 = vunpack.c.l.b16 %v71
  %v209 = vunpack.c.l.b16 %v72
  %v210 = vunpack.c.l.b16 %v73
  %v211 = vunpack.c.l.b16 %v74
  %v212 = vunpack.c.l.b16 %v75
  %v213 = vunpack.c.l.b16 %v76
  %v214 = vunpack.c.l.b16 %v77
  %v215 = vunpack.c.l.b16 %v78
  %v216 = vpack.c.b16 %v153, %v152
  %v217 = vpack.c.b16 %v155, %v154
  %v218 = vpack.c.b16 %v157, %v156
  %v219 = vpack.c.b16 %v159, %v158
  %v220 = vpack.c.b16 %v161, %v160
  %v221 = vpack.c.b16 %v163, %v162
  %v222 = vpack.c.b16 %v165, %v164
  %v223 = vpack.c.b16 %v167, %v166
  %v224 = vpack.c.b16 %v169, %v168
  %v225 = vpack.c.b16 %v171, %v170
  %v226 = vpack.c.b16 %v173, %v172
  %v227 = vpack.c.b16 %v175, %v174
  %v228 = vpack.c.b16 %v177, %v176
  %v229 = vpack.c.b16 %v179, %v178
  %v230 = vpack.c.b16 %v181, %v180
  %v231 = vpack.c.b16 %v183, %v182
  %v232 = vpack.c.b16 %v185, %v184
  %v233 = vpack.c.b16 %v187, %v186
  %v234 = vpack.c.b16 %v189, %v188
  %v235 = vpack.c.b16 %v191, %v190
  %v236 = vpack.c.b16 %v193, %v192
  %v237 = vpack.c.b16 %v195, %v194
  %v238 = vpack.c.b16 %v197, %v196
  %v239 = vpack.c.b16 %v199, %v198
  %v240 = vpack.c.b16 %v201, %v200
  %v241 = vpack.c.b16 %v203, %v202
  %v242 = vpack.c.b16 %v205, %v204
  %v243 = vpack.c.b16 %v207, %v206
  %v244 = vpack.c.b16 %v209, %v208
  %v245 = vpack.c.b16 %v211, %v210
  %v246 = vpack.c.b16 %v213, %v212
  %v247 = vpack.c.b16 %v215, %v214
  %v257 = vunpack.c.l.b16 %v79
  %v258 = vunpack.c.l.b16 %v80
  %v259 = vunpack.c.l.b16 %v81
  %v260 = vunpack.c.l.b16 %v82
  %v261 = vunpack.c.l.b16 %v83
  %v262 = vunpack.c.l.b16 %v84
  %v263 = vunpack.c.l.b16 %v85
  %v264 = vunpack.c.l.b16 %v86
  %v265 = vunpack.c.l.b16 %v87
  %v266 = vpack.c.b16 %v258, %v257
  %v267 = vpack.c.b16 %v260, %v259
  %v268 = vpack.c.b16 %v262, %v261
  %v269 = vpack.c.b16 %v264, %v263
  %v270 = vpack.c.b16 %v265, %v265
  %vm275 = vcmask 588800
  %v277 = vsel %vm275, %v216, 0
  %v280 = vsel %vm275, %v217, 0
  %v283 = vsel %vm275, %v218, 0
  %v286 = vsel %vm275, %v219, 0
  %v289 = vsel %vm275, %v220, 0
  %v292 = vsel %vm275, %v221, 0
  %v295 = vsel %vm275, %v222, 0
  %v298 = vsel %vm275, %v223, 0
  %v301 = vsel %vm275, %v224, 0
  %v304 = vsel %vm275, %v225, 0
  %v307 = vsel %vm275, %v226, 0
  %v310 = vsel %vm275, %v227, 0
  %v313 = vsel %vm275, %v228, 0
  %v316 = vsel %vm275, %v229, 0
  %v319 = vsel %vm275, %v230, 0
  %v322 = vsel %vm275, %v231, 0
  %v325 = vsel %vm275, %v232, 0
  %v328 = vsel %vm275, %v233, 0
  %v331 = vsel %vm275, %v234, 0
  %v334 = vsel %vm275, %v235, 0
  %v337 = vsel %vm275, %v236, 0
  %v340 = vsel %vm275, %v237, 0
  %v343 = vsel %vm275, %v238, 0
  %v346 = vsel %vm275, %v239, 0
  %v349 = vsel %vm275, %v240, 0
  %v352 = vsel %vm275, %v241, 0
  %v355 = vsel %vm275, %v242, 0
  %v358 = vsel %vm275, %v243, 0
  %v361 = vsel %vm275, %v244, 0
  %v364 = vsel %vm275, %v245, 0
  %v367 = vsel %vm275, %v246, 0
  %v370 = vsel %vm275, %v247, 0
  %vm372 = vcmask 1043456
  %v374 = vsel %vm372, %v270, 0
  %376 = vmatprep.subr.bf16.mxu0 0
  %377 = vmatpush1.bf16.msra.mxu0 0
  %378 = vmatprep.subr.bf16.mxu0 0
  %379 = vmatpush1.bf16.msra.mxu0 0
  %380 = vmatprep.subr.bf16.mxu0 0
  %381 = vmatpush1.bf16.msra.mxu0 0
  %382 = vmatprep.subr.bf16.mxu0 0
  %383 = vmatpush1.bf16.msra.mxu0 %v374
  %384 = vmatprep.subr.bf16.mxu0 0
  %385 = vmatpush1.bf16.msra.mxu0 %v269
  %386 = vmatprep.subr.bf16.mxu0 0
  %387 = vmatpush1.bf16.msra.mxu0 %v268
  %388 = vmatprep.subr.bf16.mxu0 0
  %389 = vmatpush1.bf16.msra.mxu0 %v267
  %390 = vmatprep.subr.bf16.mxu0 0
  %391 = vmatpush1.bf16.msra.mxu0 %v266
  %392 = vmatprep.subr.bf16.mxu0 0
  %393 = vmatpush2.bf16.msra.mxu0 0
  %394 = vmatprep.subr.bf16.mxu0 0
  %395 = vmatpush2.bf16.msra.mxu0 0
  %396 = vmatprep.subr.bf16.mxu0 0
  %397 = vmatpush2.bf16.msra.mxu0 0
  %398 = vmatprep.subr.bf16.mxu0 0
  %399 = vmatpush2.bf16.msra.mxu0 0
  %400 = vmatprep.subr.bf16.mxu0 0
  %401 = vmatpush2.bf16.msra.mxu0 0
  %402 = vmatprep.subr.bf16.mxu0 0
  %403 = vmatpush2.bf16.msra.mxu0 0
  %404 = vmatprep.subr.bf16.mxu0 0
  %405 = vmatpush2.bf16.msra.mxu0 0
  %406 = vmatprep.subr.bf16.mxu0 0
  %407 = vmatpush2.bf16.msra.mxu0 0
  %408 = vmatprep.mubr.bf16.mxu0 0
  %409 = vmatmul.mubr.bf16.gmra.mxu0 %v277
  %v410 = vpop.f32.mrf.mxu0
  %v411 = vadd.f32 0.0, %v410
  %v412 = vpop.f32.mrf.mxu0
  %v413 = vpop.f32.mrf.mxu0
  %v414 = vadd.f32 0.0, %v413
  %v415 = vpop.f32.mrf.mxu0
  %416 = vmatprep.mubr.bf16.mxu0 0
  %417 = vmatmul.mubr.bf16.gmra.mxu0 %v280
  %v418 = vpop.f32.mrf.mxu0
  %v419 = vadd.f32 0.0, %v418
  %v420 = vpop.f32.mrf.mxu0
  %v421 = vpop.f32.mrf.mxu0
  %v422 = vadd.f32 0.0, %v421
  %v423 = vpop.f32.mrf.mxu0
  %424 = vmatprep.mubr.bf16.mxu0 0
  %425 = vmatmul.mubr.bf16.gmra.mxu0 %v283
  %v426 = vpop.f32.mrf.mxu0
  %v427 = vadd.f32 0.0, %v426
  %v428 = vpop.f32.mrf.mxu0
  %v429 = vpop.f32.mrf.mxu0
  %v430 = vadd.f32 0.0, %v429
  %v431 = vpop.f32.mrf.mxu0
  %432 = vmatprep.mubr.bf16.mxu0 0
  %433 = vmatmul.mubr.bf16.gmra.mxu0 %v286
  %v434 = vpop.f32.mrf.mxu0
  %v435 = vadd.f32 0.0, %v434
  %v436 = vpop.f32.mrf.mxu0
  %v437 = vpop.f32.mrf.mxu0
  %v438 = vadd.f32 0.0, %v437
  %v439 = vpop.f32.mrf.mxu0
  %440 = vmatprep.mubr.bf16.mxu0 0
  %441 = vmatmul.mubr.bf16.gmra.mxu0 %v289
  %v442 = vpop.f32.mrf.mxu0
  %v443 = vadd.f32 0.0, %v442
  %v444 = vpop.f32.mrf.mxu0
  %v445 = vpop.f32.mrf.mxu0
  %v446 = vadd.f32 0.0, %v445
  %v447 = vpop.f32.mrf.mxu0
  %448 = vmatprep.mubr.bf16.mxu0 0
  %449 = vmatmul.mubr.bf16.gmra.mxu0 %v292
  %v450 = vpop.f32.mrf.mxu0
  %v451 = vadd.f32 0.0, %v450
  %v452 = vpop.f32.mrf.mxu0
  %v453 = vpop.f32.mrf.mxu0
  %v454 = vadd.f32 0.0, %v453
  %v455 = vpop.f32.mrf.mxu0
  %456 = vmatprep.mubr.bf16.mxu0 0
  %457 = vmatmul.mubr.bf16.gmra.mxu0 %v295
  %v458 = vpop.f32.mrf.mxu0
  %v459 = vadd.f32 0.0, %v458
  %v460 = vpop.f32.mrf.mxu0
  %v461 = vpop.f32.mrf.mxu0
  %v462 = vadd.f32 0.0, %v461
  %v463 = vpop.f32.mrf.mxu0
  %464 = vmatprep.mubr.bf16.mxu0 0
  %465 = vmatmul.mubr.bf16.gmra.mxu0 %v298
  %v466 = vpop.f32.mrf.mxu0
  %v467 = vadd.f32 0.0, %v466
  %v468 = vpop.f32.mrf.mxu0
  %v469 = vpop.f32.mrf.mxu0
  %v470 = vadd.f32 0.0, %v469
  %v471 = vpop.f32.mrf.mxu0
  %472 = vmatprep.mubr.bf16.mxu0 0
  %473 = vmatmul.mubr.bf16.gmra.mxu0 %v301
  %v474 = vpop.f32.mrf.mxu0
  %v475 = vadd.f32 0.0, %v474
  %v476 = vpop.f32.mrf.mxu0
  %v477 = vpop.f32.mrf.mxu0
  %v478 = vadd.f32 0.0, %v477
  %v479 = vpop.f32.mrf.mxu0
  %480 = vmatprep.mubr.bf16.mxu0 0
  %481 = vmatmul.mubr.bf16.gmra.mxu0 %v304
  %v482 = vpop.f32.mrf.mxu0
  %v483 = vadd.f32 0.0, %v482
  %v484 = vpop.f32.mrf.mxu0
  %v485 = vpop.f32.mrf.mxu0
  %v486 = vadd.f32 0.0, %v485
  %v487 = vpop.f32.mrf.mxu0
  %488 = vmatprep.mubr.bf16.mxu0 0
  %489 = vmatmul.mubr.bf16.gmra.mxu0 %v307
  %v490 = vpop.f32.mrf.mxu0
  %v491 = vadd.f32 0.0, %v490
  %v492 = vpop.f32.mrf.mxu0
  %v493 = vpop.f32.mrf.mxu0
  %v494 = vadd.f32 0.0, %v493
  %v495 = vpop.f32.mrf.mxu0
  %496 = vmatprep.mubr.bf16.mxu0 0
  %497 = vmatmul.mubr.bf16.gmra.mxu0 %v310
  %v498 = vpop.f32.mrf.mxu0
  %v499 = vadd.f32 0.0, %v498
  %v500 = vpop.f32.mrf.mxu0
  %v501 = vpop.f32.mrf.mxu0
  %v502 = vadd.f32 0.0, %v501
  %v503 = vpop.f32.mrf.mxu0
  %504 = vmatprep.mubr.bf16.mxu0 0
  %505 = vmatmul.mubr.bf16.gmra.mxu0 %v313
  %v506 = vpop.f32.mrf.mxu0
  %v507 = vadd.f32 0.0, %v506
  %v508 = vpop.f32.mrf.mxu0
  %v509 = vpop.f32.mrf.mxu0
  %v510 = vadd.f32 0.0, %v509
  %v511 = vpop.f32.mrf.mxu0
  %512 = vmatprep.mubr.bf16.mxu0 0
  %513 = vmatmul.mubr.bf16.gmra.mxu0 %v316
  %v514 = vpop.f32.mrf.mxu0
  %v515 = vadd.f32 0.0, %v514
  %v516 = vpop.f32.mrf.mxu0
  %v517 = vpop.f32.mrf.mxu0
  %v518 = vadd.f32 0.0, %v517
  %v519 = vpop.f32.mrf.mxu0
  %520 = vmatprep.mubr.bf16.mxu0 0
  %521 = vmatmul.mubr.bf16.gmra.mxu0 %v319
  %v522 = vpop.f32.mrf.mxu0
  %v523 = vadd.f32 0.0, %v522
  %v524 = vpop.f32.mrf.mxu0
  %v525 = vpop.f32.mrf.mxu0
  %v526 = vadd.f32 0.0, %v525
  %v527 = vpop.f32.mrf.mxu0
  %528 = vmatprep.mubr.bf16.mxu0 0
  %529 = vmatmul.mubr.bf16.gmra.mxu0 %v322
  %v530 = vpop.f32.mrf.mxu0
  %v531 = vadd.f32 0.0, %v530
  %v532 = vpop.f32.mrf.mxu0
  %v533 = vpop.f32.mrf.mxu0
  %v534 = vadd.f32 0.0, %v533
  %v535 = vpop.f32.mrf.mxu0
  %536 = vmatprep.mubr.bf16.mxu0 0
  %537 = vmatmul.mubr.bf16.gmra.mxu0 %v325
  %v538 = vpop.f32.mrf.mxu0
  %v539 = vadd.f32 0.0, %v538
  %v540 = vpop.f32.mrf.mxu0
  %v541 = vpop.f32.mrf.mxu0
  %v542 = vadd.f32 0.0, %v541
  %v543 = vpop.f32.mrf.mxu0
  %544 = vmatprep.mubr.bf16.mxu0 0
  %545 = vmatmul.mubr.bf16.gmra.mxu0 %v328
  %v546 = vpop.f32.mrf.mxu0
  %v547 = vadd.f32 0.0, %v546
  %v548 = vpop.f32.mrf.mxu0
  %v549 = vpop.f32.mrf.mxu0
  %v550 = vadd.f32 0.0, %v549
  %v551 = vpop.f32.mrf.mxu0
  %552 = vmatprep.mubr.bf16.mxu0 0
  %553 = vmatmul.mubr.bf16.gmra.mxu0 %v331
  %v554 = vpop.f32.mrf.mxu0
  %v555 = vadd.f32 0.0, %v554
  %v556 = vpop.f32.mrf.mxu0
  %v557 = vpop.f32.mrf.mxu0
  %v558 = vadd.f32 0.0, %v557
  %v559 = vpop.f32.mrf.mxu0
  %560 = vmatprep.mubr.bf16.mxu0 0
  %561 = vmatmul.mubr.bf16.gmra.mxu0 %v334
  %v562 = vpop.f32.mrf.mxu0
  %v563 = vadd.f32 0.0, %v562
  %v564 = vpop.f32.mrf.mxu0
  %v565 = vpop.f32.mrf.mxu0
  %v566 = vadd.f32 0.0, %v565
  %v567 = vpop.f32.mrf.mxu0
  %568 = vmatprep.mubr.bf16.mxu0 0
  %569 = vmatmul.mubr.bf16.gmra.mxu0 %v337
  %v570 = vpop.f32.mrf.mxu0
  %v571 = vadd.f32 0.0, %v570
  %v572 = vpop.f32.mrf.mxu0
  %v573 = vpop.f32.mrf.mxu0
  %v574 = vadd.f32 0.0, %v573
  %v575 = vpop.f32.mrf.mxu0
  %576 = vmatprep.mubr.bf16.mxu0 0
  %577 = vmatmul.mubr.bf16.gmra.mxu0 %v340
  %v578 = vpop.f32.mrf.mxu0
  %v579 = vadd.f32 0.0, %v578
  %v580 = vpop.f32.mrf.mxu0
  %v581 = vpop.f32.mrf.mxu0
  %v582 = vadd.f32 0.0, %v581
  %v583 = vpop.f32.mrf.mxu0
  %584 = vmatprep.mubr.bf16.mxu0 0
  %585 = vmatmul.mubr.bf16.gmra.mxu0 %v343
  %v586 = vpop.f32.mrf.mxu0
  %v587 = vadd.f32 0.0, %v586
  %v588 = vpop.f32.mrf.mxu0
  %v589 = vpop.f32.mrf.mxu0
  %v590 = vadd.f32 0.0, %v589
  %v591 = vpop.f32.mrf.mxu0
  %592 = vmatprep.mubr.bf16.mxu0 0
  %593 = vmatmul.mubr.bf16.gmra.mxu0 %v346
  %v594 = vpop.f32.mrf.mxu0
  %v595 = vadd.f32 0.0, %v594
  %v596 = vpop.f32.mrf.mxu0
  %v597 = vpop.f32.mrf.mxu0
  %v598 = vadd.f32 0.0, %v597
  %v599 = vpop.f32.mrf.mxu0
  %600 = vmatprep.mubr.bf16.mxu0 0
  %601 = vmatmul.mubr.bf16.gmra.mxu0 %v349
  %v602 = vpop.f32.mrf.mxu0
  %v603 = vadd.f32 0.0, %v602
  %v604 = vpop.f32.mrf.mxu0
  %v605 = vpop.f32.mrf.mxu0
  %v606 = vadd.f32 0.0, %v605
  %v607 = vpop.f32.mrf.mxu0
  %608 = vmatprep.mubr.bf16.mxu0 0
  %609 = vmatmul.mubr.bf16.gmra.mxu0 %v352
  %v610 = vpop.f32.mrf.mxu0
  %v611 = vadd.f32 0.0, %v610
  %v612 = vpop.f32.mrf.mxu0
  %v613 = vpop.f32.mrf.mxu0
  %v614 = vadd.f32 0.0, %v613
  %v615 = vpop.f32.mrf.mxu0
  %616 = vmatprep.mubr.bf16.mxu0 0
  %617 = vmatmul.mubr.bf16.gmra.mxu0 %v355
  %v618 = vpop.f32.mrf.mxu0
  %v619 = vadd.f32 0.0, %v618
  %v620 = vpop.f32.mrf.mxu0
  %v621 = vpop.f32.mrf.mxu0
  %v622 = vadd.f32 0.0, %v621
  %v623 = vpop.f32.mrf.mxu0
  %624 = vmatprep.mubr.bf16.mxu0 0
  %625 = vmatmul.mubr.bf16.gmra.mxu0 %v358
  %v626 = vpop.f32.mrf.mxu0
  %v627 = vadd.f32 0.0, %v626
  %v628 = vpop.f32.mrf.mxu0
  %v629 = vpop.f32.mrf.mxu0
  %v630 = vadd.f32 0.0, %v629
  %v631 = vpop.f32.mrf.mxu0
  %632 = vmatprep.mubr.bf16.mxu0 0
  %633 = vmatmul.mubr.bf16.gmra.mxu0 %v361
  %v634 = vpop.f32.mrf.mxu0
  %v635 = vadd.f32 0.0, %v634
  %v636 = vpop.f32.mrf.mxu0
  %v637 = vpop.f32.mrf.mxu0
  %v638 = vadd.f32 0.0, %v637
  %v639 = vpop.f32.mrf.mxu0
  %640 = vmatprep.mubr.bf16.mxu0 0
  %641 = vmatmul.mubr.bf16.gmra.mxu0 %v364
  %v642 = vpop.f32.mrf.mxu0
  %v643 = vadd.f32 0.0, %v642
  %v644 = vpop.f32.mrf.mxu0
  %v645 = vpop.f32.mrf.mxu0
  %v646 = vadd.f32 0.0, %v645
  %v647 = vpop.f32.mrf.mxu0
  %648 = vmatprep.mubr.bf16.mxu0 0
  %649 = vmatmul.mubr.bf16.gmra.mxu0 %v367
  %v650 = vpop.f32.mrf.mxu0
  %v651 = vadd.f32 0.0, %v650
  %v652 = vpop.f32.mrf.mxu0
  %v653 = vpop.f32.mrf.mxu0
  %v654 = vadd.f32 0.0, %v653
  %v655 = vpop.f32.mrf.mxu0
  %656 = vmatprep.mubr.bf16.mxu0 0
  %657 = vmatmul.mubr.bf16.gmra.mxu0 %v370
  %v658 = vpop.f32.mrf.mxu0
  %v659 = vadd.f32 0.0, %v658
  %v660 = vpop.f32.mrf.mxu0
  %v661 = vpop.f32.mrf.mxu0
  %v662 = vadd.f32 0.0, %v661
  %v663 = vpop.f32.mrf.mxu0
  %664 = vdwg.mxu0
  %v665 = vpack.c.bf16 %v414, %v411
  %v666 = vpack.c.bf16 %v422, %v419
  %v667 = vpack.c.bf16 %v430, %v427
  %v668 = vpack.c.bf16 %v438, %v435
  %v669 = vpack.c.bf16 %v446, %v443
  %v670 = vpack.c.bf16 %v454, %v451
  %v671 = vpack.c.bf16 %v462, %v459
  %v672 = vpack.c.bf16 %v470, %v467
  %v673 = vpack.c.bf16 %v478, %v475
  %v674 = vpack.c.bf16 %v486, %v483
  %v675 = vpack.c.bf16 %v494, %v491
  %v676 = vpack.c.bf16 %v502, %v499
  %v677 = vpack.c.bf16 %v510, %v507
  %v678 = vpack.c.bf16 %v518, %v515
  %v679 = vpack.c.bf16 %v526, %v523
  %v680 = vpack.c.bf16 %v534, %v531
  %v681 = vpack.c.bf16 %v542, %v539
  %v682 = vpack.c.bf16 %v550, %v547
  %v683 = vpack.c.bf16 %v558, %v555
  %v684 = vpack.c.bf16 %v566, %v563
  %v685 = vpack.c.bf16 %v574, %v571
  %v686 = vpack.c.bf16 %v582, %v579
  %v687 = vpack.c.bf16 %v590, %v587
  %v688 = vpack.c.bf16 %v598, %v595
  %v689 = vpack.c.bf16 %v606, %v603
  %v690 = vpack.c.bf16 %v614, %v611
  %v691 = vpack.c.bf16 %v622, %v619
  %v692 = vpack.c.bf16 %v630, %v627
  %v693 = vpack.c.bf16 %v638, %v635
  %v694 = vpack.c.bf16 %v646, %v643
  %v695 = vpack.c.bf16 %v654, %v651
  %v696 = vpack.c.bf16 %v662, %v659
  %v729 = vunpack.c.l.b16 %v665
  %v730 = vunpack.c.h.b16 %v665
  %v731 = vunpack.c.l.b16 %v666
  %v732 = vunpack.c.h.b16 %v666
  %v733 = vunpack.c.l.b16 %v667
  %v734 = vunpack.c.h.b16 %v667
  %v735 = vunpack.c.l.b16 %v668
  %v736 = vunpack.c.h.b16 %v668
  %v737 = vunpack.c.l.b16 %v669
  %v738 = vunpack.c.h.b16 %v669
  %v739 = vunpack.c.l.b16 %v670
  %v740 = vunpack.c.h.b16 %v670
  %v741 = vunpack.c.l.b16 %v671
  %v742 = vunpack.c.h.b16 %v671
  %v743 = vunpack.c.l.b16 %v672
  %v744 = vunpack.c.h.b16 %v672
  %v745 = vunpack.c.l.b16 %v673
  %v746 = vunpack.c.h.b16 %v673
  %v747 = vunpack.c.l.b16 %v674
  %v748 = vunpack.c.h.b16 %v674
  %v749 = vunpack.c.l.b16 %v675
  %v750 = vunpack.c.h.b16 %v675
  %v751 = vunpack.c.l.b16 %v676
  %v752 = vunpack.c.h.b16 %v676
  %v753 = vunpack.c.l.b16 %v677
  %v754 = vunpack.c.h.b16 %v677
  %v755 = vunpack.c.l.b16 %v678
  %v756 = vunpack.c.h.b16 %v678
  %v757 = vunpack.c.l.b16 %v679
  %v758 = vunpack.c.h.b16 %v679
  %v759 = vunpack.c.l.b16 %v680
  %v760 = vunpack.c.h.b16 %v680
  %v761 = vunpack.c.l.b16 %v681
  %v762 = vunpack.c.h.b16 %v681
  %v763 = vunpack.c.l.b16 %v682
  %v764 = vunpack.c.h.b16 %v682
  %v765 = vunpack.c.l.b16 %v683
  %v766 = vunpack.c.h.b16 %v683
  %v767 = vunpack.c.l.b16 %v684
  %v768 = vunpack.c.h.b16 %v684
  %v769 = vunpack.c.l.b16 %v685
  %v770 = vunpack.c.h.b16 %v685
  %v771 = vunpack.c.l.b16 %v686
  %v772 = vunpack.c.h.b16 %v686
  %v773 = vunpack.c.l.b16 %v687
  %v774 = vunpack.c.h.b16 %v687
  %v775 = vunpack.c.l.b16 %v688
  %v776 = vunpack.c.h.b16 %v688
  %v777 = vunpack.c.l.b16 %v689
  %v778 = vunpack.c.h.b16 %v689
  %v779 = vunpack.c.l.b16 %v690
  %v780 = vunpack.c.h.b16 %v690
  %v781 = vunpack.c.l.b16 %v691
  %v782 = vunpack.c.h.b16 %v691
  %v783 = vunpack.c.l.b16 %v692
  %v784 = vunpack.c.h.b16 %v692
  %v785 = vunpack.c.l.b16 %v693
  %v786 = vunpack.c.h.b16 %v693
  %v787 = vunpack.c.l.b16 %v694
  %v788 = vunpack.c.h.b16 %v694
  %v789 = vunpack.c.l.b16 %v695
  %v790 = vunpack.c.h.b16 %v695
  %v791 = vunpack.c.l.b16 %v696
  %v792 = vunpack.c.h.b16 %v696
  %v793 = vpack.c.b16 %v729, %v729
  %v794 = vpack.c.b16 %v730, %v730
  %v795 = vpack.c.b16 %v731, %v731
  %v796 = vpack.c.b16 %v732, %v732
  %v797 = vpack.c.b16 %v733, %v733
  %v798 = vpack.c.b16 %v734, %v734
  %v799 = vpack.c.b16 %v735, %v735
  %v800 = vpack.c.b16 %v736, %v736
  %v801 = vpack.c.b16 %v737, %v737
  %v802 = vpack.c.b16 %v738, %v738
  %v803 = vpack.c.b16 %v739, %v739
  %v804 = vpack.c.b16 %v740, %v740
  %v805 = vpack.c.b16 %v741, %v741
  %v806 = vpack.c.b16 %v742, %v742
  %v807 = vpack.c.b16 %v743, %v743
  %v808 = vpack.c.b16 %v744, %v744
  %v809 = vpack.c.b16 %v745, %v745
  %v810 = vpack.c.b16 %v746, %v746
  %v811 = vpack.c.b16 %v747, %v747
  %v812 = vpack.c.b16 %v748, %v748
  %v813 = vpack.c.b16 %v749, %v749
  %v814 = vpack.c.b16 %v750, %v750
  %v815 = vpack.c.b16 %v751, %v751
  %v816 = vpack.c.b16 %v752, %v752
  %v817 = vpack.c.b16 %v753, %v753
  %v818 = vpack.c.b16 %v754, %v754
  %v819 = vpack.c.b16 %v755, %v755
  %v820 = vpack.c.b16 %v756, %v756
  %v821 = vpack.c.b16 %v757, %v757
  %v822 = vpack.c.b16 %v758, %v758
  %v823 = vpack.c.b16 %v759, %v759
  %v824 = vpack.c.b16 %v760, %v760
  %v825 = vpack.c.b16 %v761, %v761
  %v826 = vpack.c.b16 %v762, %v762
  %v827 = vpack.c.b16 %v763, %v763
  %v828 = vpack.c.b16 %v764, %v764
  %v829 = vpack.c.b16 %v765, %v765
  %v830 = vpack.c.b16 %v766, %v766
  %v831 = vpack.c.b16 %v767, %v767
  %v832 = vpack.c.b16 %v768, %v768
  %v833 = vpack.c.b16 %v769, %v769
  %v834 = vpack.c.b16 %v770, %v770
  %v835 = vpack.c.b16 %v771, %v771
  %v836 = vpack.c.b16 %v772, %v772
  %v837 = vpack.c.b16 %v773, %v773
  %v838 = vpack.c.b16 %v774, %v774
  %v839 = vpack.c.b16 %v775, %v775
  %v840 = vpack.c.b16 %v776, %v776
  %v841 = vpack.c.b16 %v777, %v777
  %v842 = vpack.c.b16 %v778, %v778
  %v843 = vpack.c.b16 %v779, %v779
  %v844 = vpack.c.b16 %v780, %v780
  %v845 = vpack.c.b16 %v781, %v781
  %v846 = vpack.c.b16 %v782, %v782
  %v847 = vpack.c.b16 %v783, %v783
  %v848 = vpack.c.b16 %v784, %v784
  %v849 = vpack.c.b16 %v785, %v785
  %v850 = vpack.c.b16 %v786, %v786
  %v851 = vpack.c.b16 %v787, %v787
  %v852 = vpack.c.b16 %v788, %v788
  %v853 = vpack.c.b16 %v789, %v789
  %v854 = vpack.c.b16 %v790, %v790
  %v855 = vpack.c.b16 %v791, %v791
  %v856 = vpack.c.b16 %v792, %v792
  %vm921 = vcmask 142336
  %922 = vst.msk [vmem:[%s2] sm:$0xf] %vm921, %v793
  %923 = vst.msk [vmem:[%s2 + $0x4] sm:$0xf] %vm921, %v794
  %924 = vst.msk [vmem:[%s2 + $0x8] sm:$0xf] %vm921, %v795
  %925 = vst.msk [vmem:[%s2 + $0xc] sm:$0xf] %vm921, %v796
  %926 = vst.msk [vmem:[%s2 + $0x10] sm:$0xf] %vm921, %v797
  %927 = vst.msk [vmem:[%s2 + $0x14] sm:$0xf] %vm921, %v798
  %928 = vst.msk [vmem:[%s2 + $0x18] sm:$0xf] %vm921, %v799
  %929 = vst.msk [vmem:[%s2 + $0x1c] sm:$0xf] %vm921, %v800
  %930 = vst.msk [vmem:[%s2 + $0x20] sm:$0xf] %vm921, %v801
  %931 = vst.msk [vmem:[%s2 + $0x24] sm:$0xf] %vm921, %v802
  %932 = vst.msk [vmem:[%s2 + $0x28] sm:$0xf] %vm921, %v803
  %933 = vst.msk [vmem:[%s2 + $0x2c] sm:$0xf] %vm921, %v804
  %934 = vst.msk [vmem:[%s2 + $0x30] sm:$0xf] %vm921, %v805
  %935 = vst.msk [vmem:[%s2 + $0x34] sm:$0xf] %vm921, %v806
  %936 = vst.msk [vmem:[%s2 + $0x38] sm:$0xf] %vm921, %v807
  %937 = vst.msk [vmem:[%s2 + $0x3c] sm:$0xf] %vm921, %v808
  %938 = vst.msk [vmem:[%s2 + $0x40] sm:$0xf] %vm921, %v809
  %939 = vst.msk [vmem:[%s2 + $0x44] sm:$0xf] %vm921, %v810
  %940 = vst.msk [vmem:[%s2 + $0x48] sm:$0xf] %vm921, %v811
  %941 = vst.msk [vmem:[%s2 + $0x4c] sm:$0xf] %vm921, %v812
  %942 = vst.msk [vmem:[%s2 + $0x50] sm:$0xf] %vm921, %v813
  %943 = vst.msk [vmem:[%s2 + $0x54] sm:$0xf] %vm921, %v814
  %944 = vst.msk [vmem:[%s2 + $0x58] sm:$0xf] %vm921, %v815
  %945 = vst.msk [vmem:[%s2 + $0x5c] sm:$0xf] %vm921, %v816
  %946 = vst.msk [vmem:[%s2 + $0x60] sm:$0xf] %vm921, %v817
  %947 = vst.msk [vmem:[%s2 + $0x64] sm:$0xf] %vm921, %v818
  %948 = vst.msk [vmem:[%s2 + $0x68] sm:$0xf] %vm921, %v819
  %949 = vst.msk [vmem:[%s2 + $0x6c] sm:$0xf] %vm921, %v820
  %950 = vst.msk [vmem:[%s2 + $0x70] sm:$0xf] %vm921, %v821
  %951 = vst.msk [vmem:[%s2 + $0x74] sm:$0xf] %vm921, %v822
  %952 = vst.msk [vmem:[%s2 + $0x78] sm:$0xf] %vm921, %v823
  %953 = vst.msk [vmem:[%s2 + $0x7c] sm:$0xf] %vm921, %v824
  %954 = vst.msk [vmem:[%s2 + $0x80] sm:$0xf] %vm921, %v825
  %955 = vst.msk [vmem:[%s2 + $0x84] sm:$0xf] %vm921, %v826
  %956 = vst.msk [vmem:[%s2 + $0x88] sm:$0xf] %vm921, %v827
  %957 = vst.msk [vmem:[%s2 + $0x8c] sm:$0xf] %vm921, %v828
  %958 = vst.msk [vmem:[%s2 + $0x90] sm:$0xf] %vm921, %v829
  %959 = vst.msk [vmem:[%s2 + $0x94] sm:$0xf] %vm921, %v830
  %960 = vst.msk [vmem:[%s2 + $0x98] sm:$0xf] %vm921, %v831
  %961 = vst.msk [vmem:[%s2 + $0x9c] sm:$0xf] %vm921, %v832
  %962 = vst.msk [vmem:[%s2 + $0xa0] sm:$0xf] %vm921, %v833
  %963 = vst.msk [vmem:[%s2 + $0xa4] sm:$0xf] %vm921, %v834
  %964 = vst.msk [vmem:[%s2 + $0xa8] sm:$0xf] %vm921, %v835
  %965 = vst.msk [vmem:[%s2 + $0xac] sm:$0xf] %vm921, %v836
  %966 = vst.msk [vmem:[%s2 + $0xb0] sm:$0xf] %vm921, %v837
  %967 = vst.msk [vmem:[%s2 + $0xb4] sm:$0xf] %vm921, %v838
  %968 = vst.msk [vmem:[%s2 + $0xb8] sm:$0xf] %vm921, %v839
  %969 = vst.msk [vmem:[%s2 + $0xbc] sm:$0xf] %vm921, %v840
  %970 = vst.msk [vmem:[%s2 + $0xc0] sm:$0xf] %vm921, %v841
  %971 = vst.msk [vmem:[%s2 + $0xc4] sm:$0xf] %vm921, %v842
  %972 = vst.msk [vmem:[%s2 + $0xc8] sm:$0xf] %vm921, %v843
  %973 = vst.msk [vmem:[%s2 + $0xcc] sm:$0xf] %vm921, %v844
  %974 = vst.msk [vmem:[%s2 + $0xd0] sm:$0xf] %vm921, %v845
  %975 = vst.msk [vmem:[%s2 + $0xd4] sm:$0xf] %vm921, %v846
  %976 = vst.msk [vmem:[%s2 + $0xd8] sm:$0xf] %vm921, %v847
  %977 = vst.msk [vmem:[%s2 + $0xdc] sm:$0xf] %vm921, %v848
  %978 = vst.msk [vmem:[%s2 + $0xe0] sm:$0xf] %vm921, %v849
  %979 = vst.msk [vmem:[%s2 + $0xe4] sm:$0xf] %vm921, %v850
  %980 = vst.msk [vmem:[%s2 + $0xe8] sm:$0xf] %vm921, %v851
  %981 = vst.msk [vmem:[%s2 + $0xec] sm:$0xf] %vm921, %v852
  %982 = vst.msk [vmem:[%s2 + $0xf0] sm:$0xf] %vm921, %v853
  %983 = vst.msk [vmem:[%s2 + $0xf4] sm:$0xf] %vm921, %v854
  %984 = vst.msk [vmem:[%s2 + $0xf8] sm:$0xf] %vm921, %v855
  %985 = vst.msk [vmem:[%s2 + $0xfc] sm:$0xf] %vm921, %v856
  %vm986 = vcmask 146432
  %v987 = vsel %vm986, %v411, 0.0
  %v988 = vsel %vm986, %v414, 0.0
  %v989 = vadd.f32 %v987, %v988
  %v990 = vsel %vm986, %v419, 0.0
  %v991 = vadd.f32 %v989, %v990
  %v992 = vsel %vm986, %v422, 0.0
  %v993 = vadd.f32 %v991, %v992
  %v994 = vsel %vm986, %v427, 0.0
  %v995 = vadd.f32 %v993, %v994
  %v996 = vsel %vm986, %v430, 0.0
  %v997 = vadd.f32 %v995, %v996
  %v998 = vsel %vm986, %v435, 0.0
  %v999 = vadd.f32 %v997, %v998
  %v1000 = vsel %vm986, %v438, 0.0
  %v1001 = vadd.f32 %v999, %v1000
  %v1002 = vsel %vm986, %v443, 0.0
  %v1003 = vadd.f32 %v1001, %v1002
  %v1004 = vsel %vm986, %v446, 0.0
  %v1005 = vadd.f32 %v1003, %v1004
  %v1006 = vsel %vm986, %v451, 0.0
  %v1007 = vadd.f32 %v1005, %v1006
  %v1008 = vsel %vm986, %v454, 0.0
  %v1009 = vadd.f32 %v1007, %v1008
  %v1010 = vsel %vm986, %v459, 0.0
  %v1011 = vadd.f32 %v1009, %v1010
  %v1012 = vsel %vm986, %v462, 0.0
  %v1013 = vadd.f32 %v1011, %v1012
  %v1014 = vsel %vm986, %v467, 0.0
  %v1015 = vadd.f32 %v1013, %v1014
  %v1016 = vsel %vm986, %v470, 0.0
  %v1017 = vadd.f32 %v1015, %v1016
  %v1018 = vsel %vm986, %v475, 0.0
  %v1019 = vadd.f32 %v1017, %v1018
  %v1020 = vsel %vm986, %v478, 0.0
  %v1021 = vadd.f32 %v1019, %v1020
  %v1022 = vsel %vm986, %v483, 0.0
  %v1023 = vadd.f32 %v1021, %v1022
  %v1024 = vsel %vm986, %v486, 0.0
  %v1025 = vadd.f32 %v1023, %v1024
  %v1026 = vsel %vm986, %v491, 0.0
  %v1027 = vadd.f32 %v1025, %v1026
  %v1028 = vsel %vm986, %v494, 0.0
  %v1029 = vadd.f32 %v1027, %v1028
  %v1030 = vsel %vm986, %v499, 0.0
  %v1031 = vadd.f32 %v1029, %v1030
  %v1032 = vsel %vm986, %v502, 0.0
  %v1033 = vadd.f32 %v1031, %v1032
  %v1034 = vsel %vm986, %v507, 0.0
  %v1035 = vadd.f32 %v1033, %v1034
  %v1036 = vsel %vm986, %v510, 0.0
  %v1037 = vadd.f32 %v1035, %v1036
  %v1038 = vsel %vm986, %v515, 0.0
  %v1039 = vadd.f32 %v1037, %v1038
  %v1040 = vsel %vm986, %v518, 0.0
  %v1041 = vadd.f32 %v1039, %v1040
  %v1042 = vsel %vm986, %v523, 0.0
  %v1043 = vadd.f32 %v1041, %v1042
  %v1044 = vsel %vm986, %v526, 0.0
  %v1045 = vadd.f32 %v1043, %v1044
  %v1046 = vsel %vm986, %v531, 0.0
  %v1047 = vadd.f32 %v1045, %v1046
  %v1048 = vsel %vm986, %v534, 0.0
  %v1049 = vadd.f32 %v1047, %v1048
  %v1050 = vsel %vm986, %v539, 0.0
  %v1051 = vadd.f32 %v1049, %v1050
  %v1052 = vsel %vm986, %v542, 0.0
  %v1053 = vadd.f32 %v1051, %v1052
  %v1054 = vsel %vm986, %v547, 0.0
  %v1055 = vadd.f32 %v1053, %v1054
  %v1056 = vsel %vm986, %v550, 0.0
  %v1057 = vadd.f32 %v1055, %v1056
  %v1058 = vsel %vm986, %v555, 0.0
  %v1059 = vadd.f32 %v1057, %v1058
  %v1060 = vsel %vm986, %v558, 0.0
  %v1061 = vadd.f32 %v1059, %v1060
  %v1062 = vsel %vm986, %v563, 0.0
  %v1063 = vadd.f32 %v1061, %v1062
  %v1064 = vsel %vm986, %v566, 0.0
  %v1065 = vadd.f32 %v1063, %v1064
  %v1066 = vsel %vm986, %v571, 0.0
  %v1067 = vadd.f32 %v1065, %v1066
  %v1068 = vsel %vm986, %v574, 0.0
  %v1069 = vadd.f32 %v1067, %v1068
  %v1070 = vsel %vm986, %v579, 0.0
  %v1071 = vadd.f32 %v1069, %v1070
  %v1072 = vsel %vm986, %v582, 0.0
  %v1073 = vadd.f32 %v1071, %v1072
  %v1074 = vsel %vm986, %v587, 0.0
  %v1075 = vadd.f32 %v1073, %v1074
  %v1076 = vsel %vm986, %v590, 0.0
  %v1077 = vadd.f32 %v1075, %v1076
  %v1078 = vsel %vm986, %v595, 0.0
  %v1079 = vadd.f32 %v1077, %v1078
  %v1080 = vsel %vm986, %v598, 0.0
  %v1081 = vadd.f32 %v1079, %v1080
  %v1082 = vsel %vm986, %v603, 0.0
  %v1083 = vadd.f32 %v1081, %v1082
  %v1084 = vsel %vm986, %v606, 0.0
  %v1085 = vadd.f32 %v1083, %v1084
  %v1086 = vsel %vm986, %v611, 0.0
  %v1087 = vadd.f32 %v1085, %v1086
  %v1088 = vsel %vm986, %v614, 0.0
  %v1089 = vadd.f32 %v1087, %v1088
  %v1090 = vsel %vm986, %v619, 0.0
  %v1091 = vadd.f32 %v1089, %v1090
  %v1092 = vsel %vm986, %v622, 0.0
  %v1093 = vadd.f32 %v1091, %v1092
  %v1094 = vsel %vm986, %v627, 0.0
  %v1095 = vadd.f32 %v1093, %v1094
  %v1096 = vsel %vm986, %v630, 0.0
  %v1097 = vadd.f32 %v1095, %v1096
  %v1098 = vsel %vm986, %v635, 0.0
  %v1099 = vadd.f32 %v1097, %v1098
  %v1100 = vsel %vm986, %v638, 0.0
  %v1101 = vadd.f32 %v1099, %v1100
  %v1102 = vsel %vm986, %v643, 0.0
  %v1103 = vadd.f32 %v1101, %v1102
  %v1104 = vsel %vm986, %v646, 0.0
  %v1105 = vadd.f32 %v1103, %v1104
  %v1106 = vsel %vm986, %v651, 0.0
  %v1107 = vadd.f32 %v1105, %v1106
  %v1108 = vsel %vm986, %v654, 0.0
  %v1109 = vadd.f32 %v1107, %v1108
  %v1110 = vsel %vm986, %v659, 0.0
  %v1111 = vadd.f32 %v1109, %v1110
  %v1112 = vsel %vm986, %v662, 0.0
  %v1113 = vadd.f32 %v1111, %v1112
  %v1114 = vrot.slane %v1113, 4
  %v1115 = vadd.f32 %v1113, %v1114
  %v1116 = vrot.slane %v1115, 2
  %v1117 = vadd.f32 %v1115, %v1116
  %v1118 = vrot.slane %v1117, 1
  %v1119 = vadd.f32 %v1117, %v1118
  %vm1120 = vcmask 139264
  %1121 = vst.msk [vmem:[%s3] sm:$0x1] %vm1120, %v1119
  %v1122 = vmul.f32 %v411, %v411
  %v1123 = vmul.f32 %v414, %v414
  %v1124 = vmul.f32 %v419, %v419
  %v1125 = vmul.f32 %v422, %v422
  %v1126 = vmul.f32 %v427, %v427
  %v1127 = vmul.f32 %v430, %v430
  %v1128 = vmul.f32 %v435, %v435
  %v1129 = vmul.f32 %v438, %v438
  %v1130 = vmul.f32 %v443, %v443
  %v1131 = vmul.f32 %v446, %v446
  %v1132 = vmul.f32 %v451, %v451
  %v1133 = vmul.f32 %v454, %v454
  %v1134 = vmul.f32 %v459, %v459
  %v1135 = vmul.f32 %v462, %v462
  %v1136 = vmul.f32 %v467, %v467
  %v1137 = vmul.f32 %v470, %v470
  %v1138 = vmul.f32 %v475, %v475
  %v1139 = vmul.f32 %v478, %v478
  %v1140 = vmul.f32 %v483, %v483
  %v1141 = vmul.f32 %v486, %v486
  %v1142 = vmul.f32 %v491, %v491
  %v1143 = vmul.f32 %v494, %v494
  %v1144 = vmul.f32 %v499, %v499
  %v1145 = vmul.f32 %v502, %v502
  %v1146 = vmul.f32 %v507, %v507
  %v1147 = vmul.f32 %v510, %v510
  %v1148 = vmul.f32 %v515, %v515
  %v1149 = vmul.f32 %v518, %v518
  %v1150 = vmul.f32 %v523, %v523
  %v1151 = vmul.f32 %v526, %v526
  %v1152 = vmul.f32 %v531, %v531
  %v1153 = vmul.f32 %v534, %v534
  %v1154 = vmul.f32 %v539, %v539
  %v1155 = vmul.f32 %v542, %v542
  %v1156 = vmul.f32 %v547, %v547
  %v1157 = vmul.f32 %v550, %v550
  %v1158 = vmul.f32 %v555, %v555
  %v1159 = vmul.f32 %v558, %v558
  %v1160 = vmul.f32 %v563, %v563
  %v1161 = vmul.f32 %v566, %v566
  %v1162 = vmul.f32 %v571, %v571
  %v1163 = vmul.f32 %v574, %v574
  %v1164 = vmul.f32 %v579, %v579
  %v1165 = vmul.f32 %v582, %v582
  %v1166 = vmul.f32 %v587, %v587
  %v1167 = vmul.f32 %v590, %v590
  %v1168 = vmul.f32 %v595, %v595
  %v1169 = vmul.f32 %v598, %v598
  %v1170 = vmul.f32 %v603, %v603
  %v1171 = vmul.f32 %v606, %v606
  %v1172 = vmul.f32 %v611, %v611
  %v1173 = vmul.f32 %v614, %v614
  %v1174 = vmul.f32 %v619, %v619
  %v1175 = vmul.f32 %v622, %v622
  %v1176 = vmul.f32 %v627, %v627
  %v1177 = vmul.f32 %v630, %v630
  %v1178 = vmul.f32 %v635, %v635
  %v1179 = vmul.f32 %v638, %v638
  %v1180 = vmul.f32 %v643, %v643
  %v1181 = vmul.f32 %v646, %v646
  %v1182 = vmul.f32 %v651, %v651
  %v1183 = vmul.f32 %v654, %v654
  %v1184 = vmul.f32 %v659, %v659
  %v1185 = vmul.f32 %v662, %v662
  %v1186 = vsel %vm986, %v1122, 0.0
  %v1187 = vsel %vm986, %v1123, 0.0
  %v1188 = vadd.f32 %v1186, %v1187
  %v1189 = vsel %vm986, %v1124, 0.0
  %v1190 = vadd.f32 %v1188, %v1189
  %v1191 = vsel %vm986, %v1125, 0.0
  %v1192 = vadd.f32 %v1190, %v1191
  %v1193 = vsel %vm986, %v1126, 0.0
  %v1194 = vadd.f32 %v1192, %v1193
  %v1195 = vsel %vm986, %v1127, 0.0
  %v1196 = vadd.f32 %v1194, %v1195
  %v1197 = vsel %vm986, %v1128, 0.0
  %v1198 = vadd.f32 %v1196, %v1197
  %v1199 = vsel %vm986, %v1129, 0.0
  %v1200 = vadd.f32 %v1198, %v1199
  %v1201 = vsel %vm986, %v1130, 0.0
  %v1202 = vadd.f32 %v1200, %v1201
  %v1203 = vsel %vm986, %v1131, 0.0
  %v1204 = vadd.f32 %v1202, %v1203
  %v1205 = vsel %vm986, %v1132, 0.0
  %v1206 = vadd.f32 %v1204, %v1205
  %v1207 = vsel %vm986, %v1133, 0.0
  %v1208 = vadd.f32 %v1206, %v1207
  %v1209 = vsel %vm986, %v1134, 0.0
  %v1210 = vadd.f32 %v1208, %v1209
  %v1211 = vsel %vm986, %v1135, 0.0
  %v1212 = vadd.f32 %v1210, %v1211
  %v1213 = vsel %vm986, %v1136, 0.0
  %v1214 = vadd.f32 %v1212, %v1213
  %v1215 = vsel %vm986, %v1137, 0.0
  %v1216 = vadd.f32 %v1214, %v1215
  %v1217 = vsel %vm986, %v1138, 0.0
  %v1218 = vadd.f32 %v1216, %v1217
  %v1219 = vsel %vm986, %v1139, 0.0
  %v1220 = vadd.f32 %v1218, %v1219
  %v1221 = vsel %vm986, %v1140, 0.0
  %v1222 = vadd.f32 %v1220, %v1221
  %v1223 = vsel %vm986, %v1141, 0.0
  %v1224 = vadd.f32 %v1222, %v1223
  %v1225 = vsel %vm986, %v1142, 0.0
  %v1226 = vadd.f32 %v1224, %v1225
  %v1227 = vsel %vm986, %v1143, 0.0
  %v1228 = vadd.f32 %v1226, %v1227
  %v1229 = vsel %vm986, %v1144, 0.0
  %v1230 = vadd.f32 %v1228, %v1229
  %v1231 = vsel %vm986, %v1145, 0.0
  %v1232 = vadd.f32 %v1230, %v1231
  %v1233 = vsel %vm986, %v1146, 0.0
  %v1234 = vadd.f32 %v1232, %v1233
  %v1235 = vsel %vm986, %v1147, 0.0
  %v1236 = vadd.f32 %v1234, %v1235
  %v1237 = vsel %vm986, %v1148, 0.0
  %v1238 = vadd.f32 %v1236, %v1237
  %v1239 = vsel %vm986, %v1149, 0.0
  %v1240 = vadd.f32 %v1238, %v1239
  %v1241 = vsel %vm986, %v1150, 0.0
  %v1242 = vadd.f32 %v1240, %v1241
  %v1243 = vsel %vm986, %v1151, 0.0
  %v1244 = vadd.f32 %v1242, %v1243
  %v1245 = vsel %vm986, %v1152, 0.0
  %v1246 = vadd.f32 %v1244, %v1245
  %v1247 = vsel %vm986, %v1153, 0.0
  %v1248 = vadd.f32 %v1246, %v1247
  %v1249 = vsel %vm986, %v1154, 0.0
  %v1250 = vadd.f32 %v1248, %v1249
  %v1251 = vsel %vm986, %v1155, 0.0
  %v1252 = vadd.f32 %v1250, %v1251
  %v1253 = vsel %vm986, %v1156, 0.0
  %v1254 = vadd.f32 %v1252, %v1253
  %v1255 = vsel %vm986, %v1157, 0.0
  %v1256 = vadd.f32 %v1254, %v1255
  %v1257 = vsel %vm986, %v1158, 0.0
  %v1258 = vadd.f32 %v1256, %v1257
  %v1259 = vsel %vm986, %v1159, 0.0
  %v1260 = vadd.f32 %v1258, %v1259
  %v1261 = vsel %vm986, %v1160, 0.0
  %v1262 = vadd.f32 %v1260, %v1261
  %v1263 = vsel %vm986, %v1161, 0.0
  %v1264 = vadd.f32 %v1262, %v1263
  %v1265 = vsel %vm986, %v1162, 0.0
  %v1266 = vadd.f32 %v1264, %v1265
  %v1267 = vsel %vm986, %v1163, 0.0
  %v1268 = vadd.f32 %v1266, %v1267
  %v1269 = vsel %vm986, %v1164, 0.0
  %v1270 = vadd.f32 %v1268, %v1269
  %v1271 = vsel %vm986, %v1165, 0.0
  %v1272 = vadd.f32 %v1270, %v1271
  %v1273 = vsel %vm986, %v1166, 0.0
  %v1274 = vadd.f32 %v1272, %v1273
  %v1275 = vsel %vm986, %v1167, 0.0
  %v1276 = vadd.f32 %v1274, %v1275
  %v1277 = vsel %vm986, %v1168, 0.0
  %v1278 = vadd.f32 %v1276, %v1277
  %v1279 = vsel %vm986, %v1169, 0.0
  %v1280 = vadd.f32 %v1278, %v1279
  %v1281 = vsel %vm986, %v1170, 0.0
  %v1282 = vadd.f32 %v1280, %v1281
  %v1283 = vsel %vm986, %v1171, 0.0
  %v1284 = vadd.f32 %v1282, %v1283
  %v1285 = vsel %vm986, %v1172, 0.0
  %v1286 = vadd.f32 %v1284, %v1285
  %v1287 = vsel %vm986, %v1173, 0.0
  %v1288 = vadd.f32 %v1286, %v1287
  %v1289 = vsel %vm986, %v1174, 0.0
  %v1290 = vadd.f32 %v1288, %v1289
  %v1291 = vsel %vm986, %v1175, 0.0
  %v1292 = vadd.f32 %v1290, %v1291
  %v1293 = vsel %vm986, %v1176, 0.0
  %v1294 = vadd.f32 %v1292, %v1293
  %v1295 = vsel %vm986, %v1177, 0.0
  %v1296 = vadd.f32 %v1294, %v1295
  %v1297 = vsel %vm986, %v1178, 0.0
  %v1298 = vadd.f32 %v1296, %v1297
  %v1299 = vsel %vm986, %v1179, 0.0
  %v1300 = vadd.f32 %v1298, %v1299
  %v1301 = vsel %vm986, %v1180, 0.0
  %v1302 = vadd.f32 %v1300, %v1301
  %v1303 = vsel %vm986, %v1181, 0.0
  %v1304 = vadd.f32 %v1302, %v1303
  %v1305 = vsel %vm986, %v1182, 0.0
  %v1306 = vadd.f32 %v1304, %v1305
  %v1307 = vsel %vm986, %v1183, 0.0
  %v1308 = vadd.f32 %v1306, %v1307
  %v1309 = vsel %vm986, %v1184, 0.0
  %v1310 = vadd.f32 %v1308, %v1309
  %v1311 = vsel %vm986, %v1185, 0.0
  %v1312 = vadd.f32 %v1310, %v1311
  %v1313 = vrot.slane %v1312, 4
  %v1314 = vadd.f32 %v1312, %v1313
  %v1315 = vrot.slane %v1314, 2
  %v1316 = vadd.f32 %v1314, %v1315
  %v1317 = vrot.slane %v1316, 1
  %v1318 = vadd.f32 %v1316, %v1317
  %1319 = vst.msk [vmem:[%s4] sm:$0x1] %vm1120, %v1318
  // Predicated region
  $region10: #{res_layer_forward.19} parent=0 // pred_check
    _
  $region11: #{res_layer_forward.19} parent=0 // pred_check_branch
    %1321 = sbr.rel (0) target = $region13
  $region12: #{res_layer_forward.19} parent=0 // pred_region
    _
  $region13: #{res_layer_forward.19} parent=0 // pred_fallthru
    _
  // Predicated region
  $region14: #{res_layer_forward.19} parent=0 // pred_check
    _
  $region15: #{res_layer_forward.19} parent=0 // pred_check_branch
    %1323 = sbr.rel (0) target = $region17
  $region16: #{res_layer_forward.19} parent=0 // pred_region
    _
  $region17: #{res_layer_forward.19} parent=0 // pred_fallthru
    _
  // Predicated region
  $region18: #{res_layer_forward.19} parent=0 // pred_check
    _
  $region19: #{res_layer_forward.19} parent=0 // pred_check_branch
    %1325 = sbr.rel (0) target = $region21
  $region20: #{res_layer_forward.19} parent=0 // pred_region
    _
  $region21: #{res_layer_forward.19} parent=0 // pred_fallthru
    _
  // Predicated region
  $region22: #{res_layer_forward.19} parent=0 // pred_check
    _
  $region23: #{res_layer_forward.19} parent=0 // pred_check_branch
    %1327 = sbr.rel (0) target = $region25
  $region24: #{res_layer_forward.19} parent=0 // pred_region
    _
  $region25: #{res_layer_forward.19} parent=0 // pred_fallthru
    _
  // Predicated region
  $region26: #{res_layer_forward.19} parent=0 // pred_check
    _
  $region27: #{res_layer_forward.19} parent=0 // pred_check_branch
    %1329 = sbr.rel (0) target = $region29
  $region28: #{res_layer_forward.19} parent=0 // pred_region
    _
  $region29: #{res_layer_forward.19} parent=0 // pred_fallthru
    _
  // Predicated region
  $region30: #{res_layer_forward.19} parent=0 // pred_check
    _
  $region31: #{res_layer_forward.19} parent=0 // pred_check_branch
    %1331 = sbr.rel (0) target = $region33
  $region32: #{res_layer_forward.19} parent=0 // pred_region
    _
  $region33: #{res_layer_forward.19} parent=0 // pred_fallthru
    _

</llo_original>
